<compile_context>
chip_gen: v7x
topology: tpu7x:2x2x1
jax: 0.10.0
libtpu: 0.0.40
codegen_flags: <defaults>
</compile_context>

<pallas_src>
import jax
import jax.numpy as jnp
import numpy as np
from jax import lax
from jax.experimental import pallas as pl
from jax.experimental.pallas import tpu as pltpu

NEG = -1.0e30  # plain Python float (NOT a jnp array -> avoids captured-constant error);
               # stands in for -inf: only ever fed through exp (underflows to 0) / max.


# ----------------------------------------------------------------------------- kernel
def decoder_kernel(h0_ref, c0_ref,
                   w_emb_ref, b_emb_ref,
                   w_cat_ref, b_lstm_ref,
                   w_out_ref, b_out_ref,
                   paths_ref, logp_ref):
    B, H = h0_ref.shape
    A = w_out_ref.shape[1]
    S = paths_ref.shape[1]

    w_emb = w_emb_ref[...]      # (1, H)    embedding.weight.T
    b_emb = b_emb_ref[...]      # (1, H)
    w_cat = w_cat_ref[...]      # (2H, 4H)  [weight_ih.T ; weight_hh.T], gate order i,f,g,o
    b_lstm = b_lstm_ref[...]    # (1, 4H)   b_ih + b_hh
    w_out = w_out_ref[...]      # (H, A)    out.weight.T
    b_out = b_out_ref[...]      # (1, A)

    ids_a = lax.broadcasted_iota(jnp.int32, (B, A), 1)
    hp = lax.Precision.HIGHEST

    h = h0_ref[...]
    c = c0_ref[...]
    inp = jnp.ones((B, 1), jnp.float32)          # decoder_input = ones(B, 1)
    mask = jnp.zeros((B, A), jnp.float32)        # accumulated chosen-index mask

    for i in range(S):   # fully unrolled: S is small and static
        # embedding (Linear(1, H)) + ReLU
        emb = jnp.maximum(inp * w_emb + b_emb, 0.0)                       # (B, H)

        # single LSTM cell step with ONE fused matmul over concat([emb, h])
        xh = jnp.concatenate([emb, h], axis=-1)                           # (B, 2H)
        gates = jnp.dot(xh, w_cat, precision=hp,
                        preferred_element_type=jnp.float32) + b_lstm      # (B, 4H)
        sig = jax.nn.sigmoid(gates)   # one full-vreg EUP push
        th = jnp.tanh(gates)          # one full-vreg EUP push
        i_g = sig[:, 0:H]
        f_g = sig[:, H:2 * H]
        g_g = th[:, 2 * H:3 * H]
        o_g = sig[:, 3 * H:4 * H]
        c = f_g * c + i_g * g_g
        h = o_g * jnp.tanh(c)

        # output head -> logits
        logits = jnp.dot(h, w_out, precision=hp,
                         preferred_element_type=jnp.float32) + b_out      # (B, A)

        # next decoder input = first argmax of the UNMASKED logits (torch topk(1))
        m_u = jnp.max(logits, axis=-1, keepdims=True)
        inp = jnp.min(jnp.where(logits == m_u, ids_a, A),
                      axis=-1, keepdims=True).astype(jnp.float32)         # (B, 1)

        # masking: step 0 forced (index 0 = 1, rest -inf); later steps set previously
        # chosen indices to -inf (same masked logits feed the log-softmax, as in torch).
        if i == 0:
            masked = jnp.where(ids_a == 0, 1.0, NEG)                      # (B, A)
        else:
            masked = jnp.where(mask > 0.5, NEG, logits)                   # (B, A)

        m = jnp.max(masked, axis=-1, keepdims=True)                       # shared row max
        chosen = jnp.min(jnp.where(masked == m, ids_a, A),
                         axis=-1, keepdims=True)                          # (B, 1) int32
        # chosen logit == row max m exactly, so the log-softmax gather reduces to:
        logp = -jnp.log(jnp.sum(jnp.exp(masked - m), axis=-1, keepdims=True))  # (B, 1)

        # direct per-step stores (static lane slice), no carried accumulators
        paths_ref[:, i:i + 1] = chosen.astype(jnp.float32)
        logp_ref[:, i:i + 1] = logp

        if i + 1 < S:
            mask = jnp.maximum(mask, (ids_a == chosen).astype(jnp.float32))


# ---------------------------------------------------------------------------- wrapper
def decoder_forward(encoder_output, encoder_hidden, params):
    """Mirrors Decoder.forward.  encoder_output: (B, S, H) (only its shape is used),
    encoder_hidden: (h0, c0) each (1, B, H).  Returns (paths (B,1,S), path_logp (B,S,1))."""
    B, S, _ = encoder_output.shape
    h0 = encoder_hidden[0][0].astype(jnp.float32)   # (B, H)
    c0 = encoder_hidden[1][0].astype(jnp.float32)   # (B, H)

    # fuse the two LSTM input projections: gates = [emb, h] @ [w_ih ; w_hh] + b
    w_cat = jnp.concatenate([params["w_ih"], params["w_hh"]], axis=0)     # (2H, 4H)

    vmem = pl.BlockSpec(memory_space=pltpu.MemorySpace.VMEM)
    out_shape = (jax.ShapeDtypeStruct((B, S), jnp.float32),
                 jax.ShapeDtypeStruct((B, S), jnp.float32))
    paths, logp = pl.pallas_call(
        decoder_kernel,
        out_shape=out_shape,
        in_specs=[vmem] * 8,
        out_specs=(vmem, vmem),
    )(h0, c0,
      params["w_emb"], params["b_emb"],
      w_cat, params["b_lstm"],
      params["w_out"], params["b_out"])

    return paths.reshape(B, 1, S), logp.reshape(B, S, 1)


# ------------------------------------------------------------------- pure-JAX reference
def decoder_reference(encoder_output, encoder_hidden, params):
    B, S, _ = encoder_output.shape
    H = params["w_emb"].shape[1]
    A = params["w_out"].shape[1]
    hp = lax.Precision.HIGHEST
    h = encoder_hidden[0][0].astype(jnp.float32)
    c = encoder_hidden[1][0].astype(jnp.float32)
    inp = jnp.ones((B, 1), jnp.float32)
    mask = jnp.zeros((B, A), jnp.float32)
    prev_chosen = None
    ids = jnp.arange(A)[None, :]
    paths, logps = [], []
    for i in range(S):
        emb = jnp.maximum(inp * params["w_emb"] + params["b_emb"], 0.0)
        gates = (jnp.dot(emb, params["w_ih"], precision=hp)
                 + jnp.dot(h, params["w_hh"], precision=hp) + params["b_lstm"])
        ig = jax.nn.sigmoid(gates[:, :H]); fg = jax.nn.sigmoid(gates[:, H:2 * H])
        gg = jnp.tanh(gates[:, 2 * H:3 * H]); og = jax.nn.sigmoid(gates[:, 3 * H:])
        c = fg * c + ig * gg
        h = og * jnp.tanh(c)
        logits = jnp.dot(h, params["w_out"], precision=hp) + params["b_out"]
        inp = jnp.argmax(logits, axis=-1, keepdims=True).astype(jnp.float32)
        if i == 0:
            masked = jnp.broadcast_to(jnp.where(ids == 0, 1.0, -jnp.inf), (B, A))
        else:
            mask = jnp.maximum(mask, (ids == prev_chosen).astype(jnp.float32))
            masked = jnp.where(mask > 0.5, -jnp.inf, logits)
        chosen = jnp.argmax(masked, axis=-1, keepdims=True)
        lp = jax.nn.log_softmax(masked, axis=-1)
        logps.append(jnp.take_along_axis(lp, chosen, axis=-1))
        paths.append(chosen.astype(jnp.float32))
        prev_chosen = chosen
    return (jnp.concatenate(paths, 1).reshape(B, 1, S),
            jnp.concatenate(logps, 1).reshape(B, S, 1))


# --------------------------------------------------------------------------------- main
if __name__ == "__main__":
    B, S, H = 2, 8, 32
    A = S  # n_action must equal seq_len (implied by the boolean-mask indexing in PyTorch code)

    key = jax.random.PRNGKey(0)
    ks = jax.random.split(key, 12)

    # Deterministic synthetic parameters (stored pre-transposed for row-major matmuls).
    params = {
        "w_emb":  0.5 * jax.random.normal(ks[0], (1, H), jnp.float32),      # embedding.weight.T
        "b_emb":  0.5 * jax.random.normal(ks[1], (1, H), jnp.float32),
        "w_ih":   0.5 * jax.random.normal(ks[2], (H, 4 * H), jnp.float32),  # LSTM weight_ih.T
        "w_hh":   0.5 * jax.random.normal(ks[3], (H, 4 * H), jnp.float32),  # LSTM weight_hh.T
        "b_lstm": 0.5 * jax.random.normal(ks[4], (1, 4 * H), jnp.float32),  # b_ih + b_hh
        "w_out":  0.5 * jax.random.normal(ks[5], (H, A), jnp.float32),      # out.weight.T
        "b_out":  0.5 * jax.random.normal(ks[6], (1, A), jnp.float32),
    }

    encoder_output = jax.random.normal(ks[7], (B, S, H), jnp.float32)  # only shape is used
    encoder_hidden = (0.5 * jax.random.normal(ks[8], (1, B, H), jnp.float32),
                      0.5 * jax.random.normal(ks[9], (1, B, H), jnp.float32))

    paths, path_logp = decoder_forward(encoder_output, encoder_hidden, params)
    jax.block_until_ready((paths, path_logp))

    ref_paths, ref_logp = decoder_reference(encoder_output, encoder_hidden, params)
    assert paths.shape == (B, 1, S) and path_logp.shape == (B, S, 1)
    np.testing.assert_array_equal(np.asarray(paths), np.asarray(ref_paths))
    np.testing.assert_allclose(np.asarray(path_logp), np.asarray(ref_logp),
                               rtol=1e-3, atol=1e-3)
    print("KERNEL_OK")
</pallas_src>

<mosaic_0001>
module attributes {stable_mosaic.version = 11 : i64} {
  func.func @decoder_kernel(%arg0: memref<2x32xf32, #tpu.memory_space<vmem>>, %arg1: memref<2x32xf32, #tpu.memory_space<vmem>>, %arg2: memref<1x32xf32, #tpu.memory_space<vmem>>, %arg3: memref<1x32xf32, #tpu.memory_space<vmem>>, %arg4: memref<64x128xf32, #tpu.memory_space<vmem>>, %arg5: memref<1x128xf32, #tpu.memory_space<vmem>>, %arg6: memref<32x8xf32, #tpu.memory_space<vmem>>, %arg7: memref<1x8xf32, #tpu.memory_space<vmem>>, %arg8: memref<2x8xf32, #tpu.memory_space<vmem>>, %arg9: memref<2x8xf32, #tpu.memory_space<vmem>>) attributes {dimension_semantics = [], scalar_prefetch = 0 : i64, scratch_operands = 0 : i64, tpu.core_type = #tpu.core_type<tc>} {
    %c0 = arith.constant 0 : index
    %c0_0 = arith.constant 0 : index
    %0 = vector.load %arg2[%c0, %c0_0] : memref<1x32xf32, #tpu.memory_space<vmem>>, vector<1x32xf32>
    %c0_1 = arith.constant 0 : index
    %c0_2 = arith.constant 0 : index
    %1 = vector.load %arg3[%c0_1, %c0_2] : memref<1x32xf32, #tpu.memory_space<vmem>>, vector<1x32xf32>
    %c0_3 = arith.constant 0 : index
    %c0_4 = arith.constant 0 : index
    %2 = vector.load %arg4[%c0_3, %c0_4] : memref<64x128xf32, #tpu.memory_space<vmem>>, vector<64x128xf32>
    %c0_5 = arith.constant 0 : index
    %c0_6 = arith.constant 0 : index
    %3 = vector.load %arg5[%c0_5, %c0_6] : memref<1x128xf32, #tpu.memory_space<vmem>>, vector<1x128xf32>
    %c0_7 = arith.constant 0 : index
    %c0_8 = arith.constant 0 : index
    %4 = vector.load %arg6[%c0_7, %c0_8] : memref<32x8xf32, #tpu.memory_space<vmem>>, vector<32x8xf32>
    %c0_9 = arith.constant 0 : index
    %c0_10 = arith.constant 0 : index
    %5 = vector.load %arg7[%c0_9, %c0_10] : memref<1x8xf32, #tpu.memory_space<vmem>>, vector<1x8xf32>
    %6 = tpu.iota {dimensions = array<i32: 1>} : vector<2x8xi32>
    %c0_11 = arith.constant 0 : index
    %c0_12 = arith.constant 0 : index
    %7 = vector.load %arg0[%c0_11, %c0_12] : memref<2x32xf32, #tpu.memory_space<vmem>>, vector<2x32xf32>
    %c0_13 = arith.constant 0 : index
    %c0_14 = arith.constant 0 : index
    %8 = vector.load %arg1[%c0_13, %c0_14] : memref<2x32xf32, #tpu.memory_space<vmem>>, vector<2x32xf32>
    %cst = arith.constant 1.000000e+00 : f32
    %9 = vector.broadcast %cst : f32 to vector<2x1xf32>
    %cst_15 = arith.constant 0.000000e+00 : f32
    %10 = vector.broadcast %cst_15 : f32 to vector<2x8xf32>
    %11 = vector.broadcast %9 : vector<2x1xf32> to vector<2x32xf32>
    %12 = vector.broadcast %0 : vector<1x32xf32> to vector<2x32xf32>
    %13 = arith.mulf %11, %12 : vector<2x32xf32>
    %14 = vector.broadcast %1 : vector<1x32xf32> to vector<2x32xf32>
    %15 = arith.addf %13, %14 : vector<2x32xf32>
    %cst_16 = arith.constant 0.000000e+00 : f32
    %16 = vector.broadcast %cst_16 : f32 to vector<2x32xf32>
    %17 = arith.maximumf %15, %16 : vector<2x32xf32>
    %18 = tpu.concatenate %17, %7 in 1 : vector<2x32xf32>, vector<2x32xf32> -> vector<2x64xf32>
    %cst_17 = arith.constant dense<0.000000e+00> : vector<2x128xf32>
    %19 = tpu.matmul %18, %2, %cst_17 {dimension_numbers = #tpu.dot_dimension_numbers<[1], [0], [0], [1], [0, 0, 1, 1], [], []>, precision = #tpu.contract_precision<fp32>} : vector<2x64xf32>, vector<64x128xf32>, vector<2x128xf32> -> vector<2x128xf32>
    %20 = vector.broadcast %3 : vector<1x128xf32> to vector<2x128xf32>
    %21 = arith.addf %19, %20 : vector<2x128xf32>
    %22 = arith.negf %21 : vector<2x128xf32>
    %23 = math.exp %22 : vector<2x128xf32>
    %cst_18 = arith.constant 1.000000e+00 : f32
    %24 = vector.broadcast %cst_18 : f32 to vector<2x128xf32>
    %25 = arith.addf %24, %23 : vector<2x128xf32>
    %26 = arith.divf %24, %25 : vector<2x128xf32>
    %27 = math.tanh %21 : vector<2x128xf32>
    %28 = vector.extract_strided_slice %26 {offsets = [0, 0], sizes = [2, 32], strides = [1, 1]} : vector<2x128xf32> to vector<2x32xf32>
    %29 = vector.extract_strided_slice %26 {offsets = [0, 32], sizes = [2, 32], strides = [1, 1]} : vector<2x128xf32> to vector<2x32xf32>
    %30 = vector.extract_strided_slice %27 {offsets = [0, 64], sizes = [2, 32], strides = [1, 1]} : vector<2x128xf32> to vector<2x32xf32>
    %31 = vector.extract_strided_slice %26 {offsets = [0, 96], sizes = [2, 32], strides = [1, 1]} : vector<2x128xf32> to vector<2x32xf32>
    %32 = arith.mulf %29, %8 : vector<2x32xf32>
    %33 = arith.mulf %28, %30 : vector<2x32xf32>
    %34 = arith.addf %32, %33 : vector<2x32xf32>
    %35 = math.tanh %34 : vector<2x32xf32>
    %36 = arith.mulf %31, %35 : vector<2x32xf32>
    %cst_19 = arith.constant dense<0.000000e+00> : vector<2x8xf32>
    %37 = tpu.matmul %36, %4, %cst_19 {dimension_numbers = #tpu.dot_dimension_numbers<[1], [0], [0], [1], [0, 0, 1, 1], [], []>, precision = #tpu.contract_precision<fp32>} : vector<2x32xf32>, vector<32x8xf32>, vector<2x8xf32> -> vector<2x8xf32>
    %38 = vector.broadcast %5 : vector<1x8xf32> to vector<2x8xf32>
    %39 = arith.addf %37, %38 : vector<2x8xf32>
    %cst_20 = arith.constant dense<0xFF800000> : vector<2xf32>
    %40 = vector.multi_reduction <maximumf>, %39, %cst_20 [1] : vector<2x8xf32> to vector<2xf32>
    %41 = vector.shape_cast %40 : vector<2xf32> to vector<2x1xf32>
    %42 = vector.broadcast %41 : vector<2x1xf32> to vector<2x8xf32>
    %43 = arith.cmpf oeq, %39, %42 : vector<2x8xf32>
    %c8_i32 = arith.constant 8 : i32
    %44 = vector.broadcast %c8_i32 : i32 to vector<2x8xi32>
    %45 = arith.select %43, %6, %44 : vector<2x8xi1>, vector<2x8xi32>
    %cst_21 = arith.constant dense<2147483647> : vector<2xi32>
    %46 = vector.multi_reduction <minsi>, %45, %cst_21 [1] : vector<2x8xi32> to vector<2xi32>
    %47 = vector.shape_cast %46 : vector<2xi32> to vector<2x1xi32>
    %48 = arith.sitofp %47 : vector<2x1xi32> to vector<2x1xf32>
    %c0_i32 = arith.constant 0 : i32
    %49 = vector.broadcast %c0_i32 : i32 to vector<2x8xi32>
    %50 = arith.cmpi eq, %6, %49 : vector<2x8xi32>
    %cst_22 = arith.constant 1.000000e+00 : f32
    %cst_23 = arith.constant -1.000000e+30 : f32
    %51 = vector.broadcast %cst_22 : f32 to vector<2x8xf32>
    %52 = vector.broadcast %cst_23 : f32 to vector<2x8xf32>
    %53 = arith.select %50, %51, %52 : vector<2x8xi1>, vector<2x8xf32>
    %cst_24 = arith.constant dense<0xFF800000> : vector<2xf32>
    %54 = vector.multi_reduction <maximumf>, %53, %cst_24 [1] : vector<2x8xf32> to vector<2xf32>
    %55 = vector.shape_cast %54 : vector<2xf32> to vector<2x1xf32>
    %56 = vector.broadcast %55 : vector<2x1xf32> to vector<2x8xf32>
    %57 = arith.cmpf oeq, %53, %56 : vector<2x8xf32>
    %c8_i32_25 = arith.constant 8 : i32
    %58 = vector.broadcast %c8_i32_25 : i32 to vector<2x8xi32>
    %59 = arith.select %57, %6, %58 : vector<2x8xi1>, vector<2x8xi32>
    %cst_26 = arith.constant dense<2147483647> : vector<2xi32>
    %60 = vector.multi_reduction <minsi>, %59, %cst_26 [1] : vector<2x8xi32> to vector<2xi32>
    %61 = vector.shape_cast %60 : vector<2xi32> to vector<2x1xi32>
    %62 = vector.broadcast %55 : vector<2x1xf32> to vector<2x8xf32>
    %63 = arith.subf %53, %62 : vector<2x8xf32>
    %64 = math.exp %63 : vector<2x8xf32>
    %cst_27 = arith.constant dense<0.000000e+00> : vector<2xf32>
    %65 = vector.multi_reduction <add>, %64, %cst_27 [1] : vector<2x8xf32> to vector<2xf32>
    %66 = vector.shape_cast %65 : vector<2xf32> to vector<2x1xf32>
    %67 = math.log %66 : vector<2x1xf32>
    %cst_28 = arith.constant 0.000000e+00 : f32
    %68 = vector.broadcast %cst_28 : f32 to vector<2x1xf32>
    %69 = arith.subf %68, %67 : vector<2x1xf32>
    %70 = arith.sitofp %61 : vector<2x1xi32> to vector<2x1xf32>
    %c0_29 = arith.constant 0 : index
    %c0_30 = arith.constant 0 : index
    %71 = vector.load %arg8[%c0_29, %c0_30] : memref<2x8xf32, #tpu.memory_space<vmem>>, vector<2x1xf32>
    tpu.vector_store %arg8[%c0_29, %c0_30], %70 {strides = array<i32>} : memref<2x8xf32, #tpu.memory_space<vmem>>, vector<2x1xf32>,
    %c0_31 = arith.constant 0 : index
    %c0_32 = arith.constant 0 : index
    %72 = vector.load %arg9[%c0_31, %c0_32] : memref<2x8xf32, #tpu.memory_space<vmem>>, vector<2x1xf32>
    tpu.vector_store %arg9[%c0_31, %c0_32], %69 {strides = array<i32>} : memref<2x8xf32, #tpu.memory_space<vmem>>, vector<2x1xf32>,
    %73 = vector.broadcast %61 : vector<2x1xi32> to vector<2x8xi32>
    %74 = arith.cmpi eq, %6, %73 : vector<2x8xi32>
    %75 = arith.extui %74 : vector<2x8xi1> to vector<2x8xi32>
    %76 = arith.sitofp %75 : vector<2x8xi32> to vector<2x8xf32>
    %77 = arith.maximumf %10, %76 : vector<2x8xf32>
    %78 = vector.broadcast %48 : vector<2x1xf32> to vector<2x32xf32>
    %79 = vector.broadcast %0 : vector<1x32xf32> to vector<2x32xf32>
    %80 = arith.mulf %78, %79 : vector<2x32xf32>
    %81 = vector.broadcast %1 : vector<1x32xf32> to vector<2x32xf32>
    %82 = arith.addf %80, %81 : vector<2x32xf32>
    %cst_33 = arith.constant 0.000000e+00 : f32
    %83 = vector.broadcast %cst_33 : f32 to vector<2x32xf32>
    %84 = arith.maximumf %82, %83 : vector<2x32xf32>
    %85 = tpu.concatenate %84, %36 in 1 : vector<2x32xf32>, vector<2x32xf32> -> vector<2x64xf32>
    %cst_34 = arith.constant dense<0.000000e+00> : vector<2x128xf32>
    %86 = tpu.matmul %85, %2, %cst_34 {dimension_numbers = #tpu.dot_dimension_numbers<[1], [0], [0], [1], [0, 0, 1, 1], [], []>, precision = #tpu.contract_precision<fp32>} : vector<2x64xf32>, vector<64x128xf32>, vector<2x128xf32> -> vector<2x128xf32>
    %87 = vector.broadcast %3 : vector<1x128xf32> to vector<2x128xf32>
    %88 = arith.addf %86, %87 : vector<2x128xf32>
    %89 = arith.negf %88 : vector<2x128xf32>
    %90 = math.exp %89 : vector<2x128xf32>
    %cst_35 = arith.constant 1.000000e+00 : f32
    %91 = vector.broadcast %cst_35 : f32 to vector<2x128xf32>
    %92 = arith.addf %91, %90 : vector<2x128xf32>
    %93 = arith.divf %91, %92 : vector<2x128xf32>
    %94 = math.tanh %88 : vector<2x128xf32>
    %95 = vector.extract_strided_slice %93 {offsets = [0, 0], sizes = [2, 32], strides = [1, 1]} : vector<2x128xf32> to vector<2x32xf32>
    %96 = vector.extract_strided_slice %93 {offsets = [0, 32], sizes = [2, 32], strides = [1, 1]} : vector<2x128xf32> to vector<2x32xf32>
    %97 = vector.extract_strided_slice %94 {offsets = [0, 64], sizes = [2, 32], strides = [1, 1]} : vector<2x128xf32> to vector<2x32xf32>
    %98 = vector.extract_strided_slice %93 {offsets = [0, 96], sizes = [2, 32], strides = [1, 1]} : vector<2x128xf32> to vector<2x32xf32>
    %99 = arith.mulf %96, %34 : vector<2x32xf32>
    %100 = arith.mulf %95, %97 : vector<2x32xf32>
    %101 = arith.addf %99, %100 : vector<2x32xf32>
    %102 = math.tanh %101 : vector<2x32xf32>
    %103 = arith.mulf %98, %102 : vector<2x32xf32>
    %cst_36 = arith.constant dense<0.000000e+00> : vector<2x8xf32>
    %104 = tpu.matmul %103, %4, %cst_36 {dimension_numbers = #tpu.dot_dimension_numbers<[1], [0], [0], [1], [0, 0, 1, 1], [], []>, precision = #tpu.contract_precision<fp32>} : vector<2x32xf32>, vector<32x8xf32>, vector<2x8xf32> -> vector<2x8xf32>
    %105 = vector.broadcast %5 : vector<1x8xf32> to vector<2x8xf32>
    %106 = arith.addf %104, %105 : vector<2x8xf32>
    %cst_37 = arith.constant dense<0xFF800000> : vector<2xf32>
    %107 = vector.multi_reduction <maximumf>, %106, %cst_37 [1] : vector<2x8xf32> to vector<2xf32>
    %108 = vector.shape_cast %107 : vector<2xf32> to vector<2x1xf32>
    %109 = vector.broadcast %108 : vector<2x1xf32> to vector<2x8xf32>
    %110 = arith.cmpf oeq, %106, %109 : vector<2x8xf32>
    %c8_i32_38 = arith.constant 8 : i32
    %111 = vector.broadcast %c8_i32_38 : i32 to vector<2x8xi32>
    %112 = arith.select %110, %6, %111 : vector<2x8xi1>, vector<2x8xi32>
    %cst_39 = arith.constant dense<2147483647> : vector<2xi32>
    %113 = vector.multi_reduction <minsi>, %112, %cst_39 [1] : vector<2x8xi32> to vector<2xi32>
    %114 = vector.shape_cast %113 : vector<2xi32> to vector<2x1xi32>
    %115 = arith.sitofp %114 : vector<2x1xi32> to vector<2x1xf32>
    %cst_40 = arith.constant 5.000000e-01 : f32
    %116 = vector.broadcast %cst_40 : f32 to vector<2x8xf32>
    %117 = arith.cmpf ogt, %77, %116 : vector<2x8xf32>
    %cst_41 = arith.constant -1.000000e+30 : f32
    %118 = vector.broadcast %cst_41 : f32 to vector<2x8xf32>
    %119 = arith.select %117, %118, %106 : vector<2x8xi1>, vector<2x8xf32>
    %cst_42 = arith.constant dense<0xFF800000> : vector<2xf32>
    %120 = vector.multi_reduction <maximumf>, %119, %cst_42 [1] : vector<2x8xf32> to vector<2xf32>
    %121 = vector.shape_cast %120 : vector<2xf32> to vector<2x1xf32>
    %122 = vector.broadcast %121 : vector<2x1xf32> to vector<2x8xf32>
    %123 = arith.cmpf oeq, %119, %122 : vector<2x8xf32>
    %c8_i32_43 = arith.constant 8 : i32
    %124 = vector.broadcast %c8_i32_43 : i32 to vector<2x8xi32>
    %125 = arith.select %123, %6, %124 : vector<2x8xi1>, vector<2x8xi32>
    %cst_44 = arith.constant dense<2147483647> : vector<2xi32>
    %126 = vector.multi_reduction <minsi>, %125, %cst_44 [1] : vector<2x8xi32> to vector<2xi32>
    %127 = vector.shape_cast %126 : vector<2xi32> to vector<2x1xi32>
    %128 = vector.broadcast %121 : vector<2x1xf32> to vector<2x8xf32>
    %129 = arith.subf %119, %128 : vector<2x8xf32>
    %130 = math.exp %129 : vector<2x8xf32>
    %cst_45 = arith.constant dense<0.000000e+00> : vector<2xf32>
    %131 = vector.multi_reduction <add>, %130, %cst_45 [1] : vector<2x8xf32> to vector<2xf32>
    %132 = vector.shape_cast %131 : vector<2xf32> to vector<2x1xf32>
    %133 = math.log %132 : vector<2x1xf32>
    %cst_46 = arith.constant 0.000000e+00 : f32
    %134 = vector.broadcast %cst_46 : f32 to vector<2x1xf32>
    %135 = arith.subf %134, %133 : vector<2x1xf32>
    %136 = arith.sitofp %127 : vector<2x1xi32> to vector<2x1xf32>
    %c0_47 = arith.constant 0 : index
    %c1 = arith.constant 1 : index
    %137 = vector.load %arg8[%c0_47, %c1] : memref<2x8xf32, #tpu.memory_space<vmem>>, vector<2x1xf32>
    tpu.vector_store %arg8[%c0_47, %c1], %136 {strides = array<i32>} : memref<2x8xf32, #tpu.memory_space<vmem>>, vector<2x1xf32>,
    %c0_48 = arith.constant 0 : index
    %c1_49 = arith.constant 1 : index
    %138 = vector.load %arg9[%c0_48, %c1_49] : memref<2x8xf32, #tpu.memory_space<vmem>>, vector<2x1xf32>
    tpu.vector_store %arg9[%c0_48, %c1_49], %135 {strides = array<i32>} : memref<2x8xf32, #tpu.memory_space<vmem>>, vector<2x1xf32>,
    %139 = vector.broadcast %127 : vector<2x1xi32> to vector<2x8xi32>
    %140 = arith.cmpi eq, %6, %139 : vector<2x8xi32>
    %141 = arith.extui %140 : vector<2x8xi1> to vector<2x8xi32>
    %142 = arith.sitofp %141 : vector<2x8xi32> to vector<2x8xf32>
    %143 = arith.maximumf %77, %142 : vector<2x8xf32>
    %144 = vector.broadcast %115 : vector<2x1xf32> to vector<2x32xf32>
    %145 = vector.broadcast %0 : vector<1x32xf32> to vector<2x32xf32>
    %146 = arith.mulf %144, %145 : vector<2x32xf32>
    %147 = vector.broadcast %1 : vector<1x32xf32> to vector<2x32xf32>
    %148 = arith.addf %146, %147 : vector<2x32xf32>
    %cst_50 = arith.constant 0.000000e+00 : f32
    %149 = vector.broadcast %cst_50 : f32 to vector<2x32xf32>
    %150 = arith.maximumf %148, %149 : vector<2x32xf32>
    %151 = tpu.concatenate %150, %103 in 1 : vector<2x32xf32>, vector<2x32xf32> -> vector<2x64xf32>
    %cst_51 = arith.constant dense<0.000000e+00> : vector<2x128xf32>
    %152 = tpu.matmul %151, %2, %cst_51 {dimension_numbers = #tpu.dot_dimension_numbers<[1], [0], [0], [1], [0, 0, 1, 1], [], []>, precision = #tpu.contract_precision<fp32>} : vector<2x64xf32>, vector<64x128xf32>, vector<2x128xf32> -> vector<2x128xf32>
    %153 = vector.broadcast %3 : vector<1x128xf32> to vector<2x128xf32>
    %154 = arith.addf %152, %153 : vector<2x128xf32>
    %155 = arith.negf %154 : vector<2x128xf32>
    %156 = math.exp %155 : vector<2x128xf32>
    %cst_52 = arith.constant 1.000000e+00 : f32
    %157 = vector.broadcast %cst_52 : f32 to vector<2x128xf32>
    %158 = arith.addf %157, %156 : vector<2x128xf32>
    %159 = arith.divf %157, %158 : vector<2x128xf32>
    %160 = math.tanh %154 : vector<2x128xf32>
    %161 = vector.extract_strided_slice %159 {offsets = [0, 0], sizes = [2, 32], strides = [1, 1]} : vector<2x128xf32> to vector<2x32xf32>
    %162 = vector.extract_strided_slice %159 {offsets = [0, 32], sizes = [2, 32], strides = [1, 1]} : vector<2x128xf32> to vector<2x32xf32>
    %163 = vector.extract_strided_slice %160 {offsets = [0, 64], sizes = [2, 32], strides = [1, 1]} : vector<2x128xf32> to vector<2x32xf32>
    %164 = vector.extract_strided_slice %159 {offsets = [0, 96], sizes = [2, 32], strides = [1, 1]} : vector<2x128xf32> to vector<2x32xf32>
    %165 = arith.mulf %162, %101 : vector<2x32xf32>
    %166 = arith.mulf %161, %163 : vector<2x32xf32>
    %167 = arith.addf %165, %166 : vector<2x32xf32>
    %168 = math.tanh %167 : vector<2x32xf32>
    %169 = arith.mulf %164, %168 : vector<2x32xf32>
    %cst_53 = arith.constant dense<0.000000e+00> : vector<2x8xf32>
    %170 = tpu.matmul %169, %4, %cst_53 {dimension_numbers = #tpu.dot_dimension_numbers<[1], [0], [0], [1], [0, 0, 1, 1], [], []>, precision = #tpu.contract_precision<fp32>} : vector<2x32xf32>, vector<32x8xf32>, vector<2x8xf32> -> vector<2x8xf32>
    %171 = vector.broadcast %5 : vector<1x8xf32> to vector<2x8xf32>
    %172 = arith.addf %170, %171 : vector<2x8xf32>
    %cst_54 = arith.constant dense<0xFF800000> : vector<2xf32>
    %173 = vector.multi_reduction <maximumf>, %172, %cst_54 [1] : vector<2x8xf32> to vector<2xf32>
    %174 = vector.shape_cast %173 : vector<2xf32> to vector<2x1xf32>
    %175 = vector.broadcast %174 : vector<2x1xf32> to vector<2x8xf32>
    %176 = arith.cmpf oeq, %172, %175 : vector<2x8xf32>
    %c8_i32_55 = arith.constant 8 : i32
    %177 = vector.broadcast %c8_i32_55 : i32 to vector<2x8xi32>
    %178 = arith.select %176, %6, %177 : vector<2x8xi1>, vector<2x8xi32>
    %cst_56 = arith.constant dense<2147483647> : vector<2xi32>
    %179 = vector.multi_reduction <minsi>, %178, %cst_56 [1] : vector<2x8xi32> to vector<2xi32>
    %180 = vector.shape_cast %179 : vector<2xi32> to vector<2x1xi32>
    %181 = arith.sitofp %180 : vector<2x1xi32> to vector<2x1xf32>
    %cst_57 = arith.constant 5.000000e-01 : f32
    %182 = vector.broadcast %cst_57 : f32 to vector<2x8xf32>
    %183 = arith.cmpf ogt, %143, %182 : vector<2x8xf32>
    %cst_58 = arith.constant -1.000000e+30 : f32
    %184 = vector.broadcast %cst_58 : f32 to vector<2x8xf32>
    %185 = arith.select %183, %184, %172 : vector<2x8xi1>, vector<2x8xf32>
    %cst_59 = arith.constant dense<0xFF800000> : vector<2xf32>
    %186 = vector.multi_reduction <maximumf>, %185, %cst_59 [1] : vector<2x8xf32> to vector<2xf32>
    %187 = vector.shape_cast %186 : vector<2xf32> to vector<2x1xf32>
    %188 = vector.broadcast %187 : vector<2x1xf32> to vector<2x8xf32>
    %189 = arith.cmpf oeq, %185, %188 : vector<2x8xf32>
    %c8_i32_60 = arith.constant 8 : i32
    %190 = vector.broadcast %c8_i32_60 : i32 to vector<2x8xi32>
    %191 = arith.select %189, %6, %190 : vector<2x8xi1>, vector<2x8xi32>
    %cst_61 = arith.constant dense<2147483647> : vector<2xi32>
    %192 = vector.multi_reduction <minsi>, %191, %cst_61 [1] : vector<2x8xi32> to vector<2xi32>
    %193 = vector.shape_cast %192 : vector<2xi32> to vector<2x1xi32>
    %194 = vector.broadcast %187 : vector<2x1xf32> to vector<2x8xf32>
    %195 = arith.subf %185, %194 : vector<2x8xf32>
    %196 = math.exp %195 : vector<2x8xf32>
    %cst_62 = arith.constant dense<0.000000e+00> : vector<2xf32>
    %197 = vector.multi_reduction <add>, %196, %cst_62 [1] : vector<2x8xf32> to vector<2xf32>
    %198 = vector.shape_cast %197 : vector<2xf32> to vector<2x1xf32>
    %199 = math.log %198 : vector<2x1xf32>
    %cst_63 = arith.constant 0.000000e+00 : f32
    %200 = vector.broadcast %cst_63 : f32 to vector<2x1xf32>
    %201 = arith.subf %200, %199 : vector<2x1xf32>
    %202 = arith.sitofp %193 : vector<2x1xi32> to vector<2x1xf32>
    %c0_64 = arith.constant 0 : index
    %c2 = arith.constant 2 : index
    %203 = vector.load %arg8[%c0_64, %c2] : memref<2x8xf32, #tpu.memory_space<vmem>>, vector<2x1xf32>
    tpu.vector_store %arg8[%c0_64, %c2], %202 {strides = array<i32>} : memref<2x8xf32, #tpu.memory_space<vmem>>, vector<2x1xf32>,
    %c0_65 = arith.constant 0 : index
    %c2_66 = arith.constant 2 : index
    %204 = vector.load %arg9[%c0_65, %c2_66] : memref<2x8xf32, #tpu.memory_space<vmem>>, vector<2x1xf32>
    tpu.vector_store %arg9[%c0_65, %c2_66], %201 {strides = array<i32>} : memref<2x8xf32, #tpu.memory_space<vmem>>, vector<2x1xf32>,
    %205 = vector.broadcast %193 : vector<2x1xi32> to vector<2x8xi32>
    %206 = arith.cmpi eq, %6, %205 : vector<2x8xi32>
    %207 = arith.extui %206 : vector<2x8xi1> to vector<2x8xi32>
    %208 = arith.sitofp %207 : vector<2x8xi32> to vector<2x8xf32>
    %209 = arith.maximumf %143, %208 : vector<2x8xf32>
    %210 = vector.broadcast %181 : vector<2x1xf32> to vector<2x32xf32>
    %211 = vector.broadcast %0 : vector<1x32xf32> to vector<2x32xf32>
    %212 = arith.mulf %210, %211 : vector<2x32xf32>
    %213 = vector.broadcast %1 : vector<1x32xf32> to vector<2x32xf32>
    %214 = arith.addf %212, %213 : vector<2x32xf32>
    %cst_67 = arith.constant 0.000000e+00 : f32
    %215 = vector.broadcast %cst_67 : f32 to vector<2x32xf32>
    %216 = arith.maximumf %214, %215 : vector<2x32xf32>
    %217 = tpu.concatenate %216, %169 in 1 : vector<2x32xf32>, vector<2x32xf32> -> vector<2x64xf32>
    %cst_68 = arith.constant dense<0.000000e+00> : vector<2x128xf32>
    %218 = tpu.matmul %217, %2, %cst_68 {dimension_numbers = #tpu.dot_dimension_numbers<[1], [0], [0], [1], [0, 0, 1, 1], [], []>, precision = #tpu.contract_precision<fp32>} : vector<2x64xf32>, vector<64x128xf32>, vector<2x128xf32> -> vector<2x128xf32>
    %219 = vector.broadcast %3 : vector<1x128xf32> to vector<2x128xf32>
    %220 = arith.addf %218, %219 : vector<2x128xf32>
    %221 = arith.negf %220 : vector<2x128xf32>
    %222 = math.exp %221 : vector<2x128xf32>
    %cst_69 = arith.constant 1.000000e+00 : f32
    %223 = vector.broadcast %cst_69 : f32 to vector<2x128xf32>
    %224 = arith.addf %223, %222 : vector<2x128xf32>
    %225 = arith.divf %223, %224 : vector<2x128xf32>
    %226 = math.tanh %220 : vector<2x128xf32>
    %227 = vector.extract_strided_slice %225 {offsets = [0, 0], sizes = [2, 32], strides = [1, 1]} : vector<2x128xf32> to vector<2x32xf32>
    %228 = vector.extract_strided_slice %225 {offsets = [0, 32], sizes = [2, 32], strides = [1, 1]} : vector<2x128xf32> to vector<2x32xf32>
    %229 = vector.extract_strided_slice %226 {offsets = [0, 64], sizes = [2, 32], strides = [1, 1]} : vector<2x128xf32> to vector<2x32xf32>
    %230 = vector.extract_strided_slice %225 {offsets = [0, 96], sizes = [2, 32], strides = [1, 1]} : vector<2x128xf32> to vector<2x32xf32>
    %231 = arith.mulf %228, %167 : vector<2x32xf32>
    %232 = arith.mulf %227, %229 : vector<2x32xf32>
    %233 = arith.addf %231, %232 : vector<2x32xf32>
    %234 = math.tanh %233 : vector<2x32xf32>
    %235 = arith.mulf %230, %234 : vector<2x32xf32>
    %cst_70 = arith.constant dense<0.000000e+00> : vector<2x8xf32>
    %236 = tpu.matmul %235, %4, %cst_70 {dimension_numbers = #tpu.dot_dimension_numbers<[1], [0], [0], [1], [0, 0, 1, 1], [], []>, precision = #tpu.contract_precision<fp32>} : vector<2x32xf32>, vector<32x8xf32>, vector<2x8xf32> -> vector<2x8xf32>
    %237 = vector.broadcast %5 : vector<1x8xf32> to vector<2x8xf32>
    %238 = arith.addf %236, %237 : vector<2x8xf32>
    %cst_71 = arith.constant dense<0xFF800000> : vector<2xf32>
    %239 = vector.multi_reduction <maximumf>, %238, %cst_71 [1] : vector<2x8xf32> to vector<2xf32>
    %240 = vector.shape_cast %239 : vector<2xf32> to vector<2x1xf32>
    %241 = vector.broadcast %240 : vector<2x1xf32> to vector<2x8xf32>
    %242 = arith.cmpf oeq, %238, %241 : vector<2x8xf32>
    %c8_i32_72 = arith.constant 8 : i32
    %243 = vector.broadcast %c8_i32_72 : i32 to vector<2x8xi32>
    %244 = arith.select %242, %6, %243 : vector<2x8xi1>, vector<2x8xi32>
    %cst_73 = arith.constant dense<2147483647> : vector<2xi32>
    %245 = vector.multi_reduction <minsi>, %244, %cst_73 [1] : vector<2x8xi32> to vector<2xi32>
    %246 = vector.shape_cast %245 : vector<2xi32> to vector<2x1xi32>
    %247 = arith.sitofp %246 : vector<2x1xi32> to vector<2x1xf32>
    %cst_74 = arith.constant 5.000000e-01 : f32
    %248 = vector.broadcast %cst_74 : f32 to vector<2x8xf32>
    %249 = arith.cmpf ogt, %209, %248 : vector<2x8xf32>
    %cst_75 = arith.constant -1.000000e+30 : f32
    %250 = vector.broadcast %cst_75 : f32 to vector<2x8xf32>
    %251 = arith.select %249, %250, %238 : vector<2x8xi1>, vector<2x8xf32>
    %cst_76 = arith.constant dense<0xFF800000> : vector<2xf32>
    %252 = vector.multi_reduction <maximumf>, %251, %cst_76 [1] : vector<2x8xf32> to vector<2xf32>
    %253 = vector.shape_cast %252 : vector<2xf32> to vector<2x1xf32>
    %254 = vector.broadcast %253 : vector<2x1xf32> to vector<2x8xf32>
    %255 = arith.cmpf oeq, %251, %254 : vector<2x8xf32>
    %c8_i32_77 = arith.constant 8 : i32
    %256 = vector.broadcast %c8_i32_77 : i32 to vector<2x8xi32>
    %257 = arith.select %255, %6, %256 : vector<2x8xi1>, vector<2x8xi32>
    %cst_78 = arith.constant dense<2147483647> : vector<2xi32>
    %258 = vector.multi_reduction <minsi>, %257, %cst_78 [1] : vector<2x8xi32> to vector<2xi32>
    %259 = vector.shape_cast %258 : vector<2xi32> to vector<2x1xi32>
    %260 = vector.broadcast %253 : vector<2x1xf32> to vector<2x8xf32>
    %261 = arith.subf %251, %260 : vector<2x8xf32>
    %262 = math.exp %261 : vector<2x8xf32>
    %cst_79 = arith.constant dense<0.000000e+00> : vector<2xf32>
    %263 = vector.multi_reduction <add>, %262, %cst_79 [1] : vector<2x8xf32> to vector<2xf32>
    %264 = vector.shape_cast %263 : vector<2xf32> to vector<2x1xf32>
    %265 = math.log %264 : vector<2x1xf32>
    %cst_80 = arith.constant 0.000000e+00 : f32
    %266 = vector.broadcast %cst_80 : f32 to vector<2x1xf32>
    %267 = arith.subf %266, %265 : vector<2x1xf32>
    %268 = arith.sitofp %259 : vector<2x1xi32> to vector<2x1xf32>
    %c0_81 = arith.constant 0 : index
    %c3 = arith.constant 3 : index
    %269 = vector.load %arg8[%c0_81, %c3] : memref<2x8xf32, #tpu.memory_space<vmem>>, vector<2x1xf32>
    tpu.vector_store %arg8[%c0_81, %c3], %268 {strides = array<i32>} : memref<2x8xf32, #tpu.memory_space<vmem>>, vector<2x1xf32>,
    %c0_82 = arith.constant 0 : index
    %c3_83 = arith.constant 3 : index
    %270 = vector.load %arg9[%c0_82, %c3_83] : memref<2x8xf32, #tpu.memory_space<vmem>>, vector<2x1xf32>
    tpu.vector_store %arg9[%c0_82, %c3_83], %267 {strides = array<i32>} : memref<2x8xf32, #tpu.memory_space<vmem>>, vector<2x1xf32>,
    %271 = vector.broadcast %259 : vector<2x1xi32> to vector<2x8xi32>
    %272 = arith.cmpi eq, %6, %271 : vector<2x8xi32>
    %273 = arith.extui %272 : vector<2x8xi1> to vector<2x8xi32>
    %274 = arith.sitofp %273 : vector<2x8xi32> to vector<2x8xf32>
    %275 = arith.maximumf %209, %274 : vector<2x8xf32>
    %276 = vector.broadcast %247 : vector<2x1xf32> to vector<2x32xf32>
    %277 = vector.broadcast %0 : vector<1x32xf32> to vector<2x32xf32>
    %278 = arith.mulf %276, %277 : vector<2x32xf32>
    %279 = vector.broadcast %1 : vector<1x32xf32> to vector<2x32xf32>
    %280 = arith.addf %278, %279 : vector<2x32xf32>
    %cst_84 = arith.constant 0.000000e+00 : f32
    %281 = vector.broadcast %cst_84 : f32 to vector<2x32xf32>
    %282 = arith.maximumf %280, %281 : vector<2x32xf32>
    %283 = tpu.concatenate %282, %235 in 1 : vector<2x32xf32>, vector<2x32xf32> -> vector<2x64xf32>
    %cst_85 = arith.constant dense<0.000000e+00> : vector<2x128xf32>
    %284 = tpu.matmul %283, %2, %cst_85 {dimension_numbers = #tpu.dot_dimension_numbers<[1], [0], [0], [1], [0, 0, 1, 1], [], []>, precision = #tpu.contract_precision<fp32>} : vector<2x64xf32>, vector<64x128xf32>, vector<2x128xf32> -> vector<2x128xf32>
    %285 = vector.broadcast %3 : vector<1x128xf32> to vector<2x128xf32>
    %286 = arith.addf %284, %285 : vector<2x128xf32>
    %287 = arith.negf %286 : vector<2x128xf32>
    %288 = math.exp %287 : vector<2x128xf32>
    %cst_86 = arith.constant 1.000000e+00 : f32
    %289 = vector.broadcast %cst_86 : f32 to vector<2x128xf32>
    %290 = arith.addf %289, %288 : vector<2x128xf32>
    %291 = arith.divf %289, %290 : vector<2x128xf32>
    %292 = math.tanh %286 : vector<2x128xf32>
    %293 = vector.extract_strided_slice %291 {offsets = [0, 0], sizes = [2, 32], strides = [1, 1]} : vector<2x128xf32> to vector<2x32xf32>
    %294 = vector.extract_strided_slice %291 {offsets = [0, 32], sizes = [2, 32], strides = [1, 1]} : vector<2x128xf32> to vector<2x32xf32>
    %295 = vector.extract_strided_slice %292 {offsets = [0, 64], sizes = [2, 32], strides = [1, 1]} : vector<2x128xf32> to vector<2x32xf32>
    %296 = vector.extract_strided_slice %291 {offsets = [0, 96], sizes = [2, 32], strides = [1, 1]} : vector<2x128xf32> to vector<2x32xf32>
    %297 = arith.mulf %294, %233 : vector<2x32xf32>
    %298 = arith.mulf %293, %295 : vector<2x32xf32>
    %299 = arith.addf %297, %298 : vector<2x32xf32>
    %300 = math.tanh %299 : vector<2x32xf32>
    %301 = arith.mulf %296, %300 : vector<2x32xf32>
    %cst_87 = arith.constant dense<0.000000e+00> : vector<2x8xf32>
    %302 = tpu.matmul %301, %4, %cst_87 {dimension_numbers = #tpu.dot_dimension_numbers<[1], [0], [0], [1], [0, 0, 1, 1], [], []>, precision = #tpu.contract_precision<fp32>} : vector<2x32xf32>, vector<32x8xf32>, vector<2x8xf32> -> vector<2x8xf32>
    %303 = vector.broadcast %5 : vector<1x8xf32> to vector<2x8xf32>
    %304 = arith.addf %302, %303 : vector<2x8xf32>
    %cst_88 = arith.constant dense<0xFF800000> : vector<2xf32>
    %305 = vector.multi_reduction <maximumf>, %304, %cst_88 [1] : vector<2x8xf32> to vector<2xf32>
    %306 = vector.shape_cast %305 : vector<2xf32> to vector<2x1xf32>
    %307 = vector.broadcast %306 : vector<2x1xf32> to vector<2x8xf32>
    %308 = arith.cmpf oeq, %304, %307 : vector<2x8xf32>
    %c8_i32_89 = arith.constant 8 : i32
    %309 = vector.broadcast %c8_i32_89 : i32 to vector<2x8xi32>
    %310 = arith.select %308, %6, %309 : vector<2x8xi1>, vector<2x8xi32>
    %cst_90 = arith.constant dense<2147483647> : vector<2xi32>
    %311 = vector.multi_reduction <minsi>, %310, %cst_90 [1] : vector<2x8xi32> to vector<2xi32>
    %312 = vector.shape_cast %311 : vector<2xi32> to vector<2x1xi32>
    %313 = arith.sitofp %312 : vector<2x1xi32> to vector<2x1xf32>
    %cst_91 = arith.constant 5.000000e-01 : f32
    %314 = vector.broadcast %cst_91 : f32 to vector<2x8xf32>
    %315 = arith.cmpf ogt, %275, %314 : vector<2x8xf32>
    %cst_92 = arith.constant -1.000000e+30 : f32
    %316 = vector.broadcast %cst_92 : f32 to vector<2x8xf32>
    %317 = arith.select %315, %316, %304 : vector<2x8xi1>, vector<2x8xf32>
    %cst_93 = arith.constant dense<0xFF800000> : vector<2xf32>
    %318 = vector.multi_reduction <maximumf>, %317, %cst_93 [1] : vector<2x8xf32> to vector<2xf32>
    %319 = vector.shape_cast %318 : vector<2xf32> to vector<2x1xf32>
    %320 = vector.broadcast %319 : vector<2x1xf32> to vector<2x8xf32>
    %321 = arith.cmpf oeq, %317, %320 : vector<2x8xf32>
    %c8_i32_94 = arith.constant 8 : i32
    %322 = vector.broadcast %c8_i32_94 : i32 to vector<2x8xi32>
    %323 = arith.select %321, %6, %322 : vector<2x8xi1>, vector<2x8xi32>
    %cst_95 = arith.constant dense<2147483647> : vector<2xi32>
    %324 = vector.multi_reduction <minsi>, %323, %cst_95 [1] : vector<2x8xi32> to vector<2xi32>
    %325 = vector.shape_cast %324 : vector<2xi32> to vector<2x1xi32>
    %326 = vector.broadcast %319 : vector<2x1xf32> to vector<2x8xf32>
    %327 = arith.subf %317, %326 : vector<2x8xf32>
    %328 = math.exp %327 : vector<2x8xf32>
    %cst_96 = arith.constant dense<0.000000e+00> : vector<2xf32>
    %329 = vector.multi_reduction <add>, %328, %cst_96 [1] : vector<2x8xf32> to vector<2xf32>
    %330 = vector.shape_cast %329 : vector<2xf32> to vector<2x1xf32>
    %331 = math.log %330 : vector<2x1xf32>
    %cst_97 = arith.constant 0.000000e+00 : f32
    %332 = vector.broadcast %cst_97 : f32 to vector<2x1xf32>
    %333 = arith.subf %332, %331 : vector<2x1xf32>
    %334 = arith.sitofp %325 : vector<2x1xi32> to vector<2x1xf32>
    %c0_98 = arith.constant 0 : index
    %c4 = arith.constant 4 : index
    %335 = vector.load %arg8[%c0_98, %c4] : memref<2x8xf32, #tpu.memory_space<vmem>>, vector<2x1xf32>
    tpu.vector_store %arg8[%c0_98, %c4], %334 {strides = array<i32>} : memref<2x8xf32, #tpu.memory_space<vmem>>, vector<2x1xf32>,
    %c0_99 = arith.constant 0 : index
    %c4_100 = arith.constant 4 : index
    %336 = vector.load %arg9[%c0_99, %c4_100] : memref<2x8xf32, #tpu.memory_space<vmem>>, vector<2x1xf32>
    tpu.vector_store %arg9[%c0_99, %c4_100], %333 {strides = array<i32>} : memref<2x8xf32, #tpu.memory_space<vmem>>, vector<2x1xf32>,
    %337 = vector.broadcast %325 : vector<2x1xi32> to vector<2x8xi32>
    %338 = arith.cmpi eq, %6, %337 : vector<2x8xi32>
    %339 = arith.extui %338 : vector<2x8xi1> to vector<2x8xi32>
    %340 = arith.sitofp %339 : vector<2x8xi32> to vector<2x8xf32>
    %341 = arith.maximumf %275, %340 : vector<2x8xf32>
    %342 = vector.broadcast %313 : vector<2x1xf32> to vector<2x32xf32>
    %343 = vector.broadcast %0 : vector<1x32xf32> to vector<2x32xf32>
    %344 = arith.mulf %342, %343 : vector<2x32xf32>
    %345 = vector.broadcast %1 : vector<1x32xf32> to vector<2x32xf32>
    %346 = arith.addf %344, %345 : vector<2x32xf32>
    %cst_101 = arith.constant 0.000000e+00 : f32
    %347 = vector.broadcast %cst_101 : f32 to vector<2x32xf32>
    %348 = arith.maximumf %346, %347 : vector<2x32xf32>
    %349 = tpu.concatenate %348, %301 in 1 : vector<2x32xf32>, vector<2x32xf32> -> vector<2x64xf32>
    %cst_102 = arith.constant dense<0.000000e+00> : vector<2x128xf32>
    %350 = tpu.matmul %349, %2, %cst_102 {dimension_numbers = #tpu.dot_dimension_numbers<[1], [0], [0], [1], [0, 0, 1, 1], [], []>, precision = #tpu.contract_precision<fp32>} : vector<2x64xf32>, vector<64x128xf32>, vector<2x128xf32> -> vector<2x128xf32>
    %351 = vector.broadcast %3 : vector<1x128xf32> to vector<2x128xf32>
    %352 = arith.addf %350, %351 : vector<2x128xf32>
    %353 = arith.negf %352 : vector<2x128xf32>
    %354 = math.exp %353 : vector<2x128xf32>
    %cst_103 = arith.constant 1.000000e+00 : f32
    %355 = vector.broadcast %cst_103 : f32 to vector<2x128xf32>
    %356 = arith.addf %355, %354 : vector<2x128xf32>
    %357 = arith.divf %355, %356 : vector<2x128xf32>
    %358 = math.tanh %352 : vector<2x128xf32>
    %359 = vector.extract_strided_slice %357 {offsets = [0, 0], sizes = [2, 32], strides = [1, 1]} : vector<2x128xf32> to vector<2x32xf32>
    %360 = vector.extract_strided_slice %357 {offsets = [0, 32], sizes = [2, 32], strides = [1, 1]} : vector<2x128xf32> to vector<2x32xf32>
    %361 = vector.extract_strided_slice %358 {offsets = [0, 64], sizes = [2, 32], strides = [1, 1]} : vector<2x128xf32> to vector<2x32xf32>
    %362 = vector.extract_strided_slice %357 {offsets = [0, 96], sizes = [2, 32], strides = [1, 1]} : vector<2x128xf32> to vector<2x32xf32>
    %363 = arith.mulf %360, %299 : vector<2x32xf32>
    %364 = arith.mulf %359, %361 : vector<2x32xf32>
    %365 = arith.addf %363, %364 : vector<2x32xf32>
    %366 = math.tanh %365 : vector<2x32xf32>
    %367 = arith.mulf %362, %366 : vector<2x32xf32>
    %cst_104 = arith.constant dense<0.000000e+00> : vector<2x8xf32>
    %368 = tpu.matmul %367, %4, %cst_104 {dimension_numbers = #tpu.dot_dimension_numbers<[1], [0], [0], [1], [0, 0, 1, 1], [], []>, precision = #tpu.contract_precision<fp32>} : vector<2x32xf32>, vector<32x8xf32>, vector<2x8xf32> -> vector<2x8xf32>
    %369 = vector.broadcast %5 : vector<1x8xf32> to vector<2x8xf32>
    %370 = arith.addf %368, %369 : vector<2x8xf32>
    %cst_105 = arith.constant dense<0xFF800000> : vector<2xf32>
    %371 = vector.multi_reduction <maximumf>, %370, %cst_105 [1] : vector<2x8xf32> to vector<2xf32>
    %372 = vector.shape_cast %371 : vector<2xf32> to vector<2x1xf32>
    %373 = vector.broadcast %372 : vector<2x1xf32> to vector<2x8xf32>
    %374 = arith.cmpf oeq, %370, %373 : vector<2x8xf32>
    %c8_i32_106 = arith.constant 8 : i32
    %375 = vector.broadcast %c8_i32_106 : i32 to vector<2x8xi32>
    %376 = arith.select %374, %6, %375 : vector<2x8xi1>, vector<2x8xi32>
    %cst_107 = arith.constant dense<2147483647> : vector<2xi32>
    %377 = vector.multi_reduction <minsi>, %376, %cst_107 [1] : vector<2x8xi32> to vector<2xi32>
    %378 = vector.shape_cast %377 : vector<2xi32> to vector<2x1xi32>
    %379 = arith.sitofp %378 : vector<2x1xi32> to vector<2x1xf32>
    %cst_108 = arith.constant 5.000000e-01 : f32
    %380 = vector.broadcast %cst_108 : f32 to vector<2x8xf32>
    %381 = arith.cmpf ogt, %341, %380 : vector<2x8xf32>
    %cst_109 = arith.constant -1.000000e+30 : f32
    %382 = vector.broadcast %cst_109 : f32 to vector<2x8xf32>
    %383 = arith.select %381, %382, %370 : vector<2x8xi1>, vector<2x8xf32>
    %cst_110 = arith.constant dense<0xFF800000> : vector<2xf32>
    %384 = vector.multi_reduction <maximumf>, %383, %cst_110 [1] : vector<2x8xf32> to vector<2xf32>
    %385 = vector.shape_cast %384 : vector<2xf32> to vector<2x1xf32>
    %386 = vector.broadcast %385 : vector<2x1xf32> to vector<2x8xf32>
    %387 = arith.cmpf oeq, %383, %386 : vector<2x8xf32>
    %c8_i32_111 = arith.constant 8 : i32
    %388 = vector.broadcast %c8_i32_111 : i32 to vector<2x8xi32>
    %389 = arith.select %387, %6, %388 : vector<2x8xi1>, vector<2x8xi32>
    %cst_112 = arith.constant dense<2147483647> : vector<2xi32>
    %390 = vector.multi_reduction <minsi>, %389, %cst_112 [1] : vector<2x8xi32> to vector<2xi32>
    %391 = vector.shape_cast %390 : vector<2xi32> to vector<2x1xi32>
    %392 = vector.broadcast %385 : vector<2x1xf32> to vector<2x8xf32>
    %393 = arith.subf %383, %392 : vector<2x8xf32>
    %394 = math.exp %393 : vector<2x8xf32>
    %cst_113 = arith.constant dense<0.000000e+00> : vector<2xf32>
    %395 = vector.multi_reduction <add>, %394, %cst_113 [1] : vector<2x8xf32> to vector<2xf32>
    %396 = vector.shape_cast %395 : vector<2xf32> to vector<2x1xf32>
    %397 = math.log %396 : vector<2x1xf32>
    %cst_114 = arith.constant 0.000000e+00 : f32
    %398 = vector.broadcast %cst_114 : f32 to vector<2x1xf32>
    %399 = arith.subf %398, %397 : vector<2x1xf32>
    %400 = arith.sitofp %391 : vector<2x1xi32> to vector<2x1xf32>
    %c0_115 = arith.constant 0 : index
    %c5 = arith.constant 5 : index
    %401 = vector.load %arg8[%c0_115, %c5] : memref<2x8xf32, #tpu.memory_space<vmem>>, vector<2x1xf32>
    tpu.vector_store %arg8[%c0_115, %c5], %400 {strides = array<i32>} : memref<2x8xf32, #tpu.memory_space<vmem>>, vector<2x1xf32>,
    %c0_116 = arith.constant 0 : index
    %c5_117 = arith.constant 5 : index
    %402 = vector.load %arg9[%c0_116, %c5_117] : memref<2x8xf32, #tpu.memory_space<vmem>>, vector<2x1xf32>
    tpu.vector_store %arg9[%c0_116, %c5_117], %399 {strides = array<i32>} : memref<2x8xf32, #tpu.memory_space<vmem>>, vector<2x1xf32>,
    %403 = vector.broadcast %391 : vector<2x1xi32> to vector<2x8xi32>
    %404 = arith.cmpi eq, %6, %403 : vector<2x8xi32>
    %405 = arith.extui %404 : vector<2x8xi1> to vector<2x8xi32>
    %406 = arith.sitofp %405 : vector<2x8xi32> to vector<2x8xf32>
    %407 = arith.maximumf %341, %406 : vector<2x8xf32>
    %408 = vector.broadcast %379 : vector<2x1xf32> to vector<2x32xf32>
    %409 = vector.broadcast %0 : vector<1x32xf32> to vector<2x32xf32>
    %410 = arith.mulf %408, %409 : vector<2x32xf32>
    %411 = vector.broadcast %1 : vector<1x32xf32> to vector<2x32xf32>
    %412 = arith.addf %410, %411 : vector<2x32xf32>
    %cst_118 = arith.constant 0.000000e+00 : f32
    %413 = vector.broadcast %cst_118 : f32 to vector<2x32xf32>
    %414 = arith.maximumf %412, %413 : vector<2x32xf32>
    %415 = tpu.concatenate %414, %367 in 1 : vector<2x32xf32>, vector<2x32xf32> -> vector<2x64xf32>
    %cst_119 = arith.constant dense<0.000000e+00> : vector<2x128xf32>
    %416 = tpu.matmul %415, %2, %cst_119 {dimension_numbers = #tpu.dot_dimension_numbers<[1], [0], [0], [1], [0, 0, 1, 1], [], []>, precision = #tpu.contract_precision<fp32>} : vector<2x64xf32>, vector<64x128xf32>, vector<2x128xf32> -> vector<2x128xf32>
    %417 = vector.broadcast %3 : vector<1x128xf32> to vector<2x128xf32>
    %418 = arith.addf %416, %417 : vector<2x128xf32>
    %419 = arith.negf %418 : vector<2x128xf32>
    %420 = math.exp %419 : vector<2x128xf32>
    %cst_120 = arith.constant 1.000000e+00 : f32
    %421 = vector.broadcast %cst_120 : f32 to vector<2x128xf32>
    %422 = arith.addf %421, %420 : vector<2x128xf32>
    %423 = arith.divf %421, %422 : vector<2x128xf32>
    %424 = math.tanh %418 : vector<2x128xf32>
    %425 = vector.extract_strided_slice %423 {offsets = [0, 0], sizes = [2, 32], strides = [1, 1]} : vector<2x128xf32> to vector<2x32xf32>
    %426 = vector.extract_strided_slice %423 {offsets = [0, 32], sizes = [2, 32], strides = [1, 1]} : vector<2x128xf32> to vector<2x32xf32>
    %427 = vector.extract_strided_slice %424 {offsets = [0, 64], sizes = [2, 32], strides = [1, 1]} : vector<2x128xf32> to vector<2x32xf32>
    %428 = vector.extract_strided_slice %423 {offsets = [0, 96], sizes = [2, 32], strides = [1, 1]} : vector<2x128xf32> to vector<2x32xf32>
    %429 = arith.mulf %426, %365 : vector<2x32xf32>
    %430 = arith.mulf %425, %427 : vector<2x32xf32>
    %431 = arith.addf %429, %430 : vector<2x32xf32>
    %432 = math.tanh %431 : vector<2x32xf32>
    %433 = arith.mulf %428, %432 : vector<2x32xf32>
    %cst_121 = arith.constant dense<0.000000e+00> : vector<2x8xf32>
    %434 = tpu.matmul %433, %4, %cst_121 {dimension_numbers = #tpu.dot_dimension_numbers<[1], [0], [0], [1], [0, 0, 1, 1], [], []>, precision = #tpu.contract_precision<fp32>} : vector<2x32xf32>, vector<32x8xf32>, vector<2x8xf32> -> vector<2x8xf32>
    %435 = vector.broadcast %5 : vector<1x8xf32> to vector<2x8xf32>
    %436 = arith.addf %434, %435 : vector<2x8xf32>
    %cst_122 = arith.constant dense<0xFF800000> : vector<2xf32>
    %437 = vector.multi_reduction <maximumf>, %436, %cst_122 [1] : vector<2x8xf32> to vector<2xf32>
    %438 = vector.shape_cast %437 : vector<2xf32> to vector<2x1xf32>
    %439 = vector.broadcast %438 : vector<2x1xf32> to vector<2x8xf32>
    %440 = arith.cmpf oeq, %436, %439 : vector<2x8xf32>
    %c8_i32_123 = arith.constant 8 : i32
    %441 = vector.broadcast %c8_i32_123 : i32 to vector<2x8xi32>
    %442 = arith.select %440, %6, %441 : vector<2x8xi1>, vector<2x8xi32>
    %cst_124 = arith.constant dense<2147483647> : vector<2xi32>
    %443 = vector.multi_reduction <minsi>, %442, %cst_124 [1] : vector<2x8xi32> to vector<2xi32>
    %444 = vector.shape_cast %443 : vector<2xi32> to vector<2x1xi32>
    %445 = arith.sitofp %444 : vector<2x1xi32> to vector<2x1xf32>
    %cst_125 = arith.constant 5.000000e-01 : f32
    %446 = vector.broadcast %cst_125 : f32 to vector<2x8xf32>
    %447 = arith.cmpf ogt, %407, %446 : vector<2x8xf32>
    %cst_126 = arith.constant -1.000000e+30 : f32
    %448 = vector.broadcast %cst_126 : f32 to vector<2x8xf32>
    %449 = arith.select %447, %448, %436 : vector<2x8xi1>, vector<2x8xf32>
    %cst_127 = arith.constant dense<0xFF800000> : vector<2xf32>
    %450 = vector.multi_reduction <maximumf>, %449, %cst_127 [1] : vector<2x8xf32> to vector<2xf32>
    %451 = vector.shape_cast %450 : vector<2xf32> to vector<2x1xf32>
    %452 = vector.broadcast %451 : vector<2x1xf32> to vector<2x8xf32>
    %453 = arith.cmpf oeq, %449, %452 : vector<2x8xf32>
    %c8_i32_128 = arith.constant 8 : i32
    %454 = vector.broadcast %c8_i32_128 : i32 to vector<2x8xi32>
    %455 = arith.select %453, %6, %454 : vector<2x8xi1>, vector<2x8xi32>
    %cst_129 = arith.constant dense<2147483647> : vector<2xi32>
    %456 = vector.multi_reduction <minsi>, %455, %cst_129 [1] : vector<2x8xi32> to vector<2xi32>
    %457 = vector.shape_cast %456 : vector<2xi32> to vector<2x1xi32>
    %458 = vector.broadcast %451 : vector<2x1xf32> to vector<2x8xf32>
    %459 = arith.subf %449, %458 : vector<2x8xf32>
    %460 = math.exp %459 : vector<2x8xf32>
    %cst_130 = arith.constant dense<0.000000e+00> : vector<2xf32>
    %461 = vector.multi_reduction <add>, %460, %cst_130 [1] : vector<2x8xf32> to vector<2xf32>
    %462 = vector.shape_cast %461 : vector<2xf32> to vector<2x1xf32>
    %463 = math.log %462 : vector<2x1xf32>
    %cst_131 = arith.constant 0.000000e+00 : f32
    %464 = vector.broadcast %cst_131 : f32 to vector<2x1xf32>
    %465 = arith.subf %464, %463 : vector<2x1xf32>
    %466 = arith.sitofp %457 : vector<2x1xi32> to vector<2x1xf32>
    %c0_132 = arith.constant 0 : index
    %c6 = arith.constant 6 : index
    %467 = vector.load %arg8[%c0_132, %c6] : memref<2x8xf32, #tpu.memory_space<vmem>>, vector<2x1xf32>
    tpu.vector_store %arg8[%c0_132, %c6], %466 {strides = array<i32>} : memref<2x8xf32, #tpu.memory_space<vmem>>, vector<2x1xf32>,
    %c0_133 = arith.constant 0 : index
    %c6_134 = arith.constant 6 : index
    %468 = vector.load %arg9[%c0_133, %c6_134] : memref<2x8xf32, #tpu.memory_space<vmem>>, vector<2x1xf32>
    tpu.vector_store %arg9[%c0_133, %c6_134], %465 {strides = array<i32>} : memref<2x8xf32, #tpu.memory_space<vmem>>, vector<2x1xf32>,
    %469 = vector.broadcast %457 : vector<2x1xi32> to vector<2x8xi32>
    %470 = arith.cmpi eq, %6, %469 : vector<2x8xi32>
    %471 = arith.extui %470 : vector<2x8xi1> to vector<2x8xi32>
    %472 = arith.sitofp %471 : vector<2x8xi32> to vector<2x8xf32>
    %473 = arith.maximumf %407, %472 : vector<2x8xf32>
    %474 = vector.broadcast %445 : vector<2x1xf32> to vector<2x32xf32>
    %475 = vector.broadcast %0 : vector<1x32xf32> to vector<2x32xf32>
    %476 = arith.mulf %474, %475 : vector<2x32xf32>
    %477 = vector.broadcast %1 : vector<1x32xf32> to vector<2x32xf32>
    %478 = arith.addf %476, %477 : vector<2x32xf32>
    %cst_135 = arith.constant 0.000000e+00 : f32
    %479 = vector.broadcast %cst_135 : f32 to vector<2x32xf32>
    %480 = arith.maximumf %478, %479 : vector<2x32xf32>
    %481 = tpu.concatenate %480, %433 in 1 : vector<2x32xf32>, vector<2x32xf32> -> vector<2x64xf32>
    %cst_136 = arith.constant dense<0.000000e+00> : vector<2x128xf32>
    %482 = tpu.matmul %481, %2, %cst_136 {dimension_numbers = #tpu.dot_dimension_numbers<[1], [0], [0], [1], [0, 0, 1, 1], [], []>, precision = #tpu.contract_precision<fp32>} : vector<2x64xf32>, vector<64x128xf32>, vector<2x128xf32> -> vector<2x128xf32>
    %483 = vector.broadcast %3 : vector<1x128xf32> to vector<2x128xf32>
    %484 = arith.addf %482, %483 : vector<2x128xf32>
    %485 = arith.negf %484 : vector<2x128xf32>
    %486 = math.exp %485 : vector<2x128xf32>
    %cst_137 = arith.constant 1.000000e+00 : f32
    %487 = vector.broadcast %cst_137 : f32 to vector<2x128xf32>
    %488 = arith.addf %487, %486 : vector<2x128xf32>
    %489 = arith.divf %487, %488 : vector<2x128xf32>
    %490 = math.tanh %484 : vector<2x128xf32>
    %491 = vector.extract_strided_slice %489 {offsets = [0, 0], sizes = [2, 32], strides = [1, 1]} : vector<2x128xf32> to vector<2x32xf32>
    %492 = vector.extract_strided_slice %489 {offsets = [0, 32], sizes = [2, 32], strides = [1, 1]} : vector<2x128xf32> to vector<2x32xf32>
    %493 = vector.extract_strided_slice %490 {offsets = [0, 64], sizes = [2, 32], strides = [1, 1]} : vector<2x128xf32> to vector<2x32xf32>
    %494 = vector.extract_strided_slice %489 {offsets = [0, 96], sizes = [2, 32], strides = [1, 1]} : vector<2x128xf32> to vector<2x32xf32>
    %495 = arith.mulf %492, %431 : vector<2x32xf32>
    %496 = arith.mulf %491, %493 : vector<2x32xf32>
    %497 = arith.addf %495, %496 : vector<2x32xf32>
    %498 = math.tanh %497 : vector<2x32xf32>
    %499 = arith.mulf %494, %498 : vector<2x32xf32>
    %cst_138 = arith.constant dense<0.000000e+00> : vector<2x8xf32>
    %500 = tpu.matmul %499, %4, %cst_138 {dimension_numbers = #tpu.dot_dimension_numbers<[1], [0], [0], [1], [0, 0, 1, 1], [], []>, precision = #tpu.contract_precision<fp32>} : vector<2x32xf32>, vector<32x8xf32>, vector<2x8xf32> -> vector<2x8xf32>
    %501 = vector.broadcast %5 : vector<1x8xf32> to vector<2x8xf32>
    %502 = arith.addf %500, %501 : vector<2x8xf32>
    %cst_139 = arith.constant 5.000000e-01 : f32
    %503 = vector.broadcast %cst_139 : f32 to vector<2x8xf32>
    %504 = arith.cmpf ogt, %473, %503 : vector<2x8xf32>
    %cst_140 = arith.constant -1.000000e+30 : f32
    %505 = vector.broadcast %cst_140 : f32 to vector<2x8xf32>
    %506 = arith.select %504, %505, %502 : vector<2x8xi1>, vector<2x8xf32>
    %cst_141 = arith.constant dense<0xFF800000> : vector<2xf32>
    %507 = vector.multi_reduction <maximumf>, %506, %cst_141 [1] : vector<2x8xf32> to vector<2xf32>
    %508 = vector.shape_cast %507 : vector<2xf32> to vector<2x1xf32>
    %509 = vector.broadcast %508 : vector<2x1xf32> to vector<2x8xf32>
    %510 = arith.cmpf oeq, %506, %509 : vector<2x8xf32>
    %c8_i32_142 = arith.constant 8 : i32
    %511 = vector.broadcast %c8_i32_142 : i32 to vector<2x8xi32>
    %512 = arith.select %510, %6, %511 : vector<2x8xi1>, vector<2x8xi32>
    %cst_143 = arith.constant dense<2147483647> : vector<2xi32>
    %513 = vector.multi_reduction <minsi>, %512, %cst_143 [1] : vector<2x8xi32> to vector<2xi32>
    %514 = vector.shape_cast %513 : vector<2xi32> to vector<2x1xi32>
    %515 = vector.broadcast %508 : vector<2x1xf32> to vector<2x8xf32>
    %516 = arith.subf %506, %515 : vector<2x8xf32>
    %517 = math.exp %516 : vector<2x8xf32>
    %cst_144 = arith.constant dense<0.000000e+00> : vector<2xf32>
    %518 = vector.multi_reduction <add>, %517, %cst_144 [1] : vector<2x8xf32> to vector<2xf32>
    %519 = vector.shape_cast %518 : vector<2xf32> to vector<2x1xf32>
    %520 = math.log %519 : vector<2x1xf32>
    %cst_145 = arith.constant 0.000000e+00 : f32
    %521 = vector.broadcast %cst_145 : f32 to vector<2x1xf32>
    %522 = arith.subf %521, %520 : vector<2x1xf32>
    %523 = arith.sitofp %514 : vector<2x1xi32> to vector<2x1xf32>
    %c0_146 = arith.constant 0 : index
    %c7 = arith.constant 7 : index
    %524 = vector.load %arg8[%c0_146, %c7] : memref<2x8xf32, #tpu.memory_space<vmem>>, vector<2x1xf32>
    tpu.vector_store %arg8[%c0_146, %c7], %523 {strides = array<i32>} : memref<2x8xf32, #tpu.memory_space<vmem>>, vector<2x1xf32>,
    %c0_147 = arith.constant 0 : index
    %c7_148 = arith.constant 7 : index
    %525 = vector.load %arg9[%c0_147, %c7_148] : memref<2x8xf32, #tpu.memory_space<vmem>>, vector<2x1xf32>
    tpu.vector_store %arg9[%c0_147, %c7_148], %522 {strides = array<i32>} : memref<2x8xf32, #tpu.memory_space<vmem>>, vector<2x1xf32>,
    return
  }
}

</mosaic_0001>

<llo_original>
// kernel: tpu_custom_call.1
$region0: #{tpu_custom_call.1}
  #allocation0 [shape = 'u32[]', space=smem, size = 0x4, offset = 0x4, fixed_abs, tag = 'smem constant byte address 0x4 - core index']
  #allocation1 [shape = 'u32[144,128]{1,0:T(1,128)}', space=vmem, size = 0x12000, scoped, tag = 'internal scratch']
  %s0 = inlined_call_operand.vmem [shape: f32[2,32], index: 0, kind: input, shape index: {}]
  %s1 = inlined_call_operand.vmem [shape: f32[2,32], index: 1, kind: input, shape index: {}]
  %s2 = inlined_call_operand.vmem [shape: f32[1,32], index: 2, kind: input, shape index: {}]
  %s3 = inlined_call_operand.vmem [shape: f32[1,32], index: 3, kind: input, shape index: {}]
  %s4 = inlined_call_operand.hbm [shape: f32[64,128], index: 4, kind: input, shape index: {}]
  %s5 = inlined_call_operand.vmem [shape: f32[1,128], index: 5, kind: input, shape index: {}]
  %s6 = inlined_call_operand.vmem [shape: f32[32,8], index: 6, kind: input, shape index: {}]
  %s7 = inlined_call_operand.vmem [shape: f32[1,8], index: 7, kind: input, shape index: {}]
  %s8 = inlined_call_operand.hbm [shape: f32[2,8], index: 8, kind: output, shape index: {0}]
  %s9 = inlined_call_operand.hbm [shape: f32[2,8], index: 9, kind: output, shape index: {1}]
  %10 = xla_tuple %s8, %s9
  %s11 = sld [smem:[#allocation0]]
  $region54: #{tpu_custom_call.1} parent=0
    _
  %s13 = ssub.s32 1, %s11
  %s14 = scalar_select 0, %s13, %s11
  $region1: #{tpu_custom_call.1} parent=0
    #allocation2 [shape = 'u8[32768]{0}', space=vmem, size = 0x8000, scoped, tag = 'input window, operand 4, single buffered']
    #allocation3 [shape = 's32[1]{0}', space=sflag, size = 0x4, scoped, tag = 'scoped memory for tpu_custom_call.1']
    #allocation4 [shape = 's32[1]{0}', space=sflag, size = 0x4, scoped, tag = 'scoped memory for tpu_custom_call.1']
    #allocation5 [shape = 'u8[1024]{0}', space=vmem, size = 0x400, scoped, tag = 'output window, operand 0, single buffered']
    #allocation6 [shape = 'u8[1024]{0}', space=vmem, size = 0x400, scoped, tag = 'output window, operand 1, single buffered']
    #allocation7 [shape = 's32[1]{0}', space=sflag, size = 0x4, scoped, tag = 'scoped memory for tpu_custom_call.1']
    %15 = vsyncpa [#allocation3], 0
    %16 = vsyncpa [#allocation4], 0
    %17 = vsyncpa [#allocation7], 0
    // Predicated region
    $region2: #{tpu_custom_call.1} parent=1 // pred_check
      _
    $region3: #{tpu_custom_call.1} parent=1 // pred_check_branch
      %19 = sbr.rel (0) target = $region5
    $region4: #{tpu_custom_call.1} parent=1 // pred_region
      _
    $region5: #{tpu_custom_call.1} parent=1 // pred_fallthru
      _
    // Predicated region
    $region6: #{tpu_custom_call.1} parent=1 // pred_check
      _
    $region7: #{tpu_custom_call.1} parent=1 // pred_check_branch
      %21 = sbr.rel (0) target = $region9
    $region8: #{tpu_custom_call.1} parent=1 // pred_region
      _
    $region9: #{tpu_custom_call.1} parent=1 // pred_fallthru
      _
    // Predicated region
    $region10: #{tpu_custom_call.1} parent=1 // pred_check
      _
    $region11: #{tpu_custom_call.1} parent=1 // pred_check_branch
      %23 = sbr.rel (0) target = $region13
    $region12: #{tpu_custom_call.1} parent=1 // pred_region
      _
    $region13: #{tpu_custom_call.1} parent=1 // pred_fallthru
      _
    // Predicated region
    $region14: #{tpu_custom_call.1} parent=1 // pred_check
      _
    $region15: #{tpu_custom_call.1} parent=1 // pred_check_branch
      %25 = sbr.rel (0) target = $region17
    $region16: #{tpu_custom_call.1} parent=1 // pred_region
      _
    $region17: #{tpu_custom_call.1} parent=1 // pred_fallthru
      _
    // Predicated region
    $region18: #{tpu_custom_call.1} parent=1 // pred_check
      _
    $region19: #{tpu_custom_call.1} parent=1 // pred_check_branch
      %27 = sbr.rel (0) target = $region21
    $region20: #{tpu_custom_call.1} parent=1 // pred_region
      %s29 = ssub.s32 1024, 1024
      %30 = vsyncadd [#allocation3], %s29
      %s31 = sshll.u32 [#allocation2], 4
      %s32 = int_to_ptr.vmem [resolvable:$true] %s31
      %37 = dma.hbm_to_vmem [thread:$0]  %s4, 1024, %s32, [#allocation3], 128, 128, 8
    $region21: #{tpu_custom_call.1} parent=1 // pred_fallthru
      _
    // Predicated region
    $region22: #{tpu_custom_call.1} parent=1 // pred_check
      _
    $region23: #{tpu_custom_call.1} parent=1 // pred_check_branch
      %39 = sbr.rel (0) target = $region25
    $region24: #{tpu_custom_call.1} parent=1 // pred_region
      _
    $region25: #{tpu_custom_call.1} parent=1 // pred_fallthru
      _
    // Predicated region
    $region26: #{tpu_custom_call.1} parent=1 // pred_check
      _
    $region27: #{tpu_custom_call.1} parent=1 // pred_check_branch
      %41 = sbr.rel (0) target = $region29
    $region28: #{tpu_custom_call.1} parent=1 // pred_region
      _
    $region29: #{tpu_custom_call.1} parent=1 // pred_fallthru
      _
    // Predicated region
    $region30: #{tpu_custom_call.1} parent=1 // pred_check
      _
    $region31: #{tpu_custom_call.1} parent=1 // pred_check_branch
      %43 = sbr.rel (0) target = $region33
    $region32: #{tpu_custom_call.1} parent=1 // pred_region
      _
    $region33: #{tpu_custom_call.1} parent=1 // pred_fallthru
      _
    // Predicated region
    $region34: #{tpu_custom_call.1} parent=1 // pred_check
      _
    $region35: #{tpu_custom_call.1} parent=1 // pred_check_branch
      %45 = sbr.rel (0) target = $region37
    $region36: #{tpu_custom_call.1} parent=1 // pred_region
      %46 = dma.done [#allocation3], 1024
    $region37: #{tpu_custom_call.1} parent=1 // pred_fallthru
      _
    %v47 = vld [vmem:[%s2] sm:$0x1]
    %v48 = vld [vmem:[%s3] sm:$0x1]
    %v49 = vld [vmem:[#allocation2] sm:$0xff]
    %v50 = vld [vmem:[#allocation2 + $0x8] sm:$0xff]
    %v51 = vld [vmem:[#allocation2 + $0x10] sm:$0xff]
    %v52 = vld [vmem:[#allocation2 + $0x18] sm:$0xff]
    %v53 = vld [vmem:[#allocation2 + $0x20] sm:$0xff]
    %v54 = vld [vmem:[#allocation2 + $0x28] sm:$0xff]
    %v55 = vld [vmem:[#allocation2 + $0x30] sm:$0xff]
    %v56 = vld [vmem:[#allocation2 + $0x38] sm:$0xff]
    %v57 = vld [vmem:[%s5] sm:$0x1]
    %v58 = vld [vmem:[%s6] sm:$0xff]
    %v59 = vld [vmem:[%s6 + $0x8] sm:$0xff]
    %v60 = vld [vmem:[%s6 + $0x10] sm:$0xff]
    %v61 = vld [vmem:[%s6 + $0x18] sm:$0xff]
    %v62 = vld [vmem:[%s7] sm:$0x1]
    %v63 = vlaneseq
    %v64 = vand.u32 %v63, 127
    %v65 = vld [vmem:[%s0] sm:$0x3]
    %v66 = vld [vmem:[%s1] sm:$0x3]
    %v68 = vlaneseq
    %v69 = vshrl.u32 %v68, 7
    %v70 = vsub.s32 0, %v69
    %v71 = vrot.slane %v47, %v70
    %v74 = vlaneseq
    %v75 = vshrl.u32 %v74, 7
    %v76 = vsub.s32 0, %v75
    %v77 = vrot.slane %v48, %v76
    %v79 = vadd.f32 %v71, %v77
    %v80 = vmax.f32 %v79, 0.0
    %82 = vrot.lane.b32.xlu0 %v65, 32
    %v83 = vpop.permute.xlu0 %82
    %vm85 = vcmask 261120
    %v86 = vsel %vm85, %v80, %v83
    %v88 = vlaneseq
    %v89 = vshrl.u32 %v88, 7
    %v90 = vsub.s32 0, %v89
    %v91 = vrot.slane %v57, %v90
    %vm93 = vcmask 523264
    %v95 = vsel %vm93, %v86, 0
    %97 = vmatprep.subr.mxu0 0.0
    %v98 = vand.u32 %v49, 4294901760
    %99 = vmatpush1.msra.mxu0 %v98
    %100 = vmatprep.subr.mxu0 0.0
    %v101 = vand.u32 %v50, 4294901760
    %102 = vmatpush1.msra.mxu0 %v101
    %103 = vmatprep.subr.mxu0 0.0
    %v104 = vand.u32 %v51, 4294901760
    %105 = vmatpush1.msra.mxu0 %v104
    %106 = vmatprep.subr.mxu0 0.0
    %v107 = vand.u32 %v52, 4294901760
    %108 = vmatpush1.msra.mxu0 %v107
    %109 = vmatprep.subr.mxu0 0.0
    %v110 = vand.u32 %v53, 4294901760
    %111 = vmatpush1.msra.mxu0 %v110
    %112 = vmatprep.subr.mxu0 0.0
    %v113 = vand.u32 %v54, 4294901760
    %114 = vmatpush1.msra.mxu0 %v113
    %115 = vmatprep.subr.mxu0 0.0
    %v116 = vand.u32 %v55, 4294901760
    %117 = vmatpush1.msra.mxu0 %v116
    %118 = vmatprep.subr.mxu0 0.0
    %v119 = vand.u32 %v56, 4294901760
    %120 = vmatpush1.msra.mxu0 %v119
    %121 = vmatprep.subr.mxu0 0.0
    %122 = vmatpush1.msra.mxu0 0.0
    %123 = vmatprep.subr.mxu0 0.0
    %124 = vmatpush1.msra.mxu0 0.0
    %125 = vmatprep.subr.mxu0 0.0
    %126 = vmatpush1.msra.mxu0 0.0
    %127 = vmatprep.subr.mxu0 0.0
    %128 = vmatpush1.msra.mxu0 0.0
    %129 = vmatprep.subr.mxu0 0.0
    %130 = vmatpush1.msra.mxu0 0.0
    %131 = vmatprep.subr.mxu0 0.0
    %132 = vmatpush1.msra.mxu0 0.0
    %133 = vmatprep.subr.mxu0 0.0
    %134 = vmatpush1.msra.mxu0 0.0
    %135 = vmatprep.subr.mxu0 0.0
    %136 = vmatpush1.msra.mxu0 0.0
    %137 = vmatprep.subr.mxu0 0.0
    %138 = vmatpush1.msra.mxu0 0.0
    %139 = vmatprep.subr.mxu0 0.0
    %140 = vmatpush1.msra.mxu0 0.0
    %141 = vmatprep.subr.mxu0 0.0
    %142 = vmatpush1.msra.mxu0 0.0
    %143 = vmatprep.subr.mxu0 0.0
    %144 = vmatpush1.msra.mxu0 0.0
    %145 = vmatprep.subr.mxu0 0.0
    %146 = vmatpush1.msra.mxu0 0.0
    %147 = vmatprep.subr.mxu0 0.0
    %148 = vmatpush1.msra.mxu0 0.0
    %149 = vmatprep.subr.mxu0 0.0
    %150 = vmatpush1.msra.mxu0 0.0
    %151 = vmatprep.subr.mxu0 0.0
    %152 = vmatpush1.msra.mxu0 0.0
    %153 = vmatprep.subr.mxu0 0.0
    %154 = vmatpush1.msra.mxu0 0.0
    %155 = vmatprep.subr.mxu0 0.0
    %156 = vmatpush1.msra.mxu0 0.0
    %157 = vmatprep.subr.mxu0 0.0
    %158 = vmatpush1.msra.mxu0 0.0
    %159 = vmatprep.subr.mxu0 0.0
    %160 = vmatpush1.msra.mxu0 0.0
    %161 = vmatprep.subr.mxu0 0.0
    %162 = vmatpush1.msra.mxu0 0.0
    %163 = vmatprep.subr.mxu0 0.0
    %164 = vmatpush1.msra.mxu0 0.0
    %165 = vmatprep.subr.mxu0 0.0
    %166 = vmatpush1.msra.mxu0 0.0
    %167 = vmatprep.subr.mxu0 0.0
    %168 = vmatpush1.msra.mxu0 0.0
    %169 = vmatprep.mubr.f32.mxu0 0.0
    %v170 = vand.u32 %v95, 4294901760
    %v171 = vsub.f32 %v95, %v170
    %v172 = vand.u32 %v171, 4294901760
    %v173 = vsub.f32 %v171, %v172
    %v174 = vand.u32 %v173, 4294901760
    %175 = vmatmul.mubr.f32.gmra.mrb[0].mxu0 %v174
    %v176 = vpop.f32.mrb[0].mxu0
    %v177 = vadd.f32 %v91, %v176
    %v178 = vpop.f32.mrb[0].mxu0
    %179 = vdwg.mxu0
    %180 = vmatprep.subr.mxu0 0.0
    %v181 = vand.u32 %v49, 4294901760
    %v182 = vsub.f32 %v49, %v181
    %v183 = vand.u32 %v182, 4294901760
    %v184 = vsub.f32 %v182, %v183
    %v185 = vand.u32 %v184, 4294901760
    %186 = vmatpush1.msra.mxu0 %v185
    %187 = vmatprep.subr.mxu0 0.0
    %v188 = vand.u32 %v50, 4294901760
    %v189 = vsub.f32 %v50, %v188
    %v190 = vand.u32 %v189, 4294901760
    %v191 = vsub.f32 %v189, %v190
    %v192 = vand.u32 %v191, 4294901760
    %193 = vmatpush1.msra.mxu0 %v192
    %194 = vmatprep.subr.mxu0 0.0
    %v195 = vand.u32 %v51, 4294901760
    %v196 = vsub.f32 %v51, %v195
    %v197 = vand.u32 %v196, 4294901760
    %v198 = vsub.f32 %v196, %v197
    %v199 = vand.u32 %v198, 4294901760
    %200 = vmatpush1.msra.mxu0 %v199
    %201 = vmatprep.subr.mxu0 0.0
    %v202 = vand.u32 %v52, 4294901760
    %v203 = vsub.f32 %v52, %v202
    %v204 = vand.u32 %v203, 4294901760
    %v205 = vsub.f32 %v203, %v204
    %v206 = vand.u32 %v205, 4294901760
    %207 = vmatpush1.msra.mxu0 %v206
    %208 = vmatprep.subr.mxu0 0.0
    %v209 = vand.u32 %v53, 4294901760
    %v210 = vsub.f32 %v53, %v209
    %v211 = vand.u32 %v210, 4294901760
    %v212 = vsub.f32 %v210, %v211
    %v213 = vand.u32 %v212, 4294901760
    %214 = vmatpush1.msra.mxu0 %v213
    %215 = vmatprep.subr.mxu0 0.0
    %v216 = vand.u32 %v54, 4294901760
    %v217 = vsub.f32 %v54, %v216
    %v218 = vand.u32 %v217, 4294901760
    %v219 = vsub.f32 %v217, %v218
    %v220 = vand.u32 %v219, 4294901760
    %221 = vmatpush1.msra.mxu0 %v220
    %222 = vmatprep.subr.mxu0 0.0
    %v223 = vand.u32 %v55, 4294901760
    %v224 = vsub.f32 %v55, %v223
    %v225 = vand.u32 %v224, 4294901760
    %v226 = vsub.f32 %v224, %v225
    %v227 = vand.u32 %v226, 4294901760
    %228 = vmatpush1.msra.mxu0 %v227
    %229 = vmatprep.subr.mxu0 0.0
    %v230 = vand.u32 %v56, 4294901760
    %v231 = vsub.f32 %v56, %v230
    %v232 = vand.u32 %v231, 4294901760
    %v233 = vsub.f32 %v231, %v232
    %v234 = vand.u32 %v233, 4294901760
    %235 = vmatpush1.msra.mxu0 %v234
    %236 = vmatprep.subr.mxu0 0.0
    %237 = vmatpush1.msra.mxu0 0.0
    %238 = vmatprep.subr.mxu0 0.0
    %239 = vmatpush1.msra.mxu0 0.0
    %240 = vmatprep.subr.mxu0 0.0
    %241 = vmatpush1.msra.mxu0 0.0
    %242 = vmatprep.subr.mxu0 0.0
    %243 = vmatpush1.msra.mxu0 0.0
    %244 = vmatprep.subr.mxu0 0.0
    %245 = vmatpush1.msra.mxu0 0.0
    %246 = vmatprep.subr.mxu0 0.0
    %247 = vmatpush1.msra.mxu0 0.0
    %248 = vmatprep.subr.mxu0 0.0
    %249 = vmatpush1.msra.mxu0 0.0
    %250 = vmatprep.subr.mxu0 0.0
    %251 = vmatpush1.msra.mxu0 0.0
    %252 = vmatprep.subr.mxu0 0.0
    %253 = vmatpush1.msra.mxu0 0.0
    %254 = vmatprep.subr.mxu0 0.0
    %255 = vmatpush1.msra.mxu0 0.0
    %256 = vmatprep.subr.mxu0 0.0
    %257 = vmatpush1.msra.mxu0 0.0
    %258 = vmatprep.subr.mxu0 0.0
    %259 = vmatpush1.msra.mxu0 0.0
    %260 = vmatprep.subr.mxu0 0.0
    %261 = vmatpush1.msra.mxu0 0.0
    %262 = vmatprep.subr.mxu0 0.0
    %263 = vmatpush1.msra.mxu0 0.0
    %264 = vmatprep.subr.mxu0 0.0
    %265 = vmatpush1.msra.mxu0 0.0
    %266 = vmatprep.subr.mxu0 0.0
    %267 = vmatpush1.msra.mxu0 0.0
    %268 = vmatprep.subr.mxu0 0.0
    %269 = vmatpush1.msra.mxu0 0.0
    %270 = vmatprep.subr.mxu0 0.0
    %271 = vmatpush1.msra.mxu0 0.0
    %272 = vmatprep.subr.mxu0 0.0
    %273 = vmatpush1.msra.mxu0 0.0
    %274 = vmatprep.subr.mxu0 0.0
    %275 = vmatpush1.msra.mxu0 0.0
    %276 = vmatprep.subr.mxu0 0.0
    %277 = vmatpush1.msra.mxu0 0.0
    %278 = vmatprep.subr.mxu0 0.0
    %279 = vmatpush1.msra.mxu0 0.0
    %280 = vmatprep.subr.mxu0 0.0
    %281 = vmatpush1.msra.mxu0 0.0
    %282 = vmatprep.subr.mxu0 0.0
    %283 = vmatpush1.msra.mxu0 0.0
    %284 = vmatprep.mubr.f32.mxu0 0.0
    %v285 = vand.u32 %v95, 4294901760
    %286 = vmatmul.mubr.f32.gmra.mrb[0].mxu0 %v285
    %v287 = vpop.f32.mrb[0].mxu0
    %v288 = vadd.f32 %v177, %v287
    %v289 = vpop.f32.mrb[0].mxu0
    %290 = vdwg.mxu0
    %291 = vmatprep.subr.mxu0 0.0
    %v292 = vand.u32 %v49, 4294901760
    %v293 = vsub.f32 %v49, %v292
    %294 = vmatpush1.msra.mxu0 %v293
    %295 = vmatprep.subr.mxu0 0.0
    %v296 = vand.u32 %v50, 4294901760
    %v297 = vsub.f32 %v50, %v296
    %298 = vmatpush1.msra.mxu0 %v297
    %299 = vmatprep.subr.mxu0 0.0
    %v300 = vand.u32 %v51, 4294901760
    %v301 = vsub.f32 %v51, %v300
    %302 = vmatpush1.msra.mxu0 %v301
    %303 = vmatprep.subr.mxu0 0.0
    %v304 = vand.u32 %v52, 4294901760
    %v305 = vsub.f32 %v52, %v304
    %306 = vmatpush1.msra.mxu0 %v305
    %307 = vmatprep.subr.mxu0 0.0
    %v308 = vand.u32 %v53, 4294901760
    %v309 = vsub.f32 %v53, %v308
    %310 = vmatpush1.msra.mxu0 %v309
    %311 = vmatprep.subr.mxu0 0.0
    %v312 = vand.u32 %v54, 4294901760
    %v313 = vsub.f32 %v54, %v312
    %314 = vmatpush1.msra.mxu0 %v313
    %315 = vmatprep.subr.mxu0 0.0
    %v316 = vand.u32 %v55, 4294901760
    %v317 = vsub.f32 %v55, %v316
    %318 = vmatpush1.msra.mxu0 %v317
    %319 = vmatprep.subr.mxu0 0.0
    %v320 = vand.u32 %v56, 4294901760
    %v321 = vsub.f32 %v56, %v320
    %322 = vmatpush1.msra.mxu0 %v321
    %323 = vmatprep.subr.mxu0 0.0
    %324 = vmatpush1.msra.mxu0 0.0
    %325 = vmatprep.subr.mxu0 0.0
    %326 = vmatpush1.msra.mxu0 0.0
    %327 = vmatprep.subr.mxu0 0.0
    %328 = vmatpush1.msra.mxu0 0.0
    %329 = vmatprep.subr.mxu0 0.0
    %330 = vmatpush1.msra.mxu0 0.0
    %331 = vmatprep.subr.mxu0 0.0
    %332 = vmatpush1.msra.mxu0 0.0
    %333 = vmatprep.subr.mxu0 0.0
    %334 = vmatpush1.msra.mxu0 0.0
    %335 = vmatprep.subr.mxu0 0.0
    %336 = vmatpush1.msra.mxu0 0.0
    %337 = vmatprep.subr.mxu0 0.0
    %338 = vmatpush1.msra.mxu0 0.0
    %339 = vmatprep.subr.mxu0 0.0
    %340 = vmatpush1.msra.mxu0 0.0
    %341 = vmatprep.subr.mxu0 0.0
    %342 = vmatpush1.msra.mxu0 0.0
    %343 = vmatprep.subr.mxu0 0.0
    %344 = vmatpush1.msra.mxu0 0.0
    %345 = vmatprep.subr.mxu0 0.0
    %346 = vmatpush1.msra.mxu0 0.0
    %347 = vmatprep.subr.mxu0 0.0
    %348 = vmatpush1.msra.mxu0 0.0
    %349 = vmatprep.subr.mxu0 0.0
    %350 = vmatpush1.msra.mxu0 0.0
    %351 = vmatprep.subr.mxu0 0.0
    %352 = vmatpush1.msra.mxu0 0.0
    %353 = vmatprep.subr.mxu0 0.0
    %354 = vmatpush1.msra.mxu0 0.0
    %355 = vmatprep.subr.mxu0 0.0
    %356 = vmatpush1.msra.mxu0 0.0
    %357 = vmatprep.subr.mxu0 0.0
    %358 = vmatpush1.msra.mxu0 0.0
    %359 = vmatprep.subr.mxu0 0.0
    %360 = vmatpush1.msra.mxu0 0.0
    %361 = vmatprep.subr.mxu0 0.0
    %362 = vmatpush1.msra.mxu0 0.0
    %363 = vmatprep.subr.mxu0 0.0
    %364 = vmatpush1.msra.mxu0 0.0
    %365 = vmatprep.subr.mxu0 0.0
    %366 = vmatpush1.msra.mxu0 0.0
    %367 = vmatprep.subr.mxu0 0.0
    %368 = vmatpush1.msra.mxu0 0.0
    %369 = vmatprep.subr.mxu0 0.0
    %370 = vmatpush1.msra.mxu0 0.0
    %371 = vmatprep.mubr.f32.mxu0 0.0
    %v372 = vand.u32 %v95, 4294901760
    %v373 = vsub.f32 %v95, %v372
    %374 = vmatmul.mubr.f32.gmra.mrb[0].mxu0 %v373
    %v375 = vpop.f32.mrb[0].mxu0
    %v376 = vadd.f32 %v288, %v375
    %v377 = vpop.f32.mrb[0].mxu0
    %378 = vdwg.mxu0
    %379 = vmatprep.subr.mxu0 0.0
    %v380 = vand.u32 %v49, 4294901760
    %381 = vmatpush1.msra.mxu0 %v380
    %382 = vmatprep.subr.mxu0 0.0
    %v383 = vand.u32 %v50, 4294901760
    %384 = vmatpush1.msra.mxu0 %v383
    %385 = vmatprep.subr.mxu0 0.0
    %v386 = vand.u32 %v51, 4294901760
    %387 = vmatpush1.msra.mxu0 %v386
    %388 = vmatprep.subr.mxu0 0.0
    %v389 = vand.u32 %v52, 4294901760
    %390 = vmatpush1.msra.mxu0 %v389
    %391 = vmatprep.subr.mxu0 0.0
    %v392 = vand.u32 %v53, 4294901760
    %393 = vmatpush1.msra.mxu0 %v392
    %394 = vmatprep.subr.mxu0 0.0
    %v395 = vand.u32 %v54, 4294901760
    %396 = vmatpush1.msra.mxu0 %v395
    %397 = vmatprep.subr.mxu0 0.0
    %v398 = vand.u32 %v55, 4294901760
    %399 = vmatpush1.msra.mxu0 %v398
    %400 = vmatprep.subr.mxu0 0.0
    %v401 = vand.u32 %v56, 4294901760
    %402 = vmatpush1.msra.mxu0 %v401
    %403 = vmatprep.subr.mxu0 0.0
    %404 = vmatpush1.msra.mxu0 0.0
    %405 = vmatprep.subr.mxu0 0.0
    %406 = vmatpush1.msra.mxu0 0.0
    %407 = vmatprep.subr.mxu0 0.0
    %408 = vmatpush1.msra.mxu0 0.0
    %409 = vmatprep.subr.mxu0 0.0
    %410 = vmatpush1.msra.mxu0 0.0
    %411 = vmatprep.subr.mxu0 0.0
    %412 = vmatpush1.msra.mxu0 0.0
    %413 = vmatprep.subr.mxu0 0.0
    %414 = vmatpush1.msra.mxu0 0.0
    %415 = vmatprep.subr.mxu0 0.0
    %416 = vmatpush1.msra.mxu0 0.0
    %417 = vmatprep.subr.mxu0 0.0
    %418 = vmatpush1.msra.mxu0 0.0
    %419 = vmatprep.subr.mxu0 0.0
    %420 = vmatpush1.msra.mxu0 0.0
    %421 = vmatprep.subr.mxu0 0.0
    %422 = vmatpush1.msra.mxu0 0.0
    %423 = vmatprep.subr.mxu0 0.0
    %424 = vmatpush1.msra.mxu0 0.0
    %425 = vmatprep.subr.mxu0 0.0
    %426 = vmatpush1.msra.mxu0 0.0
    %427 = vmatprep.subr.mxu0 0.0
    %428 = vmatpush1.msra.mxu0 0.0
    %429 = vmatprep.subr.mxu0 0.0
    %430 = vmatpush1.msra.mxu0 0.0
    %431 = vmatprep.subr.mxu0 0.0
    %432 = vmatpush1.msra.mxu0 0.0
    %433 = vmatprep.subr.mxu0 0.0
    %434 = vmatpush1.msra.mxu0 0.0
    %435 = vmatprep.subr.mxu0 0.0
    %436 = vmatpush1.msra.mxu0 0.0
    %437 = vmatprep.subr.mxu0 0.0
    %438 = vmatpush1.msra.mxu0 0.0
    %439 = vmatprep.subr.mxu0 0.0
    %440 = vmatpush1.msra.mxu0 0.0
    %441 = vmatprep.subr.mxu0 0.0
    %442 = vmatpush1.msra.mxu0 0.0
    %443 = vmatprep.subr.mxu0 0.0
    %444 = vmatpush1.msra.mxu0 0.0
    %445 = vmatprep.subr.mxu0 0.0
    %446 = vmatpush1.msra.mxu0 0.0
    %447 = vmatprep.subr.mxu0 0.0
    %448 = vmatpush1.msra.mxu0 0.0
    %449 = vmatprep.subr.mxu0 0.0
    %450 = vmatpush1.msra.mxu0 0.0
    %451 = vmatprep.mubr.f32.mxu0 0.0
    %v452 = vand.u32 %v95, 4294901760
    %v453 = vsub.f32 %v95, %v452
    %v454 = vand.u32 %v453, 4294901760
    %455 = vmatmul.mubr.f32.gmra.mrb[0].mxu0 %v454
    %v456 = vpop.f32.mrb[0].mxu0
    %v457 = vadd.f32 %v376, %v456
    %v458 = vpop.f32.mrb[0].mxu0
    %459 = vdwg.mxu0
    %460 = vmatprep.subr.mxu0 0.0
    %v461 = vand.u32 %v49, 4294901760
    %v462 = vsub.f32 %v49, %v461
    %v463 = vand.u32 %v462, 4294901760
    %464 = vmatpush1.msra.mxu0 %v463
    %465 = vmatprep.subr.mxu0 0.0
    %v466 = vand.u32 %v50, 4294901760
    %v467 = vsub.f32 %v50, %v466
    %v468 = vand.u32 %v467, 4294901760
    %469 = vmatpush1.msra.mxu0 %v468
    %470 = vmatprep.subr.mxu0 0.0
    %v471 = vand.u32 %v51, 4294901760
    %v472 = vsub.f32 %v51, %v471
    %v473 = vand.u32 %v472, 4294901760
    %474 = vmatpush1.msra.mxu0 %v473
    %475 = vmatprep.subr.mxu0 0.0
    %v476 = vand.u32 %v52, 4294901760
    %v477 = vsub.f32 %v52, %v476
    %v478 = vand.u32 %v477, 4294901760
    %479 = vmatpush1.msra.mxu0 %v478
    %480 = vmatprep.subr.mxu0 0.0
    %v481 = vand.u32 %v53, 4294901760
    %v482 = vsub.f32 %v53, %v481
    %v483 = vand.u32 %v482, 4294901760
    %484 = vmatpush1.msra.mxu0 %v483
    %485 = vmatprep.subr.mxu0 0.0
    %v486 = vand.u32 %v54, 4294901760
    %v487 = vsub.f32 %v54, %v486
    %v488 = vand.u32 %v487, 4294901760
    %489 = vmatpush1.msra.mxu0 %v488
    %490 = vmatprep.subr.mxu0 0.0
    %v491 = vand.u32 %v55, 4294901760
    %v492 = vsub.f32 %v55, %v491
    %v493 = vand.u32 %v492, 4294901760
    %494 = vmatpush1.msra.mxu0 %v493
    %495 = vmatprep.subr.mxu0 0.0
    %v496 = vand.u32 %v56, 4294901760
    %v497 = vsub.f32 %v56, %v496
    %v498 = vand.u32 %v497, 4294901760
    %499 = vmatpush1.msra.mxu0 %v498
    %500 = vmatprep.subr.mxu0 0.0
    %501 = vmatpush1.msra.mxu0 0.0
    %502 = vmatprep.subr.mxu0 0.0
    %503 = vmatpush1.msra.mxu0 0.0
    %504 = vmatprep.subr.mxu0 0.0
    %505 = vmatpush1.msra.mxu0 0.0
    %506 = vmatprep.subr.mxu0 0.0
    %507 = vmatpush1.msra.mxu0 0.0
    %508 = vmatprep.subr.mxu0 0.0
    %509 = vmatpush1.msra.mxu0 0.0
    %510 = vmatprep.subr.mxu0 0.0
    %511 = vmatpush1.msra.mxu0 0.0
    %512 = vmatprep.subr.mxu0 0.0
    %513 = vmatpush1.msra.mxu0 0.0
    %514 = vmatprep.subr.mxu0 0.0
    %515 = vmatpush1.msra.mxu0 0.0
    %516 = vmatprep.subr.mxu0 0.0
    %517 = vmatpush1.msra.mxu0 0.0
    %518 = vmatprep.subr.mxu0 0.0
    %519 = vmatpush1.msra.mxu0 0.0
    %520 = vmatprep.subr.mxu0 0.0
    %521 = vmatpush1.msra.mxu0 0.0
    %522 = vmatprep.subr.mxu0 0.0
    %523 = vmatpush1.msra.mxu0 0.0
    %524 = vmatprep.subr.mxu0 0.0
    %525 = vmatpush1.msra.mxu0 0.0
    %526 = vmatprep.subr.mxu0 0.0
    %527 = vmatpush1.msra.mxu0 0.0
    %528 = vmatprep.subr.mxu0 0.0
    %529 = vmatpush1.msra.mxu0 0.0
    %530 = vmatprep.subr.mxu0 0.0
    %531 = vmatpush1.msra.mxu0 0.0
    %532 = vmatprep.subr.mxu0 0.0
    %533 = vmatpush1.msra.mxu0 0.0
    %534 = vmatprep.subr.mxu0 0.0
    %535 = vmatpush1.msra.mxu0 0.0
    %536 = vmatprep.subr.mxu0 0.0
    %537 = vmatpush1.msra.mxu0 0.0
    %538 = vmatprep.subr.mxu0 0.0
    %539 = vmatpush1.msra.mxu0 0.0
    %540 = vmatprep.subr.mxu0 0.0
    %541 = vmatpush1.msra.mxu0 0.0
    %542 = vmatprep.subr.mxu0 0.0
    %543 = vmatpush1.msra.mxu0 0.0
    %544 = vmatprep.subr.mxu0 0.0
    %545 = vmatpush1.msra.mxu0 0.0
    %546 = vmatprep.subr.mxu0 0.0
    %547 = vmatpush1.msra.mxu0 0.0
    %548 = vmatprep.mubr.f32.mxu0 0.0
    %v549 = vand.u32 %v95, 4294901760
    %550 = vmatmul.mubr.f32.gmra.mrb[0].mxu0 %v549
    %v551 = vpop.f32.mrb[0].mxu0
    %v552 = vadd.f32 %v457, %v551
    %v553 = vpop.f32.mrb[0].mxu0
    %554 = vdwg.mxu0
    %555 = vmatprep.subr.mxu0 0.0
    %v556 = vand.u32 %v49, 4294901760
    %557 = vmatpush1.msra.mxu0 %v556
    %558 = vmatprep.subr.mxu0 0.0
    %v559 = vand.u32 %v50, 4294901760
    %560 = vmatpush1.msra.mxu0 %v559
    %561 = vmatprep.subr.mxu0 0.0
    %v562 = vand.u32 %v51, 4294901760
    %563 = vmatpush1.msra.mxu0 %v562
    %564 = vmatprep.subr.mxu0 0.0
    %v565 = vand.u32 %v52, 4294901760
    %566 = vmatpush1.msra.mxu0 %v565
    %567 = vmatprep.subr.mxu0 0.0
    %v568 = vand.u32 %v53, 4294901760
    %569 = vmatpush1.msra.mxu0 %v568
    %570 = vmatprep.subr.mxu0 0.0
    %v571 = vand.u32 %v54, 4294901760
    %572 = vmatpush1.msra.mxu0 %v571
    %573 = vmatprep.subr.mxu0 0.0
    %v574 = vand.u32 %v55, 4294901760
    %575 = vmatpush1.msra.mxu0 %v574
    %576 = vmatprep.subr.mxu0 0.0
    %v577 = vand.u32 %v56, 4294901760
    %578 = vmatpush1.msra.mxu0 %v577
    %579 = vmatprep.subr.mxu0 0.0
    %580 = vmatpush1.msra.mxu0 0.0
    %581 = vmatprep.subr.mxu0 0.0
    %582 = vmatpush1.msra.mxu0 0.0
    %583 = vmatprep.subr.mxu0 0.0
    %584 = vmatpush1.msra.mxu0 0.0
    %585 = vmatprep.subr.mxu0 0.0
    %586 = vmatpush1.msra.mxu0 0.0
    %587 = vmatprep.subr.mxu0 0.0
    %588 = vmatpush1.msra.mxu0 0.0
    %589 = vmatprep.subr.mxu0 0.0
    %590 = vmatpush1.msra.mxu0 0.0
    %591 = vmatprep.subr.mxu0 0.0
    %592 = vmatpush1.msra.mxu0 0.0
    %593 = vmatprep.subr.mxu0 0.0
    %594 = vmatpush1.msra.mxu0 0.0
    %595 = vmatprep.subr.mxu0 0.0
    %596 = vmatpush1.msra.mxu0 0.0
    %597 = vmatprep.subr.mxu0 0.0
    %598 = vmatpush1.msra.mxu0 0.0
    %599 = vmatprep.subr.mxu0 0.0
    %600 = vmatpush1.msra.mxu0 0.0
    %601 = vmatprep.subr.mxu0 0.0
    %602 = vmatpush1.msra.mxu0 0.0
    %603 = vmatprep.subr.mxu0 0.0
    %604 = vmatpush1.msra.mxu0 0.0
    %605 = vmatprep.subr.mxu0 0.0
    %606 = vmatpush1.msra.mxu0 0.0
    %607 = vmatprep.subr.mxu0 0.0
    %608 = vmatpush1.msra.mxu0 0.0
    %609 = vmatprep.subr.mxu0 0.0
    %610 = vmatpush1.msra.mxu0 0.0
    %611 = vmatprep.subr.mxu0 0.0
    %612 = vmatpush1.msra.mxu0 0.0
    %613 = vmatprep.subr.mxu0 0.0
    %614 = vmatpush1.msra.mxu0 0.0
    %615 = vmatprep.subr.mxu0 0.0
    %616 = vmatpush1.msra.mxu0 0.0
    %617 = vmatprep.subr.mxu0 0.0
    %618 = vmatpush1.msra.mxu0 0.0
    %619 = vmatprep.subr.mxu0 0.0
    %620 = vmatpush1.msra.mxu0 0.0
    %621 = vmatprep.subr.mxu0 0.0
    %622 = vmatpush1.msra.mxu0 0.0
    %623 = vmatprep.subr.mxu0 0.0
    %624 = vmatpush1.msra.mxu0 0.0
    %625 = vmatprep.subr.mxu0 0.0
    %626 = vmatpush1.msra.mxu0 0.0
    %627 = vmatprep.mubr.f32.mxu0 0.0
    %v628 = vand.u32 %v95, 4294901760
    %629 = vmatmul.mubr.f32.gmra.mrb[0].mxu0 %v628
    %v630 = vpop.f32.mrb[0].mxu0
    %v631 = vadd.f32 %v552, %v630
    %v632 = vpop.f32.mrb[0].mxu0
    %633 = vdwg.mxu0
    %v634 = vxor.u32 %v631, 2147483648
    %v635 = vmul.f32 %v634, 1.442695
    %v636 = vpow.pop %v635
    %v637 = vadd.f32 %v636, 1.0
    %v638 = vrcp.pop %v637
    %v639 = vmul.f32 1.0, %v638
    %v640 = vtanh.pop %v631
    %642 = vrot.lane.b32.xlu0 %v66, 32
    %v643 = vpop.permute.xlu0 %642
    %v645 = vmul.f32 %v639, %v643
    %647 = vrot.lane.b32.xlu0 %v640, 64
    %v648 = vpop.permute.xlu0 %647
    %v650 = vmul.f32 %v639, %v648
    %652 = vrot.lane.b32.xlu0 %v650, 32
    %v653 = vpop.permute.xlu0 %652
    %v655 = vadd.f32 %v645, %v653
    %v656 = vtanh.pop %v655
    %658 = vrot.lane.b32.xlu0 %v656, 64
    %v659 = vpop.permute.xlu0 %658
    %v661 = vmul.f32 %v639, %v659
    %v663 = vlaneseq
    %v664 = vshrl.u32 %v663, 7
    %v665 = vsub.s32 0, %v664
    %v666 = vrot.slane %v62, %v665
    %669 = vrot.lane.b32.xlu0 %v661, 32
    %v670 = vpop.permute.xlu0 %669
    %v671 = vsel %vm85, %v670, 0
    %673 = vmatprep.subr.mxu0 0.0
    %v674 = vand.u32 %v58, 4294901760
    %675 = vmatpush1.msra.mxu0 %v674
    %676 = vmatprep.subr.mxu0 0.0
    %v677 = vand.u32 %v59, 4294901760
    %678 = vmatpush1.msra.mxu0 %v677
    %679 = vmatprep.subr.mxu0 0.0
    %v680 = vand.u32 %v60, 4294901760
    %681 = vmatpush1.msra.mxu0 %v680
    %682 = vmatprep.subr.mxu0 0.0
    %v683 = vand.u32 %v61, 4294901760
    %684 = vmatpush1.msra.mxu0 %v683
    %685 = vmatprep.subr.mxu0 0.0
    %686 = vmatpush1.msra.mxu0 0.0
    %687 = vmatprep.subr.mxu0 0.0
    %688 = vmatpush1.msra.mxu0 0.0
    %689 = vmatprep.subr.mxu0 0.0
    %690 = vmatpush1.msra.mxu0 0.0
    %691 = vmatprep.subr.mxu0 0.0
    %692 = vmatpush1.msra.mxu0 0.0
    %693 = vmatprep.subr.mxu0 0.0
    %694 = vmatpush1.msra.mxu0 0.0
    %695 = vmatprep.subr.mxu0 0.0
    %696 = vmatpush1.msra.mxu0 0.0
    %697 = vmatprep.subr.mxu0 0.0
    %698 = vmatpush1.msra.mxu0 0.0
    %699 = vmatprep.subr.mxu0 0.0
    %700 = vmatpush1.msra.mxu0 0.0
    %701 = vmatprep.subr.mxu0 0.0
    %702 = vmatpush1.msra.mxu0 0.0
    %703 = vmatprep.subr.mxu0 0.0
    %704 = vmatpush1.msra.mxu0 0.0
    %705 = vmatprep.subr.mxu0 0.0
    %706 = vmatpush1.msra.mxu0 0.0
    %707 = vmatprep.subr.mxu0 0.0
    %708 = vmatpush1.msra.mxu0 0.0
    %709 = vmatprep.subr.mxu0 0.0
    %710 = vmatpush1.msra.mxu0 0.0
    %711 = vmatprep.subr.mxu0 0.0
    %712 = vmatpush1.msra.mxu0 0.0
    %713 = vmatprep.subr.mxu0 0.0
    %714 = vmatpush1.msra.mxu0 0.0
    %715 = vmatprep.subr.mxu0 0.0
    %716 = vmatpush1.msra.mxu0 0.0
    %717 = vmatprep.subr.mxu0 0.0
    %718 = vmatpush1.msra.mxu0 0.0
    %719 = vmatprep.subr.mxu0 0.0
    %720 = vmatpush1.msra.mxu0 0.0
    %721 = vmatprep.subr.mxu0 0.0
    %722 = vmatpush1.msra.mxu0 0.0
    %723 = vmatprep.subr.mxu0 0.0
    %724 = vmatpush1.msra.mxu0 0.0
    %725 = vmatprep.subr.mxu0 0.0
    %726 = vmatpush1.msra.mxu0 0.0
    %727 = vmatprep.subr.mxu0 0.0
    %728 = vmatpush1.msra.mxu0 0.0
    %729 = vmatprep.subr.mxu0 0.0
    %730 = vmatpush1.msra.mxu0 0.0
    %731 = vmatprep.subr.mxu0 0.0
    %732 = vmatpush1.msra.mxu0 0.0
    %733 = vmatprep.subr.mxu0 0.0
    %734 = vmatpush1.msra.mxu0 0.0
    %735 = vmatprep.subr.mxu0 0.0
    %736 = vmatpush1.msra.mxu0 0.0
    %737 = vmatprep.subr.mxu0 0.0
    %738 = vmatpush1.msra.mxu0 0.0
    %739 = vmatprep.subr.mxu0 0.0
    %740 = vmatpush1.msra.mxu0 0.0
    %741 = vmatprep.mubr.f32.mxu0 0.0
    %v742 = vand.u32 %v671, 4294901760
    %v743 = vsub.f32 %v671, %v742
    %v744 = vand.u32 %v743, 4294901760
    %v745 = vsub.f32 %v743, %v744
    %v746 = vand.u32 %v745, 4294901760
    %747 = vmatmul.mubr.f32.gmra.mrb[0].mxu0 %v746
    %v748 = vpop.f32.mrb[0].mxu0
    %v749 = vadd.f32 %v666, %v748
    %v750 = vpop.f32.mrb[0].mxu0
    %751 = vdwg.mxu0
    %752 = vmatprep.subr.mxu0 0.0
    %v753 = vand.u32 %v58, 4294901760
    %v754 = vsub.f32 %v58, %v753
    %v755 = vand.u32 %v754, 4294901760
    %v756 = vsub.f32 %v754, %v755
    %v757 = vand.u32 %v756, 4294901760
    %758 = vmatpush1.msra.mxu0 %v757
    %759 = vmatprep.subr.mxu0 0.0
    %v760 = vand.u32 %v59, 4294901760
    %v761 = vsub.f32 %v59, %v760
    %v762 = vand.u32 %v761, 4294901760
    %v763 = vsub.f32 %v761, %v762
    %v764 = vand.u32 %v763, 4294901760
    %765 = vmatpush1.msra.mxu0 %v764
    %766 = vmatprep.subr.mxu0 0.0
    %v767 = vand.u32 %v60, 4294901760
    %v768 = vsub.f32 %v60, %v767
    %v769 = vand.u32 %v768, 4294901760
    %v770 = vsub.f32 %v768, %v769
    %v771 = vand.u32 %v770, 4294901760
    %772 = vmatpush1.msra.mxu0 %v771
    %773 = vmatprep.subr.mxu0 0.0
    %v774 = vand.u32 %v61, 4294901760
    %v775 = vsub.f32 %v61, %v774
    %v776 = vand.u32 %v775, 4294901760
    %v777 = vsub.f32 %v775, %v776
    %v778 = vand.u32 %v777, 4294901760
    %779 = vmatpush1.msra.mxu0 %v778
    %780 = vmatprep.subr.mxu0 0.0
    %781 = vmatpush1.msra.mxu0 0.0
    %782 = vmatprep.subr.mxu0 0.0
    %783 = vmatpush1.msra.mxu0 0.0
    %784 = vmatprep.subr.mxu0 0.0
    %785 = vmatpush1.msra.mxu0 0.0
    %786 = vmatprep.subr.mxu0 0.0
    %787 = vmatpush1.msra.mxu0 0.0
    %788 = vmatprep.subr.mxu0 0.0
    %789 = vmatpush1.msra.mxu0 0.0
    %790 = vmatprep.subr.mxu0 0.0
    %791 = vmatpush1.msra.mxu0 0.0
    %792 = vmatprep.subr.mxu0 0.0
    %793 = vmatpush1.msra.mxu0 0.0
    %794 = vmatprep.subr.mxu0 0.0
    %795 = vmatpush1.msra.mxu0 0.0
    %796 = vmatprep.subr.mxu0 0.0
    %797 = vmatpush1.msra.mxu0 0.0
    %798 = vmatprep.subr.mxu0 0.0
    %799 = vmatpush1.msra.mxu0 0.0
    %800 = vmatprep.subr.mxu0 0.0
    %801 = vmatpush1.msra.mxu0 0.0
    %802 = vmatprep.subr.mxu0 0.0
    %803 = vmatpush1.msra.mxu0 0.0
    %804 = vmatprep.subr.mxu0 0.0
    %805 = vmatpush1.msra.mxu0 0.0
    %806 = vmatprep.subr.mxu0 0.0
    %807 = vmatpush1.msra.mxu0 0.0
    %808 = vmatprep.subr.mxu0 0.0
    %809 = vmatpush1.msra.mxu0 0.0
    %810 = vmatprep.subr.mxu0 0.0
    %811 = vmatpush1.msra.mxu0 0.0
    %812 = vmatprep.subr.mxu0 0.0
    %813 = vmatpush1.msra.mxu0 0.0
    %814 = vmatprep.subr.mxu0 0.0
    %815 = vmatpush1.msra.mxu0 0.0
    %816 = vmatprep.subr.mxu0 0.0
    %817 = vmatpush1.msra.mxu0 0.0
    %818 = vmatprep.subr.mxu0 0.0
    %819 = vmatpush1.msra.mxu0 0.0
    %820 = vmatprep.subr.mxu0 0.0
    %821 = vmatpush1.msra.mxu0 0.0
    %822 = vmatprep.subr.mxu0 0.0
    %823 = vmatpush1.msra.mxu0 0.0
    %824 = vmatprep.subr.mxu0 0.0
    %825 = vmatpush1.msra.mxu0 0.0
    %826 = vmatprep.subr.mxu0 0.0
    %827 = vmatpush1.msra.mxu0 0.0
    %828 = vmatprep.subr.mxu0 0.0
    %829 = vmatpush1.msra.mxu0 0.0
    %830 = vmatprep.subr.mxu0 0.0
    %831 = vmatpush1.msra.mxu0 0.0
    %832 = vmatprep.subr.mxu0 0.0
    %833 = vmatpush1.msra.mxu0 0.0
    %834 = vmatprep.subr.mxu0 0.0
    %835 = vmatpush1.msra.mxu0 0.0
    %836 = vmatprep.mubr.f32.mxu0 0.0
    %v837 = vand.u32 %v671, 4294901760
    %838 = vmatmul.mubr.f32.gmra.mrb[0].mxu0 %v837
    %v839 = vpop.f32.mrb[0].mxu0
    %v840 = vadd.f32 %v749, %v839
    %v841 = vpop.f32.mrb[0].mxu0
    %842 = vdwg.mxu0
    %843 = vmatprep.subr.mxu0 0.0
    %v844 = vand.u32 %v58, 4294901760
    %v845 = vsub.f32 %v58, %v844
    %846 = vmatpush1.msra.mxu0 %v845
    %847 = vmatprep.subr.mxu0 0.0
    %v848 = vand.u32 %v59, 4294901760
    %v849 = vsub.f32 %v59, %v848
    %850 = vmatpush1.msra.mxu0 %v849
    %851 = vmatprep.subr.mxu0 0.0
    %v852 = vand.u32 %v60, 4294901760
    %v853 = vsub.f32 %v60, %v852
    %854 = vmatpush1.msra.mxu0 %v853
    %855 = vmatprep.subr.mxu0 0.0
    %v856 = vand.u32 %v61, 4294901760
    %v857 = vsub.f32 %v61, %v856
    %858 = vmatpush1.msra.mxu0 %v857
    %859 = vmatprep.subr.mxu0 0.0
    %860 = vmatpush1.msra.mxu0 0.0
    %861 = vmatprep.subr.mxu0 0.0
    %862 = vmatpush1.msra.mxu0 0.0
    %863 = vmatprep.subr.mxu0 0.0
    %864 = vmatpush1.msra.mxu0 0.0
    %865 = vmatprep.subr.mxu0 0.0
    %866 = vmatpush1.msra.mxu0 0.0
    %867 = vmatprep.subr.mxu0 0.0
    %868 = vmatpush1.msra.mxu0 0.0
    %869 = vmatprep.subr.mxu0 0.0
    %870 = vmatpush1.msra.mxu0 0.0
    %871 = vmatprep.subr.mxu0 0.0
    %872 = vmatpush1.msra.mxu0 0.0
    %873 = vmatprep.subr.mxu0 0.0
    %874 = vmatpush1.msra.mxu0 0.0
    %875 = vmatprep.subr.mxu0 0.0
    %876 = vmatpush1.msra.mxu0 0.0
    %877 = vmatprep.subr.mxu0 0.0
    %878 = vmatpush1.msra.mxu0 0.0
    %879 = vmatprep.subr.mxu0 0.0
    %880 = vmatpush1.msra.mxu0 0.0
    %881 = vmatprep.subr.mxu0 0.0
    %882 = vmatpush1.msra.mxu0 0.0
    %883 = vmatprep.subr.mxu0 0.0
    %884 = vmatpush1.msra.mxu0 0.0
    %885 = vmatprep.subr.mxu0 0.0
    %886 = vmatpush1.msra.mxu0 0.0
    %887 = vmatprep.subr.mxu0 0.0
    %888 = vmatpush1.msra.mxu0 0.0
    %889 = vmatprep.subr.mxu0 0.0
    %890 = vmatpush1.msra.mxu0 0.0
    %891 = vmatprep.subr.mxu0 0.0
    %892 = vmatpush1.msra.mxu0 0.0
    %893 = vmatprep.subr.mxu0 0.0
    %894 = vmatpush1.msra.mxu0 0.0
    %895 = vmatprep.subr.mxu0 0.0
    %896 = vmatpush1.msra.mxu0 0.0
    %897 = vmatprep.subr.mxu0 0.0
    %898 = vmatpush1.msra.mxu0 0.0
    %899 = vmatprep.subr.mxu0 0.0
    %900 = vmatpush1.msra.mxu0 0.0
    %901 = vmatprep.subr.mxu0 0.0
    %902 = vmatpush1.msra.mxu0 0.0
    %903 = vmatprep.subr.mxu0 0.0
    %904 = vmatpush1.msra.mxu0 0.0
    %905 = vmatprep.subr.mxu0 0.0
    %906 = vmatpush1.msra.mxu0 0.0
    %907 = vmatprep.subr.mxu0 0.0
    %908 = vmatpush1.msra.mxu0 0.0
    %909 = vmatprep.subr.mxu0 0.0
    %910 = vmatpush1.msra.mxu0 0.0
    %911 = vmatprep.subr.mxu0 0.0
    %912 = vmatpush1.msra.mxu0 0.0
    %913 = vmatprep.subr.mxu0 0.0
    %914 = vmatpush1.msra.mxu0 0.0
    %915 = vmatprep.mubr.f32.mxu0 0.0
    %v916 = vand.u32 %v671, 4294901760
    %v917 = vsub.f32 %v671, %v916
    %918 = vmatmul.mubr.f32.gmra.mrb[0].mxu0 %v917
    %v919 = vpop.f32.mrb[0].mxu0
    %v920 = vadd.f32 %v840, %v919
    %v921 = vpop.f32.mrb[0].mxu0
    %922 = vdwg.mxu0
    %923 = vmatprep.subr.mxu0 0.0
    %v924 = vand.u32 %v58, 4294901760
    %925 = vmatpush1.msra.mxu0 %v924
    %926 = vmatprep.subr.mxu0 0.0
    %v927 = vand.u32 %v59, 4294901760
    %928 = vmatpush1.msra.mxu0 %v927
    %929 = vmatprep.subr.mxu0 0.0
    %v930 = vand.u32 %v60, 4294901760
    %931 = vmatpush1.msra.mxu0 %v930
    %932 = vmatprep.subr.mxu0 0.0
    %v933 = vand.u32 %v61, 4294901760
    %934 = vmatpush1.msra.mxu0 %v933
    %935 = vmatprep.subr.mxu0 0.0
    %936 = vmatpush1.msra.mxu0 0.0
    %937 = vmatprep.subr.mxu0 0.0
    %938 = vmatpush1.msra.mxu0 0.0
    %939 = vmatprep.subr.mxu0 0.0
    %940 = vmatpush1.msra.mxu0 0.0
    %941 = vmatprep.subr.mxu0 0.0
    %942 = vmatpush1.msra.mxu0 0.0
    %943 = vmatprep.subr.mxu0 0.0
    %944 = vmatpush1.msra.mxu0 0.0
    %945 = vmatprep.subr.mxu0 0.0
    %946 = vmatpush1.msra.mxu0 0.0
    %947 = vmatprep.subr.mxu0 0.0
    %948 = vmatpush1.msra.mxu0 0.0
    %949 = vmatprep.subr.mxu0 0.0
    %950 = vmatpush1.msra.mxu0 0.0
    %951 = vmatprep.subr.mxu0 0.0
    %952 = vmatpush1.msra.mxu0 0.0
    %953 = vmatprep.subr.mxu0 0.0
    %954 = vmatpush1.msra.mxu0 0.0
    %955 = vmatprep.subr.mxu0 0.0
    %956 = vmatpush1.msra.mxu0 0.0
    %957 = vmatprep.subr.mxu0 0.0
    %958 = vmatpush1.msra.mxu0 0.0
    %959 = vmatprep.subr.mxu0 0.0
    %960 = vmatpush1.msra.mxu0 0.0
    %961 = vmatprep.subr.mxu0 0.0
    %962 = vmatpush1.msra.mxu0 0.0
    %963 = vmatprep.subr.mxu0 0.0
    %964 = vmatpush1.msra.mxu0 0.0
    %965 = vmatprep.subr.mxu0 0.0
    %966 = vmatpush1.msra.mxu0 0.0
    %967 = vmatprep.subr.mxu0 0.0
    %968 = vmatpush1.msra.mxu0 0.0
    %969 = vmatprep.subr.mxu0 0.0
    %970 = vmatpush1.msra.mxu0 0.0
    %971 = vmatprep.subr.mxu0 0.0
    %972 = vmatpush1.msra.mxu0 0.0
    %973 = vmatprep.subr.mxu0 0.0
    %974 = vmatpush1.msra.mxu0 0.0
    %975 = vmatprep.subr.mxu0 0.0
    %976 = vmatpush1.msra.mxu0 0.0
    %977 = vmatprep.subr.mxu0 0.0
    %978 = vmatpush1.msra.mxu0 0.0
    %979 = vmatprep.subr.mxu0 0.0
    %980 = vmatpush1.msra.mxu0 0.0
    %981 = vmatprep.subr.mxu0 0.0
    %982 = vmatpush1.msra.mxu0 0.0
    %983 = vmatprep.subr.mxu0 0.0
    %984 = vmatpush1.msra.mxu0 0.0
    %985 = vmatprep.subr.mxu0 0.0
    %986 = vmatpush1.msra.mxu0 0.0
    %987 = vmatprep.subr.mxu0 0.0
    %988 = vmatpush1.msra.mxu0 0.0
    %989 = vmatprep.subr.mxu0 0.0
    %990 = vmatpush1.msra.mxu0 0.0
    %991 = vmatprep.mubr.f32.mxu0 0.0
    %v992 = vand.u32 %v671, 4294901760
    %v993 = vsub.f32 %v671, %v992
    %v994 = vand.u32 %v993, 4294901760
    %995 = vmatmul.mubr.f32.gmra.mrb[0].mxu0 %v994
    %v996 = vpop.f32.mrb[0].mxu0
    %v997 = vadd.f32 %v920, %v996
    %v998 = vpop.f32.mrb[0].mxu0
    %999 = vdwg.mxu0
    %1000 = vmatprep.subr.mxu0 0.0
    %v1001 = vand.u32 %v58, 4294901760
    %v1002 = vsub.f32 %v58, %v1001
    %v1003 = vand.u32 %v1002, 4294901760
    %1004 = vmatpush1.msra.mxu0 %v1003
    %1005 = vmatprep.subr.mxu0 0.0
    %v1006 = vand.u32 %v59, 4294901760
    %v1007 = vsub.f32 %v59, %v1006
    %v1008 = vand.u32 %v1007, 4294901760
    %1009 = vmatpush1.msra.mxu0 %v1008
    %1010 = vmatprep.subr.mxu0 0.0
    %v1011 = vand.u32 %v60, 4294901760
    %v1012 = vsub.f32 %v60, %v1011
    %v1013 = vand.u32 %v1012, 4294901760
    %1014 = vmatpush1.msra.mxu0 %v1013
    %1015 = vmatprep.subr.mxu0 0.0
    %v1016 = vand.u32 %v61, 4294901760
    %v1017 = vsub.f32 %v61, %v1016
    %v1018 = vand.u32 %v1017, 4294901760
    %1019 = vmatpush1.msra.mxu0 %v1018
    %1020 = vmatprep.subr.mxu0 0.0
    %1021 = vmatpush1.msra.mxu0 0.0
    %1022 = vmatprep.subr.mxu0 0.0
    %1023 = vmatpush1.msra.mxu0 0.0
    %1024 = vmatprep.subr.mxu0 0.0
    %1025 = vmatpush1.msra.mxu0 0.0
    %1026 = vmatprep.subr.mxu0 0.0
    %1027 = vmatpush1.msra.mxu0 0.0
    %1028 = vmatprep.subr.mxu0 0.0
    %1029 = vmatpush1.msra.mxu0 0.0
    %1030 = vmatprep.subr.mxu0 0.0
    %1031 = vmatpush1.msra.mxu0 0.0
    %1032 = vmatprep.subr.mxu0 0.0
    %1033 = vmatpush1.msra.mxu0 0.0
    %1034 = vmatprep.subr.mxu0 0.0
    %1035 = vmatpush1.msra.mxu0 0.0
    %1036 = vmatprep.subr.mxu0 0.0
    %1037 = vmatpush1.msra.mxu0 0.0
    %1038 = vmatprep.subr.mxu0 0.0
    %1039 = vmatpush1.msra.mxu0 0.0
    %1040 = vmatprep.subr.mxu0 0.0
    %1041 = vmatpush1.msra.mxu0 0.0
    %1042 = vmatprep.subr.mxu0 0.0
    %1043 = vmatpush1.msra.mxu0 0.0
    %1044 = vmatprep.subr.mxu0 0.0
    %1045 = vmatpush1.msra.mxu0 0.0
    %1046 = vmatprep.subr.mxu0 0.0
    %1047 = vmatpush1.msra.mxu0 0.0
    %1048 = vmatprep.subr.mxu0 0.0
    %1049 = vmatpush1.msra.mxu0 0.0
    %1050 = vmatprep.subr.mxu0 0.0
    %1051 = vmatpush1.msra.mxu0 0.0
    %1052 = vmatprep.subr.mxu0 0.0
    %1053 = vmatpush1.msra.mxu0 0.0
    %1054 = vmatprep.subr.mxu0 0.0
    %1055 = vmatpush1.msra.mxu0 0.0
    %1056 = vmatprep.subr.mxu0 0.0
    %1057 = vmatpush1.msra.mxu0 0.0
    %1058 = vmatprep.subr.mxu0 0.0
    %1059 = vmatpush1.msra.mxu0 0.0
    %1060 = vmatprep.subr.mxu0 0.0
    %1061 = vmatpush1.msra.mxu0 0.0
    %1062 = vmatprep.subr.mxu0 0.0
    %1063 = vmatpush1.msra.mxu0 0.0
    %1064 = vmatprep.subr.mxu0 0.0
    %1065 = vmatpush1.msra.mxu0 0.0
    %1066 = vmatprep.subr.mxu0 0.0
    %1067 = vmatpush1.msra.mxu0 0.0
    %1068 = vmatprep.subr.mxu0 0.0
    %1069 = vmatpush1.msra.mxu0 0.0
    %1070 = vmatprep.subr.mxu0 0.0
    %1071 = vmatpush1.msra.mxu0 0.0
    %1072 = vmatprep.subr.mxu0 0.0
    %1073 = vmatpush1.msra.mxu0 0.0
    %1074 = vmatprep.subr.mxu0 0.0
    %1075 = vmatpush1.msra.mxu0 0.0
    %1076 = vmatprep.mubr.f32.mxu0 0.0
    %v1077 = vand.u32 %v671, 4294901760
    %1078 = vmatmul.mubr.f32.gmra.mrb[0].mxu0 %v1077
    %v1079 = vpop.f32.mrb[0].mxu0
    %v1080 = vadd.f32 %v997, %v1079
    %v1081 = vpop.f32.mrb[0].mxu0
    %1082 = vdwg.mxu0
    %1083 = vmatprep.subr.mxu0 0.0
    %v1084 = vand.u32 %v58, 4294901760
    %1085 = vmatpush1.msra.mxu0 %v1084
    %1086 = vmatprep.subr.mxu0 0.0
    %v1087 = vand.u32 %v59, 4294901760
    %1088 = vmatpush1.msra.mxu0 %v1087
    %1089 = vmatprep.subr.mxu0 0.0
    %v1090 = vand.u32 %v60, 4294901760
    %1091 = vmatpush1.msra.mxu0 %v1090
    %1092 = vmatprep.subr.mxu0 0.0
    %v1093 = vand.u32 %v61, 4294901760
    %1094 = vmatpush1.msra.mxu0 %v1093
    %1095 = vmatprep.subr.mxu0 0.0
    %1096 = vmatpush1.msra.mxu0 0.0
    %1097 = vmatprep.subr.mxu0 0.0
    %1098 = vmatpush1.msra.mxu0 0.0
    %1099 = vmatprep.subr.mxu0 0.0
    %1100 = vmatpush1.msra.mxu0 0.0
    %1101 = vmatprep.subr.mxu0 0.0
    %1102 = vmatpush1.msra.mxu0 0.0
    %1103 = vmatprep.subr.mxu0 0.0
    %1104 = vmatpush1.msra.mxu0 0.0
    %1105 = vmatprep.subr.mxu0 0.0
    %1106 = vmatpush1.msra.mxu0 0.0
    %1107 = vmatprep.subr.mxu0 0.0
    %1108 = vmatpush1.msra.mxu0 0.0
    %1109 = vmatprep.subr.mxu0 0.0
    %1110 = vmatpush1.msra.mxu0 0.0
    %1111 = vmatprep.subr.mxu0 0.0
    %1112 = vmatpush1.msra.mxu0 0.0
    %1113 = vmatprep.subr.mxu0 0.0
    %1114 = vmatpush1.msra.mxu0 0.0
    %1115 = vmatprep.subr.mxu0 0.0
    %1116 = vmatpush1.msra.mxu0 0.0
    %1117 = vmatprep.subr.mxu0 0.0
    %1118 = vmatpush1.msra.mxu0 0.0
    %1119 = vmatprep.subr.mxu0 0.0
    %1120 = vmatpush1.msra.mxu0 0.0
    %1121 = vmatprep.subr.mxu0 0.0
    %1122 = vmatpush1.msra.mxu0 0.0
    %1123 = vmatprep.subr.mxu0 0.0
    %1124 = vmatpush1.msra.mxu0 0.0
    %1125 = vmatprep.subr.mxu0 0.0
    %1126 = vmatpush1.msra.mxu0 0.0
    %1127 = vmatprep.subr.mxu0 0.0
    %1128 = vmatpush1.msra.mxu0 0.0
    %1129 = vmatprep.subr.mxu0 0.0
    %1130 = vmatpush1.msra.mxu0 0.0
    %1131 = vmatprep.subr.mxu0 0.0
    %1132 = vmatpush1.msra.mxu0 0.0
    %1133 = vmatprep.subr.mxu0 0.0
    %1134 = vmatpush1.msra.mxu0 0.0
    %1135 = vmatprep.subr.mxu0 0.0
    %1136 = vmatpush1.msra.mxu0 0.0
    %1137 = vmatprep.subr.mxu0 0.0
    %1138 = vmatpush1.msra.mxu0 0.0
    %1139 = vmatprep.subr.mxu0 0.0
    %1140 = vmatpush1.msra.mxu0 0.0
    %1141 = vmatprep.subr.mxu0 0.0
    %1142 = vmatpush1.msra.mxu0 0.0
    %1143 = vmatprep.subr.mxu0 0.0
    %1144 = vmatpush1.msra.mxu0 0.0
    %1145 = vmatprep.subr.mxu0 0.0
    %1146 = vmatpush1.msra.mxu0 0.0
    %1147 = vmatprep.subr.mxu0 0.0
    %1148 = vmatpush1.msra.mxu0 0.0
    %1149 = vmatprep.subr.mxu0 0.0
    %1150 = vmatpush1.msra.mxu0 0.0
    %1151 = vmatprep.mubr.f32.mxu0 0.0
    %v1152 = vand.u32 %v671, 4294901760
    %1153 = vmatmul.mubr.f32.gmra.mrb[0].mxu0 %v1152
    %v1154 = vpop.f32.mrb[0].mxu0
    %v1155 = vadd.f32 %v1080, %v1154
    %v1156 = vpop.f32.mrb[0].mxu0
    %1157 = vdwg.mxu0
    %vm1158 = vcmask 58368
    %v1159 = vsel %vm1158, %v1155, -inf
    %1160 = vmax.xlane.f32.xlu0 %v1159
    %v1161 = vpop.xlane.xlu0 %1160
    %vm1162 = vcmp.eq.f32.partialorder %v1155, %v1161
    %v1163 = vsel %vm1162, %v64, 8
    %v1164 = vsel %vm1158, %v1163, 2147483647
    %v1165 = vand.u32 %v1164, 65535
    %v1166 = vshra.s32 %v1164, 16
    %v1167 = vcvt.s32.f32 %v1165
    %v1168 = vcvt.s32.f32 %v1166
    %1169 = vmin.xlane.f32.xlu0 %v1168
    %v1170 = vpop.xlane.xlu0 %1169
    %vm1171 = vcmp.eq.f32.partialorder %v1168, %v1170
    %v1172 = vsel %vm1171, %v1167, inf
    %1173 = vmin.xlane.f32.xlu0 %v1172
    %v1174 = vpop.xlane.xlu0 %1173
    %v1175 = vcvt.f32.s32 %v1174
    %v1176 = vcvt.f32.s32 %v1170
    %v1177 = vshll.u32 %v1176, 16
    %v1178 = vadd.s32 %v1177, %v1175
    %v1179 = vcvt.s32.f32 %v1178
    %vm1180 = vcmp.eq.s32.totalorder %v64, 0
    %v1181 = vsel %vm1180, 1.0, -1e+30
    %vm1182 = vcmask 64512
    %v1183 = vsel %vm1182, %v1181, -inf
    %1184 = vmax.xlane.f32.xlu0 %v1183
    %v1185 = vpop.xlane.xlu0 %1184
    %vm1186 = vcmp.eq.f32.partialorder %v1181, %v1185
    %v1187 = vsel %vm1186, %v64, 8
    %v1188 = vsel %vm1182, %v1187, 2147483647
    %v1189 = vand.u32 %v1188, 65535
    %v1190 = vshra.s32 %v1188, 16
    %v1191 = vcvt.s32.f32 %v1189
    %v1192 = vcvt.s32.f32 %v1190
    %1193 = vmin.xlane.f32.xlu0 %v1192
    %v1194 = vpop.xlane.xlu0 %1193
    %vm1195 = vcmp.eq.f32.partialorder %v1192, %v1194
    %v1196 = vsel %vm1195, %v1191, inf
    %1197 = vmin.xlane.f32.xlu0 %v1196
    %v1198 = vpop.xlane.xlu0 %1197
    %v1199 = vcvt.f32.s32 %v1198
    %v1200 = vcvt.f32.s32 %v1194
    %v1201 = vshll.u32 %v1200, 16
    %v1202 = vadd.s32 %v1201, %v1199
    %v1203 = vsub.f32 %v1181, %v1185
    %v1204 = vmul.f32 %v1203, 1.442695
    %v1205 = vpow.pop %v1204
    %v1206 = vsel %vm1182, %v1205, 0.0
    %1207 = vadd.xlane.f32.xlu0 %v1206
    %v1208 = vpop.xlane.xlu0 %1207
    %v1209 = vlog2.pop %v1208
    %v1210 = vmul.f32 %v1209, 0.6931472
    %v1211 = vsub.f32 0.0, %v1210
    %v1212 = vcvt.s32.f32 %v1202
    %vm1213 = vcmask 1024
    %1214 = vst.msk [vmem:[#allocation5] sm:$0x3] %vm1213, %v1212
    %1215 = vst.msk [vmem:[#allocation6] sm:$0x3] %vm1213, %v1211
    %vm1216 = vcmp.eq.s32.totalorder %v64, %v1202
    %v1217 = vsel %vm1216, 1, 0
    %v1218 = vcvt.s32.f32 %v1217
    %v1219 = vmax.f32 %v1218, 0.0
    %v1220 = vmul.f32 %v1179, %v71
    %v1221 = vadd.f32 %v1220, %v77
    %v1222 = vmax.f32 %v1221, 0.0
    %1223 = vrot.lane.b32.xlu0 %v661, 64
    %v1224 = vpop.permute.xlu0 %1223
    %v1226 = vsel %vm85, %v1222, %v1224
    %v1228 = vsel %vm93, %v1226, 0
    %1230 = vmatprep.subr.mxu0 0.0
    %v1231 = vand.u32 %v49, 4294901760
    %1232 = vmatpush1.msra.mxu0 %v1231
    %1233 = vmatprep.subr.mxu0 0.0
    %v1234 = vand.u32 %v50, 4294901760
    %1235 = vmatpush1.msra.mxu0 %v1234
    %1236 = vmatprep.subr.mxu0 0.0
    %v1237 = vand.u32 %v51, 4294901760
    %1238 = vmatpush1.msra.mxu0 %v1237
    %1239 = vmatprep.subr.mxu0 0.0
    %v1240 = vand.u32 %v52, 4294901760
    %1241 = vmatpush1.msra.mxu0 %v1240
    %1242 = vmatprep.subr.mxu0 0.0
    %v1243 = vand.u32 %v53, 4294901760
    %1244 = vmatpush1.msra.mxu0 %v1243
    %1245 = vmatprep.subr.mxu0 0.0
    %v1246 = vand.u32 %v54, 4294901760
    %1247 = vmatpush1.msra.mxu0 %v1246
    %1248 = vmatprep.subr.mxu0 0.0
    %v1249 = vand.u32 %v55, 4294901760
    %1250 = vmatpush1.msra.mxu0 %v1249
    %1251 = vmatprep.subr.mxu0 0.0
    %v1252 = vand.u32 %v56, 4294901760
    %1253 = vmatpush1.msra.mxu0 %v1252
    %1254 = vmatprep.subr.mxu0 0.0
    %1255 = vmatpush1.msra.mxu0 0.0
    %1256 = vmatprep.subr.mxu0 0.0
    %1257 = vmatpush1.msra.mxu0 0.0
    %1258 = vmatprep.subr.mxu0 0.0
    %1259 = vmatpush1.msra.mxu0 0.0
    %1260 = vmatprep.subr.mxu0 0.0
    %1261 = vmatpush1.msra.mxu0 0.0
    %1262 = vmatprep.subr.mxu0 0.0
    %1263 = vmatpush1.msra.mxu0 0.0
    %1264 = vmatprep.subr.mxu0 0.0
    %1265 = vmatpush1.msra.mxu0 0.0
    %1266 = vmatprep.subr.mxu0 0.0
    %1267 = vmatpush1.msra.mxu0 0.0
    %1268 = vmatprep.subr.mxu0 0.0
    %1269 = vmatpush1.msra.mxu0 0.0
    %1270 = vmatprep.subr.mxu0 0.0
    %1271 = vmatpush1.msra.mxu0 0.0
    %1272 = vmatprep.subr.mxu0 0.0
    %1273 = vmatpush1.msra.mxu0 0.0
    %1274 = vmatprep.subr.mxu0 0.0
    %1275 = vmatpush1.msra.mxu0 0.0
    %1276 = vmatprep.subr.mxu0 0.0
    %1277 = vmatpush1.msra.mxu0 0.0
    %1278 = vmatprep.subr.mxu0 0.0
    %1279 = vmatpush1.msra.mxu0 0.0
    %1280 = vmatprep.subr.mxu0 0.0
    %1281 = vmatpush1.msra.mxu0 0.0
    %1282 = vmatprep.subr.mxu0 0.0
    %1283 = vmatpush1.msra.mxu0 0.0
    %1284 = vmatprep.subr.mxu0 0.0
    %1285 = vmatpush1.msra.mxu0 0.0
    %1286 = vmatprep.subr.mxu0 0.0
    %1287 = vmatpush1.msra.mxu0 0.0
    %1288 = vmatprep.subr.mxu0 0.0
    %1289 = vmatpush1.msra.mxu0 0.0
    %1290 = vmatprep.subr.mxu0 0.0
    %1291 = vmatpush1.msra.mxu0 0.0
    %1292 = vmatprep.subr.mxu0 0.0
    %1293 = vmatpush1.msra.mxu0 0.0
    %1294 = vmatprep.subr.mxu0 0.0
    %1295 = vmatpush1.msra.mxu0 0.0
    %1296 = vmatprep.subr.mxu0 0.0
    %1297 = vmatpush1.msra.mxu0 0.0
    %1298 = vmatprep.subr.mxu0 0.0
    %1299 = vmatpush1.msra.mxu0 0.0
    %1300 = vmatprep.subr.mxu0 0.0
    %1301 = vmatpush1.msra.mxu0 0.0
    %1302 = vmatprep.mubr.f32.mxu0 0.0
    %v1303 = vand.u32 %v1228, 4294901760
    %v1304 = vsub.f32 %v1228, %v1303
    %v1305 = vand.u32 %v1304, 4294901760
    %v1306 = vsub.f32 %v1304, %v1305
    %v1307 = vand.u32 %v1306, 4294901760
    %1308 = vmatmul.mubr.f32.gmra.mrb[0].mxu0 %v1307
    %v1309 = vpop.f32.mrb[0].mxu0
    %v1310 = vadd.f32 %v91, %v1309
    %v1311 = vpop.f32.mrb[0].mxu0
    %1312 = vdwg.mxu0
    %1313 = vmatprep.subr.mxu0 0.0
    %v1314 = vand.u32 %v49, 4294901760
    %v1315 = vsub.f32 %v49, %v1314
    %v1316 = vand.u32 %v1315, 4294901760
    %v1317 = vsub.f32 %v1315, %v1316
    %v1318 = vand.u32 %v1317, 4294901760
    %1319 = vmatpush1.msra.mxu0 %v1318
    %1320 = vmatprep.subr.mxu0 0.0
    %v1321 = vand.u32 %v50, 4294901760
    %v1322 = vsub.f32 %v50, %v1321
    %v1323 = vand.u32 %v1322, 4294901760
    %v1324 = vsub.f32 %v1322, %v1323
    %v1325 = vand.u32 %v1324, 4294901760
    %1326 = vmatpush1.msra.mxu0 %v1325
    %1327 = vmatprep.subr.mxu0 0.0
    %v1328 = vand.u32 %v51, 4294901760
    %v1329 = vsub.f32 %v51, %v1328
    %v1330 = vand.u32 %v1329, 4294901760
    %v1331 = vsub.f32 %v1329, %v1330
    %v1332 = vand.u32 %v1331, 4294901760
    %1333 = vmatpush1.msra.mxu0 %v1332
    %1334 = vmatprep.subr.mxu0 0.0
    %v1335 = vand.u32 %v52, 4294901760
    %v1336 = vsub.f32 %v52, %v1335
    %v1337 = vand.u32 %v1336, 4294901760
    %v1338 = vsub.f32 %v1336, %v1337
    %v1339 = vand.u32 %v1338, 4294901760
    %1340 = vmatpush1.msra.mxu0 %v1339
    %1341 = vmatprep.subr.mxu0 0.0
    %v1342 = vand.u32 %v53, 4294901760
    %v1343 = vsub.f32 %v53, %v1342
    %v1344 = vand.u32 %v1343, 4294901760
    %v1345 = vsub.f32 %v1343, %v1344
    %v1346 = vand.u32 %v1345, 4294901760
    %1347 = vmatpush1.msra.mxu0 %v1346
    %1348 = vmatprep.subr.mxu0 0.0
    %v1349 = vand.u32 %v54, 4294901760
    %v1350 = vsub.f32 %v54, %v1349
    %v1351 = vand.u32 %v1350, 4294901760
    %v1352 = vsub.f32 %v1350, %v1351
    %v1353 = vand.u32 %v1352, 4294901760
    %1354 = vmatpush1.msra.mxu0 %v1353
    %1355 = vmatprep.subr.mxu0 0.0
    %v1356 = vand.u32 %v55, 4294901760
    %v1357 = vsub.f32 %v55, %v1356
    %v1358 = vand.u32 %v1357, 4294901760
    %v1359 = vsub.f32 %v1357, %v1358
    %v1360 = vand.u32 %v1359, 4294901760
    %1361 = vmatpush1.msra.mxu0 %v1360
    %1362 = vmatprep.subr.mxu0 0.0
    %v1363 = vand.u32 %v56, 4294901760
    %v1364 = vsub.f32 %v56, %v1363
    %v1365 = vand.u32 %v1364, 4294901760
    %v1366 = vsub.f32 %v1364, %v1365
    %v1367 = vand.u32 %v1366, 4294901760
    %1368 = vmatpush1.msra.mxu0 %v1367
    %1369 = vmatprep.subr.mxu0 0.0
    %1370 = vmatpush1.msra.mxu0 0.0
    %1371 = vmatprep.subr.mxu0 0.0
    %1372 = vmatpush1.msra.mxu0 0.0
    %1373 = vmatprep.subr.mxu0 0.0
    %1374 = vmatpush1.msra.mxu0 0.0
    %1375 = vmatprep.subr.mxu0 0.0
    %1376 = vmatpush1.msra.mxu0 0.0
    %1377 = vmatprep.subr.mxu0 0.0
    %1378 = vmatpush1.msra.mxu0 0.0
    %1379 = vmatprep.subr.mxu0 0.0
    %1380 = vmatpush1.msra.mxu0 0.0
    %1381 = vmatprep.subr.mxu0 0.0
    %1382 = vmatpush1.msra.mxu0 0.0
    %1383 = vmatprep.subr.mxu0 0.0
    %1384 = vmatpush1.msra.mxu0 0.0
    %1385 = vmatprep.subr.mxu0 0.0
    %1386 = vmatpush1.msra.mxu0 0.0
    %1387 = vmatprep.subr.mxu0 0.0
    %1388 = vmatpush1.msra.mxu0 0.0
    %1389 = vmatprep.subr.mxu0 0.0
    %1390 = vmatpush1.msra.mxu0 0.0
    %1391 = vmatprep.subr.mxu0 0.0
    %1392 = vmatpush1.msra.mxu0 0.0
    %1393 = vmatprep.subr.mxu0 0.0
    %1394 = vmatpush1.msra.mxu0 0.0
    %1395 = vmatprep.subr.mxu0 0.0
    %1396 = vmatpush1.msra.mxu0 0.0
    %1397 = vmatprep.subr.mxu0 0.0
    %1398 = vmatpush1.msra.mxu0 0.0
    %1399 = vmatprep.subr.mxu0 0.0
    %1400 = vmatpush1.msra.mxu0 0.0
    %1401 = vmatprep.subr.mxu0 0.0
    %1402 = vmatpush1.msra.mxu0 0.0
    %1403 = vmatprep.subr.mxu0 0.0
    %1404 = vmatpush1.msra.mxu0 0.0
    %1405 = vmatprep.subr.mxu0 0.0
    %1406 = vmatpush1.msra.mxu0 0.0
    %1407 = vmatprep.subr.mxu0 0.0
    %1408 = vmatpush1.msra.mxu0 0.0
    %1409 = vmatprep.subr.mxu0 0.0
    %1410 = vmatpush1.msra.mxu0 0.0
    %1411 = vmatprep.subr.mxu0 0.0
    %1412 = vmatpush1.msra.mxu0 0.0
    %1413 = vmatprep.subr.mxu0 0.0
    %1414 = vmatpush1.msra.mxu0 0.0
    %1415 = vmatprep.subr.mxu0 0.0
    %1416 = vmatpush1.msra.mxu0 0.0
    %1417 = vmatprep.mubr.f32.mxu0 0.0
    %v1418 = vand.u32 %v1228, 4294901760
    %1419 = vmatmul.mubr.f32.gmra.mrb[0].mxu0 %v1418
    %v1420 = vpop.f32.mrb[0].mxu0
    %v1421 = vadd.f32 %v1310, %v1420
    %v1422 = vpop.f32.mrb[0].mxu0
    %1423 = vdwg.mxu0
    %1424 = vmatprep.subr.mxu0 0.0
    %v1425 = vand.u32 %v49, 4294901760
    %v1426 = vsub.f32 %v49, %v1425
    %1427 = vmatpush1.msra.mxu0 %v1426
    %1428 = vmatprep.subr.mxu0 0.0
    %v1429 = vand.u32 %v50, 4294901760
    %v1430 = vsub.f32 %v50, %v1429
    %1431 = vmatpush1.msra.mxu0 %v1430
    %1432 = vmatprep.subr.mxu0 0.0
    %v1433 = vand.u32 %v51, 4294901760
    %v1434 = vsub.f32 %v51, %v1433
    %1435 = vmatpush1.msra.mxu0 %v1434
    %1436 = vmatprep.subr.mxu0 0.0
    %v1437 = vand.u32 %v52, 4294901760
    %v1438 = vsub.f32 %v52, %v1437
    %1439 = vmatpush1.msra.mxu0 %v1438
    %1440 = vmatprep.subr.mxu0 0.0
    %v1441 = vand.u32 %v53, 4294901760
    %v1442 = vsub.f32 %v53, %v1441
    %1443 = vmatpush1.msra.mxu0 %v1442
    %1444 = vmatprep.subr.mxu0 0.0
    %v1445 = vand.u32 %v54, 4294901760
    %v1446 = vsub.f32 %v54, %v1445
    %1447 = vmatpush1.msra.mxu0 %v1446
    %1448 = vmatprep.subr.mxu0 0.0
    %v1449 = vand.u32 %v55, 4294901760
    %v1450 = vsub.f32 %v55, %v1449
    %1451 = vmatpush1.msra.mxu0 %v1450
    %1452 = vmatprep.subr.mxu0 0.0
    %v1453 = vand.u32 %v56, 4294901760
    %v1454 = vsub.f32 %v56, %v1453
    %1455 = vmatpush1.msra.mxu0 %v1454
    %1456 = vmatprep.subr.mxu0 0.0
    %1457 = vmatpush1.msra.mxu0 0.0
    %1458 = vmatprep.subr.mxu0 0.0
    %1459 = vmatpush1.msra.mxu0 0.0
    %1460 = vmatprep.subr.mxu0 0.0
    %1461 = vmatpush1.msra.mxu0 0.0
    %1462 = vmatprep.subr.mxu0 0.0
    %1463 = vmatpush1.msra.mxu0 0.0
    %1464 = vmatprep.subr.mxu0 0.0
    %1465 = vmatpush1.msra.mxu0 0.0
    %1466 = vmatprep.subr.mxu0 0.0
    %1467 = vmatpush1.msra.mxu0 0.0
    %1468 = vmatprep.subr.mxu0 0.0
    %1469 = vmatpush1.msra.mxu0 0.0
    %1470 = vmatprep.subr.mxu0 0.0
    %1471 = vmatpush1.msra.mxu0 0.0
    %1472 = vmatprep.subr.mxu0 0.0
    %1473 = vmatpush1.msra.mxu0 0.0
    %1474 = vmatprep.subr.mxu0 0.0
    %1475 = vmatpush1.msra.mxu0 0.0
    %1476 = vmatprep.subr.mxu0 0.0
    %1477 = vmatpush1.msra.mxu0 0.0
    %1478 = vmatprep.subr.mxu0 0.0
    %1479 = vmatpush1.msra.mxu0 0.0
    %1480 = vmatprep.subr.mxu0 0.0
    %1481 = vmatpush1.msra.mxu0 0.0
    %1482 = vmatprep.subr.mxu0 0.0
    %1483 = vmatpush1.msra.mxu0 0.0
    %1484 = vmatprep.subr.mxu0 0.0
    %1485 = vmatpush1.msra.mxu0 0.0
    %1486 = vmatprep.subr.mxu0 0.0
    %1487 = vmatpush1.msra.mxu0 0.0
    %1488 = vmatprep.subr.mxu0 0.0
    %1489 = vmatpush1.msra.mxu0 0.0
    %1490 = vmatprep.subr.mxu0 0.0
    %1491 = vmatpush1.msra.mxu0 0.0
    %1492 = vmatprep.subr.mxu0 0.0
    %1493 = vmatpush1.msra.mxu0 0.0
    %1494 = vmatprep.subr.mxu0 0.0
    %1495 = vmatpush1.msra.mxu0 0.0
    %1496 = vmatprep.subr.mxu0 0.0
    %1497 = vmatpush1.msra.mxu0 0.0
    %1498 = vmatprep.subr.mxu0 0.0
    %1499 = vmatpush1.msra.mxu0 0.0
    %1500 = vmatprep.subr.mxu0 0.0
    %1501 = vmatpush1.msra.mxu0 0.0
    %1502 = vmatprep.subr.mxu0 0.0
    %1503 = vmatpush1.msra.mxu0 0.0
    %1504 = vmatprep.mubr.f32.mxu0 0.0
    %v1505 = vand.u32 %v1228, 4294901760
    %v1506 = vsub.f32 %v1228, %v1505
    %1507 = vmatmul.mubr.f32.gmra.mrb[0].mxu0 %v1506
    %v1508 = vpop.f32.mrb[0].mxu0
    %v1509 = vadd.f32 %v1421, %v1508
    %v1510 = vpop.f32.mrb[0].mxu0
    %1511 = vdwg.mxu0
    %1512 = vmatprep.subr.mxu0 0.0
    %v1513 = vand.u32 %v49, 4294901760
    %1514 = vmatpush1.msra.mxu0 %v1513
    %1515 = vmatprep.subr.mxu0 0.0
    %v1516 = vand.u32 %v50, 4294901760
    %1517 = vmatpush1.msra.mxu0 %v1516
    %1518 = vmatprep.subr.mxu0 0.0
    %v1519 = vand.u32 %v51, 4294901760
    %1520 = vmatpush1.msra.mxu0 %v1519
    %1521 = vmatprep.subr.mxu0 0.0
    %v1522 = vand.u32 %v52, 4294901760
    %1523 = vmatpush1.msra.mxu0 %v1522
    %1524 = vmatprep.subr.mxu0 0.0
    %v1525 = vand.u32 %v53, 4294901760
    %1526 = vmatpush1.msra.mxu0 %v1525
    %1527 = vmatprep.subr.mxu0 0.0
    %v1528 = vand.u32 %v54, 4294901760
    %1529 = vmatpush1.msra.mxu0 %v1528
    %1530 = vmatprep.subr.mxu0 0.0
    %v1531 = vand.u32 %v55, 4294901760
    %1532 = vmatpush1.msra.mxu0 %v1531
    %1533 = vmatprep.subr.mxu0 0.0
    %v1534 = vand.u32 %v56, 4294901760
    %1535 = vmatpush1.msra.mxu0 %v1534
    %1536 = vmatprep.subr.mxu0 0.0
    %1537 = vmatpush1.msra.mxu0 0.0
    %1538 = vmatprep.subr.mxu0 0.0
    %1539 = vmatpush1.msra.mxu0 0.0
    %1540 = vmatprep.subr.mxu0 0.0
    %1541 = vmatpush1.msra.mxu0 0.0
    %1542 = vmatprep.subr.mxu0 0.0
    %1543 = vmatpush1.msra.mxu0 0.0
    %1544 = vmatprep.subr.mxu0 0.0
    %1545 = vmatpush1.msra.mxu0 0.0
    %1546 = vmatprep.subr.mxu0 0.0
    %1547 = vmatpush1.msra.mxu0 0.0
    %1548 = vmatprep.subr.mxu0 0.0
    %1549 = vmatpush1.msra.mxu0 0.0
    %1550 = vmatprep.subr.mxu0 0.0
    %1551 = vmatpush1.msra.mxu0 0.0
    %1552 = vmatprep.subr.mxu0 0.0
    %1553 = vmatpush1.msra.mxu0 0.0
    %1554 = vmatprep.subr.mxu0 0.0
    %1555 = vmatpush1.msra.mxu0 0.0
    %1556 = vmatprep.subr.mxu0 0.0
    %1557 = vmatpush1.msra.mxu0 0.0
    %1558 = vmatprep.subr.mxu0 0.0
    %1559 = vmatpush1.msra.mxu0 0.0
    %1560 = vmatprep.subr.mxu0 0.0
    %1561 = vmatpush1.msra.mxu0 0.0
    %1562 = vmatprep.subr.mxu0 0.0
    %1563 = vmatpush1.msra.mxu0 0.0
    %1564 = vmatprep.subr.mxu0 0.0
    %1565 = vmatpush1.msra.mxu0 0.0
    %1566 = vmatprep.subr.mxu0 0.0
    %1567 = vmatpush1.msra.mxu0 0.0
    %1568 = vmatprep.subr.mxu0 0.0
    %1569 = vmatpush1.msra.mxu0 0.0
    %1570 = vmatprep.subr.mxu0 0.0
    %1571 = vmatpush1.msra.mxu0 0.0
    %1572 = vmatprep.subr.mxu0 0.0
    %1573 = vmatpush1.msra.mxu0 0.0
    %1574 = vmatprep.subr.mxu0 0.0
    %1575 = vmatpush1.msra.mxu0 0.0
    %1576 = vmatprep.subr.mxu0 0.0
    %1577 = vmatpush1.msra.mxu0 0.0
    %1578 = vmatprep.subr.mxu0 0.0
    %1579 = vmatpush1.msra.mxu0 0.0
    %1580 = vmatprep.subr.mxu0 0.0
    %1581 = vmatpush1.msra.mxu0 0.0
    %1582 = vmatprep.subr.mxu0 0.0
    %1583 = vmatpush1.msra.mxu0 0.0
    %1584 = vmatprep.mubr.f32.mxu0 0.0
    %v1585 = vand.u32 %v1228, 4294901760
    %v1586 = vsub.f32 %v1228, %v1585
    %v1587 = vand.u32 %v1586, 4294901760
    %1588 = vmatmul.mubr.f32.gmra.mrb[0].mxu0 %v1587
    %v1589 = vpop.f32.mrb[0].mxu0
    %v1590 = vadd.f32 %v1509, %v1589
    %v1591 = vpop.f32.mrb[0].mxu0
    %1592 = vdwg.mxu0
    %1593 = vmatprep.subr.mxu0 0.0
    %v1594 = vand.u32 %v49, 4294901760
    %v1595 = vsub.f32 %v49, %v1594
    %v1596 = vand.u32 %v1595, 4294901760
    %1597 = vmatpush1.msra.mxu0 %v1596
    %1598 = vmatprep.subr.mxu0 0.0
    %v1599 = vand.u32 %v50, 4294901760
    %v1600 = vsub.f32 %v50, %v1599
    %v1601 = vand.u32 %v1600, 4294901760
    %1602 = vmatpush1.msra.mxu0 %v1601
    %1603 = vmatprep.subr.mxu0 0.0
    %v1604 = vand.u32 %v51, 4294901760
    %v1605 = vsub.f32 %v51, %v1604
    %v1606 = vand.u32 %v1605, 4294901760
    %1607 = vmatpush1.msra.mxu0 %v1606
    %1608 = vmatprep.subr.mxu0 0.0
    %v1609 = vand.u32 %v52, 4294901760
    %v1610 = vsub.f32 %v52, %v1609
    %v1611 = vand.u32 %v1610, 4294901760
    %1612 = vmatpush1.msra.mxu0 %v1611
    %1613 = vmatprep.subr.mxu0 0.0
    %v1614 = vand.u32 %v53, 4294901760
    %v1615 = vsub.f32 %v53, %v1614
    %v1616 = vand.u32 %v1615, 4294901760
    %1617 = vmatpush1.msra.mxu0 %v1616
    %1618 = vmatprep.subr.mxu0 0.0
    %v1619 = vand.u32 %v54, 4294901760
    %v1620 = vsub.f32 %v54, %v1619
    %v1621 = vand.u32 %v1620, 4294901760
    %1622 = vmatpush1.msra.mxu0 %v1621
    %1623 = vmatprep.subr.mxu0 0.0
    %v1624 = vand.u32 %v55, 4294901760
    %v1625 = vsub.f32 %v55, %v1624
    %v1626 = vand.u32 %v1625, 4294901760
    %1627 = vmatpush1.msra.mxu0 %v1626
    %1628 = vmatprep.subr.mxu0 0.0
    %v1629 = vand.u32 %v56, 4294901760
    %v1630 = vsub.f32 %v56, %v1629
    %v1631 = vand.u32 %v1630, 4294901760
    %1632 = vmatpush1.msra.mxu0 %v1631
    %1633 = vmatprep.subr.mxu0 0.0
    %1634 = vmatpush1.msra.mxu0 0.0
    %1635 = vmatprep.subr.mxu0 0.0
    %1636 = vmatpush1.msra.mxu0 0.0
    %1637 = vmatprep.subr.mxu0 0.0
    %1638 = vmatpush1.msra.mxu0 0.0
    %1639 = vmatprep.subr.mxu0 0.0
    %1640 = vmatpush1.msra.mxu0 0.0
    %1641 = vmatprep.subr.mxu0 0.0
    %1642 = vmatpush1.msra.mxu0 0.0
    %1643 = vmatprep.subr.mxu0 0.0
    %1644 = vmatpush1.msra.mxu0 0.0
    %1645 = vmatprep.subr.mxu0 0.0
    %1646 = vmatpush1.msra.mxu0 0.0
    %1647 = vmatprep.subr.mxu0 0.0
    %1648 = vmatpush1.msra.mxu0 0.0
    %1649 = vmatprep.subr.mxu0 0.0
    %1650 = vmatpush1.msra.mxu0 0.0
    %1651 = vmatprep.subr.mxu0 0.0
    %1652 = vmatpush1.msra.mxu0 0.0
    %1653 = vmatprep.subr.mxu0 0.0
    %1654 = vmatpush1.msra.mxu0 0.0
    %1655 = vmatprep.subr.mxu0 0.0
    %1656 = vmatpush1.msra.mxu0 0.0
    %1657 = vmatprep.subr.mxu0 0.0
    %1658 = vmatpush1.msra.mxu0 0.0
    %1659 = vmatprep.subr.mxu0 0.0
    %1660 = vmatpush1.msra.mxu0 0.0
    %1661 = vmatprep.subr.mxu0 0.0
    %1662 = vmatpush1.msra.mxu0 0.0
    %1663 = vmatprep.subr.mxu0 0.0
    %1664 = vmatpush1.msra.mxu0 0.0
    %1665 = vmatprep.subr.mxu0 0.0
    %1666 = vmatpush1.msra.mxu0 0.0
    %1667 = vmatprep.subr.mxu0 0.0
    %1668 = vmatpush1.msra.mxu0 0.0
    %1669 = vmatprep.subr.mxu0 0.0
    %1670 = vmatpush1.msra.mxu0 0.0
    %1671 = vmatprep.subr.mxu0 0.0
    %1672 = vmatpush1.msra.mxu0 0.0
    %1673 = vmatprep.subr.mxu0 0.0
    %1674 = vmatpush1.msra.mxu0 0.0
    %1675 = vmatprep.subr.mxu0 0.0
    %1676 = vmatpush1.msra.mxu0 0.0
    %1677 = vmatprep.subr.mxu0 0.0
    %1678 = vmatpush1.msra.mxu0 0.0
    %1679 = vmatprep.subr.mxu0 0.0
    %1680 = vmatpush1.msra.mxu0 0.0
    %1681 = vmatprep.mubr.f32.mxu0 0.0
    %v1682 = vand.u32 %v1228, 4294901760
    %1683 = vmatmul.mubr.f32.gmra.mrb[0].mxu0 %v1682
    %v1684 = vpop.f32.mrb[0].mxu0
    %v1685 = vadd.f32 %v1590, %v1684
    %v1686 = vpop.f32.mrb[0].mxu0
    %1687 = vdwg.mxu0
    %1688 = vmatprep.subr.mxu0 0.0
    %v1689 = vand.u32 %v49, 4294901760
    %1690 = vmatpush1.msra.mxu0 %v1689
    %1691 = vmatprep.subr.mxu0 0.0
    %v1692 = vand.u32 %v50, 4294901760
    %1693 = vmatpush1.msra.mxu0 %v1692
    %1694 = vmatprep.subr.mxu0 0.0
    %v1695 = vand.u32 %v51, 4294901760
    %1696 = vmatpush1.msra.mxu0 %v1695
    %1697 = vmatprep.subr.mxu0 0.0
    %v1698 = vand.u32 %v52, 4294901760
    %1699 = vmatpush1.msra.mxu0 %v1698
    %1700 = vmatprep.subr.mxu0 0.0
    %v1701 = vand.u32 %v53, 4294901760
    %1702 = vmatpush1.msra.mxu0 %v1701
    %1703 = vmatprep.subr.mxu0 0.0
    %v1704 = vand.u32 %v54, 4294901760
    %1705 = vmatpush1.msra.mxu0 %v1704
    %1706 = vmatprep.subr.mxu0 0.0
    %v1707 = vand.u32 %v55, 4294901760
    %1708 = vmatpush1.msra.mxu0 %v1707
    %1709 = vmatprep.subr.mxu0 0.0
    %v1710 = vand.u32 %v56, 4294901760
    %1711 = vmatpush1.msra.mxu0 %v1710
    %1712 = vmatprep.subr.mxu0 0.0
    %1713 = vmatpush1.msra.mxu0 0.0
    %1714 = vmatprep.subr.mxu0 0.0
    %1715 = vmatpush1.msra.mxu0 0.0
    %1716 = vmatprep.subr.mxu0 0.0
    %1717 = vmatpush1.msra.mxu0 0.0
    %1718 = vmatprep.subr.mxu0 0.0
    %1719 = vmatpush1.msra.mxu0 0.0
    %1720 = vmatprep.subr.mxu0 0.0
    %1721 = vmatpush1.msra.mxu0 0.0
    %1722 = vmatprep.subr.mxu0 0.0
    %1723 = vmatpush1.msra.mxu0 0.0
    %1724 = vmatprep.subr.mxu0 0.0
    %1725 = vmatpush1.msra.mxu0 0.0
    %1726 = vmatprep.subr.mxu0 0.0
    %1727 = vmatpush1.msra.mxu0 0.0
    %1728 = vmatprep.subr.mxu0 0.0
    %1729 = vmatpush1.msra.mxu0 0.0
    %1730 = vmatprep.subr.mxu0 0.0
    %1731 = vmatpush1.msra.mxu0 0.0
    %1732 = vmatprep.subr.mxu0 0.0
    %1733 = vmatpush1.msra.mxu0 0.0
    %1734 = vmatprep.subr.mxu0 0.0
    %1735 = vmatpush1.msra.mxu0 0.0
    %1736 = vmatprep.subr.mxu0 0.0
    %1737 = vmatpush1.msra.mxu0 0.0
    %1738 = vmatprep.subr.mxu0 0.0
    %1739 = vmatpush1.msra.mxu0 0.0
    %1740 = vmatprep.subr.mxu0 0.0
    %1741 = vmatpush1.msra.mxu0 0.0
    %1742 = vmatprep.subr.mxu0 0.0
    %1743 = vmatpush1.msra.mxu0 0.0
    %1744 = vmatprep.subr.mxu0 0.0
    %1745 = vmatpush1.msra.mxu0 0.0
    %1746 = vmatprep.subr.mxu0 0.0
    %1747 = vmatpush1.msra.mxu0 0.0
    %1748 = vmatprep.subr.mxu0 0.0
    %1749 = vmatpush1.msra.mxu0 0.0
    %1750 = vmatprep.subr.mxu0 0.0
    %1751 = vmatpush1.msra.mxu0 0.0
    %1752 = vmatprep.subr.mxu0 0.0
    %1753 = vmatpush1.msra.mxu0 0.0
    %1754 = vmatprep.subr.mxu0 0.0
    %1755 = vmatpush1.msra.mxu0 0.0
    %1756 = vmatprep.subr.mxu0 0.0
    %1757 = vmatpush1.msra.mxu0 0.0
    %1758 = vmatprep.subr.mxu0 0.0
    %1759 = vmatpush1.msra.mxu0 0.0
    %1760 = vmatprep.mubr.f32.mxu0 0.0
    %v1761 = vand.u32 %v1228, 4294901760
    %1762 = vmatmul.mubr.f32.gmra.mrb[0].mxu0 %v1761
    %v1763 = vpop.f32.mrb[0].mxu0
    %v1764 = vadd.f32 %v1685, %v1763
    %v1765 = vpop.f32.mrb[0].mxu0
    %1766 = vdwg.mxu0
    %v1767 = vxor.u32 %v1764, 2147483648
    %v1768 = vmul.f32 %v1767, 1.442695
    %v1769 = vpow.pop %v1768
    %v1770 = vadd.f32 %v1769, 1.0
    %v1771 = vrcp.pop %v1770
    %v1772 = vmul.f32 1.0, %v1771
    %v1773 = vtanh.pop %v1764
    %v1774 = vmul.f32 %v1772, %v655
    %1776 = vrot.lane.b32.xlu0 %v1773, 64
    %v1777 = vpop.permute.xlu0 %1776
    %v1779 = vmul.f32 %v1772, %v1777
    %1781 = vrot.lane.b32.xlu0 %v1779, 32
    %v1782 = vpop.permute.xlu0 %1781
    %v1784 = vadd.f32 %v1774, %v1782
    %v1785 = vtanh.pop %v1784
    %1787 = vrot.lane.b32.xlu0 %v1785, 64
    %v1788 = vpop.permute.xlu0 %1787
    %v1790 = vmul.f32 %v1772, %v1788
    %1792 = vrot.lane.b32.xlu0 %v1790, 32
    %v1793 = vpop.permute.xlu0 %1792
    %v1794 = vsel %vm85, %v1793, 0
    %1796 = vmatprep.subr.mxu0 0.0
    %v1797 = vand.u32 %v58, 4294901760
    %1798 = vmatpush1.msra.mxu0 %v1797
    %1799 = vmatprep.subr.mxu0 0.0
    %v1800 = vand.u32 %v59, 4294901760
    %1801 = vmatpush1.msra.mxu0 %v1800
    %1802 = vmatprep.subr.mxu0 0.0
    %v1803 = vand.u32 %v60, 4294901760
    %1804 = vmatpush1.msra.mxu0 %v1803
    %1805 = vmatprep.subr.mxu0 0.0
    %v1806 = vand.u32 %v61, 4294901760
    %1807 = vmatpush1.msra.mxu0 %v1806
    %1808 = vmatprep.subr.mxu0 0.0
    %1809 = vmatpush1.msra.mxu0 0.0
    %1810 = vmatprep.subr.mxu0 0.0
    %1811 = vmatpush1.msra.mxu0 0.0
    %1812 = vmatprep.subr.mxu0 0.0
    %1813 = vmatpush1.msra.mxu0 0.0
    %1814 = vmatprep.subr.mxu0 0.0
    %1815 = vmatpush1.msra.mxu0 0.0
    %1816 = vmatprep.subr.mxu0 0.0
    %1817 = vmatpush1.msra.mxu0 0.0
    %1818 = vmatprep.subr.mxu0 0.0
    %1819 = vmatpush1.msra.mxu0 0.0
    %1820 = vmatprep.subr.mxu0 0.0
    %1821 = vmatpush1.msra.mxu0 0.0
    %1822 = vmatprep.subr.mxu0 0.0
    %1823 = vmatpush1.msra.mxu0 0.0
    %1824 = vmatprep.subr.mxu0 0.0
    %1825 = vmatpush1.msra.mxu0 0.0
    %1826 = vmatprep.subr.mxu0 0.0
    %1827 = vmatpush1.msra.mxu0 0.0
    %1828 = vmatprep.subr.mxu0 0.0
    %1829 = vmatpush1.msra.mxu0 0.0
    %1830 = vmatprep.subr.mxu0 0.0
    %1831 = vmatpush1.msra.mxu0 0.0
    %1832 = vmatprep.subr.mxu0 0.0
    %1833 = vmatpush1.msra.mxu0 0.0
    %1834 = vmatprep.subr.mxu0 0.0
    %1835 = vmatpush1.msra.mxu0 0.0
    %1836 = vmatprep.subr.mxu0 0.0
    %1837 = vmatpush1.msra.mxu0 0.0
    %1838 = vmatprep.subr.mxu0 0.0
    %1839 = vmatpush1.msra.mxu0 0.0
    %1840 = vmatprep.subr.mxu0 0.0
    %1841 = vmatpush1.msra.mxu0 0.0
    %1842 = vmatprep.subr.mxu0 0.0
    %1843 = vmatpush1.msra.mxu0 0.0
    %1844 = vmatprep.subr.mxu0 0.0
    %1845 = vmatpush1.msra.mxu0 0.0
    %1846 = vmatprep.subr.mxu0 0.0
    %1847 = vmatpush1.msra.mxu0 0.0
    %1848 = vmatprep.subr.mxu0 0.0
    %1849 = vmatpush1.msra.mxu0 0.0
    %1850 = vmatprep.subr.mxu0 0.0
    %1851 = vmatpush1.msra.mxu0 0.0
    %1852 = vmatprep.subr.mxu0 0.0
    %1853 = vmatpush1.msra.mxu0 0.0
    %1854 = vmatprep.subr.mxu0 0.0
    %1855 = vmatpush1.msra.mxu0 0.0
    %1856 = vmatprep.subr.mxu0 0.0
    %1857 = vmatpush1.msra.mxu0 0.0
    %1858 = vmatprep.subr.mxu0 0.0
    %1859 = vmatpush1.msra.mxu0 0.0
    %1860 = vmatprep.subr.mxu0 0.0
    %1861 = vmatpush1.msra.mxu0 0.0
    %1862 = vmatprep.subr.mxu0 0.0
    %1863 = vmatpush1.msra.mxu0 0.0
    %1864 = vmatprep.mubr.f32.mxu0 0.0
    %v1865 = vand.u32 %v1794, 4294901760
    %v1866 = vsub.f32 %v1794, %v1865
    %v1867 = vand.u32 %v1866, 4294901760
    %v1868 = vsub.f32 %v1866, %v1867
    %v1869 = vand.u32 %v1868, 4294901760
    %1870 = vmatmul.mubr.f32.gmra.mrb[0].mxu0 %v1869
    %v1871 = vpop.f32.mrb[0].mxu0
    %v1872 = vadd.f32 %v666, %v1871
    %v1873 = vpop.f32.mrb[0].mxu0
    %1874 = vdwg.mxu0
    %1875 = vmatprep.subr.mxu0 0.0
    %v1876 = vand.u32 %v58, 4294901760
    %v1877 = vsub.f32 %v58, %v1876
    %v1878 = vand.u32 %v1877, 4294901760
    %v1879 = vsub.f32 %v1877, %v1878
    %v1880 = vand.u32 %v1879, 4294901760
    %1881 = vmatpush1.msra.mxu0 %v1880
    %1882 = vmatprep.subr.mxu0 0.0
    %v1883 = vand.u32 %v59, 4294901760
    %v1884 = vsub.f32 %v59, %v1883
    %v1885 = vand.u32 %v1884, 4294901760
    %v1886 = vsub.f32 %v1884, %v1885
    %v1887 = vand.u32 %v1886, 4294901760
    %1888 = vmatpush1.msra.mxu0 %v1887
    %1889 = vmatprep.subr.mxu0 0.0
    %v1890 = vand.u32 %v60, 4294901760
    %v1891 = vsub.f32 %v60, %v1890
    %v1892 = vand.u32 %v1891, 4294901760
    %v1893 = vsub.f32 %v1891, %v1892
    %v1894 = vand.u32 %v1893, 4294901760
    %1895 = vmatpush1.msra.mxu0 %v1894
    %1896 = vmatprep.subr.mxu0 0.0
    %v1897 = vand.u32 %v61, 4294901760
    %v1898 = vsub.f32 %v61, %v1897
    %v1899 = vand.u32 %v1898, 4294901760
    %v1900 = vsub.f32 %v1898, %v1899
    %v1901 = vand.u32 %v1900, 4294901760
    %1902 = vmatpush1.msra.mxu0 %v1901
    %1903 = vmatprep.subr.mxu0 0.0
    %1904 = vmatpush1.msra.mxu0 0.0
    %1905 = vmatprep.subr.mxu0 0.0
    %1906 = vmatpush1.msra.mxu0 0.0
    %1907 = vmatprep.subr.mxu0 0.0
    %1908 = vmatpush1.msra.mxu0 0.0
    %1909 = vmatprep.subr.mxu0 0.0
    %1910 = vmatpush1.msra.mxu0 0.0
    %1911 = vmatprep.subr.mxu0 0.0
    %1912 = vmatpush1.msra.mxu0 0.0
    %1913 = vmatprep.subr.mxu0 0.0
    %1914 = vmatpush1.msra.mxu0 0.0
    %1915 = vmatprep.subr.mxu0 0.0
    %1916 = vmatpush1.msra.mxu0 0.0
    %1917 = vmatprep.subr.mxu0 0.0
    %1918 = vmatpush1.msra.mxu0 0.0
    %1919 = vmatprep.subr.mxu0 0.0
    %1920 = vmatpush1.msra.mxu0 0.0
    %1921 = vmatprep.subr.mxu0 0.0
    %1922 = vmatpush1.msra.mxu0 0.0
    %1923 = vmatprep.subr.mxu0 0.0
    %1924 = vmatpush1.msra.mxu0 0.0
    %1925 = vmatprep.subr.mxu0 0.0
    %1926 = vmatpush1.msra.mxu0 0.0
    %1927 = vmatprep.subr.mxu0 0.0
    %1928 = vmatpush1.msra.mxu0 0.0
    %1929 = vmatprep.subr.mxu0 0.0
    %1930 = vmatpush1.msra.mxu0 0.0
    %1931 = vmatprep.subr.mxu0 0.0
    %1932 = vmatpush1.msra.mxu0 0.0
    %1933 = vmatprep.subr.mxu0 0.0
    %1934 = vmatpush1.msra.mxu0 0.0
    %1935 = vmatprep.subr.mxu0 0.0
    %1936 = vmatpush1.msra.mxu0 0.0
    %1937 = vmatprep.subr.mxu0 0.0
    %1938 = vmatpush1.msra.mxu0 0.0
    %1939 = vmatprep.subr.mxu0 0.0
    %1940 = vmatpush1.msra.mxu0 0.0
    %1941 = vmatprep.subr.mxu0 0.0
    %1942 = vmatpush1.msra.mxu0 0.0
    %1943 = vmatprep.subr.mxu0 0.0
    %1944 = vmatpush1.msra.mxu0 0.0
    %1945 = vmatprep.subr.mxu0 0.0
    %1946 = vmatpush1.msra.mxu0 0.0
    %1947 = vmatprep.subr.mxu0 0.0
    %1948 = vmatpush1.msra.mxu0 0.0
    %1949 = vmatprep.subr.mxu0 0.0
    %1950 = vmatpush1.msra.mxu0 0.0
    %1951 = vmatprep.subr.mxu0 0.0
    %1952 = vmatpush1.msra.mxu0 0.0
    %1953 = vmatprep.subr.mxu0 0.0
    %1954 = vmatpush1.msra.mxu0 0.0
    %1955 = vmatprep.subr.mxu0 0.0
    %1956 = vmatpush1.msra.mxu0 0.0
    %1957 = vmatprep.subr.mxu0 0.0
    %1958 = vmatpush1.msra.mxu0 0.0
    %1959 = vmatprep.mubr.f32.mxu0 0.0
    %v1960 = vand.u32 %v1794, 4294901760
    %1961 = vmatmul.mubr.f32.gmra.mrb[0].mxu0 %v1960
    %v1962 = vpop.f32.mrb[0].mxu0
    %v1963 = vadd.f32 %v1872, %v1962
    %v1964 = vpop.f32.mrb[0].mxu0
    %1965 = vdwg.mxu0
    %1966 = vmatprep.subr.mxu0 0.0
    %v1967 = vand.u32 %v58, 4294901760
    %v1968 = vsub.f32 %v58, %v1967
    %1969 = vmatpush1.msra.mxu0 %v1968
    %1970 = vmatprep.subr.mxu0 0.0
    %v1971 = vand.u32 %v59, 4294901760
    %v1972 = vsub.f32 %v59, %v1971
    %1973 = vmatpush1.msra.mxu0 %v1972
    %1974 = vmatprep.subr.mxu0 0.0
    %v1975 = vand.u32 %v60, 4294901760
    %v1976 = vsub.f32 %v60, %v1975
    %1977 = vmatpush1.msra.mxu0 %v1976
    %1978 = vmatprep.subr.mxu0 0.0
    %v1979 = vand.u32 %v61, 4294901760
    %v1980 = vsub.f32 %v61, %v1979
    %1981 = vmatpush1.msra.mxu0 %v1980
    %1982 = vmatprep.subr.mxu0 0.0
    %1983 = vmatpush1.msra.mxu0 0.0
    %1984 = vmatprep.subr.mxu0 0.0
    %1985 = vmatpush1.msra.mxu0 0.0
    %1986 = vmatprep.subr.mxu0 0.0
    %1987 = vmatpush1.msra.mxu0 0.0
    %1988 = vmatprep.subr.mxu0 0.0
    %1989 = vmatpush1.msra.mxu0 0.0
    %1990 = vmatprep.subr.mxu0 0.0
    %1991 = vmatpush1.msra.mxu0 0.0
    %1992 = vmatprep.subr.mxu0 0.0
    %1993 = vmatpush1.msra.mxu0 0.0
    %1994 = vmatprep.subr.mxu0 0.0
    %1995 = vmatpush1.msra.mxu0 0.0
    %1996 = vmatprep.subr.mxu0 0.0
    %1997 = vmatpush1.msra.mxu0 0.0
    %1998 = vmatprep.subr.mxu0 0.0
    %1999 = vmatpush1.msra.mxu0 0.0
    %2000 = vmatprep.subr.mxu0 0.0
    %2001 = vmatpush1.msra.mxu0 0.0
    %2002 = vmatprep.subr.mxu0 0.0
    %2003 = vmatpush1.msra.mxu0 0.0
    %2004 = vmatprep.subr.mxu0 0.0
    %2005 = vmatpush1.msra.mxu0 0.0
    %2006 = vmatprep.subr.mxu0 0.0
    %2007 = vmatpush1.msra.mxu0 0.0
    %2008 = vmatprep.subr.mxu0 0.0
    %2009 = vmatpush1.msra.mxu0 0.0
    %2010 = vmatprep.subr.mxu0 0.0
    %2011 = vmatpush1.msra.mxu0 0.0
    %2012 = vmatprep.subr.mxu0 0.0
    %2013 = vmatpush1.msra.mxu0 0.0
    %2014 = vmatprep.subr.mxu0 0.0
    %2015 = vmatpush1.msra.mxu0 0.0
    %2016 = vmatprep.subr.mxu0 0.0
    %2017 = vmatpush1.msra.mxu0 0.0
    %2018 = vmatprep.subr.mxu0 0.0
    %2019 = vmatpush1.msra.mxu0 0.0
    %2020 = vmatprep.subr.mxu0 0.0
    %2021 = vmatpush1.msra.mxu0 0.0
    %2022 = vmatprep.subr.mxu0 0.0
    %2023 = vmatpush1.msra.mxu0 0.0
    %2024 = vmatprep.subr.mxu0 0.0
    %2025 = vmatpush1.msra.mxu0 0.0
    %2026 = vmatprep.subr.mxu0 0.0
    %2027 = vmatpush1.msra.mxu0 0.0
    %2028 = vmatprep.subr.mxu0 0.0
    %2029 = vmatpush1.msra.mxu0 0.0
    %2030 = vmatprep.subr.mxu0 0.0
    %2031 = vmatpush1.msra.mxu0 0.0
    %2032 = vmatprep.subr.mxu0 0.0
    %2033 = vmatpush1.msra.mxu0 0.0
    %2034 = vmatprep.subr.mxu0 0.0
    %2035 = vmatpush1.msra.mxu0 0.0
    %2036 = vmatprep.subr.mxu0 0.0
    %2037 = vmatpush1.msra.mxu0 0.0
    %2038 = vmatprep.mubr.f32.mxu0 0.0
    %v2039 = vand.u32 %v1794, 4294901760
    %v2040 = vsub.f32 %v1794, %v2039
    %2041 = vmatmul.mubr.f32.gmra.mrb[0].mxu0 %v2040
    %v2042 = vpop.f32.mrb[0].mxu0
    %v2043 = vadd.f32 %v1963, %v2042
    %v2044 = vpop.f32.mrb[0].mxu0
    %2045 = vdwg.mxu0
    %2046 = vmatprep.subr.mxu0 0.0
    %v2047 = vand.u32 %v58, 4294901760
    %2048 = vmatpush1.msra.mxu0 %v2047
    %2049 = vmatprep.subr.mxu0 0.0
    %v2050 = vand.u32 %v59, 4294901760
    %2051 = vmatpush1.msra.mxu0 %v2050
    %2052 = vmatprep.subr.mxu0 0.0
    %v2053 = vand.u32 %v60, 4294901760
    %2054 = vmatpush1.msra.mxu0 %v2053
    %2055 = vmatprep.subr.mxu0 0.0
    %v2056 = vand.u32 %v61, 4294901760
    %2057 = vmatpush1.msra.mxu0 %v2056
    %2058 = vmatprep.subr.mxu0 0.0
    %2059 = vmatpush1.msra.mxu0 0.0
    %2060 = vmatprep.subr.mxu0 0.0
    %2061 = vmatpush1.msra.mxu0 0.0
    %2062 = vmatprep.subr.mxu0 0.0
    %2063 = vmatpush1.msra.mxu0 0.0
    %2064 = vmatprep.subr.mxu0 0.0
    %2065 = vmatpush1.msra.mxu0 0.0
    %2066 = vmatprep.subr.mxu0 0.0
    %2067 = vmatpush1.msra.mxu0 0.0
    %2068 = vmatprep.subr.mxu0 0.0
    %2069 = vmatpush1.msra.mxu0 0.0
    %2070 = vmatprep.subr.mxu0 0.0
    %2071 = vmatpush1.msra.mxu0 0.0
    %2072 = vmatprep.subr.mxu0 0.0
    %2073 = vmatpush1.msra.mxu0 0.0
    %2074 = vmatprep.subr.mxu0 0.0
    %2075 = vmatpush1.msra.mxu0 0.0
    %2076 = vmatprep.subr.mxu0 0.0
    %2077 = vmatpush1.msra.mxu0 0.0
    %2078 = vmatprep.subr.mxu0 0.0
    %2079 = vmatpush1.msra.mxu0 0.0
    %2080 = vmatprep.subr.mxu0 0.0
    %2081 = vmatpush1.msra.mxu0 0.0
    %2082 = vmatprep.subr.mxu0 0.0
    %2083 = vmatpush1.msra.mxu0 0.0
    %2084 = vmatprep.subr.mxu0 0.0
    %2085 = vmatpush1.msra.mxu0 0.0
    %2086 = vmatprep.subr.mxu0 0.0
    %2087 = vmatpush1.msra.mxu0 0.0
    %2088 = vmatprep.subr.mxu0 0.0
    %2089 = vmatpush1.msra.mxu0 0.0
    %2090 = vmatprep.subr.mxu0 0.0
    %2091 = vmatpush1.msra.mxu0 0.0
    %2092 = vmatprep.subr.mxu0 0.0
    %2093 = vmatpush1.msra.mxu0 0.0
    %2094 = vmatprep.subr.mxu0 0.0
    %2095 = vmatpush1.msra.mxu0 0.0
    %2096 = vmatprep.subr.mxu0 0.0
    %2097 = vmatpush1.msra.mxu0 0.0
    %2098 = vmatprep.subr.mxu0 0.0
    %2099 = vmatpush1.msra.mxu0 0.0
    %2100 = vmatprep.subr.mxu0 0.0
    %2101 = vmatpush1.msra.mxu0 0.0
    %2102 = vmatprep.subr.mxu0 0.0
    %2103 = vmatpush1.msra.mxu0 0.0
    %2104 = vmatprep.subr.mxu0 0.0
    %2105 = vmatpush1.msra.mxu0 0.0
    %2106 = vmatprep.subr.mxu0 0.0
    %2107 = vmatpush1.msra.mxu0 0.0
    %2108 = vmatprep.subr.mxu0 0.0
    %2109 = vmatpush1.msra.mxu0 0.0
    %2110 = vmatprep.subr.mxu0 0.0
    %2111 = vmatpush1.msra.mxu0 0.0
    %2112 = vmatprep.subr.mxu0 0.0
    %2113 = vmatpush1.msra.mxu0 0.0
    %2114 = vmatprep.mubr.f32.mxu0 0.0
    %v2115 = vand.u32 %v1794, 4294901760
    %v2116 = vsub.f32 %v1794, %v2115
    %v2117 = vand.u32 %v2116, 4294901760
    %2118 = vmatmul.mubr.f32.gmra.mrb[0].mxu0 %v2117
    %v2119 = vpop.f32.mrb[0].mxu0
    %v2120 = vadd.f32 %v2043, %v2119
    %v2121 = vpop.f32.mrb[0].mxu0
    %2122 = vdwg.mxu0
    %2123 = vmatprep.subr.mxu0 0.0
    %v2124 = vand.u32 %v58, 4294901760
    %v2125 = vsub.f32 %v58, %v2124
    %v2126 = vand.u32 %v2125, 4294901760
    %2127 = vmatpush1.msra.mxu0 %v2126
    %2128 = vmatprep.subr.mxu0 0.0
    %v2129 = vand.u32 %v59, 4294901760
    %v2130 = vsub.f32 %v59, %v2129
    %v2131 = vand.u32 %v2130, 4294901760
    %2132 = vmatpush1.msra.mxu0 %v2131
    %2133 = vmatprep.subr.mxu0 0.0
    %v2134 = vand.u32 %v60, 4294901760
    %v2135 = vsub.f32 %v60, %v2134
    %v2136 = vand.u32 %v2135, 4294901760
    %2137 = vmatpush1.msra.mxu0 %v2136
    %2138 = vmatprep.subr.mxu0 0.0
    %v2139 = vand.u32 %v61, 4294901760
    %v2140 = vsub.f32 %v61, %v2139
    %v2141 = vand.u32 %v2140, 4294901760
    %2142 = vmatpush1.msra.mxu0 %v2141
    %2143 = vmatprep.subr.mxu0 0.0
    %2144 = vmatpush1.msra.mxu0 0.0
    %2145 = vmatprep.subr.mxu0 0.0
    %2146 = vmatpush1.msra.mxu0 0.0
    %2147 = vmatprep.subr.mxu0 0.0
    %2148 = vmatpush1.msra.mxu0 0.0
    %2149 = vmatprep.subr.mxu0 0.0
    %2150 = vmatpush1.msra.mxu0 0.0
    %2151 = vmatprep.subr.mxu0 0.0
    %2152 = vmatpush1.msra.mxu0 0.0
    %2153 = vmatprep.subr.mxu0 0.0
    %2154 = vmatpush1.msra.mxu0 0.0
    %2155 = vmatprep.subr.mxu0 0.0
    %2156 = vmatpush1.msra.mxu0 0.0
    %2157 = vmatprep.subr.mxu0 0.0
    %2158 = vmatpush1.msra.mxu0 0.0
    %2159 = vmatprep.subr.mxu0 0.0
    %2160 = vmatpush1.msra.mxu0 0.0
    %2161 = vmatprep.subr.mxu0 0.0
    %2162 = vmatpush1.msra.mxu0 0.0
    %2163 = vmatprep.subr.mxu0 0.0
    %2164 = vmatpush1.msra.mxu0 0.0
    %2165 = vmatprep.subr.mxu0 0.0
    %2166 = vmatpush1.msra.mxu0 0.0
    %2167 = vmatprep.subr.mxu0 0.0
    %2168 = vmatpush1.msra.mxu0 0.0
    %2169 = vmatprep.subr.mxu0 0.0
    %2170 = vmatpush1.msra.mxu0 0.0
    %2171 = vmatprep.subr.mxu0 0.0
    %2172 = vmatpush1.msra.mxu0 0.0
    %2173 = vmatprep.subr.mxu0 0.0
    %2174 = vmatpush1.msra.mxu0 0.0
    %2175 = vmatprep.subr.mxu0 0.0
    %2176 = vmatpush1.msra.mxu0 0.0
    %2177 = vmatprep.subr.mxu0 0.0
    %2178 = vmatpush1.msra.mxu0 0.0
    %2179 = vmatprep.subr.mxu0 0.0
    %2180 = vmatpush1.msra.mxu0 0.0
    %2181 = vmatprep.subr.mxu0 0.0
    %2182 = vmatpush1.msra.mxu0 0.0
    %2183 = vmatprep.subr.mxu0 0.0
    %2184 = vmatpush1.msra.mxu0 0.0
    %2185 = vmatprep.subr.mxu0 0.0
    %2186 = vmatpush1.msra.mxu0 0.0
    %2187 = vmatprep.subr.mxu0 0.0
    %2188 = vmatpush1.msra.mxu0 0.0
    %2189 = vmatprep.subr.mxu0 0.0
    %2190 = vmatpush1.msra.mxu0 0.0
    %2191 = vmatprep.subr.mxu0 0.0
    %2192 = vmatpush1.msra.mxu0 0.0
    %2193 = vmatprep.subr.mxu0 0.0
    %2194 = vmatpush1.msra.mxu0 0.0
    %2195 = vmatprep.subr.mxu0 0.0
    %2196 = vmatpush1.msra.mxu0 0.0
    %2197 = vmatprep.subr.mxu0 0.0
    %2198 = vmatpush1.msra.mxu0 0.0
    %2199 = vmatprep.mubr.f32.mxu0 0.0
    %v2200 = vand.u32 %v1794, 4294901760
    %2201 = vmatmul.mubr.f32.gmra.mrb[0].mxu0 %v2200
    %v2202 = vpop.f32.mrb[0].mxu0
    %v2203 = vadd.f32 %v2120, %v2202
    %v2204 = vpop.f32.mrb[0].mxu0
    %2205 = vdwg.mxu0
    %2206 = vmatprep.subr.mxu0 0.0
    %v2207 = vand.u32 %v58, 4294901760
    %2208 = vmatpush1.msra.mxu0 %v2207
    %2209 = vmatprep.subr.mxu0 0.0
    %v2210 = vand.u32 %v59, 4294901760
    %2211 = vmatpush1.msra.mxu0 %v2210
    %2212 = vmatprep.subr.mxu0 0.0
    %v2213 = vand.u32 %v60, 4294901760
    %2214 = vmatpush1.msra.mxu0 %v2213
    %2215 = vmatprep.subr.mxu0 0.0
    %v2216 = vand.u32 %v61, 4294901760
    %2217 = vmatpush1.msra.mxu0 %v2216
    %2218 = vmatprep.subr.mxu0 0.0
    %2219 = vmatpush1.msra.mxu0 0.0
    %2220 = vmatprep.subr.mxu0 0.0
    %2221 = vmatpush1.msra.mxu0 0.0
    %2222 = vmatprep.subr.mxu0 0.0
    %2223 = vmatpush1.msra.mxu0 0.0
    %2224 = vmatprep.subr.mxu0 0.0
    %2225 = vmatpush1.msra.mxu0 0.0
    %2226 = vmatprep.subr.mxu0 0.0
    %2227 = vmatpush1.msra.mxu0 0.0
    %2228 = vmatprep.subr.mxu0 0.0
    %2229 = vmatpush1.msra.mxu0 0.0
    %2230 = vmatprep.subr.mxu0 0.0
    %2231 = vmatpush1.msra.mxu0 0.0
    %2232 = vmatprep.subr.mxu0 0.0
    %2233 = vmatpush1.msra.mxu0 0.0
    %2234 = vmatprep.subr.mxu0 0.0
    %2235 = vmatpush1.msra.mxu0 0.0
    %2236 = vmatprep.subr.mxu0 0.0
    %2237 = vmatpush1.msra.mxu0 0.0
    %2238 = vmatprep.subr.mxu0 0.0
    %2239 = vmatpush1.msra.mxu0 0.0
    %2240 = vmatprep.subr.mxu0 0.0
    %2241 = vmatpush1.msra.mxu0 0.0
    %2242 = vmatprep.subr.mxu0 0.0
    %2243 = vmatpush1.msra.mxu0 0.0
    %2244 = vmatprep.subr.mxu0 0.0
    %2245 = vmatpush1.msra.mxu0 0.0
    %2246 = vmatprep.subr.mxu0 0.0
    %2247 = vmatpush1.msra.mxu0 0.0
    %2248 = vmatprep.subr.mxu0 0.0
    %2249 = vmatpush1.msra.mxu0 0.0
    %2250 = vmatprep.subr.mxu0 0.0
    %2251 = vmatpush1.msra.mxu0 0.0
    %2252 = vmatprep.subr.mxu0 0.0
    %2253 = vmatpush1.msra.mxu0 0.0
    %2254 = vmatprep.subr.mxu0 0.0
    %2255 = vmatpush1.msra.mxu0 0.0
    %2256 = vmatprep.subr.mxu0 0.0
    %2257 = vmatpush1.msra.mxu0 0.0
    %2258 = vmatprep.subr.mxu0 0.0
    %2259 = vmatpush1.msra.mxu0 0.0
    %2260 = vmatprep.subr.mxu0 0.0
    %2261 = vmatpush1.msra.mxu0 0.0
    %2262 = vmatprep.subr.mxu0 0.0
    %2263 = vmatpush1.msra.mxu0 0.0
    %2264 = vmatprep.subr.mxu0 0.0
    %2265 = vmatpush1.msra.mxu0 0.0
    %2266 = vmatprep.subr.mxu0 0.0
    %2267 = vmatpush1.msra.mxu0 0.0
    %2268 = vmatprep.subr.mxu0 0.0
    %2269 = vmatpush1.msra.mxu0 0.0
    %2270 = vmatprep.subr.mxu0 0.0
    %2271 = vmatpush1.msra.mxu0 0.0
    %2272 = vmatprep.subr.mxu0 0.0
    %2273 = vmatpush1.msra.mxu0 0.0
    %2274 = vmatprep.mubr.f32.mxu0 0.0
    %v2275 = vand.u32 %v1794, 4294901760
    %2276 = vmatmul.mubr.f32.gmra.mrb[0].mxu0 %v2275
    %v2277 = vpop.f32.mrb[0].mxu0
    %v2278 = vadd.f32 %v2203, %v2277
    %v2279 = vpop.f32.mrb[0].mxu0
    %2280 = vdwg.mxu0
    %v2281 = vsel %vm1158, %v2278, -inf
    %2282 = vmax.xlane.f32.xlu0 %v2281
    %v2283 = vpop.xlane.xlu0 %2282
    %vm2284 = vcmp.eq.f32.partialorder %v2278, %v2283
    %v2285 = vsel %vm2284, %v64, 8
    %v2286 = vsel %vm1158, %v2285, 2147483647
    %v2287 = vand.u32 %v2286, 65535
    %v2288 = vshra.s32 %v2286, 16
    %v2289 = vcvt.s32.f32 %v2287
    %v2290 = vcvt.s32.f32 %v2288
    %2291 = vmin.xlane.f32.xlu0 %v2290
    %v2292 = vpop.xlane.xlu0 %2291
    %vm2293 = vcmp.eq.f32.partialorder %v2290, %v2292
    %v2294 = vsel %vm2293, %v2289, inf
    %2295 = vmin.xlane.f32.xlu0 %v2294
    %v2296 = vpop.xlane.xlu0 %2295
    %v2297 = vcvt.f32.s32 %v2296
    %v2298 = vcvt.f32.s32 %v2292
    %v2299 = vshll.u32 %v2298, 16
    %v2300 = vadd.s32 %v2299, %v2297
    %v2301 = vcvt.s32.f32 %v2300
    %vm2302 = vcmp.gt.f32.partialorder %v1219, 0.5
    %v2303 = vsel %vm2302, -1e+30, %v2278
    %v2304 = vsel %vm1158, %v2303, -inf
    %2305 = vmax.xlane.f32.xlu0 %v2304
    %v2306 = vpop.xlane.xlu0 %2305
    %vm2307 = vcmp.eq.f32.partialorder %v2303, %v2306
    %v2308 = vsel %vm2307, %v64, 8
    %v2309 = vsel %vm1158, %v2308, 2147483647
    %v2310 = vand.u32 %v2309, 65535
    %v2311 = vshra.s32 %v2309, 16
    %v2312 = vcvt.s32.f32 %v2310
    %v2313 = vcvt.s32.f32 %v2311
    %2314 = vmin.xlane.f32.xlu0 %v2313
    %v2315 = vpop.xlane.xlu0 %2314
    %vm2316 = vcmp.eq.f32.partialorder %v2313, %v2315
    %v2317 = vsel %vm2316, %v2312, inf
    %2318 = vmin.xlane.f32.xlu0 %v2317
    %v2319 = vpop.xlane.xlu0 %2318
    %v2320 = vcvt.f32.s32 %v2319
    %v2321 = vcvt.f32.s32 %v2315
    %v2322 = vshll.u32 %v2321, 16
    %v2323 = vadd.s32 %v2322, %v2320
    %v2324 = vsub.f32 %v2303, %v2306
    %v2325 = vmul.f32 %v2324, 1.442695
    %v2326 = vpow.pop %v2325
    %v2327 = vsel %vm1158, %v2326, 0.0
    %2328 = vadd.xlane.f32.xlu0 %v2327
    %v2329 = vpop.xlane.xlu0 %2328
    %v2330 = vlog2.pop %v2329
    %v2331 = vmul.f32 %v2330, 0.6931472
    %v2332 = vsub.f32 0.0, %v2331
    %v2333 = vcvt.s32.f32 %v2323
    %vm2334 = vcmask 9224
    %2335 = vst.msk [vmem:[#allocation5] sm:$0x3] %vm2334, %v2333
    %2336 = vst.msk [vmem:[#allocation6] sm:$0x3] %vm2334, %v2332
    %vm2337 = vcmp.eq.s32.totalorder %v64, %v2323
    %v2338 = vsel %vm2337, 1, 0
    %v2339 = vcvt.s32.f32 %v2338
    %v2340 = vmax.f32 %v1219, %v2339
    %v2341 = vmul.f32 %v2301, %v71
    %v2342 = vadd.f32 %v2341, %v77
    %v2343 = vmax.f32 %v2342, 0.0
    %2344 = vrot.lane.b32.xlu0 %v1790, 64
    %v2345 = vpop.permute.xlu0 %2344
    %v2347 = vsel %vm85, %v2343, %v2345
    %v2349 = vsel %vm93, %v2347, 0
    %2351 = vmatprep.subr.mxu0 0.0
    %v2352 = vand.u32 %v49, 4294901760
    %2353 = vmatpush1.msra.mxu0 %v2352
    %2354 = vmatprep.subr.mxu0 0.0
    %v2355 = vand.u32 %v50, 4294901760
    %2356 = vmatpush1.msra.mxu0 %v2355
    %2357 = vmatprep.subr.mxu0 0.0
    %v2358 = vand.u32 %v51, 4294901760
    %2359 = vmatpush1.msra.mxu0 %v2358
    %2360 = vmatprep.subr.mxu0 0.0
    %v2361 = vand.u32 %v52, 4294901760
    %2362 = vmatpush1.msra.mxu0 %v2361
    %2363 = vmatprep.subr.mxu0 0.0
    %v2364 = vand.u32 %v53, 4294901760
    %2365 = vmatpush1.msra.mxu0 %v2364
    %2366 = vmatprep.subr.mxu0 0.0
    %v2367 = vand.u32 %v54, 4294901760
    %2368 = vmatpush1.msra.mxu0 %v2367
    %2369 = vmatprep.subr.mxu0 0.0
    %v2370 = vand.u32 %v55, 4294901760
    %2371 = vmatpush1.msra.mxu0 %v2370
    %2372 = vmatprep.subr.mxu0 0.0
    %v2373 = vand.u32 %v56, 4294901760
    %2374 = vmatpush1.msra.mxu0 %v2373
    %2375 = vmatprep.subr.mxu0 0.0
    %2376 = vmatpush1.msra.mxu0 0.0
    %2377 = vmatprep.subr.mxu0 0.0
    %2378 = vmatpush1.msra.mxu0 0.0
    %2379 = vmatprep.subr.mxu0 0.0
    %2380 = vmatpush1.msra.mxu0 0.0
    %2381 = vmatprep.subr.mxu0 0.0
    %2382 = vmatpush1.msra.mxu0 0.0
    %2383 = vmatprep.subr.mxu0 0.0
    %2384 = vmatpush1.msra.mxu0 0.0
    %2385 = vmatprep.subr.mxu0 0.0
    %2386 = vmatpush1.msra.mxu0 0.0
    %2387 = vmatprep.subr.mxu0 0.0
    %2388 = vmatpush1.msra.mxu0 0.0
    %2389 = vmatprep.subr.mxu0 0.0
    %2390 = vmatpush1.msra.mxu0 0.0
    %2391 = vmatprep.subr.mxu0 0.0
    %2392 = vmatpush1.msra.mxu0 0.0
    %2393 = vmatprep.subr.mxu0 0.0
    %2394 = vmatpush1.msra.mxu0 0.0
    %2395 = vmatprep.subr.mxu0 0.0
    %2396 = vmatpush1.msra.mxu0 0.0
    %2397 = vmatprep.subr.mxu0 0.0
    %2398 = vmatpush1.msra.mxu0 0.0
    %2399 = vmatprep.subr.mxu0 0.0
    %2400 = vmatpush1.msra.mxu0 0.0
    %2401 = vmatprep.subr.mxu0 0.0
    %2402 = vmatpush1.msra.mxu0 0.0
    %2403 = vmatprep.subr.mxu0 0.0
    %2404 = vmatpush1.msra.mxu0 0.0
    %2405 = vmatprep.subr.mxu0 0.0
    %2406 = vmatpush1.msra.mxu0 0.0
    %2407 = vmatprep.subr.mxu0 0.0
    %2408 = vmatpush1.msra.mxu0 0.0
    %2409 = vmatprep.subr.mxu0 0.0
    %2410 = vmatpush1.msra.mxu0 0.0
    %2411 = vmatprep.subr.mxu0 0.0
    %2412 = vmatpush1.msra.mxu0 0.0
    %2413 = vmatprep.subr.mxu0 0.0
    %2414 = vmatpush1.msra.mxu0 0.0
    %2415 = vmatprep.subr.mxu0 0.0
    %2416 = vmatpush1.msra.mxu0 0.0
    %2417 = vmatprep.subr.mxu0 0.0
    %2418 = vmatpush1.msra.mxu0 0.0
    %2419 = vmatprep.subr.mxu0 0.0
    %2420 = vmatpush1.msra.mxu0 0.0
    %2421 = vmatprep.subr.mxu0 0.0
    %2422 = vmatpush1.msra.mxu0 0.0
    %2423 = vmatprep.mubr.f32.mxu0 0.0
    %v2424 = vand.u32 %v2349, 4294901760
    %v2425 = vsub.f32 %v2349, %v2424
    %v2426 = vand.u32 %v2425, 4294901760
    %v2427 = vsub.f32 %v2425, %v2426
    %v2428 = vand.u32 %v2427, 4294901760
    %2429 = vmatmul.mubr.f32.gmra.mrb[0].mxu0 %v2428
    %v2430 = vpop.f32.mrb[0].mxu0
    %v2431 = vadd.f32 %v91, %v2430
    %v2432 = vpop.f32.mrb[0].mxu0
    %2433 = vdwg.mxu0
    %2434 = vmatprep.subr.mxu0 0.0
    %v2435 = vand.u32 %v49, 4294901760
    %v2436 = vsub.f32 %v49, %v2435
    %v2437 = vand.u32 %v2436, 4294901760
    %v2438 = vsub.f32 %v2436, %v2437
    %v2439 = vand.u32 %v2438, 4294901760
    %2440 = vmatpush1.msra.mxu0 %v2439
    %2441 = vmatprep.subr.mxu0 0.0
    %v2442 = vand.u32 %v50, 4294901760
    %v2443 = vsub.f32 %v50, %v2442
    %v2444 = vand.u32 %v2443, 4294901760
    %v2445 = vsub.f32 %v2443, %v2444
    %v2446 = vand.u32 %v2445, 4294901760
    %2447 = vmatpush1.msra.mxu0 %v2446
    %2448 = vmatprep.subr.mxu0 0.0
    %v2449 = vand.u32 %v51, 4294901760
    %v2450 = vsub.f32 %v51, %v2449
    %v2451 = vand.u32 %v2450, 4294901760
    %v2452 = vsub.f32 %v2450, %v2451
    %v2453 = vand.u32 %v2452, 4294901760
    %2454 = vmatpush1.msra.mxu0 %v2453
    %2455 = vmatprep.subr.mxu0 0.0
    %v2456 = vand.u32 %v52, 4294901760
    %v2457 = vsub.f32 %v52, %v2456
    %v2458 = vand.u32 %v2457, 4294901760
    %v2459 = vsub.f32 %v2457, %v2458
    %v2460 = vand.u32 %v2459, 4294901760
    %2461 = vmatpush1.msra.mxu0 %v2460
    %2462 = vmatprep.subr.mxu0 0.0
    %v2463 = vand.u32 %v53, 4294901760
    %v2464 = vsub.f32 %v53, %v2463
    %v2465 = vand.u32 %v2464, 4294901760
    %v2466 = vsub.f32 %v2464, %v2465
    %v2467 = vand.u32 %v2466, 4294901760
    %2468 = vmatpush1.msra.mxu0 %v2467
    %2469 = vmatprep.subr.mxu0 0.0
    %v2470 = vand.u32 %v54, 4294901760
    %v2471 = vsub.f32 %v54, %v2470
    %v2472 = vand.u32 %v2471, 4294901760
    %v2473 = vsub.f32 %v2471, %v2472
    %v2474 = vand.u32 %v2473, 4294901760
    %2475 = vmatpush1.msra.mxu0 %v2474
    %2476 = vmatprep.subr.mxu0 0.0
    %v2477 = vand.u32 %v55, 4294901760
    %v2478 = vsub.f32 %v55, %v2477
    %v2479 = vand.u32 %v2478, 4294901760
    %v2480 = vsub.f32 %v2478, %v2479
    %v2481 = vand.u32 %v2480, 4294901760
    %2482 = vmatpush1.msra.mxu0 %v2481
    %2483 = vmatprep.subr.mxu0 0.0
    %v2484 = vand.u32 %v56, 4294901760
    %v2485 = vsub.f32 %v56, %v2484
    %v2486 = vand.u32 %v2485, 4294901760
    %v2487 = vsub.f32 %v2485, %v2486
    %v2488 = vand.u32 %v2487, 4294901760
    %2489 = vmatpush1.msra.mxu0 %v2488
    %2490 = vmatprep.subr.mxu0 0.0
    %2491 = vmatpush1.msra.mxu0 0.0
    %2492 = vmatprep.subr.mxu0 0.0
    %2493 = vmatpush1.msra.mxu0 0.0
    %2494 = vmatprep.subr.mxu0 0.0
    %2495 = vmatpush1.msra.mxu0 0.0
    %2496 = vmatprep.subr.mxu0 0.0
    %2497 = vmatpush1.msra.mxu0 0.0
    %2498 = vmatprep.subr.mxu0 0.0
    %2499 = vmatpush1.msra.mxu0 0.0
    %2500 = vmatprep.subr.mxu0 0.0
    %2501 = vmatpush1.msra.mxu0 0.0
    %2502 = vmatprep.subr.mxu0 0.0
    %2503 = vmatpush1.msra.mxu0 0.0
    %2504 = vmatprep.subr.mxu0 0.0
    %2505 = vmatpush1.msra.mxu0 0.0
    %2506 = vmatprep.subr.mxu0 0.0
    %2507 = vmatpush1.msra.mxu0 0.0
    %2508 = vmatprep.subr.mxu0 0.0
    %2509 = vmatpush1.msra.mxu0 0.0
    %2510 = vmatprep.subr.mxu0 0.0
    %2511 = vmatpush1.msra.mxu0 0.0
    %2512 = vmatprep.subr.mxu0 0.0
    %2513 = vmatpush1.msra.mxu0 0.0
    %2514 = vmatprep.subr.mxu0 0.0
    %2515 = vmatpush1.msra.mxu0 0.0
    %2516 = vmatprep.subr.mxu0 0.0
    %2517 = vmatpush1.msra.mxu0 0.0
    %2518 = vmatprep.subr.mxu0 0.0
    %2519 = vmatpush1.msra.mxu0 0.0
    %2520 = vmatprep.subr.mxu0 0.0
    %2521 = vmatpush1.msra.mxu0 0.0
    %2522 = vmatprep.subr.mxu0 0.0
    %2523 = vmatpush1.msra.mxu0 0.0
    %2524 = vmatprep.subr.mxu0 0.0
    %2525 = vmatpush1.msra.mxu0 0.0
    %2526 = vmatprep.subr.mxu0 0.0
    %2527 = vmatpush1.msra.mxu0 0.0
    %2528 = vmatprep.subr.mxu0 0.0
    %2529 = vmatpush1.msra.mxu0 0.0
    %2530 = vmatprep.subr.mxu0 0.0
    %2531 = vmatpush1.msra.mxu0 0.0
    %2532 = vmatprep.subr.mxu0 0.0
    %2533 = vmatpush1.msra.mxu0 0.0
    %2534 = vmatprep.subr.mxu0 0.0
    %2535 = vmatpush1.msra.mxu0 0.0
    %2536 = vmatprep.subr.mxu0 0.0
    %2537 = vmatpush1.msra.mxu0 0.0
    %2538 = vmatprep.mubr.f32.mxu0 0.0
    %v2539 = vand.u32 %v2349, 4294901760
    %2540 = vmatmul.mubr.f32.gmra.mrb[0].mxu0 %v2539
    %v2541 = vpop.f32.mrb[0].mxu0
    %v2542 = vadd.f32 %v2431, %v2541
    %v2543 = vpop.f32.mrb[0].mxu0
    %2544 = vdwg.mxu0
    %2545 = vmatprep.subr.mxu0 0.0
    %v2546 = vand.u32 %v49, 4294901760
    %v2547 = vsub.f32 %v49, %v2546
    %2548 = vmatpush1.msra.mxu0 %v2547
    %2549 = vmatprep.subr.mxu0 0.0
    %v2550 = vand.u32 %v50, 4294901760
    %v2551 = vsub.f32 %v50, %v2550
    %2552 = vmatpush1.msra.mxu0 %v2551
    %2553 = vmatprep.subr.mxu0 0.0
    %v2554 = vand.u32 %v51, 4294901760
    %v2555 = vsub.f32 %v51, %v2554
    %2556 = vmatpush1.msra.mxu0 %v2555
    %2557 = vmatprep.subr.mxu0 0.0
    %v2558 = vand.u32 %v52, 4294901760
    %v2559 = vsub.f32 %v52, %v2558
    %2560 = vmatpush1.msra.mxu0 %v2559
    %2561 = vmatprep.subr.mxu0 0.0
    %v2562 = vand.u32 %v53, 4294901760
    %v2563 = vsub.f32 %v53, %v2562
    %2564 = vmatpush1.msra.mxu0 %v2563
    %2565 = vmatprep.subr.mxu0 0.0
    %v2566 = vand.u32 %v54, 4294901760
    %v2567 = vsub.f32 %v54, %v2566
    %2568 = vmatpush1.msra.mxu0 %v2567
    %2569 = vmatprep.subr.mxu0 0.0
    %v2570 = vand.u32 %v55, 4294901760
    %v2571 = vsub.f32 %v55, %v2570
    %2572 = vmatpush1.msra.mxu0 %v2571
    %2573 = vmatprep.subr.mxu0 0.0
    %v2574 = vand.u32 %v56, 4294901760
    %v2575 = vsub.f32 %v56, %v2574
    %2576 = vmatpush1.msra.mxu0 %v2575
    %2577 = vmatprep.subr.mxu0 0.0
    %2578 = vmatpush1.msra.mxu0 0.0
    %2579 = vmatprep.subr.mxu0 0.0
    %2580 = vmatpush1.msra.mxu0 0.0
    %2581 = vmatprep.subr.mxu0 0.0
    %2582 = vmatpush1.msra.mxu0 0.0
    %2583 = vmatprep.subr.mxu0 0.0
    %2584 = vmatpush1.msra.mxu0 0.0
    %2585 = vmatprep.subr.mxu0 0.0
    %2586 = vmatpush1.msra.mxu0 0.0
    %2587 = vmatprep.subr.mxu0 0.0
    %2588 = vmatpush1.msra.mxu0 0.0
    %2589 = vmatprep.subr.mxu0 0.0
    %2590 = vmatpush1.msra.mxu0 0.0
    %2591 = vmatprep.subr.mxu0 0.0
    %2592 = vmatpush1.msra.mxu0 0.0
    %2593 = vmatprep.subr.mxu0 0.0
    %2594 = vmatpush1.msra.mxu0 0.0
    %2595 = vmatprep.subr.mxu0 0.0
    %2596 = vmatpush1.msra.mxu0 0.0
    %2597 = vmatprep.subr.mxu0 0.0
    %2598 = vmatpush1.msra.mxu0 0.0
    %2599 = vmatprep.subr.mxu0 0.0
    %2600 = vmatpush1.msra.mxu0 0.0
    %2601 = vmatprep.subr.mxu0 0.0
    %2602 = vmatpush1.msra.mxu0 0.0
    %2603 = vmatprep.subr.mxu0 0.0
    %2604 = vmatpush1.msra.mxu0 0.0
    %2605 = vmatprep.subr.mxu0 0.0
    %2606 = vmatpush1.msra.mxu0 0.0
    %2607 = vmatprep.subr.mxu0 0.0
    %2608 = vmatpush1.msra.mxu0 0.0
    %2609 = vmatprep.subr.mxu0 0.0
    %2610 = vmatpush1.msra.mxu0 0.0
    %2611 = vmatprep.subr.mxu0 0.0
    %2612 = vmatpush1.msra.mxu0 0.0
    %2613 = vmatprep.subr.mxu0 0.0
    %2614 = vmatpush1.msra.mxu0 0.0
    %2615 = vmatprep.subr.mxu0 0.0
    %2616 = vmatpush1.msra.mxu0 0.0
    %2617 = vmatprep.subr.mxu0 0.0
    %2618 = vmatpush1.msra.mxu0 0.0
    %2619 = vmatprep.subr.mxu0 0.0
    %2620 = vmatpush1.msra.mxu0 0.0
    %2621 = vmatprep.subr.mxu0 0.0
    %2622 = vmatpush1.msra.mxu0 0.0
    %2623 = vmatprep.subr.mxu0 0.0
    %2624 = vmatpush1.msra.mxu0 0.0
    %2625 = vmatprep.mubr.f32.mxu0 0.0
    %v2626 = vand.u32 %v2349, 4294901760
    %v2627 = vsub.f32 %v2349, %v2626
    %2628 = vmatmul.mubr.f32.gmra.mrb[0].mxu0 %v2627
    %v2629 = vpop.f32.mrb[0].mxu0
    %v2630 = vadd.f32 %v2542, %v2629
    %v2631 = vpop.f32.mrb[0].mxu0
    %2632 = vdwg.mxu0
    %2633 = vmatprep.subr.mxu0 0.0
    %v2634 = vand.u32 %v49, 4294901760
    %2635 = vmatpush1.msra.mxu0 %v2634
    %2636 = vmatprep.subr.mxu0 0.0
    %v2637 = vand.u32 %v50, 4294901760
    %2638 = vmatpush1.msra.mxu0 %v2637
    %2639 = vmatprep.subr.mxu0 0.0
    %v2640 = vand.u32 %v51, 4294901760
    %2641 = vmatpush1.msra.mxu0 %v2640
    %2642 = vmatprep.subr.mxu0 0.0
    %v2643 = vand.u32 %v52, 4294901760
    %2644 = vmatpush1.msra.mxu0 %v2643
    %2645 = vmatprep.subr.mxu0 0.0
    %v2646 = vand.u32 %v53, 4294901760
    %2647 = vmatpush1.msra.mxu0 %v2646
    %2648 = vmatprep.subr.mxu0 0.0
    %v2649 = vand.u32 %v54, 4294901760
    %2650 = vmatpush1.msra.mxu0 %v2649
    %2651 = vmatprep.subr.mxu0 0.0
    %v2652 = vand.u32 %v55, 4294901760
    %2653 = vmatpush1.msra.mxu0 %v2652
    %2654 = vmatprep.subr.mxu0 0.0
    %v2655 = vand.u32 %v56, 4294901760
    %2656 = vmatpush1.msra.mxu0 %v2655
    %2657 = vmatprep.subr.mxu0 0.0
    %2658 = vmatpush1.msra.mxu0 0.0
    %2659 = vmatprep.subr.mxu0 0.0
    %2660 = vmatpush1.msra.mxu0 0.0
    %2661 = vmatprep.subr.mxu0 0.0
    %2662 = vmatpush1.msra.mxu0 0.0
    %2663 = vmatprep.subr.mxu0 0.0
    %2664 = vmatpush1.msra.mxu0 0.0
    %2665 = vmatprep.subr.mxu0 0.0
    %2666 = vmatpush1.msra.mxu0 0.0
    %2667 = vmatprep.subr.mxu0 0.0
    %2668 = vmatpush1.msra.mxu0 0.0
    %2669 = vmatprep.subr.mxu0 0.0
    %2670 = vmatpush1.msra.mxu0 0.0
    %2671 = vmatprep.subr.mxu0 0.0
    %2672 = vmatpush1.msra.mxu0 0.0
    %2673 = vmatprep.subr.mxu0 0.0
    %2674 = vmatpush1.msra.mxu0 0.0
    %2675 = vmatprep.subr.mxu0 0.0
    %2676 = vmatpush1.msra.mxu0 0.0
    %2677 = vmatprep.subr.mxu0 0.0
    %2678 = vmatpush1.msra.mxu0 0.0
    %2679 = vmatprep.subr.mxu0 0.0
    %2680 = vmatpush1.msra.mxu0 0.0
    %2681 = vmatprep.subr.mxu0 0.0
    %2682 = vmatpush1.msra.mxu0 0.0
    %2683 = vmatprep.subr.mxu0 0.0
    %2684 = vmatpush1.msra.mxu0 0.0
    %2685 = vmatprep.subr.mxu0 0.0
    %2686 = vmatpush1.msra.mxu0 0.0
    %2687 = vmatprep.subr.mxu0 0.0
    %2688 = vmatpush1.msra.mxu0 0.0
    %2689 = vmatprep.subr.mxu0 0.0
    %2690 = vmatpush1.msra.mxu0 0.0
    %2691 = vmatprep.subr.mxu0 0.0
    %2692 = vmatpush1.msra.mxu0 0.0
    %2693 = vmatprep.subr.mxu0 0.0
    %2694 = vmatpush1.msra.mxu0 0.0
    %2695 = vmatprep.subr.mxu0 0.0
    %2696 = vmatpush1.msra.mxu0 0.0
    %2697 = vmatprep.subr.mxu0 0.0
    %2698 = vmatpush1.msra.mxu0 0.0
    %2699 = vmatprep.subr.mxu0 0.0
    %2700 = vmatpush1.msra.mxu0 0.0
    %2701 = vmatprep.subr.mxu0 0.0
    %2702 = vmatpush1.msra.mxu0 0.0
    %2703 = vmatprep.subr.mxu0 0.0
    %2704 = vmatpush1.msra.mxu0 0.0
    %2705 = vmatprep.mubr.f32.mxu0 0.0
    %v2706 = vand.u32 %v2349, 4294901760
    %v2707 = vsub.f32 %v2349, %v2706
    %v2708 = vand.u32 %v2707, 4294901760
    %2709 = vmatmul.mubr.f32.gmra.mrb[0].mxu0 %v2708
    %v2710 = vpop.f32.mrb[0].mxu0
    %v2711 = vadd.f32 %v2630, %v2710
    %v2712 = vpop.f32.mrb[0].mxu0
    %2713 = vdwg.mxu0
    %2714 = vmatprep.subr.mxu0 0.0
    %v2715 = vand.u32 %v49, 4294901760
    %v2716 = vsub.f32 %v49, %v2715
    %v2717 = vand.u32 %v2716, 4294901760
    %2718 = vmatpush1.msra.mxu0 %v2717
    %2719 = vmatprep.subr.mxu0 0.0
    %v2720 = vand.u32 %v50, 4294901760
    %v2721 = vsub.f32 %v50, %v2720
    %v2722 = vand.u32 %v2721, 4294901760
    %2723 = vmatpush1.msra.mxu0 %v2722
    %2724 = vmatprep.subr.mxu0 0.0
    %v2725 = vand.u32 %v51, 4294901760
    %v2726 = vsub.f32 %v51, %v2725
    %v2727 = vand.u32 %v2726, 4294901760
    %2728 = vmatpush1.msra.mxu0 %v2727
    %2729 = vmatprep.subr.mxu0 0.0
    %v2730 = vand.u32 %v52, 4294901760
    %v2731 = vsub.f32 %v52, %v2730
    %v2732 = vand.u32 %v2731, 4294901760
    %2733 = vmatpush1.msra.mxu0 %v2732
    %2734 = vmatprep.subr.mxu0 0.0
    %v2735 = vand.u32 %v53, 4294901760
    %v2736 = vsub.f32 %v53, %v2735
    %v2737 = vand.u32 %v2736, 4294901760
    %2738 = vmatpush1.msra.mxu0 %v2737
    %2739 = vmatprep.subr.mxu0 0.0
    %v2740 = vand.u32 %v54, 4294901760
    %v2741 = vsub.f32 %v54, %v2740
    %v2742 = vand.u32 %v2741, 4294901760
    %2743 = vmatpush1.msra.mxu0 %v2742
    %2744 = vmatprep.subr.mxu0 0.0
    %v2745 = vand.u32 %v55, 4294901760
    %v2746 = vsub.f32 %v55, %v2745
    %v2747 = vand.u32 %v2746, 4294901760
    %2748 = vmatpush1.msra.mxu0 %v2747
    %2749 = vmatprep.subr.mxu0 0.0
    %v2750 = vand.u32 %v56, 4294901760
    %v2751 = vsub.f32 %v56, %v2750
    %v2752 = vand.u32 %v2751, 4294901760
    %2753 = vmatpush1.msra.mxu0 %v2752
    %2754 = vmatprep.subr.mxu0 0.0
    %2755 = vmatpush1.msra.mxu0 0.0
    %2756 = vmatprep.subr.mxu0 0.0
    %2757 = vmatpush1.msra.mxu0 0.0
    %2758 = vmatprep.subr.mxu0 0.0
    %2759 = vmatpush1.msra.mxu0 0.0
    %2760 = vmatprep.subr.mxu0 0.0
    %2761 = vmatpush1.msra.mxu0 0.0
    %2762 = vmatprep.subr.mxu0 0.0
    %2763 = vmatpush1.msra.mxu0 0.0
    %2764 = vmatprep.subr.mxu0 0.0
    %2765 = vmatpush1.msra.mxu0 0.0
    %2766 = vmatprep.subr.mxu0 0.0
    %2767 = vmatpush1.msra.mxu0 0.0
    %2768 = vmatprep.subr.mxu0 0.0
    %2769 = vmatpush1.msra.mxu0 0.0
    %2770 = vmatprep.subr.mxu0 0.0
    %2771 = vmatpush1.msra.mxu0 0.0
    %2772 = vmatprep.subr.mxu0 0.0
    %2773 = vmatpush1.msra.mxu0 0.0
    %2774 = vmatprep.subr.mxu0 0.0
    %2775 = vmatpush1.msra.mxu0 0.0
    %2776 = vmatprep.subr.mxu0 0.0
    %2777 = vmatpush1.msra.mxu0 0.0
    %2778 = vmatprep.subr.mxu0 0.0
    %2779 = vmatpush1.msra.mxu0 0.0
    %2780 = vmatprep.subr.mxu0 0.0
    %2781 = vmatpush1.msra.mxu0 0.0
    %2782 = vmatprep.subr.mxu0 0.0
    %2783 = vmatpush1.msra.mxu0 0.0
    %2784 = vmatprep.subr.mxu0 0.0
    %2785 = vmatpush1.msra.mxu0 0.0
    %2786 = vmatprep.subr.mxu0 0.0
    %2787 = vmatpush1.msra.mxu0 0.0
    %2788 = vmatprep.subr.mxu0 0.0
    %2789 = vmatpush1.msra.mxu0 0.0
    %2790 = vmatprep.subr.mxu0 0.0
    %2791 = vmatpush1.msra.mxu0 0.0
    %2792 = vmatprep.subr.mxu0 0.0
    %2793 = vmatpush1.msra.mxu0 0.0
    %2794 = vmatprep.subr.mxu0 0.0
    %2795 = vmatpush1.msra.mxu0 0.0
    %2796 = vmatprep.subr.mxu0 0.0
    %2797 = vmatpush1.msra.mxu0 0.0
    %2798 = vmatprep.subr.mxu0 0.0
    %2799 = vmatpush1.msra.mxu0 0.0
    %2800 = vmatprep.subr.mxu0 0.0
    %2801 = vmatpush1.msra.mxu0 0.0
    %2802 = vmatprep.mubr.f32.mxu0 0.0
    %v2803 = vand.u32 %v2349, 4294901760
    %2804 = vmatmul.mubr.f32.gmra.mrb[0].mxu0 %v2803
    %v2805 = vpop.f32.mrb[0].mxu0
    %v2806 = vadd.f32 %v2711, %v2805
    %v2807 = vpop.f32.mrb[0].mxu0
    %2808 = vdwg.mxu0
    %2809 = vmatprep.subr.mxu0 0.0
    %v2810 = vand.u32 %v49, 4294901760
    %2811 = vmatpush1.msra.mxu0 %v2810
    %2812 = vmatprep.subr.mxu0 0.0
    %v2813 = vand.u32 %v50, 4294901760
    %2814 = vmatpush1.msra.mxu0 %v2813
    %2815 = vmatprep.subr.mxu0 0.0
    %v2816 = vand.u32 %v51, 4294901760
    %2817 = vmatpush1.msra.mxu0 %v2816
    %2818 = vmatprep.subr.mxu0 0.0
    %v2819 = vand.u32 %v52, 4294901760
    %2820 = vmatpush1.msra.mxu0 %v2819
    %2821 = vmatprep.subr.mxu0 0.0
    %v2822 = vand.u32 %v53, 4294901760
    %2823 = vmatpush1.msra.mxu0 %v2822
    %2824 = vmatprep.subr.mxu0 0.0
    %v2825 = vand.u32 %v54, 4294901760
    %2826 = vmatpush1.msra.mxu0 %v2825
    %2827 = vmatprep.subr.mxu0 0.0
    %v2828 = vand.u32 %v55, 4294901760
    %2829 = vmatpush1.msra.mxu0 %v2828
    %2830 = vmatprep.subr.mxu0 0.0
    %v2831 = vand.u32 %v56, 4294901760
    %2832 = vmatpush1.msra.mxu0 %v2831
    %2833 = vmatprep.subr.mxu0 0.0
    %2834 = vmatpush1.msra.mxu0 0.0
    %2835 = vmatprep.subr.mxu0 0.0
    %2836 = vmatpush1.msra.mxu0 0.0
    %2837 = vmatprep.subr.mxu0 0.0
    %2838 = vmatpush1.msra.mxu0 0.0
    %2839 = vmatprep.subr.mxu0 0.0
    %2840 = vmatpush1.msra.mxu0 0.0
    %2841 = vmatprep.subr.mxu0 0.0
    %2842 = vmatpush1.msra.mxu0 0.0
    %2843 = vmatprep.subr.mxu0 0.0
    %2844 = vmatpush1.msra.mxu0 0.0
    %2845 = vmatprep.subr.mxu0 0.0
    %2846 = vmatpush1.msra.mxu0 0.0
    %2847 = vmatprep.subr.mxu0 0.0
    %2848 = vmatpush1.msra.mxu0 0.0
    %2849 = vmatprep.subr.mxu0 0.0
    %2850 = vmatpush1.msra.mxu0 0.0
    %2851 = vmatprep.subr.mxu0 0.0
    %2852 = vmatpush1.msra.mxu0 0.0
    %2853 = vmatprep.subr.mxu0 0.0
    %2854 = vmatpush1.msra.mxu0 0.0
    %2855 = vmatprep.subr.mxu0 0.0
    %2856 = vmatpush1.msra.mxu0 0.0
    %2857 = vmatprep.subr.mxu0 0.0
    %2858 = vmatpush1.msra.mxu0 0.0
    %2859 = vmatprep.subr.mxu0 0.0
    %2860 = vmatpush1.msra.mxu0 0.0
    %2861 = vmatprep.subr.mxu0 0.0
    %2862 = vmatpush1.msra.mxu0 0.0
    %2863 = vmatprep.subr.mxu0 0.0
    %2864 = vmatpush1.msra.mxu0 0.0
    %2865 = vmatprep.subr.mxu0 0.0
    %2866 = vmatpush1.msra.mxu0 0.0
    %2867 = vmatprep.subr.mxu0 0.0
    %2868 = vmatpush1.msra.mxu0 0.0
    %2869 = vmatprep.subr.mxu0 0.0
    %2870 = vmatpush1.msra.mxu0 0.0
    %2871 = vmatprep.subr.mxu0 0.0
    %2872 = vmatpush1.msra.mxu0 0.0
    %2873 = vmatprep.subr.mxu0 0.0
    %2874 = vmatpush1.msra.mxu0 0.0
    %2875 = vmatprep.subr.mxu0 0.0
    %2876 = vmatpush1.msra.mxu0 0.0
    %2877 = vmatprep.subr.mxu0 0.0
    %2878 = vmatpush1.msra.mxu0 0.0
    %2879 = vmatprep.subr.mxu0 0.0
    %2880 = vmatpush1.msra.mxu0 0.0
    %2881 = vmatprep.mubr.f32.mxu0 0.0
    %v2882 = vand.u32 %v2349, 4294901760
    %2883 = vmatmul.mubr.f32.gmra.mrb[0].mxu0 %v2882
    %v2884 = vpop.f32.mrb[0].mxu0
    %v2885 = vadd.f32 %v2806, %v2884
    %v2886 = vpop.f32.mrb[0].mxu0
    %2887 = vdwg.mxu0
    %v2888 = vxor.u32 %v2885, 2147483648
    %v2889 = vmul.f32 %v2888, 1.442695
    %v2890 = vpow.pop %v2889
    %v2891 = vadd.f32 %v2890, 1.0
    %v2892 = vrcp.pop %v2891
    %v2893 = vmul.f32 1.0, %v2892
    %v2894 = vtanh.pop %v2885
    %v2895 = vmul.f32 %v2893, %v1784
    %2897 = vrot.lane.b32.xlu0 %v2894, 64
    %v2898 = vpop.permute.xlu0 %2897
    %v2900 = vmul.f32 %v2893, %v2898
    %2902 = vrot.lane.b32.xlu0 %v2900, 32
    %v2903 = vpop.permute.xlu0 %2902
    %v2905 = vadd.f32 %v2895, %v2903
    %v2906 = vtanh.pop %v2905
    %2908 = vrot.lane.b32.xlu0 %v2906, 64
    %v2909 = vpop.permute.xlu0 %2908
    %v2911 = vmul.f32 %v2893, %v2909
    %2913 = vrot.lane.b32.xlu0 %v2911, 32
    %v2914 = vpop.permute.xlu0 %2913
    %v2915 = vsel %vm85, %v2914, 0
    %2917 = vmatprep.subr.mxu0 0.0
    %v2918 = vand.u32 %v58, 4294901760
    %2919 = vmatpush1.msra.mxu0 %v2918
    %2920 = vmatprep.subr.mxu0 0.0
    %v2921 = vand.u32 %v59, 4294901760
    %2922 = vmatpush1.msra.mxu0 %v2921
    %2923 = vmatprep.subr.mxu0 0.0
    %v2924 = vand.u32 %v60, 4294901760
    %2925 = vmatpush1.msra.mxu0 %v2924
    %2926 = vmatprep.subr.mxu0 0.0
    %v2927 = vand.u32 %v61, 4294901760
    %2928 = vmatpush1.msra.mxu0 %v2927
    %2929 = vmatprep.subr.mxu0 0.0
    %2930 = vmatpush1.msra.mxu0 0.0
    %2931 = vmatprep.subr.mxu0 0.0
    %2932 = vmatpush1.msra.mxu0 0.0
    %2933 = vmatprep.subr.mxu0 0.0
    %2934 = vmatpush1.msra.mxu0 0.0
    %2935 = vmatprep.subr.mxu0 0.0
    %2936 = vmatpush1.msra.mxu0 0.0
    %2937 = vmatprep.subr.mxu0 0.0
    %2938 = vmatpush1.msra.mxu0 0.0
    %2939 = vmatprep.subr.mxu0 0.0
    %2940 = vmatpush1.msra.mxu0 0.0
    %2941 = vmatprep.subr.mxu0 0.0
    %2942 = vmatpush1.msra.mxu0 0.0
    %2943 = vmatprep.subr.mxu0 0.0
    %2944 = vmatpush1.msra.mxu0 0.0
    %2945 = vmatprep.subr.mxu0 0.0
    %2946 = vmatpush1.msra.mxu0 0.0
    %2947 = vmatprep.subr.mxu0 0.0
    %2948 = vmatpush1.msra.mxu0 0.0
    %2949 = vmatprep.subr.mxu0 0.0
    %2950 = vmatpush1.msra.mxu0 0.0
    %2951 = vmatprep.subr.mxu0 0.0
    %2952 = vmatpush1.msra.mxu0 0.0
    %2953 = vmatprep.subr.mxu0 0.0
    %2954 = vmatpush1.msra.mxu0 0.0
    %2955 = vmatprep.subr.mxu0 0.0
    %2956 = vmatpush1.msra.mxu0 0.0
    %2957 = vmatprep.subr.mxu0 0.0
    %2958 = vmatpush1.msra.mxu0 0.0
    %2959 = vmatprep.subr.mxu0 0.0
    %2960 = vmatpush1.msra.mxu0 0.0
    %2961 = vmatprep.subr.mxu0 0.0
    %2962 = vmatpush1.msra.mxu0 0.0
    %2963 = vmatprep.subr.mxu0 0.0
    %2964 = vmatpush1.msra.mxu0 0.0
    %2965 = vmatprep.subr.mxu0 0.0
    %2966 = vmatpush1.msra.mxu0 0.0
    %2967 = vmatprep.subr.mxu0 0.0
    %2968 = vmatpush1.msra.mxu0 0.0
    %2969 = vmatprep.subr.mxu0 0.0
    %2970 = vmatpush1.msra.mxu0 0.0
    %2971 = vmatprep.subr.mxu0 0.0
    %2972 = vmatpush1.msra.mxu0 0.0
    %2973 = vmatprep.subr.mxu0 0.0
    %2974 = vmatpush1.msra.mxu0 0.0
    %2975 = vmatprep.subr.mxu0 0.0
    %2976 = vmatpush1.msra.mxu0 0.0
    %2977 = vmatprep.subr.mxu0 0.0
    %2978 = vmatpush1.msra.mxu0 0.0
    %2979 = vmatprep.subr.mxu0 0.0
    %2980 = vmatpush1.msra.mxu0 0.0
    %2981 = vmatprep.subr.mxu0 0.0
    %2982 = vmatpush1.msra.mxu0 0.0
    %2983 = vmatprep.subr.mxu0 0.0
    %2984 = vmatpush1.msra.mxu0 0.0
    %2985 = vmatprep.mubr.f32.mxu0 0.0
    %v2986 = vand.u32 %v2915, 4294901760
    %v2987 = vsub.f32 %v2915, %v2986
    %v2988 = vand.u32 %v2987, 4294901760
    %v2989 = vsub.f32 %v2987, %v2988
    %v2990 = vand.u32 %v2989, 4294901760
    %2991 = vmatmul.mubr.f32.gmra.mrb[0].mxu0 %v2990
    %v2992 = vpop.f32.mrb[0].mxu0
    %v2993 = vadd.f32 %v666, %v2992
    %v2994 = vpop.f32.mrb[0].mxu0
    %2995 = vdwg.mxu0
    %2996 = vmatprep.subr.mxu0 0.0
    %v2997 = vand.u32 %v58, 4294901760
    %v2998 = vsub.f32 %v58, %v2997
    %v2999 = vand.u32 %v2998, 4294901760
    %v3000 = vsub.f32 %v2998, %v2999
    %v3001 = vand.u32 %v3000, 4294901760
    %3002 = vmatpush1.msra.mxu0 %v3001
    %3003 = vmatprep.subr.mxu0 0.0
    %v3004 = vand.u32 %v59, 4294901760
    %v3005 = vsub.f32 %v59, %v3004
    %v3006 = vand.u32 %v3005, 4294901760
    %v3007 = vsub.f32 %v3005, %v3006
    %v3008 = vand.u32 %v3007, 4294901760
    %3009 = vmatpush1.msra.mxu0 %v3008
    %3010 = vmatprep.subr.mxu0 0.0
    %v3011 = vand.u32 %v60, 4294901760
    %v3012 = vsub.f32 %v60, %v3011
    %v3013 = vand.u32 %v3012, 4294901760
    %v3014 = vsub.f32 %v3012, %v3013
    %v3015 = vand.u32 %v3014, 4294901760
    %3016 = vmatpush1.msra.mxu0 %v3015
    %3017 = vmatprep.subr.mxu0 0.0
    %v3018 = vand.u32 %v61, 4294901760
    %v3019 = vsub.f32 %v61, %v3018
    %v3020 = vand.u32 %v3019, 4294901760
    %v3021 = vsub.f32 %v3019, %v3020
    %v3022 = vand.u32 %v3021, 4294901760
    %3023 = vmatpush1.msra.mxu0 %v3022
    %3024 = vmatprep.subr.mxu0 0.0
    %3025 = vmatpush1.msra.mxu0 0.0
    %3026 = vmatprep.subr.mxu0 0.0
    %3027 = vmatpush1.msra.mxu0 0.0
    %3028 = vmatprep.subr.mxu0 0.0
    %3029 = vmatpush1.msra.mxu0 0.0
    %3030 = vmatprep.subr.mxu0 0.0
    %3031 = vmatpush1.msra.mxu0 0.0
    %3032 = vmatprep.subr.mxu0 0.0
    %3033 = vmatpush1.msra.mxu0 0.0
    %3034 = vmatprep.subr.mxu0 0.0
    %3035 = vmatpush1.msra.mxu0 0.0
    %3036 = vmatprep.subr.mxu0 0.0
    %3037 = vmatpush1.msra.mxu0 0.0
    %3038 = vmatprep.subr.mxu0 0.0
    %3039 = vmatpush1.msra.mxu0 0.0
    %3040 = vmatprep.subr.mxu0 0.0
    %3041 = vmatpush1.msra.mxu0 0.0
    %3042 = vmatprep.subr.mxu0 0.0
    %3043 = vmatpush1.msra.mxu0 0.0
    %3044 = vmatprep.subr.mxu0 0.0
    %3045 = vmatpush1.msra.mxu0 0.0
    %3046 = vmatprep.subr.mxu0 0.0
    %3047 = vmatpush1.msra.mxu0 0.0
    %3048 = vmatprep.subr.mxu0 0.0
    %3049 = vmatpush1.msra.mxu0 0.0
    %3050 = vmatprep.subr.mxu0 0.0
    %3051 = vmatpush1.msra.mxu0 0.0
    %3052 = vmatprep.subr.mxu0 0.0
    %3053 = vmatpush1.msra.mxu0 0.0
    %3054 = vmatprep.subr.mxu0 0.0
    %3055 = vmatpush1.msra.mxu0 0.0
    %3056 = vmatprep.subr.mxu0 0.0
    %3057 = vmatpush1.msra.mxu0 0.0
    %3058 = vmatprep.subr.mxu0 0.0
    %3059 = vmatpush1.msra.mxu0 0.0
    %3060 = vmatprep.subr.mxu0 0.0
    %3061 = vmatpush1.msra.mxu0 0.0
    %3062 = vmatprep.subr.mxu0 0.0
    %3063 = vmatpush1.msra.mxu0 0.0
    %3064 = vmatprep.subr.mxu0 0.0
    %3065 = vmatpush1.msra.mxu0 0.0
    %3066 = vmatprep.subr.mxu0 0.0
    %3067 = vmatpush1.msra.mxu0 0.0
    %3068 = vmatprep.subr.mxu0 0.0
    %3069 = vmatpush1.msra.mxu0 0.0
    %3070 = vmatprep.subr.mxu0 0.0
    %3071 = vmatpush1.msra.mxu0 0.0
    %3072 = vmatprep.subr.mxu0 0.0
    %3073 = vmatpush1.msra.mxu0 0.0
    %3074 = vmatprep.subr.mxu0 0.0
    %3075 = vmatpush1.msra.mxu0 0.0
    %3076 = vmatprep.subr.mxu0 0.0
    %3077 = vmatpush1.msra.mxu0 0.0
    %3078 = vmatprep.subr.mxu0 0.0
    %3079 = vmatpush1.msra.mxu0 0.0
    %3080 = vmatprep.mubr.f32.mxu0 0.0
    %v3081 = vand.u32 %v2915, 4294901760
    %3082 = vmatmul.mubr.f32.gmra.mrb[0].mxu0 %v3081
    %v3083 = vpop.f32.mrb[0].mxu0
    %v3084 = vadd.f32 %v2993, %v3083
    %v3085 = vpop.f32.mrb[0].mxu0
    %3086 = vdwg.mxu0
    %3087 = vmatprep.subr.mxu0 0.0
    %v3088 = vand.u32 %v58, 4294901760
    %v3089 = vsub.f32 %v58, %v3088
    %3090 = vmatpush1.msra.mxu0 %v3089
    %3091 = vmatprep.subr.mxu0 0.0
    %v3092 = vand.u32 %v59, 4294901760
    %v3093 = vsub.f32 %v59, %v3092
    %3094 = vmatpush1.msra.mxu0 %v3093
    %3095 = vmatprep.subr.mxu0 0.0
    %v3096 = vand.u32 %v60, 4294901760
    %v3097 = vsub.f32 %v60, %v3096
    %3098 = vmatpush1.msra.mxu0 %v3097
    %3099 = vmatprep.subr.mxu0 0.0
    %v3100 = vand.u32 %v61, 4294901760
    %v3101 = vsub.f32 %v61, %v3100
    %3102 = vmatpush1.msra.mxu0 %v3101
    %3103 = vmatprep.subr.mxu0 0.0
    %3104 = vmatpush1.msra.mxu0 0.0
    %3105 = vmatprep.subr.mxu0 0.0
    %3106 = vmatpush1.msra.mxu0 0.0
    %3107 = vmatprep.subr.mxu0 0.0
    %3108 = vmatpush1.msra.mxu0 0.0
    %3109 = vmatprep.subr.mxu0 0.0
    %3110 = vmatpush1.msra.mxu0 0.0
    %3111 = vmatprep.subr.mxu0 0.0
    %3112 = vmatpush1.msra.mxu0 0.0
    %3113 = vmatprep.subr.mxu0 0.0
    %3114 = vmatpush1.msra.mxu0 0.0
    %3115 = vmatprep.subr.mxu0 0.0
    %3116 = vmatpush1.msra.mxu0 0.0
    %3117 = vmatprep.subr.mxu0 0.0
    %3118 = vmatpush1.msra.mxu0 0.0
    %3119 = vmatprep.subr.mxu0 0.0
    %3120 = vmatpush1.msra.mxu0 0.0
    %3121 = vmatprep.subr.mxu0 0.0
    %3122 = vmatpush1.msra.mxu0 0.0
    %3123 = vmatprep.subr.mxu0 0.0
    %3124 = vmatpush1.msra.mxu0 0.0
    %3125 = vmatprep.subr.mxu0 0.0
    %3126 = vmatpush1.msra.mxu0 0.0
    %3127 = vmatprep.subr.mxu0 0.0
    %3128 = vmatpush1.msra.mxu0 0.0
    %3129 = vmatprep.subr.mxu0 0.0
    %3130 = vmatpush1.msra.mxu0 0.0
    %3131 = vmatprep.subr.mxu0 0.0
    %3132 = vmatpush1.msra.mxu0 0.0
    %3133 = vmatprep.subr.mxu0 0.0
    %3134 = vmatpush1.msra.mxu0 0.0
    %3135 = vmatprep.subr.mxu0 0.0
    %3136 = vmatpush1.msra.mxu0 0.0
    %3137 = vmatprep.subr.mxu0 0.0
    %3138 = vmatpush1.msra.mxu0 0.0
    %3139 = vmatprep.subr.mxu0 0.0
    %3140 = vmatpush1.msra.mxu0 0.0
    %3141 = vmatprep.subr.mxu0 0.0
    %3142 = vmatpush1.msra.mxu0 0.0
    %3143 = vmatprep.subr.mxu0 0.0
    %3144 = vmatpush1.msra.mxu0 0.0
    %3145 = vmatprep.subr.mxu0 0.0
    %3146 = vmatpush1.msra.mxu0 0.0
    %3147 = vmatprep.subr.mxu0 0.0
    %3148 = vmatpush1.msra.mxu0 0.0
    %3149 = vmatprep.subr.mxu0 0.0
    %3150 = vmatpush1.msra.mxu0 0.0
    %3151 = vmatprep.subr.mxu0 0.0
    %3152 = vmatpush1.msra.mxu0 0.0
    %3153 = vmatprep.subr.mxu0 0.0
    %3154 = vmatpush1.msra.mxu0 0.0
    %3155 = vmatprep.subr.mxu0 0.0
    %3156 = vmatpush1.msra.mxu0 0.0
    %3157 = vmatprep.subr.mxu0 0.0
    %3158 = vmatpush1.msra.mxu0 0.0
    %3159 = vmatprep.mubr.f32.mxu0 0.0
    %v3160 = vand.u32 %v2915, 4294901760
    %v3161 = vsub.f32 %v2915, %v3160
    %3162 = vmatmul.mubr.f32.gmra.mrb[0].mxu0 %v3161
    %v3163 = vpop.f32.mrb[0].mxu0
    %v3164 = vadd.f32 %v3084, %v3163
    %v3165 = vpop.f32.mrb[0].mxu0
    %3166 = vdwg.mxu0
    %3167 = vmatprep.subr.mxu0 0.0
    %v3168 = vand.u32 %v58, 4294901760
    %3169 = vmatpush1.msra.mxu0 %v3168
    %3170 = vmatprep.subr.mxu0 0.0
    %v3171 = vand.u32 %v59, 4294901760
    %3172 = vmatpush1.msra.mxu0 %v3171
    %3173 = vmatprep.subr.mxu0 0.0
    %v3174 = vand.u32 %v60, 4294901760
    %3175 = vmatpush1.msra.mxu0 %v3174
    %3176 = vmatprep.subr.mxu0 0.0
    %v3177 = vand.u32 %v61, 4294901760
    %3178 = vmatpush1.msra.mxu0 %v3177
    %3179 = vmatprep.subr.mxu0 0.0
    %3180 = vmatpush1.msra.mxu0 0.0
    %3181 = vmatprep.subr.mxu0 0.0
    %3182 = vmatpush1.msra.mxu0 0.0
    %3183 = vmatprep.subr.mxu0 0.0
    %3184 = vmatpush1.msra.mxu0 0.0
    %3185 = vmatprep.subr.mxu0 0.0
    %3186 = vmatpush1.msra.mxu0 0.0
    %3187 = vmatprep.subr.mxu0 0.0
    %3188 = vmatpush1.msra.mxu0 0.0
    %3189 = vmatprep.subr.mxu0 0.0
    %3190 = vmatpush1.msra.mxu0 0.0
    %3191 = vmatprep.subr.mxu0 0.0
    %3192 = vmatpush1.msra.mxu0 0.0
    %3193 = vmatprep.subr.mxu0 0.0
    %3194 = vmatpush1.msra.mxu0 0.0
    %3195 = vmatprep.subr.mxu0 0.0
    %3196 = vmatpush1.msra.mxu0 0.0
    %3197 = vmatprep.subr.mxu0 0.0
    %3198 = vmatpush1.msra.mxu0 0.0
    %3199 = vmatprep.subr.mxu0 0.0
    %3200 = vmatpush1.msra.mxu0 0.0
    %3201 = vmatprep.subr.mxu0 0.0
    %3202 = vmatpush1.msra.mxu0 0.0
    %3203 = vmatprep.subr.mxu0 0.0
    %3204 = vmatpush1.msra.mxu0 0.0
    %3205 = vmatprep.subr.mxu0 0.0
    %3206 = vmatpush1.msra.mxu0 0.0
    %3207 = vmatprep.subr.mxu0 0.0
    %3208 = vmatpush1.msra.mxu0 0.0
    %3209 = vmatprep.subr.mxu0 0.0
    %3210 = vmatpush1.msra.mxu0 0.0
    %3211 = vmatprep.subr.mxu0 0.0
    %3212 = vmatpush1.msra.mxu0 0.0
    %3213 = vmatprep.subr.mxu0 0.0
    %3214 = vmatpush1.msra.mxu0 0.0
    %3215 = vmatprep.subr.mxu0 0.0
    %3216 = vmatpush1.msra.mxu0 0.0
    %3217 = vmatprep.subr.mxu0 0.0
    %3218 = vmatpush1.msra.mxu0 0.0
    %3219 = vmatprep.subr.mxu0 0.0
    %3220 = vmatpush1.msra.mxu0 0.0
    %3221 = vmatprep.subr.mxu0 0.0
    %3222 = vmatpush1.msra.mxu0 0.0
    %3223 = vmatprep.subr.mxu0 0.0
    %3224 = vmatpush1.msra.mxu0 0.0
    %3225 = vmatprep.subr.mxu0 0.0
    %3226 = vmatpush1.msra.mxu0 0.0
    %3227 = vmatprep.subr.mxu0 0.0
    %3228 = vmatpush1.msra.mxu0 0.0
    %3229 = vmatprep.subr.mxu0 0.0
    %3230 = vmatpush1.msra.mxu0 0.0
    %3231 = vmatprep.subr.mxu0 0.0
    %3232 = vmatpush1.msra.mxu0 0.0
    %3233 = vmatprep.subr.mxu0 0.0
    %3234 = vmatpush1.msra.mxu0 0.0
    %3235 = vmatprep.mubr.f32.mxu0 0.0
    %v3236 = vand.u32 %v2915, 4294901760
    %v3237 = vsub.f32 %v2915, %v3236
    %v3238 = vand.u32 %v3237, 4294901760
    %3239 = vmatmul.mubr.f32.gmra.mrb[0].mxu0 %v3238
    %v3240 = vpop.f32.mrb[0].mxu0
    %v3241 = vadd.f32 %v3164, %v3240
    %v3242 = vpop.f32.mrb[0].mxu0
    %3243 = vdwg.mxu0
    %3244 = vmatprep.subr.mxu0 0.0
    %v3245 = vand.u32 %v58, 4294901760
    %v3246 = vsub.f32 %v58, %v3245
    %v3247 = vand.u32 %v3246, 4294901760
    %3248 = vmatpush1.msra.mxu0 %v3247
    %3249 = vmatprep.subr.mxu0 0.0
    %v3250 = vand.u32 %v59, 4294901760
    %v3251 = vsub.f32 %v59, %v3250
    %v3252 = vand.u32 %v3251, 4294901760
    %3253 = vmatpush1.msra.mxu0 %v3252
    %3254 = vmatprep.subr.mxu0 0.0
    %v3255 = vand.u32 %v60, 4294901760
    %v3256 = vsub.f32 %v60, %v3255
    %v3257 = vand.u32 %v3256, 4294901760
    %3258 = vmatpush1.msra.mxu0 %v3257
    %3259 = vmatprep.subr.mxu0 0.0
    %v3260 = vand.u32 %v61, 4294901760
    %v3261 = vsub.f32 %v61, %v3260
    %v3262 = vand.u32 %v3261, 4294901760
    %3263 = vmatpush1.msra.mxu0 %v3262
    %3264 = vmatprep.subr.mxu0 0.0
    %3265 = vmatpush1.msra.mxu0 0.0
    %3266 = vmatprep.subr.mxu0 0.0
    %3267 = vmatpush1.msra.mxu0 0.0
    %3268 = vmatprep.subr.mxu0 0.0
    %3269 = vmatpush1.msra.mxu0 0.0
    %3270 = vmatprep.subr.mxu0 0.0
    %3271 = vmatpush1.msra.mxu0 0.0
    %3272 = vmatprep.subr.mxu0 0.0
    %3273 = vmatpush1.msra.mxu0 0.0
    %3274 = vmatprep.subr.mxu0 0.0
    %3275 = vmatpush1.msra.mxu0 0.0
    %3276 = vmatprep.subr.mxu0 0.0
    %3277 = vmatpush1.msra.mxu0 0.0
    %3278 = vmatprep.subr.mxu0 0.0
    %3279 = vmatpush1.msra.mxu0 0.0
    %3280 = vmatprep.subr.mxu0 0.0
    %3281 = vmatpush1.msra.mxu0 0.0
    %3282 = vmatprep.subr.mxu0 0.0
    %3283 = vmatpush1.msra.mxu0 0.0
    %3284 = vmatprep.subr.mxu0 0.0
    %3285 = vmatpush1.msra.mxu0 0.0
    %3286 = vmatprep.subr.mxu0 0.0
    %3287 = vmatpush1.msra.mxu0 0.0
    %3288 = vmatprep.subr.mxu0 0.0
    %3289 = vmatpush1.msra.mxu0 0.0
    %3290 = vmatprep.subr.mxu0 0.0
    %3291 = vmatpush1.msra.mxu0 0.0
    %3292 = vmatprep.subr.mxu0 0.0
    %3293 = vmatpush1.msra.mxu0 0.0
    %3294 = vmatprep.subr.mxu0 0.0
    %3295 = vmatpush1.msra.mxu0 0.0
    %3296 = vmatprep.subr.mxu0 0.0
    %3297 = vmatpush1.msra.mxu0 0.0
    %3298 = vmatprep.subr.mxu0 0.0
    %3299 = vmatpush1.msra.mxu0 0.0
    %3300 = vmatprep.subr.mxu0 0.0
    %3301 = vmatpush1.msra.mxu0 0.0
    %3302 = vmatprep.subr.mxu0 0.0
    %3303 = vmatpush1.msra.mxu0 0.0
    %3304 = vmatprep.subr.mxu0 0.0
    %3305 = vmatpush1.msra.mxu0 0.0
    %3306 = vmatprep.subr.mxu0 0.0
    %3307 = vmatpush1.msra.mxu0 0.0
    %3308 = vmatprep.subr.mxu0 0.0
    %3309 = vmatpush1.msra.mxu0 0.0
    %3310 = vmatprep.subr.mxu0 0.0
    %3311 = vmatpush1.msra.mxu0 0.0
    %3312 = vmatprep.subr.mxu0 0.0
    %3313 = vmatpush1.msra.mxu0 0.0
    %3314 = vmatprep.subr.mxu0 0.0
    %3315 = vmatpush1.msra.mxu0 0.0
    %3316 = vmatprep.subr.mxu0 0.0
    %3317 = vmatpush1.msra.mxu0 0.0
    %3318 = vmatprep.subr.mxu0 0.0
    %3319 = vmatpush1.msra.mxu0 0.0
    %3320 = vmatprep.mubr.f32.mxu0 0.0
    %v3321 = vand.u32 %v2915, 4294901760
    %3322 = vmatmul.mubr.f32.gmra.mrb[0].mxu0 %v3321
    %v3323 = vpop.f32.mrb[0].mxu0
    %v3324 = vadd.f32 %v3241, %v3323
    %v3325 = vpop.f32.mrb[0].mxu0
    %3326 = vdwg.mxu0
    %3327 = vmatprep.subr.mxu0 0.0
    %v3328 = vand.u32 %v58, 4294901760
    %3329 = vmatpush1.msra.mxu0 %v3328
    %3330 = vmatprep.subr.mxu0 0.0
    %v3331 = vand.u32 %v59, 4294901760
    %3332 = vmatpush1.msra.mxu0 %v3331
    %3333 = vmatprep.subr.mxu0 0.0
    %v3334 = vand.u32 %v60, 4294901760
    %3335 = vmatpush1.msra.mxu0 %v3334
    %3336 = vmatprep.subr.mxu0 0.0
    %v3337 = vand.u32 %v61, 4294901760
    %3338 = vmatpush1.msra.mxu0 %v3337
    %3339 = vmatprep.subr.mxu0 0.0
    %3340 = vmatpush1.msra.mxu0 0.0
    %3341 = vmatprep.subr.mxu0 0.0
    %3342 = vmatpush1.msra.mxu0 0.0
    %3343 = vmatprep.subr.mxu0 0.0
    %3344 = vmatpush1.msra.mxu0 0.0
    %3345 = vmatprep.subr.mxu0 0.0
    %3346 = vmatpush1.msra.mxu0 0.0
    %3347 = vmatprep.subr.mxu0 0.0
    %3348 = vmatpush1.msra.mxu0 0.0
    %3349 = vmatprep.subr.mxu0 0.0
    %3350 = vmatpush1.msra.mxu0 0.0
    %3351 = vmatprep.subr.mxu0 0.0
    %3352 = vmatpush1.msra.mxu0 0.0
    %3353 = vmatprep.subr.mxu0 0.0
    %3354 = vmatpush1.msra.mxu0 0.0
    %3355 = vmatprep.subr.mxu0 0.0
    %3356 = vmatpush1.msra.mxu0 0.0
    %3357 = vmatprep.subr.mxu0 0.0
    %3358 = vmatpush1.msra.mxu0 0.0
    %3359 = vmatprep.subr.mxu0 0.0
    %3360 = vmatpush1.msra.mxu0 0.0
    %3361 = vmatprep.subr.mxu0 0.0
    %3362 = vmatpush1.msra.mxu0 0.0
    %3363 = vmatprep.subr.mxu0 0.0
    %3364 = vmatpush1.msra.mxu0 0.0
    %3365 = vmatprep.subr.mxu0 0.0
    %3366 = vmatpush1.msra.mxu0 0.0
    %3367 = vmatprep.subr.mxu0 0.0
    %3368 = vmatpush1.msra.mxu0 0.0
    %3369 = vmatprep.subr.mxu0 0.0
    %3370 = vmatpush1.msra.mxu0 0.0
    %3371 = vmatprep.subr.mxu0 0.0
    %3372 = vmatpush1.msra.mxu0 0.0
    %3373 = vmatprep.subr.mxu0 0.0
    %3374 = vmatpush1.msra.mxu0 0.0
    %3375 = vmatprep.subr.mxu0 0.0
    %3376 = vmatpush1.msra.mxu0 0.0
    %3377 = vmatprep.subr.mxu0 0.0
    %3378 = vmatpush1.msra.mxu0 0.0
    %3379 = vmatprep.subr.mxu0 0.0
    %3380 = vmatpush1.msra.mxu0 0.0
    %3381 = vmatprep.subr.mxu0 0.0
    %3382 = vmatpush1.msra.mxu0 0.0
    %3383 = vmatprep.subr.mxu0 0.0
    %3384 = vmatpush1.msra.mxu0 0.0
    %3385 = vmatprep.subr.mxu0 0.0
    %3386 = vmatpush1.msra.mxu0 0.0
    %3387 = vmatprep.subr.mxu0 0.0
    %3388 = vmatpush1.msra.mxu0 0.0
    %3389 = vmatprep.subr.mxu0 0.0
    %3390 = vmatpush1.msra.mxu0 0.0
    %3391 = vmatprep.subr.mxu0 0.0
    %3392 = vmatpush1.msra.mxu0 0.0
    %3393 = vmatprep.subr.mxu0 0.0
    %3394 = vmatpush1.msra.mxu0 0.0
    %3395 = vmatprep.mubr.f32.mxu0 0.0
    %v3396 = vand.u32 %v2915, 4294901760
    %3397 = vmatmul.mubr.f32.gmra.mrb[0].mxu0 %v3396
    %v3398 = vpop.f32.mrb[0].mxu0
    %v3399 = vadd.f32 %v3324, %v3398
    %v3400 = vpop.f32.mrb[0].mxu0
    %3401 = vdwg.mxu0
    %v3402 = vsel %vm1158, %v3399, -inf
    %3403 = vmax.xlane.f32.xlu0 %v3402
    %v3404 = vpop.xlane.xlu0 %3403
    %vm3405 = vcmp.eq.f32.partialorder %v3399, %v3404
    %v3406 = vsel %vm3405, %v64, 8
    %v3407 = vsel %vm1158, %v3406, 2147483647
    %v3408 = vand.u32 %v3407, 65535
    %v3409 = vshra.s32 %v3407, 16
    %v3410 = vcvt.s32.f32 %v3408
    %v3411 = vcvt.s32.f32 %v3409
    %3412 = vmin.xlane.f32.xlu0 %v3411
    %v3413 = vpop.xlane.xlu0 %3412
    %vm3414 = vcmp.eq.f32.partialorder %v3411, %v3413
    %v3415 = vsel %vm3414, %v3410, inf
    %3416 = vmin.xlane.f32.xlu0 %v3415
    %v3417 = vpop.xlane.xlu0 %3416
    %v3418 = vcvt.f32.s32 %v3417
    %v3419 = vcvt.f32.s32 %v3413
    %v3420 = vshll.u32 %v3419, 16
    %v3421 = vadd.s32 %v3420, %v3418
    %v3422 = vcvt.s32.f32 %v3421
    %vm3423 = vcmp.gt.f32.partialorder %v2340, 0.5
    %v3424 = vsel %vm3423, -1e+30, %v3399
    %v3425 = vsel %vm1158, %v3424, -inf
    %3426 = vmax.xlane.f32.xlu0 %v3425
    %v3427 = vpop.xlane.xlu0 %3426
    %vm3428 = vcmp.eq.f32.partialorder %v3424, %v3427
    %v3429 = vsel %vm3428, %v64, 8
    %v3430 = vsel %vm1158, %v3429, 2147483647
    %v3431 = vand.u32 %v3430, 65535
    %v3432 = vshra.s32 %v3430, 16
    %v3433 = vcvt.s32.f32 %v3431
    %v3434 = vcvt.s32.f32 %v3432
    %3435 = vmin.xlane.f32.xlu0 %v3434
    %v3436 = vpop.xlane.xlu0 %3435
    %vm3437 = vcmp.eq.f32.partialorder %v3434, %v3436
    %v3438 = vsel %vm3437, %v3433, inf
    %3439 = vmin.xlane.f32.xlu0 %v3438
    %v3440 = vpop.xlane.xlu0 %3439
    %v3441 = vcvt.f32.s32 %v3440
    %v3442 = vcvt.f32.s32 %v3436
    %v3443 = vshll.u32 %v3442, 16
    %v3444 = vadd.s32 %v3443, %v3441
    %v3445 = vsub.f32 %v3424, %v3427
    %v3446 = vmul.f32 %v3445, 1.442695
    %v3447 = vpow.pop %v3446
    %v3448 = vsel %vm1158, %v3447, 0.0
    %3449 = vadd.xlane.f32.xlu0 %v3448
    %v3450 = vpop.xlane.xlu0 %3449
    %v3451 = vlog2.pop %v3450
    %v3452 = vmul.f32 %v3451, 0.6931472
    %v3453 = vsub.f32 0.0, %v3452
    %v3454 = vcvt.s32.f32 %v3444
    %vm3455 = vcmask 17424
    %3456 = vst.msk [vmem:[#allocation5] sm:$0x3] %vm3455, %v3454
    %3457 = vst.msk [vmem:[#allocation6] sm:$0x3] %vm3455, %v3453
    %vm3458 = vcmp.eq.s32.totalorder %v64, %v3444
    %v3459 = vsel %vm3458, 1, 0
    %v3460 = vcvt.s32.f32 %v3459
    %v3461 = vmax.f32 %v2340, %v3460
    %v3462 = vmul.f32 %v3422, %v71
    %v3463 = vadd.f32 %v3462, %v77
    %v3464 = vmax.f32 %v3463, 0.0
    %3465 = vrot.lane.b32.xlu0 %v2911, 64
    %v3466 = vpop.permute.xlu0 %3465
    %v3468 = vsel %vm85, %v3464, %v3466
    %v3470 = vsel %vm93, %v3468, 0
    %3472 = vmatprep.subr.mxu0 0.0
    %v3473 = vand.u32 %v49, 4294901760
    %3474 = vmatpush1.msra.mxu0 %v3473
    %3475 = vmatprep.subr.mxu0 0.0
    %v3476 = vand.u32 %v50, 4294901760
    %3477 = vmatpush1.msra.mxu0 %v3476
    %3478 = vmatprep.subr.mxu0 0.0
    %v3479 = vand.u32 %v51, 4294901760
    %3480 = vmatpush1.msra.mxu0 %v3479
    %3481 = vmatprep.subr.mxu0 0.0
    %v3482 = vand.u32 %v52, 4294901760
    %3483 = vmatpush1.msra.mxu0 %v3482
    %3484 = vmatprep.subr.mxu0 0.0
    %v3485 = vand.u32 %v53, 4294901760
    %3486 = vmatpush1.msra.mxu0 %v3485
    %3487 = vmatprep.subr.mxu0 0.0
    %v3488 = vand.u32 %v54, 4294901760
    %3489 = vmatpush1.msra.mxu0 %v3488
    %3490 = vmatprep.subr.mxu0 0.0
    %v3491 = vand.u32 %v55, 4294901760
    %3492 = vmatpush1.msra.mxu0 %v3491
    %3493 = vmatprep.subr.mxu0 0.0
    %v3494 = vand.u32 %v56, 4294901760
    %3495 = vmatpush1.msra.mxu0 %v3494
    %3496 = vmatprep.subr.mxu0 0.0
    %3497 = vmatpush1.msra.mxu0 0.0
    %3498 = vmatprep.subr.mxu0 0.0
    %3499 = vmatpush1.msra.mxu0 0.0
    %3500 = vmatprep.subr.mxu0 0.0
    %3501 = vmatpush1.msra.mxu0 0.0
    %3502 = vmatprep.subr.mxu0 0.0
    %3503 = vmatpush1.msra.mxu0 0.0
    %3504 = vmatprep.subr.mxu0 0.0
    %3505 = vmatpush1.msra.mxu0 0.0
    %3506 = vmatprep.subr.mxu0 0.0
    %3507 = vmatpush1.msra.mxu0 0.0
    %3508 = vmatprep.subr.mxu0 0.0
    %3509 = vmatpush1.msra.mxu0 0.0
    %3510 = vmatprep.subr.mxu0 0.0
    %3511 = vmatpush1.msra.mxu0 0.0
    %3512 = vmatprep.subr.mxu0 0.0
    %3513 = vmatpush1.msra.mxu0 0.0
    %3514 = vmatprep.subr.mxu0 0.0
    %3515 = vmatpush1.msra.mxu0 0.0
    %3516 = vmatprep.subr.mxu0 0.0
    %3517 = vmatpush1.msra.mxu0 0.0
    %3518 = vmatprep.subr.mxu0 0.0
    %3519 = vmatpush1.msra.mxu0 0.0
    %3520 = vmatprep.subr.mxu0 0.0
    %3521 = vmatpush1.msra.mxu0 0.0
    %3522 = vmatprep.subr.mxu0 0.0
    %3523 = vmatpush1.msra.mxu0 0.0
    %3524 = vmatprep.subr.mxu0 0.0
    %3525 = vmatpush1.msra.mxu0 0.0
    %3526 = vmatprep.subr.mxu0 0.0
    %3527 = vmatpush1.msra.mxu0 0.0
    %3528 = vmatprep.subr.mxu0 0.0
    %3529 = vmatpush1.msra.mxu0 0.0
    %3530 = vmatprep.subr.mxu0 0.0
    %3531 = vmatpush1.msra.mxu0 0.0
    %3532 = vmatprep.subr.mxu0 0.0
    %3533 = vmatpush1.msra.mxu0 0.0
    %3534 = vmatprep.subr.mxu0 0.0
    %3535 = vmatpush1.msra.mxu0 0.0
    %3536 = vmatprep.subr.mxu0 0.0
    %3537 = vmatpush1.msra.mxu0 0.0
    %3538 = vmatprep.subr.mxu0 0.0
    %3539 = vmatpush1.msra.mxu0 0.0
    %3540 = vmatprep.subr.mxu0 0.0
    %3541 = vmatpush1.msra.mxu0 0.0
    %3542 = vmatprep.subr.mxu0 0.0
    %3543 = vmatpush1.msra.mxu0 0.0
    %3544 = vmatprep.mubr.f32.mxu0 0.0
    %v3545 = vand.u32 %v3470, 4294901760
    %v3546 = vsub.f32 %v3470, %v3545
    %v3547 = vand.u32 %v3546, 4294901760
    %v3548 = vsub.f32 %v3546, %v3547
    %v3549 = vand.u32 %v3548, 4294901760
    %3550 = vmatmul.mubr.f32.gmra.mrb[0].mxu0 %v3549
    %v3551 = vpop.f32.mrb[0].mxu0
    %v3552 = vadd.f32 %v91, %v3551
    %v3553 = vpop.f32.mrb[0].mxu0
    %3554 = vdwg.mxu0
    %3555 = vmatprep.subr.mxu0 0.0
    %v3556 = vand.u32 %v49, 4294901760
    %v3557 = vsub.f32 %v49, %v3556
    %v3558 = vand.u32 %v3557, 4294901760
    %v3559 = vsub.f32 %v3557, %v3558
    %v3560 = vand.u32 %v3559, 4294901760
    %3561 = vmatpush1.msra.mxu0 %v3560
    %3562 = vmatprep.subr.mxu0 0.0
    %v3563 = vand.u32 %v50, 4294901760
    %v3564 = vsub.f32 %v50, %v3563
    %v3565 = vand.u32 %v3564, 4294901760
    %v3566 = vsub.f32 %v3564, %v3565
    %v3567 = vand.u32 %v3566, 4294901760
    %3568 = vmatpush1.msra.mxu0 %v3567
    %3569 = vmatprep.subr.mxu0 0.0
    %v3570 = vand.u32 %v51, 4294901760
    %v3571 = vsub.f32 %v51, %v3570
    %v3572 = vand.u32 %v3571, 4294901760
    %v3573 = vsub.f32 %v3571, %v3572
    %v3574 = vand.u32 %v3573, 4294901760
    %3575 = vmatpush1.msra.mxu0 %v3574
    %3576 = vmatprep.subr.mxu0 0.0
    %v3577 = vand.u32 %v52, 4294901760
    %v3578 = vsub.f32 %v52, %v3577
    %v3579 = vand.u32 %v3578, 4294901760
    %v3580 = vsub.f32 %v3578, %v3579
    %v3581 = vand.u32 %v3580, 4294901760
    %3582 = vmatpush1.msra.mxu0 %v3581
    %3583 = vmatprep.subr.mxu0 0.0
    %v3584 = vand.u32 %v53, 4294901760
    %v3585 = vsub.f32 %v53, %v3584
    %v3586 = vand.u32 %v3585, 4294901760
    %v3587 = vsub.f32 %v3585, %v3586
    %v3588 = vand.u32 %v3587, 4294901760
    %3589 = vmatpush1.msra.mxu0 %v3588
    %3590 = vmatprep.subr.mxu0 0.0
    %v3591 = vand.u32 %v54, 4294901760
    %v3592 = vsub.f32 %v54, %v3591
    %v3593 = vand.u32 %v3592, 4294901760
    %v3594 = vsub.f32 %v3592, %v3593
    %v3595 = vand.u32 %v3594, 4294901760
    %3596 = vmatpush1.msra.mxu0 %v3595
    %3597 = vmatprep.subr.mxu0 0.0
    %v3598 = vand.u32 %v55, 4294901760
    %v3599 = vsub.f32 %v55, %v3598
    %v3600 = vand.u32 %v3599, 4294901760
    %v3601 = vsub.f32 %v3599, %v3600
    %v3602 = vand.u32 %v3601, 4294901760
    %3603 = vmatpush1.msra.mxu0 %v3602
    %3604 = vmatprep.subr.mxu0 0.0
    %v3605 = vand.u32 %v56, 4294901760
    %v3606 = vsub.f32 %v56, %v3605
    %v3607 = vand.u32 %v3606, 4294901760
    %v3608 = vsub.f32 %v3606, %v3607
    %v3609 = vand.u32 %v3608, 4294901760
    %3610 = vmatpush1.msra.mxu0 %v3609
    %3611 = vmatprep.subr.mxu0 0.0
    %3612 = vmatpush1.msra.mxu0 0.0
    %3613 = vmatprep.subr.mxu0 0.0
    %3614 = vmatpush1.msra.mxu0 0.0
    %3615 = vmatprep.subr.mxu0 0.0
    %3616 = vmatpush1.msra.mxu0 0.0
    %3617 = vmatprep.subr.mxu0 0.0
    %3618 = vmatpush1.msra.mxu0 0.0
    %3619 = vmatprep.subr.mxu0 0.0
    %3620 = vmatpush1.msra.mxu0 0.0
    %3621 = vmatprep.subr.mxu0 0.0
    %3622 = vmatpush1.msra.mxu0 0.0
    %3623 = vmatprep.subr.mxu0 0.0
    %3624 = vmatpush1.msra.mxu0 0.0
    %3625 = vmatprep.subr.mxu0 0.0
    %3626 = vmatpush1.msra.mxu0 0.0
    %3627 = vmatprep.subr.mxu0 0.0
    %3628 = vmatpush1.msra.mxu0 0.0
    %3629 = vmatprep.subr.mxu0 0.0
    %3630 = vmatpush1.msra.mxu0 0.0
    %3631 = vmatprep.subr.mxu0 0.0
    %3632 = vmatpush1.msra.mxu0 0.0
    %3633 = vmatprep.subr.mxu0 0.0
    %3634 = vmatpush1.msra.mxu0 0.0
    %3635 = vmatprep.subr.mxu0 0.0
    %3636 = vmatpush1.msra.mxu0 0.0
    %3637 = vmatprep.subr.mxu0 0.0
    %3638 = vmatpush1.msra.mxu0 0.0
    %3639 = vmatprep.subr.mxu0 0.0
    %3640 = vmatpush1.msra.mxu0 0.0
    %3641 = vmatprep.subr.mxu0 0.0
    %3642 = vmatpush1.msra.mxu0 0.0
    %3643 = vmatprep.subr.mxu0 0.0
    %3644 = vmatpush1.msra.mxu0 0.0
    %3645 = vmatprep.subr.mxu0 0.0
    %3646 = vmatpush1.msra.mxu0 0.0
    %3647 = vmatprep.subr.mxu0 0.0
    %3648 = vmatpush1.msra.mxu0 0.0
    %3649 = vmatprep.subr.mxu0 0.0
    %3650 = vmatpush1.msra.mxu0 0.0
    %3651 = vmatprep.subr.mxu0 0.0
    %3652 = vmatpush1.msra.mxu0 0.0
    %3653 = vmatprep.subr.mxu0 0.0
    %3654 = vmatpush1.msra.mxu0 0.0
    %3655 = vmatprep.subr.mxu0 0.0
    %3656 = vmatpush1.msra.mxu0 0.0
    %3657 = vmatprep.subr.mxu0 0.0
    %3658 = vmatpush1.msra.mxu0 0.0
    %3659 = vmatprep.mubr.f32.mxu0 0.0
    %v3660 = vand.u32 %v3470, 4294901760
    %3661 = vmatmul.mubr.f32.gmra.mrb[0].mxu0 %v3660
    %v3662 = vpop.f32.mrb[0].mxu0
    %v3663 = vadd.f32 %v3552, %v3662
    %v3664 = vpop.f32.mrb[0].mxu0
    %3665 = vdwg.mxu0
    %3666 = vmatprep.subr.mxu0 0.0
    %v3667 = vand.u32 %v49, 4294901760
    %v3668 = vsub.f32 %v49, %v3667
    %3669 = vmatpush1.msra.mxu0 %v3668
    %3670 = vmatprep.subr.mxu0 0.0
    %v3671 = vand.u32 %v50, 4294901760
    %v3672 = vsub.f32 %v50, %v3671
    %3673 = vmatpush1.msra.mxu0 %v3672
    %3674 = vmatprep.subr.mxu0 0.0
    %v3675 = vand.u32 %v51, 4294901760
    %v3676 = vsub.f32 %v51, %v3675
    %3677 = vmatpush1.msra.mxu0 %v3676
    %3678 = vmatprep.subr.mxu0 0.0
    %v3679 = vand.u32 %v52, 4294901760
    %v3680 = vsub.f32 %v52, %v3679
    %3681 = vmatpush1.msra.mxu0 %v3680
    %3682 = vmatprep.subr.mxu0 0.0
    %v3683 = vand.u32 %v53, 4294901760
    %v3684 = vsub.f32 %v53, %v3683
    %3685 = vmatpush1.msra.mxu0 %v3684
    %3686 = vmatprep.subr.mxu0 0.0
    %v3687 = vand.u32 %v54, 4294901760
    %v3688 = vsub.f32 %v54, %v3687
    %3689 = vmatpush1.msra.mxu0 %v3688
    %3690 = vmatprep.subr.mxu0 0.0
    %v3691 = vand.u32 %v55, 4294901760
    %v3692 = vsub.f32 %v55, %v3691
    %3693 = vmatpush1.msra.mxu0 %v3692
    %3694 = vmatprep.subr.mxu0 0.0
    %v3695 = vand.u32 %v56, 4294901760
    %v3696 = vsub.f32 %v56, %v3695
    %3697 = vmatpush1.msra.mxu0 %v3696
    %3698 = vmatprep.subr.mxu0 0.0
    %3699 = vmatpush1.msra.mxu0 0.0
    %3700 = vmatprep.subr.mxu0 0.0
    %3701 = vmatpush1.msra.mxu0 0.0
    %3702 = vmatprep.subr.mxu0 0.0
    %3703 = vmatpush1.msra.mxu0 0.0
    %3704 = vmatprep.subr.mxu0 0.0
    %3705 = vmatpush1.msra.mxu0 0.0
    %3706 = vmatprep.subr.mxu0 0.0
    %3707 = vmatpush1.msra.mxu0 0.0
    %3708 = vmatprep.subr.mxu0 0.0
    %3709 = vmatpush1.msra.mxu0 0.0
    %3710 = vmatprep.subr.mxu0 0.0
    %3711 = vmatpush1.msra.mxu0 0.0
    %3712 = vmatprep.subr.mxu0 0.0
    %3713 = vmatpush1.msra.mxu0 0.0
    %3714 = vmatprep.subr.mxu0 0.0
    %3715 = vmatpush1.msra.mxu0 0.0
    %3716 = vmatprep.subr.mxu0 0.0
    %3717 = vmatpush1.msra.mxu0 0.0
    %3718 = vmatprep.subr.mxu0 0.0
    %3719 = vmatpush1.msra.mxu0 0.0
    %3720 = vmatprep.subr.mxu0 0.0
    %3721 = vmatpush1.msra.mxu0 0.0
    %3722 = vmatprep.subr.mxu0 0.0
    %3723 = vmatpush1.msra.mxu0 0.0
    %3724 = vmatprep.subr.mxu0 0.0
    %3725 = vmatpush1.msra.mxu0 0.0
    %3726 = vmatprep.subr.mxu0 0.0
    %3727 = vmatpush1.msra.mxu0 0.0
    %3728 = vmatprep.subr.mxu0 0.0
    %3729 = vmatpush1.msra.mxu0 0.0
    %3730 = vmatprep.subr.mxu0 0.0
    %3731 = vmatpush1.msra.mxu0 0.0
    %3732 = vmatprep.subr.mxu0 0.0
    %3733 = vmatpush1.msra.mxu0 0.0
    %3734 = vmatprep.subr.mxu0 0.0
    %3735 = vmatpush1.msra.mxu0 0.0
    %3736 = vmatprep.subr.mxu0 0.0
    %3737 = vmatpush1.msra.mxu0 0.0
    %3738 = vmatprep.subr.mxu0 0.0
    %3739 = vmatpush1.msra.mxu0 0.0
    %3740 = vmatprep.subr.mxu0 0.0
    %3741 = vmatpush1.msra.mxu0 0.0
    %3742 = vmatprep.subr.mxu0 0.0
    %3743 = vmatpush1.msra.mxu0 0.0
    %3744 = vmatprep.subr.mxu0 0.0
    %3745 = vmatpush1.msra.mxu0 0.0
    %3746 = vmatprep.mubr.f32.mxu0 0.0
    %v3747 = vand.u32 %v3470, 4294901760
    %v3748 = vsub.f32 %v3470, %v3747
    %3749 = vmatmul.mubr.f32.gmra.mrb[0].mxu0 %v3748
    %v3750 = vpop.f32.mrb[0].mxu0
    %v3751 = vadd.f32 %v3663, %v3750
    %v3752 = vpop.f32.mrb[0].mxu0
    %3753 = vdwg.mxu0
    %3754 = vmatprep.subr.mxu0 0.0
    %v3755 = vand.u32 %v49, 4294901760
    %3756 = vmatpush1.msra.mxu0 %v3755
    %3757 = vmatprep.subr.mxu0 0.0
    %v3758 = vand.u32 %v50, 4294901760
    %3759 = vmatpush1.msra.mxu0 %v3758
    %3760 = vmatprep.subr.mxu0 0.0
    %v3761 = vand.u32 %v51, 4294901760
    %3762 = vmatpush1.msra.mxu0 %v3761
    %3763 = vmatprep.subr.mxu0 0.0
    %v3764 = vand.u32 %v52, 4294901760
    %3765 = vmatpush1.msra.mxu0 %v3764
    %3766 = vmatprep.subr.mxu0 0.0
    %v3767 = vand.u32 %v53, 4294901760
    %3768 = vmatpush1.msra.mxu0 %v3767
    %3769 = vmatprep.subr.mxu0 0.0
    %v3770 = vand.u32 %v54, 4294901760
    %3771 = vmatpush1.msra.mxu0 %v3770
    %3772 = vmatprep.subr.mxu0 0.0
    %v3773 = vand.u32 %v55, 4294901760
    %3774 = vmatpush1.msra.mxu0 %v3773
    %3775 = vmatprep.subr.mxu0 0.0
    %v3776 = vand.u32 %v56, 4294901760
    %3777 = vmatpush1.msra.mxu0 %v3776
    %3778 = vmatprep.subr.mxu0 0.0
    %3779 = vmatpush1.msra.mxu0 0.0
    %3780 = vmatprep.subr.mxu0 0.0
    %3781 = vmatpush1.msra.mxu0 0.0
    %3782 = vmatprep.subr.mxu0 0.0
    %3783 = vmatpush1.msra.mxu0 0.0
    %3784 = vmatprep.subr.mxu0 0.0
    %3785 = vmatpush1.msra.mxu0 0.0
    %3786 = vmatprep.subr.mxu0 0.0
    %3787 = vmatpush1.msra.mxu0 0.0
    %3788 = vmatprep.subr.mxu0 0.0
    %3789 = vmatpush1.msra.mxu0 0.0
    %3790 = vmatprep.subr.mxu0 0.0
    %3791 = vmatpush1.msra.mxu0 0.0
    %3792 = vmatprep.subr.mxu0 0.0
    %3793 = vmatpush1.msra.mxu0 0.0
    %3794 = vmatprep.subr.mxu0 0.0
    %3795 = vmatpush1.msra.mxu0 0.0
    %3796 = vmatprep.subr.mxu0 0.0
    %3797 = vmatpush1.msra.mxu0 0.0
    %3798 = vmatprep.subr.mxu0 0.0
    %3799 = vmatpush1.msra.mxu0 0.0
    %3800 = vmatprep.subr.mxu0 0.0
    %3801 = vmatpush1.msra.mxu0 0.0
    %3802 = vmatprep.subr.mxu0 0.0
    %3803 = vmatpush1.msra.mxu0 0.0
    %3804 = vmatprep.subr.mxu0 0.0
    %3805 = vmatpush1.msra.mxu0 0.0
    %3806 = vmatprep.subr.mxu0 0.0
    %3807 = vmatpush1.msra.mxu0 0.0
    %3808 = vmatprep.subr.mxu0 0.0
    %3809 = vmatpush1.msra.mxu0 0.0
    %3810 = vmatprep.subr.mxu0 0.0
    %3811 = vmatpush1.msra.mxu0 0.0
    %3812 = vmatprep.subr.mxu0 0.0
    %3813 = vmatpush1.msra.mxu0 0.0
    %3814 = vmatprep.subr.mxu0 0.0
    %3815 = vmatpush1.msra.mxu0 0.0
    %3816 = vmatprep.subr.mxu0 0.0
    %3817 = vmatpush1.msra.mxu0 0.0
    %3818 = vmatprep.subr.mxu0 0.0
    %3819 = vmatpush1.msra.mxu0 0.0
    %3820 = vmatprep.subr.mxu0 0.0
    %3821 = vmatpush1.msra.mxu0 0.0
    %3822 = vmatprep.subr.mxu0 0.0
    %3823 = vmatpush1.msra.mxu0 0.0
    %3824 = vmatprep.subr.mxu0 0.0
    %3825 = vmatpush1.msra.mxu0 0.0
    %3826 = vmatprep.mubr.f32.mxu0 0.0
    %v3827 = vand.u32 %v3470, 4294901760
    %v3828 = vsub.f32 %v3470, %v3827
    %v3829 = vand.u32 %v3828, 4294901760
    %3830 = vmatmul.mubr.f32.gmra.mrb[0].mxu0 %v3829
    %v3831 = vpop.f32.mrb[0].mxu0
    %v3832 = vadd.f32 %v3751, %v3831
    %v3833 = vpop.f32.mrb[0].mxu0
    %3834 = vdwg.mxu0
    %3835 = vmatprep.subr.mxu0 0.0
    %v3836 = vand.u32 %v49, 4294901760
    %v3837 = vsub.f32 %v49, %v3836
    %v3838 = vand.u32 %v3837, 4294901760
    %3839 = vmatpush1.msra.mxu0 %v3838
    %3840 = vmatprep.subr.mxu0 0.0
    %v3841 = vand.u32 %v50, 4294901760
    %v3842 = vsub.f32 %v50, %v3841
    %v3843 = vand.u32 %v3842, 4294901760
    %3844 = vmatpush1.msra.mxu0 %v3843
    %3845 = vmatprep.subr.mxu0 0.0
    %v3846 = vand.u32 %v51, 4294901760
    %v3847 = vsub.f32 %v51, %v3846
    %v3848 = vand.u32 %v3847, 4294901760
    %3849 = vmatpush1.msra.mxu0 %v3848
    %3850 = vmatprep.subr.mxu0 0.0
    %v3851 = vand.u32 %v52, 4294901760
    %v3852 = vsub.f32 %v52, %v3851
    %v3853 = vand.u32 %v3852, 4294901760
    %3854 = vmatpush1.msra.mxu0 %v3853
    %3855 = vmatprep.subr.mxu0 0.0
    %v3856 = vand.u32 %v53, 4294901760
    %v3857 = vsub.f32 %v53, %v3856
    %v3858 = vand.u32 %v3857, 4294901760
    %3859 = vmatpush1.msra.mxu0 %v3858
    %3860 = vmatprep.subr.mxu0 0.0
    %v3861 = vand.u32 %v54, 4294901760
    %v3862 = vsub.f32 %v54, %v3861
    %v3863 = vand.u32 %v3862, 4294901760
    %3864 = vmatpush1.msra.mxu0 %v3863
    %3865 = vmatprep.subr.mxu0 0.0
    %v3866 = vand.u32 %v55, 4294901760
    %v3867 = vsub.f32 %v55, %v3866
    %v3868 = vand.u32 %v3867, 4294901760
    %3869 = vmatpush1.msra.mxu0 %v3868
    %3870 = vmatprep.subr.mxu0 0.0
    %v3871 = vand.u32 %v56, 4294901760
    %v3872 = vsub.f32 %v56, %v3871
    %v3873 = vand.u32 %v3872, 4294901760
    %3874 = vmatpush1.msra.mxu0 %v3873
    %3875 = vmatprep.subr.mxu0 0.0
    %3876 = vmatpush1.msra.mxu0 0.0
    %3877 = vmatprep.subr.mxu0 0.0
    %3878 = vmatpush1.msra.mxu0 0.0
    %3879 = vmatprep.subr.mxu0 0.0
    %3880 = vmatpush1.msra.mxu0 0.0
    %3881 = vmatprep.subr.mxu0 0.0
    %3882 = vmatpush1.msra.mxu0 0.0
    %3883 = vmatprep.subr.mxu0 0.0
    %3884 = vmatpush1.msra.mxu0 0.0
    %3885 = vmatprep.subr.mxu0 0.0
    %3886 = vmatpush1.msra.mxu0 0.0
    %3887 = vmatprep.subr.mxu0 0.0
    %3888 = vmatpush1.msra.mxu0 0.0
    %3889 = vmatprep.subr.mxu0 0.0
    %3890 = vmatpush1.msra.mxu0 0.0
    %3891 = vmatprep.subr.mxu0 0.0
    %3892 = vmatpush1.msra.mxu0 0.0
    %3893 = vmatprep.subr.mxu0 0.0
    %3894 = vmatpush1.msra.mxu0 0.0
    %3895 = vmatprep.subr.mxu0 0.0
    %3896 = vmatpush1.msra.mxu0 0.0
    %3897 = vmatprep.subr.mxu0 0.0
    %3898 = vmatpush1.msra.mxu0 0.0
    %3899 = vmatprep.subr.mxu0 0.0
    %3900 = vmatpush1.msra.mxu0 0.0
    %3901 = vmatprep.subr.mxu0 0.0
    %3902 = vmatpush1.msra.mxu0 0.0
    %3903 = vmatprep.subr.mxu0 0.0
    %3904 = vmatpush1.msra.mxu0 0.0
    %3905 = vmatprep.subr.mxu0 0.0
    %3906 = vmatpush1.msra.mxu0 0.0
    %3907 = vmatprep.subr.mxu0 0.0
    %3908 = vmatpush1.msra.mxu0 0.0
    %3909 = vmatprep.subr.mxu0 0.0
    %3910 = vmatpush1.msra.mxu0 0.0
    %3911 = vmatprep.subr.mxu0 0.0
    %3912 = vmatpush1.msra.mxu0 0.0
    %3913 = vmatprep.subr.mxu0 0.0
    %3914 = vmatpush1.msra.mxu0 0.0
    %3915 = vmatprep.subr.mxu0 0.0
    %3916 = vmatpush1.msra.mxu0 0.0
    %3917 = vmatprep.subr.mxu0 0.0
    %3918 = vmatpush1.msra.mxu0 0.0
    %3919 = vmatprep.subr.mxu0 0.0
    %3920 = vmatpush1.msra.mxu0 0.0
    %3921 = vmatprep.subr.mxu0 0.0
    %3922 = vmatpush1.msra.mxu0 0.0
    %3923 = vmatprep.mubr.f32.mxu0 0.0
    %v3924 = vand.u32 %v3470, 4294901760
    %3925 = vmatmul.mubr.f32.gmra.mrb[0].mxu0 %v3924
    %v3926 = vpop.f32.mrb[0].mxu0
    %v3927 = vadd.f32 %v3832, %v3926
    %v3928 = vpop.f32.mrb[0].mxu0
    %3929 = vdwg.mxu0
    %3930 = vmatprep.subr.mxu0 0.0
    %v3931 = vand.u32 %v49, 4294901760
    %3932 = vmatpush1.msra.mxu0 %v3931
    %3933 = vmatprep.subr.mxu0 0.0
    %v3934 = vand.u32 %v50, 4294901760
    %3935 = vmatpush1.msra.mxu0 %v3934
    %3936 = vmatprep.subr.mxu0 0.0
    %v3937 = vand.u32 %v51, 4294901760
    %3938 = vmatpush1.msra.mxu0 %v3937
    %3939 = vmatprep.subr.mxu0 0.0
    %v3940 = vand.u32 %v52, 4294901760
    %3941 = vmatpush1.msra.mxu0 %v3940
    %3942 = vmatprep.subr.mxu0 0.0
    %v3943 = vand.u32 %v53, 4294901760
    %3944 = vmatpush1.msra.mxu0 %v3943
    %3945 = vmatprep.subr.mxu0 0.0
    %v3946 = vand.u32 %v54, 4294901760
    %3947 = vmatpush1.msra.mxu0 %v3946
    %3948 = vmatprep.subr.mxu0 0.0
    %v3949 = vand.u32 %v55, 4294901760
    %3950 = vmatpush1.msra.mxu0 %v3949
    %3951 = vmatprep.subr.mxu0 0.0
    %v3952 = vand.u32 %v56, 4294901760
    %3953 = vmatpush1.msra.mxu0 %v3952
    %3954 = vmatprep.subr.mxu0 0.0
    %3955 = vmatpush1.msra.mxu0 0.0
    %3956 = vmatprep.subr.mxu0 0.0
    %3957 = vmatpush1.msra.mxu0 0.0
    %3958 = vmatprep.subr.mxu0 0.0
    %3959 = vmatpush1.msra.mxu0 0.0
    %3960 = vmatprep.subr.mxu0 0.0
    %3961 = vmatpush1.msra.mxu0 0.0
    %3962 = vmatprep.subr.mxu0 0.0
    %3963 = vmatpush1.msra.mxu0 0.0
    %3964 = vmatprep.subr.mxu0 0.0
    %3965 = vmatpush1.msra.mxu0 0.0
    %3966 = vmatprep.subr.mxu0 0.0
    %3967 = vmatpush1.msra.mxu0 0.0
    %3968 = vmatprep.subr.mxu0 0.0
    %3969 = vmatpush1.msra.mxu0 0.0
    %3970 = vmatprep.subr.mxu0 0.0
    %3971 = vmatpush1.msra.mxu0 0.0
    %3972 = vmatprep.subr.mxu0 0.0
    %3973 = vmatpush1.msra.mxu0 0.0
    %3974 = vmatprep.subr.mxu0 0.0
    %3975 = vmatpush1.msra.mxu0 0.0
    %3976 = vmatprep.subr.mxu0 0.0
    %3977 = vmatpush1.msra.mxu0 0.0
    %3978 = vmatprep.subr.mxu0 0.0
    %3979 = vmatpush1.msra.mxu0 0.0
    %3980 = vmatprep.subr.mxu0 0.0
    %3981 = vmatpush1.msra.mxu0 0.0
    %3982 = vmatprep.subr.mxu0 0.0
    %3983 = vmatpush1.msra.mxu0 0.0
    %3984 = vmatprep.subr.mxu0 0.0
    %3985 = vmatpush1.msra.mxu0 0.0
    %3986 = vmatprep.subr.mxu0 0.0
    %3987 = vmatpush1.msra.mxu0 0.0
    %3988 = vmatprep.subr.mxu0 0.0
    %3989 = vmatpush1.msra.mxu0 0.0
    %3990 = vmatprep.subr.mxu0 0.0
    %3991 = vmatpush1.msra.mxu0 0.0
    %3992 = vmatprep.subr.mxu0 0.0
    %3993 = vmatpush1.msra.mxu0 0.0
    %3994 = vmatprep.subr.mxu0 0.0
    %3995 = vmatpush1.msra.mxu0 0.0
    %3996 = vmatprep.subr.mxu0 0.0
    %3997 = vmatpush1.msra.mxu0 0.0
    %3998 = vmatprep.subr.mxu0 0.0
    %3999 = vmatpush1.msra.mxu0 0.0
    %4000 = vmatprep.subr.mxu0 0.0
    %4001 = vmatpush1.msra.mxu0 0.0
    %4002 = vmatprep.mubr.f32.mxu0 0.0
    %v4003 = vand.u32 %v3470, 4294901760
    %4004 = vmatmul.mubr.f32.gmra.mrb[0].mxu0 %v4003
    %v4005 = vpop.f32.mrb[0].mxu0
    %v4006 = vadd.f32 %v3927, %v4005
    %v4007 = vpop.f32.mrb[0].mxu0
    %4008 = vdwg.mxu0
    %v4009 = vxor.u32 %v4006, 2147483648
    %v4010 = vmul.f32 %v4009, 1.442695
    %v4011 = vpow.pop %v4010
    %v4012 = vadd.f32 %v4011, 1.0
    %v4013 = vrcp.pop %v4012
    %v4014 = vmul.f32 1.0, %v4013
    %v4015 = vtanh.pop %v4006
    %v4016 = vmul.f32 %v4014, %v2905
    %4018 = vrot.lane.b32.xlu0 %v4015, 64
    %v4019 = vpop.permute.xlu0 %4018
    %v4021 = vmul.f32 %v4014, %v4019
    %4023 = vrot.lane.b32.xlu0 %v4021, 32
    %v4024 = vpop.permute.xlu0 %4023
    %v4026 = vadd.f32 %v4016, %v4024
    %v4027 = vtanh.pop %v4026
    %4029 = vrot.lane.b32.xlu0 %v4027, 64
    %v4030 = vpop.permute.xlu0 %4029
    %v4032 = vmul.f32 %v4014, %v4030
    %4034 = vrot.lane.b32.xlu0 %v4032, 32
    %v4035 = vpop.permute.xlu0 %4034
    %v4036 = vsel %vm85, %v4035, 0
    %4038 = vmatprep.subr.mxu0 0.0
    %v4039 = vand.u32 %v58, 4294901760
    %4040 = vmatpush1.msra.mxu0 %v4039
    %4041 = vmatprep.subr.mxu0 0.0
    %v4042 = vand.u32 %v59, 4294901760
    %4043 = vmatpush1.msra.mxu0 %v4042
    %4044 = vmatprep.subr.mxu0 0.0
    %v4045 = vand.u32 %v60, 4294901760
    %4046 = vmatpush1.msra.mxu0 %v4045
    %4047 = vmatprep.subr.mxu0 0.0
    %v4048 = vand.u32 %v61, 4294901760
    %4049 = vmatpush1.msra.mxu0 %v4048
    %4050 = vmatprep.subr.mxu0 0.0
    %4051 = vmatpush1.msra.mxu0 0.0
    %4052 = vmatprep.subr.mxu0 0.0
    %4053 = vmatpush1.msra.mxu0 0.0
    %4054 = vmatprep.subr.mxu0 0.0
    %4055 = vmatpush1.msra.mxu0 0.0
    %4056 = vmatprep.subr.mxu0 0.0
    %4057 = vmatpush1.msra.mxu0 0.0
    %4058 = vmatprep.subr.mxu0 0.0
    %4059 = vmatpush1.msra.mxu0 0.0
    %4060 = vmatprep.subr.mxu0 0.0
    %4061 = vmatpush1.msra.mxu0 0.0
    %4062 = vmatprep.subr.mxu0 0.0
    %4063 = vmatpush1.msra.mxu0 0.0
    %4064 = vmatprep.subr.mxu0 0.0
    %4065 = vmatpush1.msra.mxu0 0.0
    %4066 = vmatprep.subr.mxu0 0.0
    %4067 = vmatpush1.msra.mxu0 0.0
    %4068 = vmatprep.subr.mxu0 0.0
    %4069 = vmatpush1.msra.mxu0 0.0
    %4070 = vmatprep.subr.mxu0 0.0
    %4071 = vmatpush1.msra.mxu0 0.0
    %4072 = vmatprep.subr.mxu0 0.0
    %4073 = vmatpush1.msra.mxu0 0.0
    %4074 = vmatprep.subr.mxu0 0.0
    %4075 = vmatpush1.msra.mxu0 0.0
    %4076 = vmatprep.subr.mxu0 0.0
    %4077 = vmatpush1.msra.mxu0 0.0
    %4078 = vmatprep.subr.mxu0 0.0
    %4079 = vmatpush1.msra.mxu0 0.0
    %4080 = vmatprep.subr.mxu0 0.0
    %4081 = vmatpush1.msra.mxu0 0.0
    %4082 = vmatprep.subr.mxu0 0.0
    %4083 = vmatpush1.msra.mxu0 0.0
    %4084 = vmatprep.subr.mxu0 0.0
    %4085 = vmatpush1.msra.mxu0 0.0
    %4086 = vmatprep.subr.mxu0 0.0
    %4087 = vmatpush1.msra.mxu0 0.0
    %4088 = vmatprep.subr.mxu0 0.0
    %4089 = vmatpush1.msra.mxu0 0.0
    %4090 = vmatprep.subr.mxu0 0.0
    %4091 = vmatpush1.msra.mxu0 0.0
    %4092 = vmatprep.subr.mxu0 0.0
    %4093 = vmatpush1.msra.mxu0 0.0
    %4094 = vmatprep.subr.mxu0 0.0
    %4095 = vmatpush1.msra.mxu0 0.0
    %4096 = vmatprep.subr.mxu0 0.0
    %4097 = vmatpush1.msra.mxu0 0.0
    %4098 = vmatprep.subr.mxu0 0.0
    %4099 = vmatpush1.msra.mxu0 0.0
    %4100 = vmatprep.subr.mxu0 0.0
    %4101 = vmatpush1.msra.mxu0 0.0
    %4102 = vmatprep.subr.mxu0 0.0
    %4103 = vmatpush1.msra.mxu0 0.0
    %4104 = vmatprep.subr.mxu0 0.0
    %4105 = vmatpush1.msra.mxu0 0.0
    %4106 = vmatprep.mubr.f32.mxu0 0.0
    %v4107 = vand.u32 %v4036, 4294901760
    %v4108 = vsub.f32 %v4036, %v4107
    %v4109 = vand.u32 %v4108, 4294901760
    %v4110 = vsub.f32 %v4108, %v4109
    %v4111 = vand.u32 %v4110, 4294901760
    %4112 = vmatmul.mubr.f32.gmra.mrb[0].mxu0 %v4111
    %v4113 = vpop.f32.mrb[0].mxu0
    %v4114 = vadd.f32 %v666, %v4113
    %v4115 = vpop.f32.mrb[0].mxu0
    %4116 = vdwg.mxu0
    %4117 = vmatprep.subr.mxu0 0.0
    %v4118 = vand.u32 %v58, 4294901760
    %v4119 = vsub.f32 %v58, %v4118
    %v4120 = vand.u32 %v4119, 4294901760
    %v4121 = vsub.f32 %v4119, %v4120
    %v4122 = vand.u32 %v4121, 4294901760
    %4123 = vmatpush1.msra.mxu0 %v4122
    %4124 = vmatprep.subr.mxu0 0.0
    %v4125 = vand.u32 %v59, 4294901760
    %v4126 = vsub.f32 %v59, %v4125
    %v4127 = vand.u32 %v4126, 4294901760
    %v4128 = vsub.f32 %v4126, %v4127
    %v4129 = vand.u32 %v4128, 4294901760
    %4130 = vmatpush1.msra.mxu0 %v4129
    %4131 = vmatprep.subr.mxu0 0.0
    %v4132 = vand.u32 %v60, 4294901760
    %v4133 = vsub.f32 %v60, %v4132
    %v4134 = vand.u32 %v4133, 4294901760
    %v4135 = vsub.f32 %v4133, %v4134
    %v4136 = vand.u32 %v4135, 4294901760
    %4137 = vmatpush1.msra.mxu0 %v4136
    %4138 = vmatprep.subr.mxu0 0.0
    %v4139 = vand.u32 %v61, 4294901760
    %v4140 = vsub.f32 %v61, %v4139
    %v4141 = vand.u32 %v4140, 4294901760
    %v4142 = vsub.f32 %v4140, %v4141
    %v4143 = vand.u32 %v4142, 4294901760
    %4144 = vmatpush1.msra.mxu0 %v4143
    %4145 = vmatprep.subr.mxu0 0.0
    %4146 = vmatpush1.msra.mxu0 0.0
    %4147 = vmatprep.subr.mxu0 0.0
    %4148 = vmatpush1.msra.mxu0 0.0
    %4149 = vmatprep.subr.mxu0 0.0
    %4150 = vmatpush1.msra.mxu0 0.0
    %4151 = vmatprep.subr.mxu0 0.0
    %4152 = vmatpush1.msra.mxu0 0.0
    %4153 = vmatprep.subr.mxu0 0.0
    %4154 = vmatpush1.msra.mxu0 0.0
    %4155 = vmatprep.subr.mxu0 0.0
    %4156 = vmatpush1.msra.mxu0 0.0
    %4157 = vmatprep.subr.mxu0 0.0
    %4158 = vmatpush1.msra.mxu0 0.0
    %4159 = vmatprep.subr.mxu0 0.0
    %4160 = vmatpush1.msra.mxu0 0.0
    %4161 = vmatprep.subr.mxu0 0.0
    %4162 = vmatpush1.msra.mxu0 0.0
    %4163 = vmatprep.subr.mxu0 0.0
    %4164 = vmatpush1.msra.mxu0 0.0
    %4165 = vmatprep.subr.mxu0 0.0
    %4166 = vmatpush1.msra.mxu0 0.0
    %4167 = vmatprep.subr.mxu0 0.0
    %4168 = vmatpush1.msra.mxu0 0.0
    %4169 = vmatprep.subr.mxu0 0.0
    %4170 = vmatpush1.msra.mxu0 0.0
    %4171 = vmatprep.subr.mxu0 0.0
    %4172 = vmatpush1.msra.mxu0 0.0
    %4173 = vmatprep.subr.mxu0 0.0
    %4174 = vmatpush1.msra.mxu0 0.0
    %4175 = vmatprep.subr.mxu0 0.0
    %4176 = vmatpush1.msra.mxu0 0.0
    %4177 = vmatprep.subr.mxu0 0.0
    %4178 = vmatpush1.msra.mxu0 0.0
    %4179 = vmatprep.subr.mxu0 0.0
    %4180 = vmatpush1.msra.mxu0 0.0
    %4181 = vmatprep.subr.mxu0 0.0
    %4182 = vmatpush1.msra.mxu0 0.0
    %4183 = vmatprep.subr.mxu0 0.0
    %4184 = vmatpush1.msra.mxu0 0.0
    %4185 = vmatprep.subr.mxu0 0.0
    %4186 = vmatpush1.msra.mxu0 0.0
    %4187 = vmatprep.subr.mxu0 0.0
    %4188 = vmatpush1.msra.mxu0 0.0
    %4189 = vmatprep.subr.mxu0 0.0
    %4190 = vmatpush1.msra.mxu0 0.0
    %4191 = vmatprep.subr.mxu0 0.0
    %4192 = vmatpush1.msra.mxu0 0.0
    %4193 = vmatprep.subr.mxu0 0.0
    %4194 = vmatpush1.msra.mxu0 0.0
    %4195 = vmatprep.subr.mxu0 0.0
    %4196 = vmatpush1.msra.mxu0 0.0
    %4197 = vmatprep.subr.mxu0 0.0
    %4198 = vmatpush1.msra.mxu0 0.0
    %4199 = vmatprep.subr.mxu0 0.0
    %4200 = vmatpush1.msra.mxu0 0.0
    %4201 = vmatprep.mubr.f32.mxu0 0.0
    %v4202 = vand.u32 %v4036, 4294901760
    %4203 = vmatmul.mubr.f32.gmra.mrb[0].mxu0 %v4202
    %v4204 = vpop.f32.mrb[0].mxu0
    %v4205 = vadd.f32 %v4114, %v4204
    %v4206 = vpop.f32.mrb[0].mxu0
    %4207 = vdwg.mxu0
    %4208 = vmatprep.subr.mxu0 0.0
    %v4209 = vand.u32 %v58, 4294901760
    %v4210 = vsub.f32 %v58, %v4209
    %4211 = vmatpush1.msra.mxu0 %v4210
    %4212 = vmatprep.subr.mxu0 0.0
    %v4213 = vand.u32 %v59, 4294901760
    %v4214 = vsub.f32 %v59, %v4213
    %4215 = vmatpush1.msra.mxu0 %v4214
    %4216 = vmatprep.subr.mxu0 0.0
    %v4217 = vand.u32 %v60, 4294901760
    %v4218 = vsub.f32 %v60, %v4217
    %4219 = vmatpush1.msra.mxu0 %v4218
    %4220 = vmatprep.subr.mxu0 0.0
    %v4221 = vand.u32 %v61, 4294901760
    %v4222 = vsub.f32 %v61, %v4221
    %4223 = vmatpush1.msra.mxu0 %v4222
    %4224 = vmatprep.subr.mxu0 0.0
    %4225 = vmatpush1.msra.mxu0 0.0
    %4226 = vmatprep.subr.mxu0 0.0
    %4227 = vmatpush1.msra.mxu0 0.0
    %4228 = vmatprep.subr.mxu0 0.0
    %4229 = vmatpush1.msra.mxu0 0.0
    %4230 = vmatprep.subr.mxu0 0.0
    %4231 = vmatpush1.msra.mxu0 0.0
    %4232 = vmatprep.subr.mxu0 0.0
    %4233 = vmatpush1.msra.mxu0 0.0
    %4234 = vmatprep.subr.mxu0 0.0
    %4235 = vmatpush1.msra.mxu0 0.0
    %4236 = vmatprep.subr.mxu0 0.0
    %4237 = vmatpush1.msra.mxu0 0.0
    %4238 = vmatprep.subr.mxu0 0.0
    %4239 = vmatpush1.msra.mxu0 0.0
    %4240 = vmatprep.subr.mxu0 0.0
    %4241 = vmatpush1.msra.mxu0 0.0
    %4242 = vmatprep.subr.mxu0 0.0
    %4243 = vmatpush1.msra.mxu0 0.0
    %4244 = vmatprep.subr.mxu0 0.0
    %4245 = vmatpush1.msra.mxu0 0.0
    %4246 = vmatprep.subr.mxu0 0.0
    %4247 = vmatpush1.msra.mxu0 0.0
    %4248 = vmatprep.subr.mxu0 0.0
    %4249 = vmatpush1.msra.mxu0 0.0
    %4250 = vmatprep.subr.mxu0 0.0
    %4251 = vmatpush1.msra.mxu0 0.0
    %4252 = vmatprep.subr.mxu0 0.0
    %4253 = vmatpush1.msra.mxu0 0.0
    %4254 = vmatprep.subr.mxu0 0.0
    %4255 = vmatpush1.msra.mxu0 0.0
    %4256 = vmatprep.subr.mxu0 0.0
    %4257 = vmatpush1.msra.mxu0 0.0
    %4258 = vmatprep.subr.mxu0 0.0
    %4259 = vmatpush1.msra.mxu0 0.0
    %4260 = vmatprep.subr.mxu0 0.0
    %4261 = vmatpush1.msra.mxu0 0.0
    %4262 = vmatprep.subr.mxu0 0.0
    %4263 = vmatpush1.msra.mxu0 0.0
    %4264 = vmatprep.subr.mxu0 0.0
    %4265 = vmatpush1.msra.mxu0 0.0
    %4266 = vmatprep.subr.mxu0 0.0
    %4267 = vmatpush1.msra.mxu0 0.0
    %4268 = vmatprep.subr.mxu0 0.0
    %4269 = vmatpush1.msra.mxu0 0.0
    %4270 = vmatprep.subr.mxu0 0.0
    %4271 = vmatpush1.msra.mxu0 0.0
    %4272 = vmatprep.subr.mxu0 0.0
    %4273 = vmatpush1.msra.mxu0 0.0
    %4274 = vmatprep.subr.mxu0 0.0
    %4275 = vmatpush1.msra.mxu0 0.0
    %4276 = vmatprep.subr.mxu0 0.0
    %4277 = vmatpush1.msra.mxu0 0.0
    %4278 = vmatprep.subr.mxu0 0.0
    %4279 = vmatpush1.msra.mxu0 0.0
    %4280 = vmatprep.mubr.f32.mxu0 0.0
    %v4281 = vand.u32 %v4036, 4294901760
    %v4282 = vsub.f32 %v4036, %v4281
    %4283 = vmatmul.mubr.f32.gmra.mrb[0].mxu0 %v4282
    %v4284 = vpop.f32.mrb[0].mxu0
    %v4285 = vadd.f32 %v4205, %v4284
    %v4286 = vpop.f32.mrb[0].mxu0
    %4287 = vdwg.mxu0
    %4288 = vmatprep.subr.mxu0 0.0
    %v4289 = vand.u32 %v58, 4294901760
    %4290 = vmatpush1.msra.mxu0 %v4289
    %4291 = vmatprep.subr.mxu0 0.0
    %v4292 = vand.u32 %v59, 4294901760
    %4293 = vmatpush1.msra.mxu0 %v4292
    %4294 = vmatprep.subr.mxu0 0.0
    %v4295 = vand.u32 %v60, 4294901760
    %4296 = vmatpush1.msra.mxu0 %v4295
    %4297 = vmatprep.subr.mxu0 0.0
    %v4298 = vand.u32 %v61, 4294901760
    %4299 = vmatpush1.msra.mxu0 %v4298
    %4300 = vmatprep.subr.mxu0 0.0
    %4301 = vmatpush1.msra.mxu0 0.0
    %4302 = vmatprep.subr.mxu0 0.0
    %4303 = vmatpush1.msra.mxu0 0.0
    %4304 = vmatprep.subr.mxu0 0.0
    %4305 = vmatpush1.msra.mxu0 0.0
    %4306 = vmatprep.subr.mxu0 0.0
    %4307 = vmatpush1.msra.mxu0 0.0
    %4308 = vmatprep.subr.mxu0 0.0
    %4309 = vmatpush1.msra.mxu0 0.0
    %4310 = vmatprep.subr.mxu0 0.0
    %4311 = vmatpush1.msra.mxu0 0.0
    %4312 = vmatprep.subr.mxu0 0.0
    %4313 = vmatpush1.msra.mxu0 0.0
    %4314 = vmatprep.subr.mxu0 0.0
    %4315 = vmatpush1.msra.mxu0 0.0
    %4316 = vmatprep.subr.mxu0 0.0
    %4317 = vmatpush1.msra.mxu0 0.0
    %4318 = vmatprep.subr.mxu0 0.0
    %4319 = vmatpush1.msra.mxu0 0.0
    %4320 = vmatprep.subr.mxu0 0.0
    %4321 = vmatpush1.msra.mxu0 0.0
    %4322 = vmatprep.subr.mxu0 0.0
    %4323 = vmatpush1.msra.mxu0 0.0
    %4324 = vmatprep.subr.mxu0 0.0
    %4325 = vmatpush1.msra.mxu0 0.0
    %4326 = vmatprep.subr.mxu0 0.0
    %4327 = vmatpush1.msra.mxu0 0.0
    %4328 = vmatprep.subr.mxu0 0.0
    %4329 = vmatpush1.msra.mxu0 0.0
    %4330 = vmatprep.subr.mxu0 0.0
    %4331 = vmatpush1.msra.mxu0 0.0
    %4332 = vmatprep.subr.mxu0 0.0
    %4333 = vmatpush1.msra.mxu0 0.0
    %4334 = vmatprep.subr.mxu0 0.0
    %4335 = vmatpush1.msra.mxu0 0.0
    %4336 = vmatprep.subr.mxu0 0.0
    %4337 = vmatpush1.msra.mxu0 0.0
    %4338 = vmatprep.subr.mxu0 0.0
    %4339 = vmatpush1.msra.mxu0 0.0
    %4340 = vmatprep.subr.mxu0 0.0
    %4341 = vmatpush1.msra.mxu0 0.0
    %4342 = vmatprep.subr.mxu0 0.0
    %4343 = vmatpush1.msra.mxu0 0.0
    %4344 = vmatprep.subr.mxu0 0.0
    %4345 = vmatpush1.msra.mxu0 0.0
    %4346 = vmatprep.subr.mxu0 0.0
    %4347 = vmatpush1.msra.mxu0 0.0
    %4348 = vmatprep.subr.mxu0 0.0
    %4349 = vmatpush1.msra.mxu0 0.0
    %4350 = vmatprep.subr.mxu0 0.0
    %4351 = vmatpush1.msra.mxu0 0.0
    %4352 = vmatprep.subr.mxu0 0.0
    %4353 = vmatpush1.msra.mxu0 0.0
    %4354 = vmatprep.subr.mxu0 0.0
    %4355 = vmatpush1.msra.mxu0 0.0
    %4356 = vmatprep.mubr.f32.mxu0 0.0
    %v4357 = vand.u32 %v4036, 4294901760
    %v4358 = vsub.f32 %v4036, %v4357
    %v4359 = vand.u32 %v4358, 4294901760
    %4360 = vmatmul.mubr.f32.gmra.mrb[0].mxu0 %v4359
    %v4361 = vpop.f32.mrb[0].mxu0
    %v4362 = vadd.f32 %v4285, %v4361
    %v4363 = vpop.f32.mrb[0].mxu0
    %4364 = vdwg.mxu0
    %4365 = vmatprep.subr.mxu0 0.0
    %v4366 = vand.u32 %v58, 4294901760
    %v4367 = vsub.f32 %v58, %v4366
    %v4368 = vand.u32 %v4367, 4294901760
    %4369 = vmatpush1.msra.mxu0 %v4368
    %4370 = vmatprep.subr.mxu0 0.0
    %v4371 = vand.u32 %v59, 4294901760
    %v4372 = vsub.f32 %v59, %v4371
    %v4373 = vand.u32 %v4372, 4294901760
    %4374 = vmatpush1.msra.mxu0 %v4373
    %4375 = vmatprep.subr.mxu0 0.0
    %v4376 = vand.u32 %v60, 4294901760
    %v4377 = vsub.f32 %v60, %v4376
    %v4378 = vand.u32 %v4377, 4294901760
    %4379 = vmatpush1.msra.mxu0 %v4378
    %4380 = vmatprep.subr.mxu0 0.0
    %v4381 = vand.u32 %v61, 4294901760
    %v4382 = vsub.f32 %v61, %v4381
    %v4383 = vand.u32 %v4382, 4294901760
    %4384 = vmatpush1.msra.mxu0 %v4383
    %4385 = vmatprep.subr.mxu0 0.0
    %4386 = vmatpush1.msra.mxu0 0.0
    %4387 = vmatprep.subr.mxu0 0.0
    %4388 = vmatpush1.msra.mxu0 0.0
    %4389 = vmatprep.subr.mxu0 0.0
    %4390 = vmatpush1.msra.mxu0 0.0
    %4391 = vmatprep.subr.mxu0 0.0
    %4392 = vmatpush1.msra.mxu0 0.0
    %4393 = vmatprep.subr.mxu0 0.0
    %4394 = vmatpush1.msra.mxu0 0.0
    %4395 = vmatprep.subr.mxu0 0.0
    %4396 = vmatpush1.msra.mxu0 0.0
    %4397 = vmatprep.subr.mxu0 0.0
    %4398 = vmatpush1.msra.mxu0 0.0
    %4399 = vmatprep.subr.mxu0 0.0
    %4400 = vmatpush1.msra.mxu0 0.0
    %4401 = vmatprep.subr.mxu0 0.0
    %4402 = vmatpush1.msra.mxu0 0.0
    %4403 = vmatprep.subr.mxu0 0.0
    %4404 = vmatpush1.msra.mxu0 0.0
    %4405 = vmatprep.subr.mxu0 0.0
    %4406 = vmatpush1.msra.mxu0 0.0
    %4407 = vmatprep.subr.mxu0 0.0
    %4408 = vmatpush1.msra.mxu0 0.0
    %4409 = vmatprep.subr.mxu0 0.0
    %4410 = vmatpush1.msra.mxu0 0.0
    %4411 = vmatprep.subr.mxu0 0.0
    %4412 = vmatpush1.msra.mxu0 0.0
    %4413 = vmatprep.subr.mxu0 0.0
    %4414 = vmatpush1.msra.mxu0 0.0
    %4415 = vmatprep.subr.mxu0 0.0
    %4416 = vmatpush1.msra.mxu0 0.0
    %4417 = vmatprep.subr.mxu0 0.0
    %4418 = vmatpush1.msra.mxu0 0.0
    %4419 = vmatprep.subr.mxu0 0.0
    %4420 = vmatpush1.msra.mxu0 0.0
    %4421 = vmatprep.subr.mxu0 0.0
    %4422 = vmatpush1.msra.mxu0 0.0
    %4423 = vmatprep.subr.mxu0 0.0
    %4424 = vmatpush1.msra.mxu0 0.0
    %4425 = vmatprep.subr.mxu0 0.0
    %4426 = vmatpush1.msra.mxu0 0.0
    %4427 = vmatprep.subr.mxu0 0.0
    %4428 = vmatpush1.msra.mxu0 0.0
    %4429 = vmatprep.subr.mxu0 0.0
    %4430 = vmatpush1.msra.mxu0 0.0
    %4431 = vmatprep.subr.mxu0 0.0
    %4432 = vmatpush1.msra.mxu0 0.0
    %4433 = vmatprep.subr.mxu0 0.0
    %4434 = vmatpush1.msra.mxu0 0.0
    %4435 = vmatprep.subr.mxu0 0.0
    %4436 = vmatpush1.msra.mxu0 0.0
    %4437 = vmatprep.subr.mxu0 0.0
    %4438 = vmatpush1.msra.mxu0 0.0
    %4439 = vmatprep.subr.mxu0 0.0
    %4440 = vmatpush1.msra.mxu0 0.0
    %4441 = vmatprep.mubr.f32.mxu0 0.0
    %v4442 = vand.u32 %v4036, 4294901760
    %4443 = vmatmul.mubr.f32.gmra.mrb[0].mxu0 %v4442
    %v4444 = vpop.f32.mrb[0].mxu0
    %v4445 = vadd.f32 %v4362, %v4444
    %v4446 = vpop.f32.mrb[0].mxu0
    %4447 = vdwg.mxu0
    %4448 = vmatprep.subr.mxu0 0.0
    %v4449 = vand.u32 %v58, 4294901760
    %4450 = vmatpush1.msra.mxu0 %v4449
    %4451 = vmatprep.subr.mxu0 0.0
    %v4452 = vand.u32 %v59, 4294901760
    %4453 = vmatpush1.msra.mxu0 %v4452
    %4454 = vmatprep.subr.mxu0 0.0
    %v4455 = vand.u32 %v60, 4294901760
    %4456 = vmatpush1.msra.mxu0 %v4455
    %4457 = vmatprep.subr.mxu0 0.0
    %v4458 = vand.u32 %v61, 4294901760
    %4459 = vmatpush1.msra.mxu0 %v4458
    %4460 = vmatprep.subr.mxu0 0.0
    %4461 = vmatpush1.msra.mxu0 0.0
    %4462 = vmatprep.subr.mxu0 0.0
    %4463 = vmatpush1.msra.mxu0 0.0
    %4464 = vmatprep.subr.mxu0 0.0
    %4465 = vmatpush1.msra.mxu0 0.0
    %4466 = vmatprep.subr.mxu0 0.0
    %4467 = vmatpush1.msra.mxu0 0.0
    %4468 = vmatprep.subr.mxu0 0.0
    %4469 = vmatpush1.msra.mxu0 0.0
    %4470 = vmatprep.subr.mxu0 0.0
    %4471 = vmatpush1.msra.mxu0 0.0
    %4472 = vmatprep.subr.mxu0 0.0
    %4473 = vmatpush1.msra.mxu0 0.0
    %4474 = vmatprep.subr.mxu0 0.0
    %4475 = vmatpush1.msra.mxu0 0.0
    %4476 = vmatprep.subr.mxu0 0.0
    %4477 = vmatpush1.msra.mxu0 0.0
    %4478 = vmatprep.subr.mxu0 0.0
    %4479 = vmatpush1.msra.mxu0 0.0
    %4480 = vmatprep.subr.mxu0 0.0
    %4481 = vmatpush1.msra.mxu0 0.0
    %4482 = vmatprep.subr.mxu0 0.0
    %4483 = vmatpush1.msra.mxu0 0.0
    %4484 = vmatprep.subr.mxu0 0.0
    %4485 = vmatpush1.msra.mxu0 0.0
    %4486 = vmatprep.subr.mxu0 0.0
    %4487 = vmatpush1.msra.mxu0 0.0
    %4488 = vmatprep.subr.mxu0 0.0
    %4489 = vmatpush1.msra.mxu0 0.0
    %4490 = vmatprep.subr.mxu0 0.0
    %4491 = vmatpush1.msra.mxu0 0.0
    %4492 = vmatprep.subr.mxu0 0.0
    %4493 = vmatpush1.msra.mxu0 0.0
    %4494 = vmatprep.subr.mxu0 0.0
    %4495 = vmatpush1.msra.mxu0 0.0
    %4496 = vmatprep.subr.mxu0 0.0
    %4497 = vmatpush1.msra.mxu0 0.0
    %4498 = vmatprep.subr.mxu0 0.0
    %4499 = vmatpush1.msra.mxu0 0.0
    %4500 = vmatprep.subr.mxu0 0.0
    %4501 = vmatpush1.msra.mxu0 0.0
    %4502 = vmatprep.subr.mxu0 0.0
    %4503 = vmatpush1.msra.mxu0 0.0
    %4504 = vmatprep.subr.mxu0 0.0
    %4505 = vmatpush1.msra.mxu0 0.0
    %4506 = vmatprep.subr.mxu0 0.0
    %4507 = vmatpush1.msra.mxu0 0.0
    %4508 = vmatprep.subr.mxu0 0.0
    %4509 = vmatpush1.msra.mxu0 0.0
    %4510 = vmatprep.subr.mxu0 0.0
    %4511 = vmatpush1.msra.mxu0 0.0
    %4512 = vmatprep.subr.mxu0 0.0
    %4513 = vmatpush1.msra.mxu0 0.0
    %4514 = vmatprep.subr.mxu0 0.0
    %4515 = vmatpush1.msra.mxu0 0.0
    %4516 = vmatprep.mubr.f32.mxu0 0.0
    %v4517 = vand.u32 %v4036, 4294901760
    %4518 = vmatmul.mubr.f32.gmra.mrb[0].mxu0 %v4517
    %v4519 = vpop.f32.mrb[0].mxu0
    %v4520 = vadd.f32 %v4445, %v4519
    %v4521 = vpop.f32.mrb[0].mxu0
    %4522 = vdwg.mxu0
    %v4523 = vsel %vm1158, %v4520, -inf
    %4524 = vmax.xlane.f32.xlu0 %v4523
    %v4525 = vpop.xlane.xlu0 %4524
    %vm4526 = vcmp.eq.f32.partialorder %v4520, %v4525
    %v4527 = vsel %vm4526, %v64, 8
    %v4528 = vsel %vm1158, %v4527, 2147483647
    %v4529 = vand.u32 %v4528, 65535
    %v4530 = vshra.s32 %v4528, 16
    %v4531 = vcvt.s32.f32 %v4529
    %v4532 = vcvt.s32.f32 %v4530
    %4533 = vmin.xlane.f32.xlu0 %v4532
    %v4534 = vpop.xlane.xlu0 %4533
    %vm4535 = vcmp.eq.f32.partialorder %v4532, %v4534
    %v4536 = vsel %vm4535, %v4531, inf
    %4537 = vmin.xlane.f32.xlu0 %v4536
    %v4538 = vpop.xlane.xlu0 %4537
    %v4539 = vcvt.f32.s32 %v4538
    %v4540 = vcvt.f32.s32 %v4534
    %v4541 = vshll.u32 %v4540, 16
    %v4542 = vadd.s32 %v4541, %v4539
    %v4543 = vcvt.s32.f32 %v4542
    %vm4544 = vcmp.gt.f32.partialorder %v3461, 0.5
    %v4545 = vsel %vm4544, -1e+30, %v4520
    %v4546 = vsel %vm1158, %v4545, -inf
    %4547 = vmax.xlane.f32.xlu0 %v4546
    %v4548 = vpop.xlane.xlu0 %4547
    %vm4549 = vcmp.eq.f32.partialorder %v4545, %v4548
    %v4550 = vsel %vm4549, %v64, 8
    %v4551 = vsel %vm1158, %v4550, 2147483647
    %v4552 = vand.u32 %v4551, 65535
    %v4553 = vshra.s32 %v4551, 16
    %v4554 = vcvt.s32.f32 %v4552
    %v4555 = vcvt.s32.f32 %v4553
    %4556 = vmin.xlane.f32.xlu0 %v4555
    %v4557 = vpop.xlane.xlu0 %4556
    %vm4558 = vcmp.eq.f32.partialorder %v4555, %v4557
    %v4559 = vsel %vm4558, %v4554, inf
    %4560 = vmin.xlane.f32.xlu0 %v4559
    %v4561 = vpop.xlane.xlu0 %4560
    %v4562 = vcvt.f32.s32 %v4561
    %v4563 = vcvt.f32.s32 %v4557
    %v4564 = vshll.u32 %v4563, 16
    %v4565 = vadd.s32 %v4564, %v4562
    %v4566 = vsub.f32 %v4545, %v4548
    %v4567 = vmul.f32 %v4566, 1.442695
    %v4568 = vpow.pop %v4567
    %v4569 = vsel %vm1158, %v4568, 0.0
    %4570 = vadd.xlane.f32.xlu0 %v4569
    %v4571 = vpop.xlane.xlu0 %4570
    %v4572 = vlog2.pop %v4571
    %v4573 = vmul.f32 %v4572, 0.6931472
    %v4574 = vsub.f32 0.0, %v4573
    %v4575 = vcvt.s32.f32 %v4565
    %vm4576 = vcmask 25624
    %4577 = vst.msk [vmem:[#allocation5] sm:$0x3] %vm4576, %v4575
    %4578 = vst.msk [vmem:[#allocation6] sm:$0x3] %vm4576, %v4574
    %vm4579 = vcmp.eq.s32.totalorder %v64, %v4565
    %v4580 = vsel %vm4579, 1, 0
    %v4581 = vcvt.s32.f32 %v4580
    %v4582 = vmax.f32 %v3461, %v4581
    %v4583 = vmul.f32 %v4543, %v71
    %v4584 = vadd.f32 %v4583, %v77
    %v4585 = vmax.f32 %v4584, 0.0
    %4586 = vrot.lane.b32.xlu0 %v4032, 64
    %v4587 = vpop.permute.xlu0 %4586
    %v4589 = vsel %vm85, %v4585, %v4587
    %v4591 = vsel %vm93, %v4589, 0
    %4593 = vmatprep.subr.mxu0 0.0
    %v4594 = vand.u32 %v49, 4294901760
    %4595 = vmatpush1.msra.mxu0 %v4594
    %4596 = vmatprep.subr.mxu0 0.0
    %v4597 = vand.u32 %v50, 4294901760
    %4598 = vmatpush1.msra.mxu0 %v4597
    %4599 = vmatprep.subr.mxu0 0.0
    %v4600 = vand.u32 %v51, 4294901760
    %4601 = vmatpush1.msra.mxu0 %v4600
    %4602 = vmatprep.subr.mxu0 0.0
    %v4603 = vand.u32 %v52, 4294901760
    %4604 = vmatpush1.msra.mxu0 %v4603
    %4605 = vmatprep.subr.mxu0 0.0
    %v4606 = vand.u32 %v53, 4294901760
    %4607 = vmatpush1.msra.mxu0 %v4606
    %4608 = vmatprep.subr.mxu0 0.0
    %v4609 = vand.u32 %v54, 4294901760
    %4610 = vmatpush1.msra.mxu0 %v4609
    %4611 = vmatprep.subr.mxu0 0.0
    %v4612 = vand.u32 %v55, 4294901760
    %4613 = vmatpush1.msra.mxu0 %v4612
    %4614 = vmatprep.subr.mxu0 0.0
    %v4615 = vand.u32 %v56, 4294901760
    %4616 = vmatpush1.msra.mxu0 %v4615
    %4617 = vmatprep.subr.mxu0 0.0
    %4618 = vmatpush1.msra.mxu0 0.0
    %4619 = vmatprep.subr.mxu0 0.0
    %4620 = vmatpush1.msra.mxu0 0.0
    %4621 = vmatprep.subr.mxu0 0.0
    %4622 = vmatpush1.msra.mxu0 0.0
    %4623 = vmatprep.subr.mxu0 0.0
    %4624 = vmatpush1.msra.mxu0 0.0
    %4625 = vmatprep.subr.mxu0 0.0
    %4626 = vmatpush1.msra.mxu0 0.0
    %4627 = vmatprep.subr.mxu0 0.0
    %4628 = vmatpush1.msra.mxu0 0.0
    %4629 = vmatprep.subr.mxu0 0.0
    %4630 = vmatpush1.msra.mxu0 0.0
    %4631 = vmatprep.subr.mxu0 0.0
    %4632 = vmatpush1.msra.mxu0 0.0
    %4633 = vmatprep.subr.mxu0 0.0
    %4634 = vmatpush1.msra.mxu0 0.0
    %4635 = vmatprep.subr.mxu0 0.0
    %4636 = vmatpush1.msra.mxu0 0.0
    %4637 = vmatprep.subr.mxu0 0.0
    %4638 = vmatpush1.msra.mxu0 0.0
    %4639 = vmatprep.subr.mxu0 0.0
    %4640 = vmatpush1.msra.mxu0 0.0
    %4641 = vmatprep.subr.mxu0 0.0
    %4642 = vmatpush1.msra.mxu0 0.0
    %4643 = vmatprep.subr.mxu0 0.0
    %4644 = vmatpush1.msra.mxu0 0.0
    %4645 = vmatprep.subr.mxu0 0.0
    %4646 = vmatpush1.msra.mxu0 0.0
    %4647 = vmatprep.subr.mxu0 0.0
    %4648 = vmatpush1.msra.mxu0 0.0
    %4649 = vmatprep.subr.mxu0 0.0
    %4650 = vmatpush1.msra.mxu0 0.0
    %4651 = vmatprep.subr.mxu0 0.0
    %4652 = vmatpush1.msra.mxu0 0.0
    %4653 = vmatprep.subr.mxu0 0.0
    %4654 = vmatpush1.msra.mxu0 0.0
    %4655 = vmatprep.subr.mxu0 0.0
    %4656 = vmatpush1.msra.mxu0 0.0
    %4657 = vmatprep.subr.mxu0 0.0
    %4658 = vmatpush1.msra.mxu0 0.0
    %4659 = vmatprep.subr.mxu0 0.0
    %4660 = vmatpush1.msra.mxu0 0.0
    %4661 = vmatprep.subr.mxu0 0.0
    %4662 = vmatpush1.msra.mxu0 0.0
    %4663 = vmatprep.subr.mxu0 0.0
    %4664 = vmatpush1.msra.mxu0 0.0
    %4665 = vmatprep.mubr.f32.mxu0 0.0
    %v4666 = vand.u32 %v4591, 4294901760
    %v4667 = vsub.f32 %v4591, %v4666
    %v4668 = vand.u32 %v4667, 4294901760
    %v4669 = vsub.f32 %v4667, %v4668
    %v4670 = vand.u32 %v4669, 4294901760
    %4671 = vmatmul.mubr.f32.gmra.mrb[0].mxu0 %v4670
    %v4672 = vpop.f32.mrb[0].mxu0
    %v4673 = vadd.f32 %v91, %v4672
    %v4674 = vpop.f32.mrb[0].mxu0
    %4675 = vdwg.mxu0
    %4676 = vmatprep.subr.mxu0 0.0
    %v4677 = vand.u32 %v49, 4294901760
    %v4678 = vsub.f32 %v49, %v4677
    %v4679 = vand.u32 %v4678, 4294901760
    %v4680 = vsub.f32 %v4678, %v4679
    %v4681 = vand.u32 %v4680, 4294901760
    %4682 = vmatpush1.msra.mxu0 %v4681
    %4683 = vmatprep.subr.mxu0 0.0
    %v4684 = vand.u32 %v50, 4294901760
    %v4685 = vsub.f32 %v50, %v4684
    %v4686 = vand.u32 %v4685, 4294901760
    %v4687 = vsub.f32 %v4685, %v4686
    %v4688 = vand.u32 %v4687, 4294901760
    %4689 = vmatpush1.msra.mxu0 %v4688
    %4690 = vmatprep.subr.mxu0 0.0
    %v4691 = vand.u32 %v51, 4294901760
    %v4692 = vsub.f32 %v51, %v4691
    %v4693 = vand.u32 %v4692, 4294901760
    %v4694 = vsub.f32 %v4692, %v4693
    %v4695 = vand.u32 %v4694, 4294901760
    %4696 = vmatpush1.msra.mxu0 %v4695
    %4697 = vmatprep.subr.mxu0 0.0
    %v4698 = vand.u32 %v52, 4294901760
    %v4699 = vsub.f32 %v52, %v4698
    %v4700 = vand.u32 %v4699, 4294901760
    %v4701 = vsub.f32 %v4699, %v4700
    %v4702 = vand.u32 %v4701, 4294901760
    %4703 = vmatpush1.msra.mxu0 %v4702
    %4704 = vmatprep.subr.mxu0 0.0
    %v4705 = vand.u32 %v53, 4294901760
    %v4706 = vsub.f32 %v53, %v4705
    %v4707 = vand.u32 %v4706, 4294901760
    %v4708 = vsub.f32 %v4706, %v4707
    %v4709 = vand.u32 %v4708, 4294901760
    %4710 = vmatpush1.msra.mxu0 %v4709
    %4711 = vmatprep.subr.mxu0 0.0
    %v4712 = vand.u32 %v54, 4294901760
    %v4713 = vsub.f32 %v54, %v4712
    %v4714 = vand.u32 %v4713, 4294901760
    %v4715 = vsub.f32 %v4713, %v4714
    %v4716 = vand.u32 %v4715, 4294901760
    %4717 = vmatpush1.msra.mxu0 %v4716
    %4718 = vmatprep.subr.mxu0 0.0
    %v4719 = vand.u32 %v55, 4294901760
    %v4720 = vsub.f32 %v55, %v4719
    %v4721 = vand.u32 %v4720, 4294901760
    %v4722 = vsub.f32 %v4720, %v4721
    %v4723 = vand.u32 %v4722, 4294901760
    %4724 = vmatpush1.msra.mxu0 %v4723
    %4725 = vmatprep.subr.mxu0 0.0
    %v4726 = vand.u32 %v56, 4294901760
    %v4727 = vsub.f32 %v56, %v4726
    %v4728 = vand.u32 %v4727, 4294901760
    %v4729 = vsub.f32 %v4727, %v4728
    %v4730 = vand.u32 %v4729, 4294901760
    %4731 = vmatpush1.msra.mxu0 %v4730
    %4732 = vmatprep.subr.mxu0 0.0
    %4733 = vmatpush1.msra.mxu0 0.0
    %4734 = vmatprep.subr.mxu0 0.0
    %4735 = vmatpush1.msra.mxu0 0.0
    %4736 = vmatprep.subr.mxu0 0.0
    %4737 = vmatpush1.msra.mxu0 0.0
    %4738 = vmatprep.subr.mxu0 0.0
    %4739 = vmatpush1.msra.mxu0 0.0
    %4740 = vmatprep.subr.mxu0 0.0
    %4741 = vmatpush1.msra.mxu0 0.0
    %4742 = vmatprep.subr.mxu0 0.0
    %4743 = vmatpush1.msra.mxu0 0.0
    %4744 = vmatprep.subr.mxu0 0.0
    %4745 = vmatpush1.msra.mxu0 0.0
    %4746 = vmatprep.subr.mxu0 0.0
    %4747 = vmatpush1.msra.mxu0 0.0
    %4748 = vmatprep.subr.mxu0 0.0
    %4749 = vmatpush1.msra.mxu0 0.0
    %4750 = vmatprep.subr.mxu0 0.0
    %4751 = vmatpush1.msra.mxu0 0.0
    %4752 = vmatprep.subr.mxu0 0.0
    %4753 = vmatpush1.msra.mxu0 0.0
    %4754 = vmatprep.subr.mxu0 0.0
    %4755 = vmatpush1.msra.mxu0 0.0
    %4756 = vmatprep.subr.mxu0 0.0
    %4757 = vmatpush1.msra.mxu0 0.0
    %4758 = vmatprep.subr.mxu0 0.0
    %4759 = vmatpush1.msra.mxu0 0.0
    %4760 = vmatprep.subr.mxu0 0.0
    %4761 = vmatpush1.msra.mxu0 0.0
    %4762 = vmatprep.subr.mxu0 0.0
    %4763 = vmatpush1.msra.mxu0 0.0
    %4764 = vmatprep.subr.mxu0 0.0
    %4765 = vmatpush1.msra.mxu0 0.0
    %4766 = vmatprep.subr.mxu0 0.0
    %4767 = vmatpush1.msra.mxu0 0.0
    %4768 = vmatprep.subr.mxu0 0.0
    %4769 = vmatpush1.msra.mxu0 0.0
    %4770 = vmatprep.subr.mxu0 0.0
    %4771 = vmatpush1.msra.mxu0 0.0
    %4772 = vmatprep.subr.mxu0 0.0
    %4773 = vmatpush1.msra.mxu0 0.0
    %4774 = vmatprep.subr.mxu0 0.0
    %4775 = vmatpush1.msra.mxu0 0.0
    %4776 = vmatprep.subr.mxu0 0.0
    %4777 = vmatpush1.msra.mxu0 0.0
    %4778 = vmatprep.subr.mxu0 0.0
    %4779 = vmatpush1.msra.mxu0 0.0
    %4780 = vmatprep.mubr.f32.mxu0 0.0
    %v4781 = vand.u32 %v4591, 4294901760
    %4782 = vmatmul.mubr.f32.gmra.mrb[0].mxu0 %v4781
    %v4783 = vpop.f32.mrb[0].mxu0
    %v4784 = vadd.f32 %v4673, %v4783
    %v4785 = vpop.f32.mrb[0].mxu0
    %4786 = vdwg.mxu0
    %4787 = vmatprep.subr.mxu0 0.0
    %v4788 = vand.u32 %v49, 4294901760
    %v4789 = vsub.f32 %v49, %v4788
    %4790 = vmatpush1.msra.mxu0 %v4789
    %4791 = vmatprep.subr.mxu0 0.0
    %v4792 = vand.u32 %v50, 4294901760
    %v4793 = vsub.f32 %v50, %v4792
    %4794 = vmatpush1.msra.mxu0 %v4793
    %4795 = vmatprep.subr.mxu0 0.0
    %v4796 = vand.u32 %v51, 4294901760
    %v4797 = vsub.f32 %v51, %v4796
    %4798 = vmatpush1.msra.mxu0 %v4797
    %4799 = vmatprep.subr.mxu0 0.0
    %v4800 = vand.u32 %v52, 4294901760
    %v4801 = vsub.f32 %v52, %v4800
    %4802 = vmatpush1.msra.mxu0 %v4801
    %4803 = vmatprep.subr.mxu0 0.0
    %v4804 = vand.u32 %v53, 4294901760
    %v4805 = vsub.f32 %v53, %v4804
    %4806 = vmatpush1.msra.mxu0 %v4805
    %4807 = vmatprep.subr.mxu0 0.0
    %v4808 = vand.u32 %v54, 4294901760
    %v4809 = vsub.f32 %v54, %v4808
    %4810 = vmatpush1.msra.mxu0 %v4809
    %4811 = vmatprep.subr.mxu0 0.0
    %v4812 = vand.u32 %v55, 4294901760
    %v4813 = vsub.f32 %v55, %v4812
    %4814 = vmatpush1.msra.mxu0 %v4813
    %4815 = vmatprep.subr.mxu0 0.0
    %v4816 = vand.u32 %v56, 4294901760
    %v4817 = vsub.f32 %v56, %v4816
    %4818 = vmatpush1.msra.mxu0 %v4817
    %4819 = vmatprep.subr.mxu0 0.0
    %4820 = vmatpush1.msra.mxu0 0.0
    %4821 = vmatprep.subr.mxu0 0.0
    %4822 = vmatpush1.msra.mxu0 0.0
    %4823 = vmatprep.subr.mxu0 0.0
    %4824 = vmatpush1.msra.mxu0 0.0
    %4825 = vmatprep.subr.mxu0 0.0
    %4826 = vmatpush1.msra.mxu0 0.0
    %4827 = vmatprep.subr.mxu0 0.0
    %4828 = vmatpush1.msra.mxu0 0.0
    %4829 = vmatprep.subr.mxu0 0.0
    %4830 = vmatpush1.msra.mxu0 0.0
    %4831 = vmatprep.subr.mxu0 0.0
    %4832 = vmatpush1.msra.mxu0 0.0
    %4833 = vmatprep.subr.mxu0 0.0
    %4834 = vmatpush1.msra.mxu0 0.0
    %4835 = vmatprep.subr.mxu0 0.0
    %4836 = vmatpush1.msra.mxu0 0.0
    %4837 = vmatprep.subr.mxu0 0.0
    %4838 = vmatpush1.msra.mxu0 0.0
    %4839 = vmatprep.subr.mxu0 0.0
    %4840 = vmatpush1.msra.mxu0 0.0
    %4841 = vmatprep.subr.mxu0 0.0
    %4842 = vmatpush1.msra.mxu0 0.0
    %4843 = vmatprep.subr.mxu0 0.0
    %4844 = vmatpush1.msra.mxu0 0.0
    %4845 = vmatprep.subr.mxu0 0.0
    %4846 = vmatpush1.msra.mxu0 0.0
    %4847 = vmatprep.subr.mxu0 0.0
    %4848 = vmatpush1.msra.mxu0 0.0
    %4849 = vmatprep.subr.mxu0 0.0
    %4850 = vmatpush1.msra.mxu0 0.0
    %4851 = vmatprep.subr.mxu0 0.0
    %4852 = vmatpush1.msra.mxu0 0.0
    %4853 = vmatprep.subr.mxu0 0.0
    %4854 = vmatpush1.msra.mxu0 0.0
    %4855 = vmatprep.subr.mxu0 0.0
    %4856 = vmatpush1.msra.mxu0 0.0
    %4857 = vmatprep.subr.mxu0 0.0
    %4858 = vmatpush1.msra.mxu0 0.0
    %4859 = vmatprep.subr.mxu0 0.0
    %4860 = vmatpush1.msra.mxu0 0.0
    %4861 = vmatprep.subr.mxu0 0.0
    %4862 = vmatpush1.msra.mxu0 0.0
    %4863 = vmatprep.subr.mxu0 0.0
    %4864 = vmatpush1.msra.mxu0 0.0
    %4865 = vmatprep.subr.mxu0 0.0
    %4866 = vmatpush1.msra.mxu0 0.0
    %4867 = vmatprep.mubr.f32.mxu0 0.0
    %v4868 = vand.u32 %v4591, 4294901760
    %v4869 = vsub.f32 %v4591, %v4868
    %4870 = vmatmul.mubr.f32.gmra.mrb[0].mxu0 %v4869
    %v4871 = vpop.f32.mrb[0].mxu0
    %v4872 = vadd.f32 %v4784, %v4871
    %v4873 = vpop.f32.mrb[0].mxu0
    %4874 = vdwg.mxu0
    %4875 = vmatprep.subr.mxu0 0.0
    %v4876 = vand.u32 %v49, 4294901760
    %4877 = vmatpush1.msra.mxu0 %v4876
    %4878 = vmatprep.subr.mxu0 0.0
    %v4879 = vand.u32 %v50, 4294901760
    %4880 = vmatpush1.msra.mxu0 %v4879
    %4881 = vmatprep.subr.mxu0 0.0
    %v4882 = vand.u32 %v51, 4294901760
    %4883 = vmatpush1.msra.mxu0 %v4882
    %4884 = vmatprep.subr.mxu0 0.0
    %v4885 = vand.u32 %v52, 4294901760
    %4886 = vmatpush1.msra.mxu0 %v4885
    %4887 = vmatprep.subr.mxu0 0.0
    %v4888 = vand.u32 %v53, 4294901760
    %4889 = vmatpush1.msra.mxu0 %v4888
    %4890 = vmatprep.subr.mxu0 0.0
    %v4891 = vand.u32 %v54, 4294901760
    %4892 = vmatpush1.msra.mxu0 %v4891
    %4893 = vmatprep.subr.mxu0 0.0
    %v4894 = vand.u32 %v55, 4294901760
    %4895 = vmatpush1.msra.mxu0 %v4894
    %4896 = vmatprep.subr.mxu0 0.0
    %v4897 = vand.u32 %v56, 4294901760
    %4898 = vmatpush1.msra.mxu0 %v4897
    %4899 = vmatprep.subr.mxu0 0.0
    %4900 = vmatpush1.msra.mxu0 0.0
    %4901 = vmatprep.subr.mxu0 0.0
    %4902 = vmatpush1.msra.mxu0 0.0
    %4903 = vmatprep.subr.mxu0 0.0
    %4904 = vmatpush1.msra.mxu0 0.0
    %4905 = vmatprep.subr.mxu0 0.0
    %4906 = vmatpush1.msra.mxu0 0.0
    %4907 = vmatprep.subr.mxu0 0.0
    %4908 = vmatpush1.msra.mxu0 0.0
    %4909 = vmatprep.subr.mxu0 0.0
    %4910 = vmatpush1.msra.mxu0 0.0
    %4911 = vmatprep.subr.mxu0 0.0
    %4912 = vmatpush1.msra.mxu0 0.0
    %4913 = vmatprep.subr.mxu0 0.0
    %4914 = vmatpush1.msra.mxu0 0.0
    %4915 = vmatprep.subr.mxu0 0.0
    %4916 = vmatpush1.msra.mxu0 0.0
    %4917 = vmatprep.subr.mxu0 0.0
    %4918 = vmatpush1.msra.mxu0 0.0
    %4919 = vmatprep.subr.mxu0 0.0
    %4920 = vmatpush1.msra.mxu0 0.0
    %4921 = vmatprep.subr.mxu0 0.0
    %4922 = vmatpush1.msra.mxu0 0.0
    %4923 = vmatprep.subr.mxu0 0.0
    %4924 = vmatpush1.msra.mxu0 0.0
    %4925 = vmatprep.subr.mxu0 0.0
    %4926 = vmatpush1.msra.mxu0 0.0
    %4927 = vmatprep.subr.mxu0 0.0
    %4928 = vmatpush1.msra.mxu0 0.0
    %4929 = vmatprep.subr.mxu0 0.0
    %4930 = vmatpush1.msra.mxu0 0.0
    %4931 = vmatprep.subr.mxu0 0.0
    %4932 = vmatpush1.msra.mxu0 0.0
    %4933 = vmatprep.subr.mxu0 0.0
    %4934 = vmatpush1.msra.mxu0 0.0
    %4935 = vmatprep.subr.mxu0 0.0
    %4936 = vmatpush1.msra.mxu0 0.0
    %4937 = vmatprep.subr.mxu0 0.0
    %4938 = vmatpush1.msra.mxu0 0.0
    %4939 = vmatprep.subr.mxu0 0.0
    %4940 = vmatpush1.msra.mxu0 0.0
    %4941 = vmatprep.subr.mxu0 0.0
    %4942 = vmatpush1.msra.mxu0 0.0
    %4943 = vmatprep.subr.mxu0 0.0
    %4944 = vmatpush1.msra.mxu0 0.0
    %4945 = vmatprep.subr.mxu0 0.0
    %4946 = vmatpush1.msra.mxu0 0.0
    %4947 = vmatprep.mubr.f32.mxu0 0.0
    %v4948 = vand.u32 %v4591, 4294901760
    %v4949 = vsub.f32 %v4591, %v4948
    %v4950 = vand.u32 %v4949, 4294901760
    %4951 = vmatmul.mubr.f32.gmra.mrb[0].mxu0 %v4950
    %v4952 = vpop.f32.mrb[0].mxu0
    %v4953 = vadd.f32 %v4872, %v4952
    %v4954 = vpop.f32.mrb[0].mxu0
    %4955 = vdwg.mxu0
    %4956 = vmatprep.subr.mxu0 0.0
    %v4957 = vand.u32 %v49, 4294901760
    %v4958 = vsub.f32 %v49, %v4957
    %v4959 = vand.u32 %v4958, 4294901760
    %4960 = vmatpush1.msra.mxu0 %v4959
    %4961 = vmatprep.subr.mxu0 0.0
    %v4962 = vand.u32 %v50, 4294901760
    %v4963 = vsub.f32 %v50, %v4962
    %v4964 = vand.u32 %v4963, 4294901760
    %4965 = vmatpush1.msra.mxu0 %v4964
    %4966 = vmatprep.subr.mxu0 0.0
    %v4967 = vand.u32 %v51, 4294901760
    %v4968 = vsub.f32 %v51, %v4967
    %v4969 = vand.u32 %v4968, 4294901760
    %4970 = vmatpush1.msra.mxu0 %v4969
    %4971 = vmatprep.subr.mxu0 0.0
    %v4972 = vand.u32 %v52, 4294901760
    %v4973 = vsub.f32 %v52, %v4972
    %v4974 = vand.u32 %v4973, 4294901760
    %4975 = vmatpush1.msra.mxu0 %v4974
    %4976 = vmatprep.subr.mxu0 0.0
    %v4977 = vand.u32 %v53, 4294901760
    %v4978 = vsub.f32 %v53, %v4977
    %v4979 = vand.u32 %v4978, 4294901760
    %4980 = vmatpush1.msra.mxu0 %v4979
    %4981 = vmatprep.subr.mxu0 0.0
    %v4982 = vand.u32 %v54, 4294901760
    %v4983 = vsub.f32 %v54, %v4982
    %v4984 = vand.u32 %v4983, 4294901760
    %4985 = vmatpush1.msra.mxu0 %v4984
    %4986 = vmatprep.subr.mxu0 0.0
    %v4987 = vand.u32 %v55, 4294901760
    %v4988 = vsub.f32 %v55, %v4987
    %v4989 = vand.u32 %v4988, 4294901760
    %4990 = vmatpush1.msra.mxu0 %v4989
    %4991 = vmatprep.subr.mxu0 0.0
    %v4992 = vand.u32 %v56, 4294901760
    %v4993 = vsub.f32 %v56, %v4992
    %v4994 = vand.u32 %v4993, 4294901760
    %4995 = vmatpush1.msra.mxu0 %v4994
    %4996 = vmatprep.subr.mxu0 0.0
    %4997 = vmatpush1.msra.mxu0 0.0
    %4998 = vmatprep.subr.mxu0 0.0
    %4999 = vmatpush1.msra.mxu0 0.0
    %5000 = vmatprep.subr.mxu0 0.0
    %5001 = vmatpush1.msra.mxu0 0.0
    %5002 = vmatprep.subr.mxu0 0.0
    %5003 = vmatpush1.msra.mxu0 0.0
    %5004 = vmatprep.subr.mxu0 0.0
    %5005 = vmatpush1.msra.mxu0 0.0
    %5006 = vmatprep.subr.mxu0 0.0
    %5007 = vmatpush1.msra.mxu0 0.0
    %5008 = vmatprep.subr.mxu0 0.0
    %5009 = vmatpush1.msra.mxu0 0.0
    %5010 = vmatprep.subr.mxu0 0.0
    %5011 = vmatpush1.msra.mxu0 0.0
    %5012 = vmatprep.subr.mxu0 0.0
    %5013 = vmatpush1.msra.mxu0 0.0
    %5014 = vmatprep.subr.mxu0 0.0
    %5015 = vmatpush1.msra.mxu0 0.0
    %5016 = vmatprep.subr.mxu0 0.0
    %5017 = vmatpush1.msra.mxu0 0.0
    %5018 = vmatprep.subr.mxu0 0.0
    %5019 = vmatpush1.msra.mxu0 0.0
    %5020 = vmatprep.subr.mxu0 0.0
    %5021 = vmatpush1.msra.mxu0 0.0
    %5022 = vmatprep.subr.mxu0 0.0
    %5023 = vmatpush1.msra.mxu0 0.0
    %5024 = vmatprep.subr.mxu0 0.0
    %5025 = vmatpush1.msra.mxu0 0.0
    %5026 = vmatprep.subr.mxu0 0.0
    %5027 = vmatpush1.msra.mxu0 0.0
    %5028 = vmatprep.subr.mxu0 0.0
    %5029 = vmatpush1.msra.mxu0 0.0
    %5030 = vmatprep.subr.mxu0 0.0
    %5031 = vmatpush1.msra.mxu0 0.0
    %5032 = vmatprep.subr.mxu0 0.0
    %5033 = vmatpush1.msra.mxu0 0.0
    %5034 = vmatprep.subr.mxu0 0.0
    %5035 = vmatpush1.msra.mxu0 0.0
    %5036 = vmatprep.subr.mxu0 0.0
    %5037 = vmatpush1.msra.mxu0 0.0
    %5038 = vmatprep.subr.mxu0 0.0
    %5039 = vmatpush1.msra.mxu0 0.0
    %5040 = vmatprep.subr.mxu0 0.0
    %5041 = vmatpush1.msra.mxu0 0.0
    %5042 = vmatprep.subr.mxu0 0.0
    %5043 = vmatpush1.msra.mxu0 0.0
    %5044 = vmatprep.mubr.f32.mxu0 0.0
    %v5045 = vand.u32 %v4591, 4294901760
    %5046 = vmatmul.mubr.f32.gmra.mrb[0].mxu0 %v5045
    %v5047 = vpop.f32.mrb[0].mxu0
    %v5048 = vadd.f32 %v4953, %v5047
    %v5049 = vpop.f32.mrb[0].mxu0
    %5050 = vdwg.mxu0
    %5051 = vmatprep.subr.mxu0 0.0
    %v5052 = vand.u32 %v49, 4294901760
    %5053 = vmatpush1.msra.mxu0 %v5052
    %5054 = vmatprep.subr.mxu0 0.0
    %v5055 = vand.u32 %v50, 4294901760
    %5056 = vmatpush1.msra.mxu0 %v5055
    %5057 = vmatprep.subr.mxu0 0.0
    %v5058 = vand.u32 %v51, 4294901760
    %5059 = vmatpush1.msra.mxu0 %v5058
    %5060 = vmatprep.subr.mxu0 0.0
    %v5061 = vand.u32 %v52, 4294901760
    %5062 = vmatpush1.msra.mxu0 %v5061
    %5063 = vmatprep.subr.mxu0 0.0
    %v5064 = vand.u32 %v53, 4294901760
    %5065 = vmatpush1.msra.mxu0 %v5064
    %5066 = vmatprep.subr.mxu0 0.0
    %v5067 = vand.u32 %v54, 4294901760
    %5068 = vmatpush1.msra.mxu0 %v5067
    %5069 = vmatprep.subr.mxu0 0.0
    %v5070 = vand.u32 %v55, 4294901760
    %5071 = vmatpush1.msra.mxu0 %v5070
    %5072 = vmatprep.subr.mxu0 0.0
    %v5073 = vand.u32 %v56, 4294901760
    %5074 = vmatpush1.msra.mxu0 %v5073
    %5075 = vmatprep.subr.mxu0 0.0
    %5076 = vmatpush1.msra.mxu0 0.0
    %5077 = vmatprep.subr.mxu0 0.0
    %5078 = vmatpush1.msra.mxu0 0.0
    %5079 = vmatprep.subr.mxu0 0.0
    %5080 = vmatpush1.msra.mxu0 0.0
    %5081 = vmatprep.subr.mxu0 0.0
    %5082 = vmatpush1.msra.mxu0 0.0
    %5083 = vmatprep.subr.mxu0 0.0
    %5084 = vmatpush1.msra.mxu0 0.0
    %5085 = vmatprep.subr.mxu0 0.0
    %5086 = vmatpush1.msra.mxu0 0.0
    %5087 = vmatprep.subr.mxu0 0.0
    %5088 = vmatpush1.msra.mxu0 0.0
    %5089 = vmatprep.subr.mxu0 0.0
    %5090 = vmatpush1.msra.mxu0 0.0
    %5091 = vmatprep.subr.mxu0 0.0
    %5092 = vmatpush1.msra.mxu0 0.0
    %5093 = vmatprep.subr.mxu0 0.0
    %5094 = vmatpush1.msra.mxu0 0.0
    %5095 = vmatprep.subr.mxu0 0.0
    %5096 = vmatpush1.msra.mxu0 0.0
    %5097 = vmatprep.subr.mxu0 0.0
    %5098 = vmatpush1.msra.mxu0 0.0
    %5099 = vmatprep.subr.mxu0 0.0
    %5100 = vmatpush1.msra.mxu0 0.0
    %5101 = vmatprep.subr.mxu0 0.0
    %5102 = vmatpush1.msra.mxu0 0.0
    %5103 = vmatprep.subr.mxu0 0.0
    %5104 = vmatpush1.msra.mxu0 0.0
    %5105 = vmatprep.subr.mxu0 0.0
    %5106 = vmatpush1.msra.mxu0 0.0
    %5107 = vmatprep.subr.mxu0 0.0
    %5108 = vmatpush1.msra.mxu0 0.0
    %5109 = vmatprep.subr.mxu0 0.0
    %5110 = vmatpush1.msra.mxu0 0.0
    %5111 = vmatprep.subr.mxu0 0.0
    %5112 = vmatpush1.msra.mxu0 0.0
    %5113 = vmatprep.subr.mxu0 0.0
    %5114 = vmatpush1.msra.mxu0 0.0
    %5115 = vmatprep.subr.mxu0 0.0
    %5116 = vmatpush1.msra.mxu0 0.0
    %5117 = vmatprep.subr.mxu0 0.0
    %5118 = vmatpush1.msra.mxu0 0.0
    %5119 = vmatprep.subr.mxu0 0.0
    %5120 = vmatpush1.msra.mxu0 0.0
    %5121 = vmatprep.subr.mxu0 0.0
    %5122 = vmatpush1.msra.mxu0 0.0
    %5123 = vmatprep.mubr.f32.mxu0 0.0
    %v5124 = vand.u32 %v4591, 4294901760
    %5125 = vmatmul.mubr.f32.gmra.mrb[0].mxu0 %v5124
    %v5126 = vpop.f32.mrb[0].mxu0
    %v5127 = vadd.f32 %v5048, %v5126
    %v5128 = vpop.f32.mrb[0].mxu0
    %5129 = vdwg.mxu0
    %v5130 = vxor.u32 %v5127, 2147483648
    %v5131 = vmul.f32 %v5130, 1.442695
    %v5132 = vpow.pop %v5131
    %v5133 = vadd.f32 %v5132, 1.0
    %v5134 = vrcp.pop %v5133
    %v5135 = vmul.f32 1.0, %v5134
    %v5136 = vtanh.pop %v5127
    %v5137 = vmul.f32 %v5135, %v4026
    %5139 = vrot.lane.b32.xlu0 %v5136, 64
    %v5140 = vpop.permute.xlu0 %5139
    %v5142 = vmul.f32 %v5135, %v5140
    %5144 = vrot.lane.b32.xlu0 %v5142, 32
    %v5145 = vpop.permute.xlu0 %5144
    %v5147 = vadd.f32 %v5137, %v5145
    %v5148 = vtanh.pop %v5147
    %5150 = vrot.lane.b32.xlu0 %v5148, 64
    %v5151 = vpop.permute.xlu0 %5150
    %v5153 = vmul.f32 %v5135, %v5151
    %5155 = vrot.lane.b32.xlu0 %v5153, 32
    %v5156 = vpop.permute.xlu0 %5155
    %v5157 = vsel %vm85, %v5156, 0
    %5159 = vmatprep.subr.mxu0 0.0
    %v5160 = vand.u32 %v58, 4294901760
    %5161 = vmatpush1.msra.mxu0 %v5160
    %5162 = vmatprep.subr.mxu0 0.0
    %v5163 = vand.u32 %v59, 4294901760
    %5164 = vmatpush1.msra.mxu0 %v5163
    %5165 = vmatprep.subr.mxu0 0.0
    %v5166 = vand.u32 %v60, 4294901760
    %5167 = vmatpush1.msra.mxu0 %v5166
    %5168 = vmatprep.subr.mxu0 0.0
    %v5169 = vand.u32 %v61, 4294901760
    %5170 = vmatpush1.msra.mxu0 %v5169
    %5171 = vmatprep.subr.mxu0 0.0
    %5172 = vmatpush1.msra.mxu0 0.0
    %5173 = vmatprep.subr.mxu0 0.0
    %5174 = vmatpush1.msra.mxu0 0.0
    %5175 = vmatprep.subr.mxu0 0.0
    %5176 = vmatpush1.msra.mxu0 0.0
    %5177 = vmatprep.subr.mxu0 0.0
    %5178 = vmatpush1.msra.mxu0 0.0
    %5179 = vmatprep.subr.mxu0 0.0
    %5180 = vmatpush1.msra.mxu0 0.0
    %5181 = vmatprep.subr.mxu0 0.0
    %5182 = vmatpush1.msra.mxu0 0.0
    %5183 = vmatprep.subr.mxu0 0.0
    %5184 = vmatpush1.msra.mxu0 0.0
    %5185 = vmatprep.subr.mxu0 0.0
    %5186 = vmatpush1.msra.mxu0 0.0
    %5187 = vmatprep.subr.mxu0 0.0
    %5188 = vmatpush1.msra.mxu0 0.0
    %5189 = vmatprep.subr.mxu0 0.0
    %5190 = vmatpush1.msra.mxu0 0.0
    %5191 = vmatprep.subr.mxu0 0.0
    %5192 = vmatpush1.msra.mxu0 0.0
    %5193 = vmatprep.subr.mxu0 0.0
    %5194 = vmatpush1.msra.mxu0 0.0
    %5195 = vmatprep.subr.mxu0 0.0
    %5196 = vmatpush1.msra.mxu0 0.0
    %5197 = vmatprep.subr.mxu0 0.0
    %5198 = vmatpush1.msra.mxu0 0.0
    %5199 = vmatprep.subr.mxu0 0.0
    %5200 = vmatpush1.msra.mxu0 0.0
    %5201 = vmatprep.subr.mxu0 0.0
    %5202 = vmatpush1.msra.mxu0 0.0
    %5203 = vmatprep.subr.mxu0 0.0
    %5204 = vmatpush1.msra.mxu0 0.0
    %5205 = vmatprep.subr.mxu0 0.0
    %5206 = vmatpush1.msra.mxu0 0.0
    %5207 = vmatprep.subr.mxu0 0.0
    %5208 = vmatpush1.msra.mxu0 0.0
    %5209 = vmatprep.subr.mxu0 0.0
    %5210 = vmatpush1.msra.mxu0 0.0
    %5211 = vmatprep.subr.mxu0 0.0
    %5212 = vmatpush1.msra.mxu0 0.0
    %5213 = vmatprep.subr.mxu0 0.0
    %5214 = vmatpush1.msra.mxu0 0.0
    %5215 = vmatprep.subr.mxu0 0.0
    %5216 = vmatpush1.msra.mxu0 0.0
    %5217 = vmatprep.subr.mxu0 0.0
    %5218 = vmatpush1.msra.mxu0 0.0
    %5219 = vmatprep.subr.mxu0 0.0
    %5220 = vmatpush1.msra.mxu0 0.0
    %5221 = vmatprep.subr.mxu0 0.0
    %5222 = vmatpush1.msra.mxu0 0.0
    %5223 = vmatprep.subr.mxu0 0.0
    %5224 = vmatpush1.msra.mxu0 0.0
    %5225 = vmatprep.subr.mxu0 0.0
    %5226 = vmatpush1.msra.mxu0 0.0
    %5227 = vmatprep.mubr.f32.mxu0 0.0
    %v5228 = vand.u32 %v5157, 4294901760
    %v5229 = vsub.f32 %v5157, %v5228
    %v5230 = vand.u32 %v5229, 4294901760
    %v5231 = vsub.f32 %v5229, %v5230
    %v5232 = vand.u32 %v5231, 4294901760
    %5233 = vmatmul.mubr.f32.gmra.mrb[0].mxu0 %v5232
    %v5234 = vpop.f32.mrb[0].mxu0
    %v5235 = vadd.f32 %v666, %v5234
    %v5236 = vpop.f32.mrb[0].mxu0
    %5237 = vdwg.mxu0
    %5238 = vmatprep.subr.mxu0 0.0
    %v5239 = vand.u32 %v58, 4294901760
    %v5240 = vsub.f32 %v58, %v5239
    %v5241 = vand.u32 %v5240, 4294901760
    %v5242 = vsub.f32 %v5240, %v5241
    %v5243 = vand.u32 %v5242, 4294901760
    %5244 = vmatpush1.msra.mxu0 %v5243
    %5245 = vmatprep.subr.mxu0 0.0
    %v5246 = vand.u32 %v59, 4294901760
    %v5247 = vsub.f32 %v59, %v5246
    %v5248 = vand.u32 %v5247, 4294901760
    %v5249 = vsub.f32 %v5247, %v5248
    %v5250 = vand.u32 %v5249, 4294901760
    %5251 = vmatpush1.msra.mxu0 %v5250
    %5252 = vmatprep.subr.mxu0 0.0
    %v5253 = vand.u32 %v60, 4294901760
    %v5254 = vsub.f32 %v60, %v5253
    %v5255 = vand.u32 %v5254, 4294901760
    %v5256 = vsub.f32 %v5254, %v5255
    %v5257 = vand.u32 %v5256, 4294901760
    %5258 = vmatpush1.msra.mxu0 %v5257
    %5259 = vmatprep.subr.mxu0 0.0
    %v5260 = vand.u32 %v61, 4294901760
    %v5261 = vsub.f32 %v61, %v5260
    %v5262 = vand.u32 %v5261, 4294901760
    %v5263 = vsub.f32 %v5261, %v5262
    %v5264 = vand.u32 %v5263, 4294901760
    %5265 = vmatpush1.msra.mxu0 %v5264
    %5266 = vmatprep.subr.mxu0 0.0
    %5267 = vmatpush1.msra.mxu0 0.0
    %5268 = vmatprep.subr.mxu0 0.0
    %5269 = vmatpush1.msra.mxu0 0.0
    %5270 = vmatprep.subr.mxu0 0.0
    %5271 = vmatpush1.msra.mxu0 0.0
    %5272 = vmatprep.subr.mxu0 0.0
    %5273 = vmatpush1.msra.mxu0 0.0
    %5274 = vmatprep.subr.mxu0 0.0
    %5275 = vmatpush1.msra.mxu0 0.0
    %5276 = vmatprep.subr.mxu0 0.0
    %5277 = vmatpush1.msra.mxu0 0.0
    %5278 = vmatprep.subr.mxu0 0.0
    %5279 = vmatpush1.msra.mxu0 0.0
    %5280 = vmatprep.subr.mxu0 0.0
    %5281 = vmatpush1.msra.mxu0 0.0
    %5282 = vmatprep.subr.mxu0 0.0
    %5283 = vmatpush1.msra.mxu0 0.0
    %5284 = vmatprep.subr.mxu0 0.0
    %5285 = vmatpush1.msra.mxu0 0.0
    %5286 = vmatprep.subr.mxu0 0.0
    %5287 = vmatpush1.msra.mxu0 0.0
    %5288 = vmatprep.subr.mxu0 0.0
    %5289 = vmatpush1.msra.mxu0 0.0
    %5290 = vmatprep.subr.mxu0 0.0
    %5291 = vmatpush1.msra.mxu0 0.0
    %5292 = vmatprep.subr.mxu0 0.0
    %5293 = vmatpush1.msra.mxu0 0.0
    %5294 = vmatprep.subr.mxu0 0.0
    %5295 = vmatpush1.msra.mxu0 0.0
    %5296 = vmatprep.subr.mxu0 0.0
    %5297 = vmatpush1.msra.mxu0 0.0
    %5298 = vmatprep.subr.mxu0 0.0
    %5299 = vmatpush1.msra.mxu0 0.0
    %5300 = vmatprep.subr.mxu0 0.0
    %5301 = vmatpush1.msra.mxu0 0.0
    %5302 = vmatprep.subr.mxu0 0.0
    %5303 = vmatpush1.msra.mxu0 0.0
    %5304 = vmatprep.subr.mxu0 0.0
    %5305 = vmatpush1.msra.mxu0 0.0
    %5306 = vmatprep.subr.mxu0 0.0
    %5307 = vmatpush1.msra.mxu0 0.0
    %5308 = vmatprep.subr.mxu0 0.0
    %5309 = vmatpush1.msra.mxu0 0.0
    %5310 = vmatprep.subr.mxu0 0.0
    %5311 = vmatpush1.msra.mxu0 0.0
    %5312 = vmatprep.subr.mxu0 0.0
    %5313 = vmatpush1.msra.mxu0 0.0
    %5314 = vmatprep.subr.mxu0 0.0
    %5315 = vmatpush1.msra.mxu0 0.0
    %5316 = vmatprep.subr.mxu0 0.0
    %5317 = vmatpush1.msra.mxu0 0.0
    %5318 = vmatprep.subr.mxu0 0.0
    %5319 = vmatpush1.msra.mxu0 0.0
    %5320 = vmatprep.subr.mxu0 0.0
    %5321 = vmatpush1.msra.mxu0 0.0
    %5322 = vmatprep.mubr.f32.mxu0 0.0
    %v5323 = vand.u32 %v5157, 4294901760
    %5324 = vmatmul.mubr.f32.gmra.mrb[0].mxu0 %v5323
    %v5325 = vpop.f32.mrb[0].mxu0
    %v5326 = vadd.f32 %v5235, %v5325
    %v5327 = vpop.f32.mrb[0].mxu0
    %5328 = vdwg.mxu0
    %5329 = vmatprep.subr.mxu0 0.0
    %v5330 = vand.u32 %v58, 4294901760
    %v5331 = vsub.f32 %v58, %v5330
    %5332 = vmatpush1.msra.mxu0 %v5331
    %5333 = vmatprep.subr.mxu0 0.0
    %v5334 = vand.u32 %v59, 4294901760
    %v5335 = vsub.f32 %v59, %v5334
    %5336 = vmatpush1.msra.mxu0 %v5335
    %5337 = vmatprep.subr.mxu0 0.0
    %v5338 = vand.u32 %v60, 4294901760
    %v5339 = vsub.f32 %v60, %v5338
    %5340 = vmatpush1.msra.mxu0 %v5339
    %5341 = vmatprep.subr.mxu0 0.0
    %v5342 = vand.u32 %v61, 4294901760
    %v5343 = vsub.f32 %v61, %v5342
    %5344 = vmatpush1.msra.mxu0 %v5343
    %5345 = vmatprep.subr.mxu0 0.0
    %5346 = vmatpush1.msra.mxu0 0.0
    %5347 = vmatprep.subr.mxu0 0.0
    %5348 = vmatpush1.msra.mxu0 0.0
    %5349 = vmatprep.subr.mxu0 0.0
    %5350 = vmatpush1.msra.mxu0 0.0
    %5351 = vmatprep.subr.mxu0 0.0
    %5352 = vmatpush1.msra.mxu0 0.0
    %5353 = vmatprep.subr.mxu0 0.0
    %5354 = vmatpush1.msra.mxu0 0.0
    %5355 = vmatprep.subr.mxu0 0.0
    %5356 = vmatpush1.msra.mxu0 0.0
    %5357 = vmatprep.subr.mxu0 0.0
    %5358 = vmatpush1.msra.mxu0 0.0
    %5359 = vmatprep.subr.mxu0 0.0
    %5360 = vmatpush1.msra.mxu0 0.0
    %5361 = vmatprep.subr.mxu0 0.0
    %5362 = vmatpush1.msra.mxu0 0.0
    %5363 = vmatprep.subr.mxu0 0.0
    %5364 = vmatpush1.msra.mxu0 0.0
    %5365 = vmatprep.subr.mxu0 0.0
    %5366 = vmatpush1.msra.mxu0 0.0
    %5367 = vmatprep.subr.mxu0 0.0
    %5368 = vmatpush1.msra.mxu0 0.0
    %5369 = vmatprep.subr.mxu0 0.0
    %5370 = vmatpush1.msra.mxu0 0.0
    %5371 = vmatprep.subr.mxu0 0.0
    %5372 = vmatpush1.msra.mxu0 0.0
    %5373 = vmatprep.subr.mxu0 0.0
    %5374 = vmatpush1.msra.mxu0 0.0
    %5375 = vmatprep.subr.mxu0 0.0
    %5376 = vmatpush1.msra.mxu0 0.0
    %5377 = vmatprep.subr.mxu0 0.0
    %5378 = vmatpush1.msra.mxu0 0.0
    %5379 = vmatprep.subr.mxu0 0.0
    %5380 = vmatpush1.msra.mxu0 0.0
    %5381 = vmatprep.subr.mxu0 0.0
    %5382 = vmatpush1.msra.mxu0 0.0
    %5383 = vmatprep.subr.mxu0 0.0
    %5384 = vmatpush1.msra.mxu0 0.0
    %5385 = vmatprep.subr.mxu0 0.0
    %5386 = vmatpush1.msra.mxu0 0.0
    %5387 = vmatprep.subr.mxu0 0.0
    %5388 = vmatpush1.msra.mxu0 0.0
    %5389 = vmatprep.subr.mxu0 0.0
    %5390 = vmatpush1.msra.mxu0 0.0
    %5391 = vmatprep.subr.mxu0 0.0
    %5392 = vmatpush1.msra.mxu0 0.0
    %5393 = vmatprep.subr.mxu0 0.0
    %5394 = vmatpush1.msra.mxu0 0.0
    %5395 = vmatprep.subr.mxu0 0.0
    %5396 = vmatpush1.msra.mxu0 0.0
    %5397 = vmatprep.subr.mxu0 0.0
    %5398 = vmatpush1.msra.mxu0 0.0
    %5399 = vmatprep.subr.mxu0 0.0
    %5400 = vmatpush1.msra.mxu0 0.0
    %5401 = vmatprep.mubr.f32.mxu0 0.0
    %v5402 = vand.u32 %v5157, 4294901760
    %v5403 = vsub.f32 %v5157, %v5402
    %5404 = vmatmul.mubr.f32.gmra.mrb[0].mxu0 %v5403
    %v5405 = vpop.f32.mrb[0].mxu0
    %v5406 = vadd.f32 %v5326, %v5405
    %v5407 = vpop.f32.mrb[0].mxu0
    %5408 = vdwg.mxu0
    %5409 = vmatprep.subr.mxu0 0.0
    %v5410 = vand.u32 %v58, 4294901760
    %5411 = vmatpush1.msra.mxu0 %v5410
    %5412 = vmatprep.subr.mxu0 0.0
    %v5413 = vand.u32 %v59, 4294901760
    %5414 = vmatpush1.msra.mxu0 %v5413
    %5415 = vmatprep.subr.mxu0 0.0
    %v5416 = vand.u32 %v60, 4294901760
    %5417 = vmatpush1.msra.mxu0 %v5416
    %5418 = vmatprep.subr.mxu0 0.0
    %v5419 = vand.u32 %v61, 4294901760
    %5420 = vmatpush1.msra.mxu0 %v5419
    %5421 = vmatprep.subr.mxu0 0.0
    %5422 = vmatpush1.msra.mxu0 0.0
    %5423 = vmatprep.subr.mxu0 0.0
    %5424 = vmatpush1.msra.mxu0 0.0
    %5425 = vmatprep.subr.mxu0 0.0
    %5426 = vmatpush1.msra.mxu0 0.0
    %5427 = vmatprep.subr.mxu0 0.0
    %5428 = vmatpush1.msra.mxu0 0.0
    %5429 = vmatprep.subr.mxu0 0.0
    %5430 = vmatpush1.msra.mxu0 0.0
    %5431 = vmatprep.subr.mxu0 0.0
    %5432 = vmatpush1.msra.mxu0 0.0
    %5433 = vmatprep.subr.mxu0 0.0
    %5434 = vmatpush1.msra.mxu0 0.0
    %5435 = vmatprep.subr.mxu0 0.0
    %5436 = vmatpush1.msra.mxu0 0.0
    %5437 = vmatprep.subr.mxu0 0.0
    %5438 = vmatpush1.msra.mxu0 0.0
    %5439 = vmatprep.subr.mxu0 0.0
    %5440 = vmatpush1.msra.mxu0 0.0
    %5441 = vmatprep.subr.mxu0 0.0
    %5442 = vmatpush1.msra.mxu0 0.0
    %5443 = vmatprep.subr.mxu0 0.0
    %5444 = vmatpush1.msra.mxu0 0.0
    %5445 = vmatprep.subr.mxu0 0.0
    %5446 = vmatpush1.msra.mxu0 0.0
    %5447 = vmatprep.subr.mxu0 0.0
    %5448 = vmatpush1.msra.mxu0 0.0
    %5449 = vmatprep.subr.mxu0 0.0
    %5450 = vmatpush1.msra.mxu0 0.0
    %5451 = vmatprep.subr.mxu0 0.0
    %5452 = vmatpush1.msra.mxu0 0.0
    %5453 = vmatprep.subr.mxu0 0.0
    %5454 = vmatpush1.msra.mxu0 0.0
    %5455 = vmatprep.subr.mxu0 0.0
    %5456 = vmatpush1.msra.mxu0 0.0
    %5457 = vmatprep.subr.mxu0 0.0
    %5458 = vmatpush1.msra.mxu0 0.0
    %5459 = vmatprep.subr.mxu0 0.0
    %5460 = vmatpush1.msra.mxu0 0.0
    %5461 = vmatprep.subr.mxu0 0.0
    %5462 = vmatpush1.msra.mxu0 0.0
    %5463 = vmatprep.subr.mxu0 0.0
    %5464 = vmatpush1.msra.mxu0 0.0
    %5465 = vmatprep.subr.mxu0 0.0
    %5466 = vmatpush1.msra.mxu0 0.0
    %5467 = vmatprep.subr.mxu0 0.0
    %5468 = vmatpush1.msra.mxu0 0.0
    %5469 = vmatprep.subr.mxu0 0.0
    %5470 = vmatpush1.msra.mxu0 0.0
    %5471 = vmatprep.subr.mxu0 0.0
    %5472 = vmatpush1.msra.mxu0 0.0
    %5473 = vmatprep.subr.mxu0 0.0
    %5474 = vmatpush1.msra.mxu0 0.0
    %5475 = vmatprep.subr.mxu0 0.0
    %5476 = vmatpush1.msra.mxu0 0.0
    %5477 = vmatprep.mubr.f32.mxu0 0.0
    %v5478 = vand.u32 %v5157, 4294901760
    %v5479 = vsub.f32 %v5157, %v5478
    %v5480 = vand.u32 %v5479, 4294901760
    %5481 = vmatmul.mubr.f32.gmra.mrb[0].mxu0 %v5480
    %v5482 = vpop.f32.mrb[0].mxu0
    %v5483 = vadd.f32 %v5406, %v5482
    %v5484 = vpop.f32.mrb[0].mxu0
    %5485 = vdwg.mxu0
    %5486 = vmatprep.subr.mxu0 0.0
    %v5487 = vand.u32 %v58, 4294901760
    %v5488 = vsub.f32 %v58, %v5487
    %v5489 = vand.u32 %v5488, 4294901760
    %5490 = vmatpush1.msra.mxu0 %v5489
    %5491 = vmatprep.subr.mxu0 0.0
    %v5492 = vand.u32 %v59, 4294901760
    %v5493 = vsub.f32 %v59, %v5492
    %v5494 = vand.u32 %v5493, 4294901760
    %5495 = vmatpush1.msra.mxu0 %v5494
    %5496 = vmatprep.subr.mxu0 0.0
    %v5497 = vand.u32 %v60, 4294901760
    %v5498 = vsub.f32 %v60, %v5497
    %v5499 = vand.u32 %v5498, 4294901760
    %5500 = vmatpush1.msra.mxu0 %v5499
    %5501 = vmatprep.subr.mxu0 0.0
    %v5502 = vand.u32 %v61, 4294901760
    %v5503 = vsub.f32 %v61, %v5502
    %v5504 = vand.u32 %v5503, 4294901760
    %5505 = vmatpush1.msra.mxu0 %v5504
    %5506 = vmatprep.subr.mxu0 0.0
    %5507 = vmatpush1.msra.mxu0 0.0
    %5508 = vmatprep.subr.mxu0 0.0
    %5509 = vmatpush1.msra.mxu0 0.0
    %5510 = vmatprep.subr.mxu0 0.0
    %5511 = vmatpush1.msra.mxu0 0.0
    %5512 = vmatprep.subr.mxu0 0.0
    %5513 = vmatpush1.msra.mxu0 0.0
    %5514 = vmatprep.subr.mxu0 0.0
    %5515 = vmatpush1.msra.mxu0 0.0
    %5516 = vmatprep.subr.mxu0 0.0
    %5517 = vmatpush1.msra.mxu0 0.0
    %5518 = vmatprep.subr.mxu0 0.0
    %5519 = vmatpush1.msra.mxu0 0.0
    %5520 = vmatprep.subr.mxu0 0.0
    %5521 = vmatpush1.msra.mxu0 0.0
    %5522 = vmatprep.subr.mxu0 0.0
    %5523 = vmatpush1.msra.mxu0 0.0
    %5524 = vmatprep.subr.mxu0 0.0
    %5525 = vmatpush1.msra.mxu0 0.0
    %5526 = vmatprep.subr.mxu0 0.0
    %5527 = vmatpush1.msra.mxu0 0.0
    %5528 = vmatprep.subr.mxu0 0.0
    %5529 = vmatpush1.msra.mxu0 0.0
    %5530 = vmatprep.subr.mxu0 0.0
    %5531 = vmatpush1.msra.mxu0 0.0
    %5532 = vmatprep.subr.mxu0 0.0
    %5533 = vmatpush1.msra.mxu0 0.0
    %5534 = vmatprep.subr.mxu0 0.0
    %5535 = vmatpush1.msra.mxu0 0.0
    %5536 = vmatprep.subr.mxu0 0.0
    %5537 = vmatpush1.msra.mxu0 0.0
    %5538 = vmatprep.subr.mxu0 0.0
    %5539 = vmatpush1.msra.mxu0 0.0
    %5540 = vmatprep.subr.mxu0 0.0
    %5541 = vmatpush1.msra.mxu0 0.0
    %5542 = vmatprep.subr.mxu0 0.0
    %5543 = vmatpush1.msra.mxu0 0.0
    %5544 = vmatprep.subr.mxu0 0.0
    %5545 = vmatpush1.msra.mxu0 0.0
    %5546 = vmatprep.subr.mxu0 0.0
    %5547 = vmatpush1.msra.mxu0 0.0
    %5548 = vmatprep.subr.mxu0 0.0
    %5549 = vmatpush1.msra.mxu0 0.0
    %5550 = vmatprep.subr.mxu0 0.0
    %5551 = vmatpush1.msra.mxu0 0.0
    %5552 = vmatprep.subr.mxu0 0.0
    %5553 = vmatpush1.msra.mxu0 0.0
    %5554 = vmatprep.subr.mxu0 0.0
    %5555 = vmatpush1.msra.mxu0 0.0
    %5556 = vmatprep.subr.mxu0 0.0
    %5557 = vmatpush1.msra.mxu0 0.0
    %5558 = vmatprep.subr.mxu0 0.0
    %5559 = vmatpush1.msra.mxu0 0.0
    %5560 = vmatprep.subr.mxu0 0.0
    %5561 = vmatpush1.msra.mxu0 0.0
    %5562 = vmatprep.mubr.f32.mxu0 0.0
    %v5563 = vand.u32 %v5157, 4294901760
    %5564 = vmatmul.mubr.f32.gmra.mrb[0].mxu0 %v5563
    %v5565 = vpop.f32.mrb[0].mxu0
    %v5566 = vadd.f32 %v5483, %v5565
    %v5567 = vpop.f32.mrb[0].mxu0
    %5568 = vdwg.mxu0
    %5569 = vmatprep.subr.mxu0 0.0
    %v5570 = vand.u32 %v58, 4294901760
    %5571 = vmatpush1.msra.mxu0 %v5570
    %5572 = vmatprep.subr.mxu0 0.0
    %v5573 = vand.u32 %v59, 4294901760
    %5574 = vmatpush1.msra.mxu0 %v5573
    %5575 = vmatprep.subr.mxu0 0.0
    %v5576 = vand.u32 %v60, 4294901760
    %5577 = vmatpush1.msra.mxu0 %v5576
    %5578 = vmatprep.subr.mxu0 0.0
    %v5579 = vand.u32 %v61, 4294901760
    %5580 = vmatpush1.msra.mxu0 %v5579
    %5581 = vmatprep.subr.mxu0 0.0
    %5582 = vmatpush1.msra.mxu0 0.0
    %5583 = vmatprep.subr.mxu0 0.0
    %5584 = vmatpush1.msra.mxu0 0.0
    %5585 = vmatprep.subr.mxu0 0.0
    %5586 = vmatpush1.msra.mxu0 0.0
    %5587 = vmatprep.subr.mxu0 0.0
    %5588 = vmatpush1.msra.mxu0 0.0
    %5589 = vmatprep.subr.mxu0 0.0
    %5590 = vmatpush1.msra.mxu0 0.0
    %5591 = vmatprep.subr.mxu0 0.0
    %5592 = vmatpush1.msra.mxu0 0.0
    %5593 = vmatprep.subr.mxu0 0.0
    %5594 = vmatpush1.msra.mxu0 0.0
    %5595 = vmatprep.subr.mxu0 0.0
    %5596 = vmatpush1.msra.mxu0 0.0
    %5597 = vmatprep.subr.mxu0 0.0
    %5598 = vmatpush1.msra.mxu0 0.0
    %5599 = vmatprep.subr.mxu0 0.0
    %5600 = vmatpush1.msra.mxu0 0.0
    %5601 = vmatprep.subr.mxu0 0.0
    %5602 = vmatpush1.msra.mxu0 0.0
    %5603 = vmatprep.subr.mxu0 0.0
    %5604 = vmatpush1.msra.mxu0 0.0
    %5605 = vmatprep.subr.mxu0 0.0
    %5606 = vmatpush1.msra.mxu0 0.0
    %5607 = vmatprep.subr.mxu0 0.0
    %5608 = vmatpush1.msra.mxu0 0.0
    %5609 = vmatprep.subr.mxu0 0.0
    %5610 = vmatpush1.msra.mxu0 0.0
    %5611 = vmatprep.subr.mxu0 0.0
    %5612 = vmatpush1.msra.mxu0 0.0
    %5613 = vmatprep.subr.mxu0 0.0
    %5614 = vmatpush1.msra.mxu0 0.0
    %5615 = vmatprep.subr.mxu0 0.0
    %5616 = vmatpush1.msra.mxu0 0.0
    %5617 = vmatprep.subr.mxu0 0.0
    %5618 = vmatpush1.msra.mxu0 0.0
    %5619 = vmatprep.subr.mxu0 0.0
    %5620 = vmatpush1.msra.mxu0 0.0
    %5621 = vmatprep.subr.mxu0 0.0
    %5622 = vmatpush1.msra.mxu0 0.0
    %5623 = vmatprep.subr.mxu0 0.0
    %5624 = vmatpush1.msra.mxu0 0.0
    %5625 = vmatprep.subr.mxu0 0.0
    %5626 = vmatpush1.msra.mxu0 0.0
    %5627 = vmatprep.subr.mxu0 0.0
    %5628 = vmatpush1.msra.mxu0 0.0
    %5629 = vmatprep.subr.mxu0 0.0
    %5630 = vmatpush1.msra.mxu0 0.0
    %5631 = vmatprep.subr.mxu0 0.0
    %5632 = vmatpush1.msra.mxu0 0.0
    %5633 = vmatprep.subr.mxu0 0.0
    %5634 = vmatpush1.msra.mxu0 0.0
    %5635 = vmatprep.subr.mxu0 0.0
    %5636 = vmatpush1.msra.mxu0 0.0
    %5637 = vmatprep.mubr.f32.mxu0 0.0
    %v5638 = vand.u32 %v5157, 4294901760
    %5639 = vmatmul.mubr.f32.gmra.mrb[0].mxu0 %v5638
    %v5640 = vpop.f32.mrb[0].mxu0
    %v5641 = vadd.f32 %v5566, %v5640
    %v5642 = vpop.f32.mrb[0].mxu0
    %5643 = vdwg.mxu0
    %v5644 = vsel %vm1158, %v5641, -inf
    %5645 = vmax.xlane.f32.xlu0 %v5644
    %v5646 = vpop.xlane.xlu0 %5645
    %vm5647 = vcmp.eq.f32.partialorder %v5641, %v5646
    %v5648 = vsel %vm5647, %v64, 8
    %v5649 = vsel %vm1158, %v5648, 2147483647
    %v5650 = vand.u32 %v5649, 65535
    %v5651 = vshra.s32 %v5649, 16
    %v5652 = vcvt.s32.f32 %v5650
    %v5653 = vcvt.s32.f32 %v5651
    %5654 = vmin.xlane.f32.xlu0 %v5653
    %v5655 = vpop.xlane.xlu0 %5654
    %vm5656 = vcmp.eq.f32.partialorder %v5653, %v5655
    %v5657 = vsel %vm5656, %v5652, inf
    %5658 = vmin.xlane.f32.xlu0 %v5657
    %v5659 = vpop.xlane.xlu0 %5658
    %v5660 = vcvt.f32.s32 %v5659
    %v5661 = vcvt.f32.s32 %v5655
    %v5662 = vshll.u32 %v5661, 16
    %v5663 = vadd.s32 %v5662, %v5660
    %v5664 = vcvt.s32.f32 %v5663
    %vm5665 = vcmp.gt.f32.partialorder %v4582, 0.5
    %v5666 = vsel %vm5665, -1e+30, %v5641
    %v5667 = vsel %vm1158, %v5666, -inf
    %5668 = vmax.xlane.f32.xlu0 %v5667
    %v5669 = vpop.xlane.xlu0 %5668
    %vm5670 = vcmp.eq.f32.partialorder %v5666, %v5669
    %v5671 = vsel %vm5670, %v64, 8
    %v5672 = vsel %vm1158, %v5671, 2147483647
    %v5673 = vand.u32 %v5672, 65535
    %v5674 = vshra.s32 %v5672, 16
    %v5675 = vcvt.s32.f32 %v5673
    %v5676 = vcvt.s32.f32 %v5674
    %5677 = vmin.xlane.f32.xlu0 %v5676
    %v5678 = vpop.xlane.xlu0 %5677
    %vm5679 = vcmp.eq.f32.partialorder %v5676, %v5678
    %v5680 = vsel %vm5679, %v5675, inf
    %5681 = vmin.xlane.f32.xlu0 %v5680
    %v5682 = vpop.xlane.xlu0 %5681
    %v5683 = vcvt.f32.s32 %v5682
    %v5684 = vcvt.f32.s32 %v5678
    %v5685 = vshll.u32 %v5684, 16
    %v5686 = vadd.s32 %v5685, %v5683
    %v5687 = vsub.f32 %v5666, %v5669
    %v5688 = vmul.f32 %v5687, 1.442695
    %v5689 = vpow.pop %v5688
    %v5690 = vsel %vm1158, %v5689, 0.0
    %5691 = vadd.xlane.f32.xlu0 %v5690
    %v5692 = vpop.xlane.xlu0 %5691
    %v5693 = vlog2.pop %v5692
    %v5694 = vmul.f32 %v5693, 0.6931472
    %v5695 = vsub.f32 0.0, %v5694
    %v5696 = vcvt.s32.f32 %v5686
    %vm5697 = vcmask 33824
    %5698 = vst.msk [vmem:[#allocation5] sm:$0x3] %vm5697, %v5696
    %5699 = vst.msk [vmem:[#allocation6] sm:$0x3] %vm5697, %v5695
    %vm5700 = vcmp.eq.s32.totalorder %v64, %v5686
    %v5701 = vsel %vm5700, 1, 0
    %v5702 = vcvt.s32.f32 %v5701
    %v5703 = vmax.f32 %v4582, %v5702
    %v5704 = vmul.f32 %v5664, %v71
    %v5705 = vadd.f32 %v5704, %v77
    %v5706 = vmax.f32 %v5705, 0.0
    %5707 = vrot.lane.b32.xlu0 %v5153, 64
    %v5708 = vpop.permute.xlu0 %5707
    %v5710 = vsel %vm85, %v5706, %v5708
    %v5712 = vsel %vm93, %v5710, 0
    %5714 = vmatprep.subr.mxu0 0.0
    %v5715 = vand.u32 %v49, 4294901760
    %5716 = vmatpush1.msra.mxu0 %v5715
    %5717 = vmatprep.subr.mxu0 0.0
    %v5718 = vand.u32 %v50, 4294901760
    %5719 = vmatpush1.msra.mxu0 %v5718
    %5720 = vmatprep.subr.mxu0 0.0
    %v5721 = vand.u32 %v51, 4294901760
    %5722 = vmatpush1.msra.mxu0 %v5721
    %5723 = vmatprep.subr.mxu0 0.0
    %v5724 = vand.u32 %v52, 4294901760
    %5725 = vmatpush1.msra.mxu0 %v5724
    %5726 = vmatprep.subr.mxu0 0.0
    %v5727 = vand.u32 %v53, 4294901760
    %5728 = vmatpush1.msra.mxu0 %v5727
    %5729 = vmatprep.subr.mxu0 0.0
    %v5730 = vand.u32 %v54, 4294901760
    %5731 = vmatpush1.msra.mxu0 %v5730
    %5732 = vmatprep.subr.mxu0 0.0
    %v5733 = vand.u32 %v55, 4294901760
    %5734 = vmatpush1.msra.mxu0 %v5733
    %5735 = vmatprep.subr.mxu0 0.0
    %v5736 = vand.u32 %v56, 4294901760
    %5737 = vmatpush1.msra.mxu0 %v5736
    %5738 = vmatprep.subr.mxu0 0.0
    %5739 = vmatpush1.msra.mxu0 0.0
    %5740 = vmatprep.subr.mxu0 0.0
    %5741 = vmatpush1.msra.mxu0 0.0
    %5742 = vmatprep.subr.mxu0 0.0
    %5743 = vmatpush1.msra.mxu0 0.0
    %5744 = vmatprep.subr.mxu0 0.0
    %5745 = vmatpush1.msra.mxu0 0.0
    %5746 = vmatprep.subr.mxu0 0.0
    %5747 = vmatpush1.msra.mxu0 0.0
    %5748 = vmatprep.subr.mxu0 0.0
    %5749 = vmatpush1.msra.mxu0 0.0
    %5750 = vmatprep.subr.mxu0 0.0
    %5751 = vmatpush1.msra.mxu0 0.0
    %5752 = vmatprep.subr.mxu0 0.0
    %5753 = vmatpush1.msra.mxu0 0.0
    %5754 = vmatprep.subr.mxu0 0.0
    %5755 = vmatpush1.msra.mxu0 0.0
    %5756 = vmatprep.subr.mxu0 0.0
    %5757 = vmatpush1.msra.mxu0 0.0
    %5758 = vmatprep.subr.mxu0 0.0
    %5759 = vmatpush1.msra.mxu0 0.0
    %5760 = vmatprep.subr.mxu0 0.0
    %5761 = vmatpush1.msra.mxu0 0.0
    %5762 = vmatprep.subr.mxu0 0.0
    %5763 = vmatpush1.msra.mxu0 0.0
    %5764 = vmatprep.subr.mxu0 0.0
    %5765 = vmatpush1.msra.mxu0 0.0
    %5766 = vmatprep.subr.mxu0 0.0
    %5767 = vmatpush1.msra.mxu0 0.0
    %5768 = vmatprep.subr.mxu0 0.0
    %5769 = vmatpush1.msra.mxu0 0.0
    %5770 = vmatprep.subr.mxu0 0.0
    %5771 = vmatpush1.msra.mxu0 0.0
    %5772 = vmatprep.subr.mxu0 0.0
    %5773 = vmatpush1.msra.mxu0 0.0
    %5774 = vmatprep.subr.mxu0 0.0
    %5775 = vmatpush1.msra.mxu0 0.0
    %5776 = vmatprep.subr.mxu0 0.0
    %5777 = vmatpush1.msra.mxu0 0.0
    %5778 = vmatprep.subr.mxu0 0.0
    %5779 = vmatpush1.msra.mxu0 0.0
    %5780 = vmatprep.subr.mxu0 0.0
    %5781 = vmatpush1.msra.mxu0 0.0
    %5782 = vmatprep.subr.mxu0 0.0
    %5783 = vmatpush1.msra.mxu0 0.0
    %5784 = vmatprep.subr.mxu0 0.0
    %5785 = vmatpush1.msra.mxu0 0.0
    %5786 = vmatprep.mubr.f32.mxu0 0.0
    %v5787 = vand.u32 %v5712, 4294901760
    %v5788 = vsub.f32 %v5712, %v5787
    %v5789 = vand.u32 %v5788, 4294901760
    %v5790 = vsub.f32 %v5788, %v5789
    %v5791 = vand.u32 %v5790, 4294901760
    %5792 = vmatmul.mubr.f32.gmra.mrb[0].mxu0 %v5791
    %v5793 = vpop.f32.mrb[0].mxu0
    %v5794 = vadd.f32 %v91, %v5793
    %v5795 = vpop.f32.mrb[0].mxu0
    %5796 = vdwg.mxu0
    %5797 = vmatprep.subr.mxu0 0.0
    %v5798 = vand.u32 %v49, 4294901760
    %v5799 = vsub.f32 %v49, %v5798
    %v5800 = vand.u32 %v5799, 4294901760
    %v5801 = vsub.f32 %v5799, %v5800
    %v5802 = vand.u32 %v5801, 4294901760
    %5803 = vmatpush1.msra.mxu0 %v5802
    %5804 = vmatprep.subr.mxu0 0.0
    %v5805 = vand.u32 %v50, 4294901760
    %v5806 = vsub.f32 %v50, %v5805
    %v5807 = vand.u32 %v5806, 4294901760
    %v5808 = vsub.f32 %v5806, %v5807
    %v5809 = vand.u32 %v5808, 4294901760
    %5810 = vmatpush1.msra.mxu0 %v5809
    %5811 = vmatprep.subr.mxu0 0.0
    %v5812 = vand.u32 %v51, 4294901760
    %v5813 = vsub.f32 %v51, %v5812
    %v5814 = vand.u32 %v5813, 4294901760
    %v5815 = vsub.f32 %v5813, %v5814
    %v5816 = vand.u32 %v5815, 4294901760
    %5817 = vmatpush1.msra.mxu0 %v5816
    %5818 = vmatprep.subr.mxu0 0.0
    %v5819 = vand.u32 %v52, 4294901760
    %v5820 = vsub.f32 %v52, %v5819
    %v5821 = vand.u32 %v5820, 4294901760
    %v5822 = vsub.f32 %v5820, %v5821
    %v5823 = vand.u32 %v5822, 4294901760
    %5824 = vmatpush1.msra.mxu0 %v5823
    %5825 = vmatprep.subr.mxu0 0.0
    %v5826 = vand.u32 %v53, 4294901760
    %v5827 = vsub.f32 %v53, %v5826
    %v5828 = vand.u32 %v5827, 4294901760
    %v5829 = vsub.f32 %v5827, %v5828
    %v5830 = vand.u32 %v5829, 4294901760
    %5831 = vmatpush1.msra.mxu0 %v5830
    %5832 = vmatprep.subr.mxu0 0.0
    %v5833 = vand.u32 %v54, 4294901760
    %v5834 = vsub.f32 %v54, %v5833
    %v5835 = vand.u32 %v5834, 4294901760
    %v5836 = vsub.f32 %v5834, %v5835
    %v5837 = vand.u32 %v5836, 4294901760
    %5838 = vmatpush1.msra.mxu0 %v5837
    %5839 = vmatprep.subr.mxu0 0.0
    %v5840 = vand.u32 %v55, 4294901760
    %v5841 = vsub.f32 %v55, %v5840
    %v5842 = vand.u32 %v5841, 4294901760
    %v5843 = vsub.f32 %v5841, %v5842
    %v5844 = vand.u32 %v5843, 4294901760
    %5845 = vmatpush1.msra.mxu0 %v5844
    %5846 = vmatprep.subr.mxu0 0.0
    %v5847 = vand.u32 %v56, 4294901760
    %v5848 = vsub.f32 %v56, %v5847
    %v5849 = vand.u32 %v5848, 4294901760
    %v5850 = vsub.f32 %v5848, %v5849
    %v5851 = vand.u32 %v5850, 4294901760
    %5852 = vmatpush1.msra.mxu0 %v5851
    %5853 = vmatprep.subr.mxu0 0.0
    %5854 = vmatpush1.msra.mxu0 0.0
    %5855 = vmatprep.subr.mxu0 0.0
    %5856 = vmatpush1.msra.mxu0 0.0
    %5857 = vmatprep.subr.mxu0 0.0
    %5858 = vmatpush1.msra.mxu0 0.0
    %5859 = vmatprep.subr.mxu0 0.0
    %5860 = vmatpush1.msra.mxu0 0.0
    %5861 = vmatprep.subr.mxu0 0.0
    %5862 = vmatpush1.msra.mxu0 0.0
    %5863 = vmatprep.subr.mxu0 0.0
    %5864 = vmatpush1.msra.mxu0 0.0
    %5865 = vmatprep.subr.mxu0 0.0
    %5866 = vmatpush1.msra.mxu0 0.0
    %5867 = vmatprep.subr.mxu0 0.0
    %5868 = vmatpush1.msra.mxu0 0.0
    %5869 = vmatprep.subr.mxu0 0.0
    %5870 = vmatpush1.msra.mxu0 0.0
    %5871 = vmatprep.subr.mxu0 0.0
    %5872 = vmatpush1.msra.mxu0 0.0
    %5873 = vmatprep.subr.mxu0 0.0
    %5874 = vmatpush1.msra.mxu0 0.0
    %5875 = vmatprep.subr.mxu0 0.0
    %5876 = vmatpush1.msra.mxu0 0.0
    %5877 = vmatprep.subr.mxu0 0.0
    %5878 = vmatpush1.msra.mxu0 0.0
    %5879 = vmatprep.subr.mxu0 0.0
    %5880 = vmatpush1.msra.mxu0 0.0
    %5881 = vmatprep.subr.mxu0 0.0
    %5882 = vmatpush1.msra.mxu0 0.0
    %5883 = vmatprep.subr.mxu0 0.0
    %5884 = vmatpush1.msra.mxu0 0.0
    %5885 = vmatprep.subr.mxu0 0.0
    %5886 = vmatpush1.msra.mxu0 0.0
    %5887 = vmatprep.subr.mxu0 0.0
    %5888 = vmatpush1.msra.mxu0 0.0
    %5889 = vmatprep.subr.mxu0 0.0
    %5890 = vmatpush1.msra.mxu0 0.0
    %5891 = vmatprep.subr.mxu0 0.0
    %5892 = vmatpush1.msra.mxu0 0.0
    %5893 = vmatprep.subr.mxu0 0.0
    %5894 = vmatpush1.msra.mxu0 0.0
    %5895 = vmatprep.subr.mxu0 0.0
    %5896 = vmatpush1.msra.mxu0 0.0
    %5897 = vmatprep.subr.mxu0 0.0
    %5898 = vmatpush1.msra.mxu0 0.0
    %5899 = vmatprep.subr.mxu0 0.0
    %5900 = vmatpush1.msra.mxu0 0.0
    %5901 = vmatprep.mubr.f32.mxu0 0.0
    %v5902 = vand.u32 %v5712, 4294901760
    %5903 = vmatmul.mubr.f32.gmra.mrb[0].mxu0 %v5902
    %v5904 = vpop.f32.mrb[0].mxu0
    %v5905 = vadd.f32 %v5794, %v5904
    %v5906 = vpop.f32.mrb[0].mxu0
    %5907 = vdwg.mxu0
    %5908 = vmatprep.subr.mxu0 0.0
    %v5909 = vand.u32 %v49, 4294901760
    %v5910 = vsub.f32 %v49, %v5909
    %5911 = vmatpush1.msra.mxu0 %v5910
    %5912 = vmatprep.subr.mxu0 0.0
    %v5913 = vand.u32 %v50, 4294901760
    %v5914 = vsub.f32 %v50, %v5913
    %5915 = vmatpush1.msra.mxu0 %v5914
    %5916 = vmatprep.subr.mxu0 0.0
    %v5917 = vand.u32 %v51, 4294901760
    %v5918 = vsub.f32 %v51, %v5917
    %5919 = vmatpush1.msra.mxu0 %v5918
    %5920 = vmatprep.subr.mxu0 0.0
    %v5921 = vand.u32 %v52, 4294901760
    %v5922 = vsub.f32 %v52, %v5921
    %5923 = vmatpush1.msra.mxu0 %v5922
    %5924 = vmatprep.subr.mxu0 0.0
    %v5925 = vand.u32 %v53, 4294901760
    %v5926 = vsub.f32 %v53, %v5925
    %5927 = vmatpush1.msra.mxu0 %v5926
    %5928 = vmatprep.subr.mxu0 0.0
    %v5929 = vand.u32 %v54, 4294901760
    %v5930 = vsub.f32 %v54, %v5929
    %5931 = vmatpush1.msra.mxu0 %v5930
    %5932 = vmatprep.subr.mxu0 0.0
    %v5933 = vand.u32 %v55, 4294901760
    %v5934 = vsub.f32 %v55, %v5933
    %5935 = vmatpush1.msra.mxu0 %v5934
    %5936 = vmatprep.subr.mxu0 0.0
    %v5937 = vand.u32 %v56, 4294901760
    %v5938 = vsub.f32 %v56, %v5937
    %5939 = vmatpush1.msra.mxu0 %v5938
    %5940 = vmatprep.subr.mxu0 0.0
    %5941 = vmatpush1.msra.mxu0 0.0
    %5942 = vmatprep.subr.mxu0 0.0
    %5943 = vmatpush1.msra.mxu0 0.0
    %5944 = vmatprep.subr.mxu0 0.0
    %5945 = vmatpush1.msra.mxu0 0.0
    %5946 = vmatprep.subr.mxu0 0.0
    %5947 = vmatpush1.msra.mxu0 0.0
    %5948 = vmatprep.subr.mxu0 0.0
    %5949 = vmatpush1.msra.mxu0 0.0
    %5950 = vmatprep.subr.mxu0 0.0
    %5951 = vmatpush1.msra.mxu0 0.0
    %5952 = vmatprep.subr.mxu0 0.0
    %5953 = vmatpush1.msra.mxu0 0.0
    %5954 = vmatprep.subr.mxu0 0.0
    %5955 = vmatpush1.msra.mxu0 0.0
    %5956 = vmatprep.subr.mxu0 0.0
    %5957 = vmatpush1.msra.mxu0 0.0
    %5958 = vmatprep.subr.mxu0 0.0
    %5959 = vmatpush1.msra.mxu0 0.0
    %5960 = vmatprep.subr.mxu0 0.0
    %5961 = vmatpush1.msra.mxu0 0.0
    %5962 = vmatprep.subr.mxu0 0.0
    %5963 = vmatpush1.msra.mxu0 0.0
    %5964 = vmatprep.subr.mxu0 0.0
    %5965 = vmatpush1.msra.mxu0 0.0
    %5966 = vmatprep.subr.mxu0 0.0
    %5967 = vmatpush1.msra.mxu0 0.0
    %5968 = vmatprep.subr.mxu0 0.0
    %5969 = vmatpush1.msra.mxu0 0.0
    %5970 = vmatprep.subr.mxu0 0.0
    %5971 = vmatpush1.msra.mxu0 0.0
    %5972 = vmatprep.subr.mxu0 0.0
    %5973 = vmatpush1.msra.mxu0 0.0
    %5974 = vmatprep.subr.mxu0 0.0
    %5975 = vmatpush1.msra.mxu0 0.0
    %5976 = vmatprep.subr.mxu0 0.0
    %5977 = vmatpush1.msra.mxu0 0.0
    %5978 = vmatprep.subr.mxu0 0.0
    %5979 = vmatpush1.msra.mxu0 0.0
    %5980 = vmatprep.subr.mxu0 0.0
    %5981 = vmatpush1.msra.mxu0 0.0
    %5982 = vmatprep.subr.mxu0 0.0
    %5983 = vmatpush1.msra.mxu0 0.0
    %5984 = vmatprep.subr.mxu0 0.0
    %5985 = vmatpush1.msra.mxu0 0.0
    %5986 = vmatprep.subr.mxu0 0.0
    %5987 = vmatpush1.msra.mxu0 0.0
    %5988 = vmatprep.mubr.f32.mxu0 0.0
    %v5989 = vand.u32 %v5712, 4294901760
    %v5990 = vsub.f32 %v5712, %v5989
    %5991 = vmatmul.mubr.f32.gmra.mrb[0].mxu0 %v5990
    %v5992 = vpop.f32.mrb[0].mxu0
    %v5993 = vadd.f32 %v5905, %v5992
    %v5994 = vpop.f32.mrb[0].mxu0
    %5995 = vdwg.mxu0
    %5996 = vmatprep.subr.mxu0 0.0
    %v5997 = vand.u32 %v49, 4294901760
    %5998 = vmatpush1.msra.mxu0 %v5997
    %5999 = vmatprep.subr.mxu0 0.0
    %v6000 = vand.u32 %v50, 4294901760
    %6001 = vmatpush1.msra.mxu0 %v6000
    %6002 = vmatprep.subr.mxu0 0.0
    %v6003 = vand.u32 %v51, 4294901760
    %6004 = vmatpush1.msra.mxu0 %v6003
    %6005 = vmatprep.subr.mxu0 0.0
    %v6006 = vand.u32 %v52, 4294901760
    %6007 = vmatpush1.msra.mxu0 %v6006
    %6008 = vmatprep.subr.mxu0 0.0
    %v6009 = vand.u32 %v53, 4294901760
    %6010 = vmatpush1.msra.mxu0 %v6009
    %6011 = vmatprep.subr.mxu0 0.0
    %v6012 = vand.u32 %v54, 4294901760
    %6013 = vmatpush1.msra.mxu0 %v6012
    %6014 = vmatprep.subr.mxu0 0.0
    %v6015 = vand.u32 %v55, 4294901760
    %6016 = vmatpush1.msra.mxu0 %v6015
    %6017 = vmatprep.subr.mxu0 0.0
    %v6018 = vand.u32 %v56, 4294901760
    %6019 = vmatpush1.msra.mxu0 %v6018
    %6020 = vmatprep.subr.mxu0 0.0
    %6021 = vmatpush1.msra.mxu0 0.0
    %6022 = vmatprep.subr.mxu0 0.0
    %6023 = vmatpush1.msra.mxu0 0.0
    %6024 = vmatprep.subr.mxu0 0.0
    %6025 = vmatpush1.msra.mxu0 0.0
    %6026 = vmatprep.subr.mxu0 0.0
    %6027 = vmatpush1.msra.mxu0 0.0
    %6028 = vmatprep.subr.mxu0 0.0
    %6029 = vmatpush1.msra.mxu0 0.0
    %6030 = vmatprep.subr.mxu0 0.0
    %6031 = vmatpush1.msra.mxu0 0.0
    %6032 = vmatprep.subr.mxu0 0.0
    %6033 = vmatpush1.msra.mxu0 0.0
    %6034 = vmatprep.subr.mxu0 0.0
    %6035 = vmatpush1.msra.mxu0 0.0
    %6036 = vmatprep.subr.mxu0 0.0
    %6037 = vmatpush1.msra.mxu0 0.0
    %6038 = vmatprep.subr.mxu0 0.0
    %6039 = vmatpush1.msra.mxu0 0.0
    %6040 = vmatprep.subr.mxu0 0.0
    %6041 = vmatpush1.msra.mxu0 0.0
    %6042 = vmatprep.subr.mxu0 0.0
    %6043 = vmatpush1.msra.mxu0 0.0
    %6044 = vmatprep.subr.mxu0 0.0
    %6045 = vmatpush1.msra.mxu0 0.0
    %6046 = vmatprep.subr.mxu0 0.0
    %6047 = vmatpush1.msra.mxu0 0.0
    %6048 = vmatprep.subr.mxu0 0.0
    %6049 = vmatpush1.msra.mxu0 0.0
    %6050 = vmatprep.subr.mxu0 0.0
    %6051 = vmatpush1.msra.mxu0 0.0
    %6052 = vmatprep.subr.mxu0 0.0
    %6053 = vmatpush1.msra.mxu0 0.0
    %6054 = vmatprep.subr.mxu0 0.0
    %6055 = vmatpush1.msra.mxu0 0.0
    %6056 = vmatprep.subr.mxu0 0.0
    %6057 = vmatpush1.msra.mxu0 0.0
    %6058 = vmatprep.subr.mxu0 0.0
    %6059 = vmatpush1.msra.mxu0 0.0
    %6060 = vmatprep.subr.mxu0 0.0
    %6061 = vmatpush1.msra.mxu0 0.0
    %6062 = vmatprep.subr.mxu0 0.0
    %6063 = vmatpush1.msra.mxu0 0.0
    %6064 = vmatprep.subr.mxu0 0.0
    %6065 = vmatpush1.msra.mxu0 0.0
    %6066 = vmatprep.subr.mxu0 0.0
    %6067 = vmatpush1.msra.mxu0 0.0
    %6068 = vmatprep.mubr.f32.mxu0 0.0
    %v6069 = vand.u32 %v5712, 4294901760
    %v6070 = vsub.f32 %v5712, %v6069
    %v6071 = vand.u32 %v6070, 4294901760
    %6072 = vmatmul.mubr.f32.gmra.mrb[0].mxu0 %v6071
    %v6073 = vpop.f32.mrb[0].mxu0
    %v6074 = vadd.f32 %v5993, %v6073
    %v6075 = vpop.f32.mrb[0].mxu0
    %6076 = vdwg.mxu0
    %6077 = vmatprep.subr.mxu0 0.0
    %v6078 = vand.u32 %v49, 4294901760
    %v6079 = vsub.f32 %v49, %v6078
    %v6080 = vand.u32 %v6079, 4294901760
    %6081 = vmatpush1.msra.mxu0 %v6080
    %6082 = vmatprep.subr.mxu0 0.0
    %v6083 = vand.u32 %v50, 4294901760
    %v6084 = vsub.f32 %v50, %v6083
    %v6085 = vand.u32 %v6084, 4294901760
    %6086 = vmatpush1.msra.mxu0 %v6085
    %6087 = vmatprep.subr.mxu0 0.0
    %v6088 = vand.u32 %v51, 4294901760
    %v6089 = vsub.f32 %v51, %v6088
    %v6090 = vand.u32 %v6089, 4294901760
    %6091 = vmatpush1.msra.mxu0 %v6090
    %6092 = vmatprep.subr.mxu0 0.0
    %v6093 = vand.u32 %v52, 4294901760
    %v6094 = vsub.f32 %v52, %v6093
    %v6095 = vand.u32 %v6094, 4294901760
    %6096 = vmatpush1.msra.mxu0 %v6095
    %6097 = vmatprep.subr.mxu0 0.0
    %v6098 = vand.u32 %v53, 4294901760
    %v6099 = vsub.f32 %v53, %v6098
    %v6100 = vand.u32 %v6099, 4294901760
    %6101 = vmatpush1.msra.mxu0 %v6100
    %6102 = vmatprep.subr.mxu0 0.0
    %v6103 = vand.u32 %v54, 4294901760
    %v6104 = vsub.f32 %v54, %v6103
    %v6105 = vand.u32 %v6104, 4294901760
    %6106 = vmatpush1.msra.mxu0 %v6105
    %6107 = vmatprep.subr.mxu0 0.0
    %v6108 = vand.u32 %v55, 4294901760
    %v6109 = vsub.f32 %v55, %v6108
    %v6110 = vand.u32 %v6109, 4294901760
    %6111 = vmatpush1.msra.mxu0 %v6110
    %6112 = vmatprep.subr.mxu0 0.0
    %v6113 = vand.u32 %v56, 4294901760
    %v6114 = vsub.f32 %v56, %v6113
    %v6115 = vand.u32 %v6114, 4294901760
    %6116 = vmatpush1.msra.mxu0 %v6115
    %6117 = vmatprep.subr.mxu0 0.0
    %6118 = vmatpush1.msra.mxu0 0.0
    %6119 = vmatprep.subr.mxu0 0.0
    %6120 = vmatpush1.msra.mxu0 0.0
    %6121 = vmatprep.subr.mxu0 0.0
    %6122 = vmatpush1.msra.mxu0 0.0
    %6123 = vmatprep.subr.mxu0 0.0
    %6124 = vmatpush1.msra.mxu0 0.0
    %6125 = vmatprep.subr.mxu0 0.0
    %6126 = vmatpush1.msra.mxu0 0.0
    %6127 = vmatprep.subr.mxu0 0.0
    %6128 = vmatpush1.msra.mxu0 0.0
    %6129 = vmatprep.subr.mxu0 0.0
    %6130 = vmatpush1.msra.mxu0 0.0
    %6131 = vmatprep.subr.mxu0 0.0
    %6132 = vmatpush1.msra.mxu0 0.0
    %6133 = vmatprep.subr.mxu0 0.0
    %6134 = vmatpush1.msra.mxu0 0.0
    %6135 = vmatprep.subr.mxu0 0.0
    %6136 = vmatpush1.msra.mxu0 0.0
    %6137 = vmatprep.subr.mxu0 0.0
    %6138 = vmatpush1.msra.mxu0 0.0
    %6139 = vmatprep.subr.mxu0 0.0
    %6140 = vmatpush1.msra.mxu0 0.0
    %6141 = vmatprep.subr.mxu0 0.0
    %6142 = vmatpush1.msra.mxu0 0.0
    %6143 = vmatprep.subr.mxu0 0.0
    %6144 = vmatpush1.msra.mxu0 0.0
    %6145 = vmatprep.subr.mxu0 0.0
    %6146 = vmatpush1.msra.mxu0 0.0
    %6147 = vmatprep.subr.mxu0 0.0
    %6148 = vmatpush1.msra.mxu0 0.0
    %6149 = vmatprep.subr.mxu0 0.0
    %6150 = vmatpush1.msra.mxu0 0.0
    %6151 = vmatprep.subr.mxu0 0.0
    %6152 = vmatpush1.msra.mxu0 0.0
    %6153 = vmatprep.subr.mxu0 0.0
    %6154 = vmatpush1.msra.mxu0 0.0
    %6155 = vmatprep.subr.mxu0 0.0
    %6156 = vmatpush1.msra.mxu0 0.0
    %6157 = vmatprep.subr.mxu0 0.0
    %6158 = vmatpush1.msra.mxu0 0.0
    %6159 = vmatprep.subr.mxu0 0.0
    %6160 = vmatpush1.msra.mxu0 0.0
    %6161 = vmatprep.subr.mxu0 0.0
    %6162 = vmatpush1.msra.mxu0 0.0
    %6163 = vmatprep.subr.mxu0 0.0
    %6164 = vmatpush1.msra.mxu0 0.0
    %6165 = vmatprep.mubr.f32.mxu0 0.0
    %v6166 = vand.u32 %v5712, 4294901760
    %6167 = vmatmul.mubr.f32.gmra.mrb[0].mxu0 %v6166
    %v6168 = vpop.f32.mrb[0].mxu0
    %v6169 = vadd.f32 %v6074, %v6168
    %v6170 = vpop.f32.mrb[0].mxu0
    %6171 = vdwg.mxu0
    %6172 = vmatprep.subr.mxu0 0.0
    %v6173 = vand.u32 %v49, 4294901760
    %6174 = vmatpush1.msra.mxu0 %v6173
    %6175 = vmatprep.subr.mxu0 0.0
    %v6176 = vand.u32 %v50, 4294901760
    %6177 = vmatpush1.msra.mxu0 %v6176
    %6178 = vmatprep.subr.mxu0 0.0
    %v6179 = vand.u32 %v51, 4294901760
    %6180 = vmatpush1.msra.mxu0 %v6179
    %6181 = vmatprep.subr.mxu0 0.0
    %v6182 = vand.u32 %v52, 4294901760
    %6183 = vmatpush1.msra.mxu0 %v6182
    %6184 = vmatprep.subr.mxu0 0.0
    %v6185 = vand.u32 %v53, 4294901760
    %6186 = vmatpush1.msra.mxu0 %v6185
    %6187 = vmatprep.subr.mxu0 0.0
    %v6188 = vand.u32 %v54, 4294901760
    %6189 = vmatpush1.msra.mxu0 %v6188
    %6190 = vmatprep.subr.mxu0 0.0
    %v6191 = vand.u32 %v55, 4294901760
    %6192 = vmatpush1.msra.mxu0 %v6191
    %6193 = vmatprep.subr.mxu0 0.0
    %v6194 = vand.u32 %v56, 4294901760
    %6195 = vmatpush1.msra.mxu0 %v6194
    %6196 = vmatprep.subr.mxu0 0.0
    %6197 = vmatpush1.msra.mxu0 0.0
    %6198 = vmatprep.subr.mxu0 0.0
    %6199 = vmatpush1.msra.mxu0 0.0
    %6200 = vmatprep.subr.mxu0 0.0
    %6201 = vmatpush1.msra.mxu0 0.0
    %6202 = vmatprep.subr.mxu0 0.0
    %6203 = vmatpush1.msra.mxu0 0.0
    %6204 = vmatprep.subr.mxu0 0.0
    %6205 = vmatpush1.msra.mxu0 0.0
    %6206 = vmatprep.subr.mxu0 0.0
    %6207 = vmatpush1.msra.mxu0 0.0
    %6208 = vmatprep.subr.mxu0 0.0
    %6209 = vmatpush1.msra.mxu0 0.0
    %6210 = vmatprep.subr.mxu0 0.0
    %6211 = vmatpush1.msra.mxu0 0.0
    %6212 = vmatprep.subr.mxu0 0.0
    %6213 = vmatpush1.msra.mxu0 0.0
    %6214 = vmatprep.subr.mxu0 0.0
    %6215 = vmatpush1.msra.mxu0 0.0
    %6216 = vmatprep.subr.mxu0 0.0
    %6217 = vmatpush1.msra.mxu0 0.0
    %6218 = vmatprep.subr.mxu0 0.0
    %6219 = vmatpush1.msra.mxu0 0.0
    %6220 = vmatprep.subr.mxu0 0.0
    %6221 = vmatpush1.msra.mxu0 0.0
    %6222 = vmatprep.subr.mxu0 0.0
    %6223 = vmatpush1.msra.mxu0 0.0
    %6224 = vmatprep.subr.mxu0 0.0
    %6225 = vmatpush1.msra.mxu0 0.0
    %6226 = vmatprep.subr.mxu0 0.0
    %6227 = vmatpush1.msra.mxu0 0.0
    %6228 = vmatprep.subr.mxu0 0.0
    %6229 = vmatpush1.msra.mxu0 0.0
    %6230 = vmatprep.subr.mxu0 0.0
    %6231 = vmatpush1.msra.mxu0 0.0
    %6232 = vmatprep.subr.mxu0 0.0
    %6233 = vmatpush1.msra.mxu0 0.0
    %6234 = vmatprep.subr.mxu0 0.0
    %6235 = vmatpush1.msra.mxu0 0.0
    %6236 = vmatprep.subr.mxu0 0.0
    %6237 = vmatpush1.msra.mxu0 0.0
    %6238 = vmatprep.subr.mxu0 0.0
    %6239 = vmatpush1.msra.mxu0 0.0
    %6240 = vmatprep.subr.mxu0 0.0
    %6241 = vmatpush1.msra.mxu0 0.0
    %6242 = vmatprep.subr.mxu0 0.0
    %6243 = vmatpush1.msra.mxu0 0.0
    %6244 = vmatprep.mubr.f32.mxu0 0.0
    %v6245 = vand.u32 %v5712, 4294901760
    %6246 = vmatmul.mubr.f32.gmra.mrb[0].mxu0 %v6245
    %v6247 = vpop.f32.mrb[0].mxu0
    %v6248 = vadd.f32 %v6169, %v6247
    %v6249 = vpop.f32.mrb[0].mxu0
    %6250 = vdwg.mxu0
    %v6251 = vxor.u32 %v6248, 2147483648
    %v6252 = vmul.f32 %v6251, 1.442695
    %v6253 = vpow.pop %v6252
    %v6254 = vadd.f32 %v6253, 1.0
    %v6255 = vrcp.pop %v6254
    %v6256 = vmul.f32 1.0, %v6255
    %v6257 = vtanh.pop %v6248
    %v6258 = vmul.f32 %v6256, %v5147
    %6260 = vrot.lane.b32.xlu0 %v6257, 64
    %v6261 = vpop.permute.xlu0 %6260
    %v6263 = vmul.f32 %v6256, %v6261
    %6265 = vrot.lane.b32.xlu0 %v6263, 32
    %v6266 = vpop.permute.xlu0 %6265
    %v6268 = vadd.f32 %v6258, %v6266
    %v6269 = vtanh.pop %v6268
    %6271 = vrot.lane.b32.xlu0 %v6269, 64
    %v6272 = vpop.permute.xlu0 %6271
    %v6274 = vmul.f32 %v6256, %v6272
    %6276 = vrot.lane.b32.xlu0 %v6274, 32
    %v6277 = vpop.permute.xlu0 %6276
    %v6278 = vsel %vm85, %v6277, 0
    %6280 = vmatprep.subr.mxu0 0.0
    %v6281 = vand.u32 %v58, 4294901760
    %6282 = vmatpush1.msra.mxu0 %v6281
    %6283 = vmatprep.subr.mxu0 0.0
    %v6284 = vand.u32 %v59, 4294901760
    %6285 = vmatpush1.msra.mxu0 %v6284
    %6286 = vmatprep.subr.mxu0 0.0
    %v6287 = vand.u32 %v60, 4294901760
    %6288 = vmatpush1.msra.mxu0 %v6287
    %6289 = vmatprep.subr.mxu0 0.0
    %v6290 = vand.u32 %v61, 4294901760
    %6291 = vmatpush1.msra.mxu0 %v6290
    %6292 = vmatprep.subr.mxu0 0.0
    %6293 = vmatpush1.msra.mxu0 0.0
    %6294 = vmatprep.subr.mxu0 0.0
    %6295 = vmatpush1.msra.mxu0 0.0
    %6296 = vmatprep.subr.mxu0 0.0
    %6297 = vmatpush1.msra.mxu0 0.0
    %6298 = vmatprep.subr.mxu0 0.0
    %6299 = vmatpush1.msra.mxu0 0.0
    %6300 = vmatprep.subr.mxu0 0.0
    %6301 = vmatpush1.msra.mxu0 0.0
    %6302 = vmatprep.subr.mxu0 0.0
    %6303 = vmatpush1.msra.mxu0 0.0
    %6304 = vmatprep.subr.mxu0 0.0
    %6305 = vmatpush1.msra.mxu0 0.0
    %6306 = vmatprep.subr.mxu0 0.0
    %6307 = vmatpush1.msra.mxu0 0.0
    %6308 = vmatprep.subr.mxu0 0.0
    %6309 = vmatpush1.msra.mxu0 0.0
    %6310 = vmatprep.subr.mxu0 0.0
    %6311 = vmatpush1.msra.mxu0 0.0
    %6312 = vmatprep.subr.mxu0 0.0
    %6313 = vmatpush1.msra.mxu0 0.0
    %6314 = vmatprep.subr.mxu0 0.0
    %6315 = vmatpush1.msra.mxu0 0.0
    %6316 = vmatprep.subr.mxu0 0.0
    %6317 = vmatpush1.msra.mxu0 0.0
    %6318 = vmatprep.subr.mxu0 0.0
    %6319 = vmatpush1.msra.mxu0 0.0
    %6320 = vmatprep.subr.mxu0 0.0
    %6321 = vmatpush1.msra.mxu0 0.0
    %6322 = vmatprep.subr.mxu0 0.0
    %6323 = vmatpush1.msra.mxu0 0.0
    %6324 = vmatprep.subr.mxu0 0.0
    %6325 = vmatpush1.msra.mxu0 0.0
    %6326 = vmatprep.subr.mxu0 0.0
    %6327 = vmatpush1.msra.mxu0 0.0
    %6328 = vmatprep.subr.mxu0 0.0
    %6329 = vmatpush1.msra.mxu0 0.0
    %6330 = vmatprep.subr.mxu0 0.0
    %6331 = vmatpush1.msra.mxu0 0.0
    %6332 = vmatprep.subr.mxu0 0.0
    %6333 = vmatpush1.msra.mxu0 0.0
    %6334 = vmatprep.subr.mxu0 0.0
    %6335 = vmatpush1.msra.mxu0 0.0
    %6336 = vmatprep.subr.mxu0 0.0
    %6337 = vmatpush1.msra.mxu0 0.0
    %6338 = vmatprep.subr.mxu0 0.0
    %6339 = vmatpush1.msra.mxu0 0.0
    %6340 = vmatprep.subr.mxu0 0.0
    %6341 = vmatpush1.msra.mxu0 0.0
    %6342 = vmatprep.subr.mxu0 0.0
    %6343 = vmatpush1.msra.mxu0 0.0
    %6344 = vmatprep.subr.mxu0 0.0
    %6345 = vmatpush1.msra.mxu0 0.0
    %6346 = vmatprep.subr.mxu0 0.0
    %6347 = vmatpush1.msra.mxu0 0.0
    %6348 = vmatprep.mubr.f32.mxu0 0.0
    %v6349 = vand.u32 %v6278, 4294901760
    %v6350 = vsub.f32 %v6278, %v6349
    %v6351 = vand.u32 %v6350, 4294901760
    %v6352 = vsub.f32 %v6350, %v6351
    %v6353 = vand.u32 %v6352, 4294901760
    %6354 = vmatmul.mubr.f32.gmra.mrb[0].mxu0 %v6353
    %v6355 = vpop.f32.mrb[0].mxu0
    %v6356 = vadd.f32 %v666, %v6355
    %v6357 = vpop.f32.mrb[0].mxu0
    %6358 = vdwg.mxu0
    %6359 = vmatprep.subr.mxu0 0.0
    %v6360 = vand.u32 %v58, 4294901760
    %v6361 = vsub.f32 %v58, %v6360
    %v6362 = vand.u32 %v6361, 4294901760
    %v6363 = vsub.f32 %v6361, %v6362
    %v6364 = vand.u32 %v6363, 4294901760
    %6365 = vmatpush1.msra.mxu0 %v6364
    %6366 = vmatprep.subr.mxu0 0.0
    %v6367 = vand.u32 %v59, 4294901760
    %v6368 = vsub.f32 %v59, %v6367
    %v6369 = vand.u32 %v6368, 4294901760
    %v6370 = vsub.f32 %v6368, %v6369
    %v6371 = vand.u32 %v6370, 4294901760
    %6372 = vmatpush1.msra.mxu0 %v6371
    %6373 = vmatprep.subr.mxu0 0.0
    %v6374 = vand.u32 %v60, 4294901760
    %v6375 = vsub.f32 %v60, %v6374
    %v6376 = vand.u32 %v6375, 4294901760
    %v6377 = vsub.f32 %v6375, %v6376
    %v6378 = vand.u32 %v6377, 4294901760
    %6379 = vmatpush1.msra.mxu0 %v6378
    %6380 = vmatprep.subr.mxu0 0.0
    %v6381 = vand.u32 %v61, 4294901760
    %v6382 = vsub.f32 %v61, %v6381
    %v6383 = vand.u32 %v6382, 4294901760
    %v6384 = vsub.f32 %v6382, %v6383
    %v6385 = vand.u32 %v6384, 4294901760
    %6386 = vmatpush1.msra.mxu0 %v6385
    %6387 = vmatprep.subr.mxu0 0.0
    %6388 = vmatpush1.msra.mxu0 0.0
    %6389 = vmatprep.subr.mxu0 0.0
    %6390 = vmatpush1.msra.mxu0 0.0
    %6391 = vmatprep.subr.mxu0 0.0
    %6392 = vmatpush1.msra.mxu0 0.0
    %6393 = vmatprep.subr.mxu0 0.0
    %6394 = vmatpush1.msra.mxu0 0.0
    %6395 = vmatprep.subr.mxu0 0.0
    %6396 = vmatpush1.msra.mxu0 0.0
    %6397 = vmatprep.subr.mxu0 0.0
    %6398 = vmatpush1.msra.mxu0 0.0
    %6399 = vmatprep.subr.mxu0 0.0
    %6400 = vmatpush1.msra.mxu0 0.0
    %6401 = vmatprep.subr.mxu0 0.0
    %6402 = vmatpush1.msra.mxu0 0.0
    %6403 = vmatprep.subr.mxu0 0.0
    %6404 = vmatpush1.msra.mxu0 0.0
    %6405 = vmatprep.subr.mxu0 0.0
    %6406 = vmatpush1.msra.mxu0 0.0
    %6407 = vmatprep.subr.mxu0 0.0
    %6408 = vmatpush1.msra.mxu0 0.0
    %6409 = vmatprep.subr.mxu0 0.0
    %6410 = vmatpush1.msra.mxu0 0.0
    %6411 = vmatprep.subr.mxu0 0.0
    %6412 = vmatpush1.msra.mxu0 0.0
    %6413 = vmatprep.subr.mxu0 0.0
    %6414 = vmatpush1.msra.mxu0 0.0
    %6415 = vmatprep.subr.mxu0 0.0
    %6416 = vmatpush1.msra.mxu0 0.0
    %6417 = vmatprep.subr.mxu0 0.0
    %6418 = vmatpush1.msra.mxu0 0.0
    %6419 = vmatprep.subr.mxu0 0.0
    %6420 = vmatpush1.msra.mxu0 0.0
    %6421 = vmatprep.subr.mxu0 0.0
    %6422 = vmatpush1.msra.mxu0 0.0
    %6423 = vmatprep.subr.mxu0 0.0
    %6424 = vmatpush1.msra.mxu0 0.0
    %6425 = vmatprep.subr.mxu0 0.0
    %6426 = vmatpush1.msra.mxu0 0.0
    %6427 = vmatprep.subr.mxu0 0.0
    %6428 = vmatpush1.msra.mxu0 0.0
    %6429 = vmatprep.subr.mxu0 0.0
    %6430 = vmatpush1.msra.mxu0 0.0
    %6431 = vmatprep.subr.mxu0 0.0
    %6432 = vmatpush1.msra.mxu0 0.0
    %6433 = vmatprep.subr.mxu0 0.0
    %6434 = vmatpush1.msra.mxu0 0.0
    %6435 = vmatprep.subr.mxu0 0.0
    %6436 = vmatpush1.msra.mxu0 0.0
    %6437 = vmatprep.subr.mxu0 0.0
    %6438 = vmatpush1.msra.mxu0 0.0
    %6439 = vmatprep.subr.mxu0 0.0
    %6440 = vmatpush1.msra.mxu0 0.0
    %6441 = vmatprep.subr.mxu0 0.0
    %6442 = vmatpush1.msra.mxu0 0.0
    %6443 = vmatprep.mubr.f32.mxu0 0.0
    %v6444 = vand.u32 %v6278, 4294901760
    %6445 = vmatmul.mubr.f32.gmra.mrb[0].mxu0 %v6444
    %v6446 = vpop.f32.mrb[0].mxu0
    %v6447 = vadd.f32 %v6356, %v6446
    %v6448 = vpop.f32.mrb[0].mxu0
    %6449 = vdwg.mxu0
    %6450 = vmatprep.subr.mxu0 0.0
    %v6451 = vand.u32 %v58, 4294901760
    %v6452 = vsub.f32 %v58, %v6451
    %6453 = vmatpush1.msra.mxu0 %v6452
    %6454 = vmatprep.subr.mxu0 0.0
    %v6455 = vand.u32 %v59, 4294901760
    %v6456 = vsub.f32 %v59, %v6455
    %6457 = vmatpush1.msra.mxu0 %v6456
    %6458 = vmatprep.subr.mxu0 0.0
    %v6459 = vand.u32 %v60, 4294901760
    %v6460 = vsub.f32 %v60, %v6459
    %6461 = vmatpush1.msra.mxu0 %v6460
    %6462 = vmatprep.subr.mxu0 0.0
    %v6463 = vand.u32 %v61, 4294901760
    %v6464 = vsub.f32 %v61, %v6463
    %6465 = vmatpush1.msra.mxu0 %v6464
    %6466 = vmatprep.subr.mxu0 0.0
    %6467 = vmatpush1.msra.mxu0 0.0
    %6468 = vmatprep.subr.mxu0 0.0
    %6469 = vmatpush1.msra.mxu0 0.0
    %6470 = vmatprep.subr.mxu0 0.0
    %6471 = vmatpush1.msra.mxu0 0.0
    %6472 = vmatprep.subr.mxu0 0.0
    %6473 = vmatpush1.msra.mxu0 0.0
    %6474 = vmatprep.subr.mxu0 0.0
    %6475 = vmatpush1.msra.mxu0 0.0
    %6476 = vmatprep.subr.mxu0 0.0
    %6477 = vmatpush1.msra.mxu0 0.0
    %6478 = vmatprep.subr.mxu0 0.0
    %6479 = vmatpush1.msra.mxu0 0.0
    %6480 = vmatprep.subr.mxu0 0.0
    %6481 = vmatpush1.msra.mxu0 0.0
    %6482 = vmatprep.subr.mxu0 0.0
    %6483 = vmatpush1.msra.mxu0 0.0
    %6484 = vmatprep.subr.mxu0 0.0
    %6485 = vmatpush1.msra.mxu0 0.0
    %6486 = vmatprep.subr.mxu0 0.0
    %6487 = vmatpush1.msra.mxu0 0.0
    %6488 = vmatprep.subr.mxu0 0.0
    %6489 = vmatpush1.msra.mxu0 0.0
    %6490 = vmatprep.subr.mxu0 0.0
    %6491 = vmatpush1.msra.mxu0 0.0
    %6492 = vmatprep.subr.mxu0 0.0
    %6493 = vmatpush1.msra.mxu0 0.0
    %6494 = vmatprep.subr.mxu0 0.0
    %6495 = vmatpush1.msra.mxu0 0.0
    %6496 = vmatprep.subr.mxu0 0.0
    %6497 = vmatpush1.msra.mxu0 0.0
    %6498 = vmatprep.subr.mxu0 0.0
    %6499 = vmatpush1.msra.mxu0 0.0
    %6500 = vmatprep.subr.mxu0 0.0
    %6501 = vmatpush1.msra.mxu0 0.0
    %6502 = vmatprep.subr.mxu0 0.0
    %6503 = vmatpush1.msra.mxu0 0.0
    %6504 = vmatprep.subr.mxu0 0.0
    %6505 = vmatpush1.msra.mxu0 0.0
    %6506 = vmatprep.subr.mxu0 0.0
    %6507 = vmatpush1.msra.mxu0 0.0
    %6508 = vmatprep.subr.mxu0 0.0
    %6509 = vmatpush1.msra.mxu0 0.0
    %6510 = vmatprep.subr.mxu0 0.0
    %6511 = vmatpush1.msra.mxu0 0.0
    %6512 = vmatprep.subr.mxu0 0.0
    %6513 = vmatpush1.msra.mxu0 0.0
    %6514 = vmatprep.subr.mxu0 0.0
    %6515 = vmatpush1.msra.mxu0 0.0
    %6516 = vmatprep.subr.mxu0 0.0
    %6517 = vmatpush1.msra.mxu0 0.0
    %6518 = vmatprep.subr.mxu0 0.0
    %6519 = vmatpush1.msra.mxu0 0.0
    %6520 = vmatprep.subr.mxu0 0.0
    %6521 = vmatpush1.msra.mxu0 0.0
    %6522 = vmatprep.mubr.f32.mxu0 0.0
    %v6523 = vand.u32 %v6278, 4294901760
    %v6524 = vsub.f32 %v6278, %v6523
    %6525 = vmatmul.mubr.f32.gmra.mrb[0].mxu0 %v6524
    %v6526 = vpop.f32.mrb[0].mxu0
    %v6527 = vadd.f32 %v6447, %v6526
    %v6528 = vpop.f32.mrb[0].mxu0
    %6529 = vdwg.mxu0
    %6530 = vmatprep.subr.mxu0 0.0
    %v6531 = vand.u32 %v58, 4294901760
    %6532 = vmatpush1.msra.mxu0 %v6531
    %6533 = vmatprep.subr.mxu0 0.0
    %v6534 = vand.u32 %v59, 4294901760
    %6535 = vmatpush1.msra.mxu0 %v6534
    %6536 = vmatprep.subr.mxu0 0.0
    %v6537 = vand.u32 %v60, 4294901760
    %6538 = vmatpush1.msra.mxu0 %v6537
    %6539 = vmatprep.subr.mxu0 0.0
    %v6540 = vand.u32 %v61, 4294901760
    %6541 = vmatpush1.msra.mxu0 %v6540
    %6542 = vmatprep.subr.mxu0 0.0
    %6543 = vmatpush1.msra.mxu0 0.0
    %6544 = vmatprep.subr.mxu0 0.0
    %6545 = vmatpush1.msra.mxu0 0.0
    %6546 = vmatprep.subr.mxu0 0.0
    %6547 = vmatpush1.msra.mxu0 0.0
    %6548 = vmatprep.subr.mxu0 0.0
    %6549 = vmatpush1.msra.mxu0 0.0
    %6550 = vmatprep.subr.mxu0 0.0
    %6551 = vmatpush1.msra.mxu0 0.0
    %6552 = vmatprep.subr.mxu0 0.0
    %6553 = vmatpush1.msra.mxu0 0.0
    %6554 = vmatprep.subr.mxu0 0.0
    %6555 = vmatpush1.msra.mxu0 0.0
    %6556 = vmatprep.subr.mxu0 0.0
    %6557 = vmatpush1.msra.mxu0 0.0
    %6558 = vmatprep.subr.mxu0 0.0
    %6559 = vmatpush1.msra.mxu0 0.0
    %6560 = vmatprep.subr.mxu0 0.0
    %6561 = vmatpush1.msra.mxu0 0.0
    %6562 = vmatprep.subr.mxu0 0.0
    %6563 = vmatpush1.msra.mxu0 0.0
    %6564 = vmatprep.subr.mxu0 0.0
    %6565 = vmatpush1.msra.mxu0 0.0
    %6566 = vmatprep.subr.mxu0 0.0
    %6567 = vmatpush1.msra.mxu0 0.0
    %6568 = vmatprep.subr.mxu0 0.0
    %6569 = vmatpush1.msra.mxu0 0.0
    %6570 = vmatprep.subr.mxu0 0.0
    %6571 = vmatpush1.msra.mxu0 0.0
    %6572 = vmatprep.subr.mxu0 0.0
    %6573 = vmatpush1.msra.mxu0 0.0
    %6574 = vmatprep.subr.mxu0 0.0
    %6575 = vmatpush1.msra.mxu0 0.0
    %6576 = vmatprep.subr.mxu0 0.0
    %6577 = vmatpush1.msra.mxu0 0.0
    %6578 = vmatprep.subr.mxu0 0.0
    %6579 = vmatpush1.msra.mxu0 0.0
    %6580 = vmatprep.subr.mxu0 0.0
    %6581 = vmatpush1.msra.mxu0 0.0
    %6582 = vmatprep.subr.mxu0 0.0
    %6583 = vmatpush1.msra.mxu0 0.0
    %6584 = vmatprep.subr.mxu0 0.0
    %6585 = vmatpush1.msra.mxu0 0.0
    %6586 = vmatprep.subr.mxu0 0.0
    %6587 = vmatpush1.msra.mxu0 0.0
    %6588 = vmatprep.subr.mxu0 0.0
    %6589 = vmatpush1.msra.mxu0 0.0
    %6590 = vmatprep.subr.mxu0 0.0
    %6591 = vmatpush1.msra.mxu0 0.0
    %6592 = vmatprep.subr.mxu0 0.0
    %6593 = vmatpush1.msra.mxu0 0.0
    %6594 = vmatprep.subr.mxu0 0.0
    %6595 = vmatpush1.msra.mxu0 0.0
    %6596 = vmatprep.subr.mxu0 0.0
    %6597 = vmatpush1.msra.mxu0 0.0
    %6598 = vmatprep.mubr.f32.mxu0 0.0
    %v6599 = vand.u32 %v6278, 4294901760
    %v6600 = vsub.f32 %v6278, %v6599
    %v6601 = vand.u32 %v6600, 4294901760
    %6602 = vmatmul.mubr.f32.gmra.mrb[0].mxu0 %v6601
    %v6603 = vpop.f32.mrb[0].mxu0
    %v6604 = vadd.f32 %v6527, %v6603
    %v6605 = vpop.f32.mrb[0].mxu0
    %6606 = vdwg.mxu0
    %6607 = vmatprep.subr.mxu0 0.0
    %v6608 = vand.u32 %v58, 4294901760
    %v6609 = vsub.f32 %v58, %v6608
    %v6610 = vand.u32 %v6609, 4294901760
    %6611 = vmatpush1.msra.mxu0 %v6610
    %6612 = vmatprep.subr.mxu0 0.0
    %v6613 = vand.u32 %v59, 4294901760
    %v6614 = vsub.f32 %v59, %v6613
    %v6615 = vand.u32 %v6614, 4294901760
    %6616 = vmatpush1.msra.mxu0 %v6615
    %6617 = vmatprep.subr.mxu0 0.0
    %v6618 = vand.u32 %v60, 4294901760
    %v6619 = vsub.f32 %v60, %v6618
    %v6620 = vand.u32 %v6619, 4294901760
    %6621 = vmatpush1.msra.mxu0 %v6620
    %6622 = vmatprep.subr.mxu0 0.0
    %v6623 = vand.u32 %v61, 4294901760
    %v6624 = vsub.f32 %v61, %v6623
    %v6625 = vand.u32 %v6624, 4294901760
    %6626 = vmatpush1.msra.mxu0 %v6625
    %6627 = vmatprep.subr.mxu0 0.0
    %6628 = vmatpush1.msra.mxu0 0.0
    %6629 = vmatprep.subr.mxu0 0.0
    %6630 = vmatpush1.msra.mxu0 0.0
    %6631 = vmatprep.subr.mxu0 0.0
    %6632 = vmatpush1.msra.mxu0 0.0
    %6633 = vmatprep.subr.mxu0 0.0
    %6634 = vmatpush1.msra.mxu0 0.0
    %6635 = vmatprep.subr.mxu0 0.0
    %6636 = vmatpush1.msra.mxu0 0.0
    %6637 = vmatprep.subr.mxu0 0.0
    %6638 = vmatpush1.msra.mxu0 0.0
    %6639 = vmatprep.subr.mxu0 0.0
    %6640 = vmatpush1.msra.mxu0 0.0
    %6641 = vmatprep.subr.mxu0 0.0
    %6642 = vmatpush1.msra.mxu0 0.0
    %6643 = vmatprep.subr.mxu0 0.0
    %6644 = vmatpush1.msra.mxu0 0.0
    %6645 = vmatprep.subr.mxu0 0.0
    %6646 = vmatpush1.msra.mxu0 0.0
    %6647 = vmatprep.subr.mxu0 0.0
    %6648 = vmatpush1.msra.mxu0 0.0
    %6649 = vmatprep.subr.mxu0 0.0
    %6650 = vmatpush1.msra.mxu0 0.0
    %6651 = vmatprep.subr.mxu0 0.0
    %6652 = vmatpush1.msra.mxu0 0.0
    %6653 = vmatprep.subr.mxu0 0.0
    %6654 = vmatpush1.msra.mxu0 0.0
    %6655 = vmatprep.subr.mxu0 0.0
    %6656 = vmatpush1.msra.mxu0 0.0
    %6657 = vmatprep.subr.mxu0 0.0
    %6658 = vmatpush1.msra.mxu0 0.0
    %6659 = vmatprep.subr.mxu0 0.0
    %6660 = vmatpush1.msra.mxu0 0.0
    %6661 = vmatprep.subr.mxu0 0.0
    %6662 = vmatpush1.msra.mxu0 0.0
    %6663 = vmatprep.subr.mxu0 0.0
    %6664 = vmatpush1.msra.mxu0 0.0
    %6665 = vmatprep.subr.mxu0 0.0
    %6666 = vmatpush1.msra.mxu0 0.0
    %6667 = vmatprep.subr.mxu0 0.0
    %6668 = vmatpush1.msra.mxu0 0.0
    %6669 = vmatprep.subr.mxu0 0.0
    %6670 = vmatpush1.msra.mxu0 0.0
    %6671 = vmatprep.subr.mxu0 0.0
    %6672 = vmatpush1.msra.mxu0 0.0
    %6673 = vmatprep.subr.mxu0 0.0
    %6674 = vmatpush1.msra.mxu0 0.0
    %6675 = vmatprep.subr.mxu0 0.0
    %6676 = vmatpush1.msra.mxu0 0.0
    %6677 = vmatprep.subr.mxu0 0.0
    %6678 = vmatpush1.msra.mxu0 0.0
    %6679 = vmatprep.subr.mxu0 0.0
    %6680 = vmatpush1.msra.mxu0 0.0
    %6681 = vmatprep.subr.mxu0 0.0
    %6682 = vmatpush1.msra.mxu0 0.0
    %6683 = vmatprep.mubr.f32.mxu0 0.0
    %v6684 = vand.u32 %v6278, 4294901760
    %6685 = vmatmul.mubr.f32.gmra.mrb[0].mxu0 %v6684
    %v6686 = vpop.f32.mrb[0].mxu0
    %v6687 = vadd.f32 %v6604, %v6686
    %v6688 = vpop.f32.mrb[0].mxu0
    %6689 = vdwg.mxu0
    %6690 = vmatprep.subr.mxu0 0.0
    %v6691 = vand.u32 %v58, 4294901760
    %6692 = vmatpush1.msra.mxu0 %v6691
    %6693 = vmatprep.subr.mxu0 0.0
    %v6694 = vand.u32 %v59, 4294901760
    %6695 = vmatpush1.msra.mxu0 %v6694
    %6696 = vmatprep.subr.mxu0 0.0
    %v6697 = vand.u32 %v60, 4294901760
    %6698 = vmatpush1.msra.mxu0 %v6697
    %6699 = vmatprep.subr.mxu0 0.0
    %v6700 = vand.u32 %v61, 4294901760
    %6701 = vmatpush1.msra.mxu0 %v6700
    %6702 = vmatprep.subr.mxu0 0.0
    %6703 = vmatpush1.msra.mxu0 0.0
    %6704 = vmatprep.subr.mxu0 0.0
    %6705 = vmatpush1.msra.mxu0 0.0
    %6706 = vmatprep.subr.mxu0 0.0
    %6707 = vmatpush1.msra.mxu0 0.0
    %6708 = vmatprep.subr.mxu0 0.0
    %6709 = vmatpush1.msra.mxu0 0.0
    %6710 = vmatprep.subr.mxu0 0.0
    %6711 = vmatpush1.msra.mxu0 0.0
    %6712 = vmatprep.subr.mxu0 0.0
    %6713 = vmatpush1.msra.mxu0 0.0
    %6714 = vmatprep.subr.mxu0 0.0
    %6715 = vmatpush1.msra.mxu0 0.0
    %6716 = vmatprep.subr.mxu0 0.0
    %6717 = vmatpush1.msra.mxu0 0.0
    %6718 = vmatprep.subr.mxu0 0.0
    %6719 = vmatpush1.msra.mxu0 0.0
    %6720 = vmatprep.subr.mxu0 0.0
    %6721 = vmatpush1.msra.mxu0 0.0
    %6722 = vmatprep.subr.mxu0 0.0
    %6723 = vmatpush1.msra.mxu0 0.0
    %6724 = vmatprep.subr.mxu0 0.0
    %6725 = vmatpush1.msra.mxu0 0.0
    %6726 = vmatprep.subr.mxu0 0.0
    %6727 = vmatpush1.msra.mxu0 0.0
    %6728 = vmatprep.subr.mxu0 0.0
    %6729 = vmatpush1.msra.mxu0 0.0
    %6730 = vmatprep.subr.mxu0 0.0
    %6731 = vmatpush1.msra.mxu0 0.0
    %6732 = vmatprep.subr.mxu0 0.0
    %6733 = vmatpush1.msra.mxu0 0.0
    %6734 = vmatprep.subr.mxu0 0.0
    %6735 = vmatpush1.msra.mxu0 0.0
    %6736 = vmatprep.subr.mxu0 0.0
    %6737 = vmatpush1.msra.mxu0 0.0
    %6738 = vmatprep.subr.mxu0 0.0
    %6739 = vmatpush1.msra.mxu0 0.0
    %6740 = vmatprep.subr.mxu0 0.0
    %6741 = vmatpush1.msra.mxu0 0.0
    %6742 = vmatprep.subr.mxu0 0.0
    %6743 = vmatpush1.msra.mxu0 0.0
    %6744 = vmatprep.subr.mxu0 0.0
    %6745 = vmatpush1.msra.mxu0 0.0
    %6746 = vmatprep.subr.mxu0 0.0
    %6747 = vmatpush1.msra.mxu0 0.0
    %6748 = vmatprep.subr.mxu0 0.0
    %6749 = vmatpush1.msra.mxu0 0.0
    %6750 = vmatprep.subr.mxu0 0.0
    %6751 = vmatpush1.msra.mxu0 0.0
    %6752 = vmatprep.subr.mxu0 0.0
    %6753 = vmatpush1.msra.mxu0 0.0
    %6754 = vmatprep.subr.mxu0 0.0
    %6755 = vmatpush1.msra.mxu0 0.0
    %6756 = vmatprep.subr.mxu0 0.0
    %6757 = vmatpush1.msra.mxu0 0.0
    %6758 = vmatprep.mubr.f32.mxu0 0.0
    %v6759 = vand.u32 %v6278, 4294901760
    %6760 = vmatmul.mubr.f32.gmra.mrb[0].mxu0 %v6759
    %v6761 = vpop.f32.mrb[0].mxu0
    %v6762 = vadd.f32 %v6687, %v6761
    %v6763 = vpop.f32.mrb[0].mxu0
    %6764 = vdwg.mxu0
    %v6765 = vsel %vm1158, %v6762, -inf
    %6766 = vmax.xlane.f32.xlu0 %v6765
    %v6767 = vpop.xlane.xlu0 %6766
    %vm6768 = vcmp.eq.f32.partialorder %v6762, %v6767
    %v6769 = vsel %vm6768, %v64, 8
    %v6770 = vsel %vm1158, %v6769, 2147483647
    %v6771 = vand.u32 %v6770, 65535
    %v6772 = vshra.s32 %v6770, 16
    %v6773 = vcvt.s32.f32 %v6771
    %v6774 = vcvt.s32.f32 %v6772
    %6775 = vmin.xlane.f32.xlu0 %v6774
    %v6776 = vpop.xlane.xlu0 %6775
    %vm6777 = vcmp.eq.f32.partialorder %v6774, %v6776
    %v6778 = vsel %vm6777, %v6773, inf
    %6779 = vmin.xlane.f32.xlu0 %v6778
    %v6780 = vpop.xlane.xlu0 %6779
    %v6781 = vcvt.f32.s32 %v6780
    %v6782 = vcvt.f32.s32 %v6776
    %v6783 = vshll.u32 %v6782, 16
    %v6784 = vadd.s32 %v6783, %v6781
    %v6785 = vcvt.s32.f32 %v6784
    %vm6786 = vcmp.gt.f32.partialorder %v5703, 0.5
    %v6787 = vsel %vm6786, -1e+30, %v6762
    %v6788 = vsel %vm1158, %v6787, -inf
    %6789 = vmax.xlane.f32.xlu0 %v6788
    %v6790 = vpop.xlane.xlu0 %6789
    %vm6791 = vcmp.eq.f32.partialorder %v6787, %v6790
    %v6792 = vsel %vm6791, %v64, 8
    %v6793 = vsel %vm1158, %v6792, 2147483647
    %v6794 = vand.u32 %v6793, 65535
    %v6795 = vshra.s32 %v6793, 16
    %v6796 = vcvt.s32.f32 %v6794
    %v6797 = vcvt.s32.f32 %v6795
    %6798 = vmin.xlane.f32.xlu0 %v6797
    %v6799 = vpop.xlane.xlu0 %6798
    %vm6800 = vcmp.eq.f32.partialorder %v6797, %v6799
    %v6801 = vsel %vm6800, %v6796, inf
    %6802 = vmin.xlane.f32.xlu0 %v6801
    %v6803 = vpop.xlane.xlu0 %6802
    %v6804 = vcvt.f32.s32 %v6803
    %v6805 = vcvt.f32.s32 %v6799
    %v6806 = vshll.u32 %v6805, 16
    %v6807 = vadd.s32 %v6806, %v6804
    %v6808 = vsub.f32 %v6787, %v6790
    %v6809 = vmul.f32 %v6808, 1.442695
    %v6810 = vpow.pop %v6809
    %v6811 = vsel %vm1158, %v6810, 0.0
    %6812 = vadd.xlane.f32.xlu0 %v6811
    %v6813 = vpop.xlane.xlu0 %6812
    %v6814 = vlog2.pop %v6813
    %v6815 = vmul.f32 %v6814, 0.6931472
    %v6816 = vsub.f32 0.0, %v6815
    %v6817 = vcvt.s32.f32 %v6807
    %vm6818 = vcmask 42024
    %6819 = vst.msk [vmem:[#allocation5] sm:$0x3] %vm6818, %v6817
    %6820 = vst.msk [vmem:[#allocation6] sm:$0x3] %vm6818, %v6816
    %vm6821 = vcmp.eq.s32.totalorder %v64, %v6807
    %v6822 = vsel %vm6821, 1, 0
    %v6823 = vcvt.s32.f32 %v6822
    %v6824 = vmax.f32 %v5703, %v6823
    %v6825 = vmul.f32 %v6785, %v71
    %v6826 = vadd.f32 %v6825, %v77
    %v6827 = vmax.f32 %v6826, 0.0
    %6828 = vrot.lane.b32.xlu0 %v6274, 64
    %v6829 = vpop.permute.xlu0 %6828
    %v6831 = vsel %vm85, %v6827, %v6829
    %v6833 = vsel %vm93, %v6831, 0
    %6835 = vmatprep.subr.mxu0 0.0
    %v6836 = vand.u32 %v49, 4294901760
    %6837 = vmatpush1.msra.mxu0 %v6836
    %6838 = vmatprep.subr.mxu0 0.0
    %v6839 = vand.u32 %v50, 4294901760
    %6840 = vmatpush1.msra.mxu0 %v6839
    %6841 = vmatprep.subr.mxu0 0.0
    %v6842 = vand.u32 %v51, 4294901760
    %6843 = vmatpush1.msra.mxu0 %v6842
    %6844 = vmatprep.subr.mxu0 0.0
    %v6845 = vand.u32 %v52, 4294901760
    %6846 = vmatpush1.msra.mxu0 %v6845
    %6847 = vmatprep.subr.mxu0 0.0
    %v6848 = vand.u32 %v53, 4294901760
    %6849 = vmatpush1.msra.mxu0 %v6848
    %6850 = vmatprep.subr.mxu0 0.0
    %v6851 = vand.u32 %v54, 4294901760
    %6852 = vmatpush1.msra.mxu0 %v6851
    %6853 = vmatprep.subr.mxu0 0.0
    %v6854 = vand.u32 %v55, 4294901760
    %6855 = vmatpush1.msra.mxu0 %v6854
    %6856 = vmatprep.subr.mxu0 0.0
    %v6857 = vand.u32 %v56, 4294901760
    %6858 = vmatpush1.msra.mxu0 %v6857
    %6859 = vmatprep.subr.mxu0 0.0
    %6860 = vmatpush1.msra.mxu0 0.0
    %6861 = vmatprep.subr.mxu0 0.0
    %6862 = vmatpush1.msra.mxu0 0.0
    %6863 = vmatprep.subr.mxu0 0.0
    %6864 = vmatpush1.msra.mxu0 0.0
    %6865 = vmatprep.subr.mxu0 0.0
    %6866 = vmatpush1.msra.mxu0 0.0
    %6867 = vmatprep.subr.mxu0 0.0
    %6868 = vmatpush1.msra.mxu0 0.0
    %6869 = vmatprep.subr.mxu0 0.0
    %6870 = vmatpush1.msra.mxu0 0.0
    %6871 = vmatprep.subr.mxu0 0.0
    %6872 = vmatpush1.msra.mxu0 0.0
    %6873 = vmatprep.subr.mxu0 0.0
    %6874 = vmatpush1.msra.mxu0 0.0
    %6875 = vmatprep.subr.mxu0 0.0
    %6876 = vmatpush1.msra.mxu0 0.0
    %6877 = vmatprep.subr.mxu0 0.0
    %6878 = vmatpush1.msra.mxu0 0.0
    %6879 = vmatprep.subr.mxu0 0.0
    %6880 = vmatpush1.msra.mxu0 0.0
    %6881 = vmatprep.subr.mxu0 0.0
    %6882 = vmatpush1.msra.mxu0 0.0
    %6883 = vmatprep.subr.mxu0 0.0
    %6884 = vmatpush1.msra.mxu0 0.0
    %6885 = vmatprep.subr.mxu0 0.0
    %6886 = vmatpush1.msra.mxu0 0.0
    %6887 = vmatprep.subr.mxu0 0.0
    %6888 = vmatpush1.msra.mxu0 0.0
    %6889 = vmatprep.subr.mxu0 0.0
    %6890 = vmatpush1.msra.mxu0 0.0
    %6891 = vmatprep.subr.mxu0 0.0
    %6892 = vmatpush1.msra.mxu0 0.0
    %6893 = vmatprep.subr.mxu0 0.0
    %6894 = vmatpush1.msra.mxu0 0.0
    %6895 = vmatprep.subr.mxu0 0.0
    %6896 = vmatpush1.msra.mxu0 0.0
    %6897 = vmatprep.subr.mxu0 0.0
    %6898 = vmatpush1.msra.mxu0 0.0
    %6899 = vmatprep.subr.mxu0 0.0
    %6900 = vmatpush1.msra.mxu0 0.0
    %6901 = vmatprep.subr.mxu0 0.0
    %6902 = vmatpush1.msra.mxu0 0.0
    %6903 = vmatprep.subr.mxu0 0.0
    %6904 = vmatpush1.msra.mxu0 0.0
    %6905 = vmatprep.subr.mxu0 0.0
    %6906 = vmatpush1.msra.mxu0 0.0
    %6907 = vmatprep.mubr.f32.mxu0 0.0
    %v6908 = vand.u32 %v6833, 4294901760
    %v6909 = vsub.f32 %v6833, %v6908
    %v6910 = vand.u32 %v6909, 4294901760
    %v6911 = vsub.f32 %v6909, %v6910
    %v6912 = vand.u32 %v6911, 4294901760
    %6913 = vmatmul.mubr.f32.gmra.mrb[0].mxu0 %v6912
    %v6914 = vpop.f32.mrb[0].mxu0
    %v6915 = vadd.f32 %v91, %v6914
    %v6916 = vpop.f32.mrb[0].mxu0
    %6917 = vdwg.mxu0
    %6918 = vmatprep.subr.mxu0 0.0
    %v6919 = vand.u32 %v49, 4294901760
    %v6920 = vsub.f32 %v49, %v6919
    %v6921 = vand.u32 %v6920, 4294901760
    %v6922 = vsub.f32 %v6920, %v6921
    %v6923 = vand.u32 %v6922, 4294901760
    %6924 = vmatpush1.msra.mxu0 %v6923
    %6925 = vmatprep.subr.mxu0 0.0
    %v6926 = vand.u32 %v50, 4294901760
    %v6927 = vsub.f32 %v50, %v6926
    %v6928 = vand.u32 %v6927, 4294901760
    %v6929 = vsub.f32 %v6927, %v6928
    %v6930 = vand.u32 %v6929, 4294901760
    %6931 = vmatpush1.msra.mxu0 %v6930
    %6932 = vmatprep.subr.mxu0 0.0
    %v6933 = vand.u32 %v51, 4294901760
    %v6934 = vsub.f32 %v51, %v6933
    %v6935 = vand.u32 %v6934, 4294901760
    %v6936 = vsub.f32 %v6934, %v6935
    %v6937 = vand.u32 %v6936, 4294901760
    %6938 = vmatpush1.msra.mxu0 %v6937
    %6939 = vmatprep.subr.mxu0 0.0
    %v6940 = vand.u32 %v52, 4294901760
    %v6941 = vsub.f32 %v52, %v6940
    %v6942 = vand.u32 %v6941, 4294901760
    %v6943 = vsub.f32 %v6941, %v6942
    %v6944 = vand.u32 %v6943, 4294901760
    %6945 = vmatpush1.msra.mxu0 %v6944
    %6946 = vmatprep.subr.mxu0 0.0
    %v6947 = vand.u32 %v53, 4294901760
    %v6948 = vsub.f32 %v53, %v6947
    %v6949 = vand.u32 %v6948, 4294901760
    %v6950 = vsub.f32 %v6948, %v6949
    %v6951 = vand.u32 %v6950, 4294901760
    %6952 = vmatpush1.msra.mxu0 %v6951
    %6953 = vmatprep.subr.mxu0 0.0
    %v6954 = vand.u32 %v54, 4294901760
    %v6955 = vsub.f32 %v54, %v6954
    %v6956 = vand.u32 %v6955, 4294901760
    %v6957 = vsub.f32 %v6955, %v6956
    %v6958 = vand.u32 %v6957, 4294901760
    %6959 = vmatpush1.msra.mxu0 %v6958
    %6960 = vmatprep.subr.mxu0 0.0
    %v6961 = vand.u32 %v55, 4294901760
    %v6962 = vsub.f32 %v55, %v6961
    %v6963 = vand.u32 %v6962, 4294901760
    %v6964 = vsub.f32 %v6962, %v6963
    %v6965 = vand.u32 %v6964, 4294901760
    %6966 = vmatpush1.msra.mxu0 %v6965
    %6967 = vmatprep.subr.mxu0 0.0
    %v6968 = vand.u32 %v56, 4294901760
    %v6969 = vsub.f32 %v56, %v6968
    %v6970 = vand.u32 %v6969, 4294901760
    %v6971 = vsub.f32 %v6969, %v6970
    %v6972 = vand.u32 %v6971, 4294901760
    %6973 = vmatpush1.msra.mxu0 %v6972
    %6974 = vmatprep.subr.mxu0 0.0
    %6975 = vmatpush1.msra.mxu0 0.0
    %6976 = vmatprep.subr.mxu0 0.0
    %6977 = vmatpush1.msra.mxu0 0.0
    %6978 = vmatprep.subr.mxu0 0.0
    %6979 = vmatpush1.msra.mxu0 0.0
    %6980 = vmatprep.subr.mxu0 0.0
    %6981 = vmatpush1.msra.mxu0 0.0
    %6982 = vmatprep.subr.mxu0 0.0
    %6983 = vmatpush1.msra.mxu0 0.0
    %6984 = vmatprep.subr.mxu0 0.0
    %6985 = vmatpush1.msra.mxu0 0.0
    %6986 = vmatprep.subr.mxu0 0.0
    %6987 = vmatpush1.msra.mxu0 0.0
    %6988 = vmatprep.subr.mxu0 0.0
    %6989 = vmatpush1.msra.mxu0 0.0
    %6990 = vmatprep.subr.mxu0 0.0
    %6991 = vmatpush1.msra.mxu0 0.0
    %6992 = vmatprep.subr.mxu0 0.0
    %6993 = vmatpush1.msra.mxu0 0.0
    %6994 = vmatprep.subr.mxu0 0.0
    %6995 = vmatpush1.msra.mxu0 0.0
    %6996 = vmatprep.subr.mxu0 0.0
    %6997 = vmatpush1.msra.mxu0 0.0
    %6998 = vmatprep.subr.mxu0 0.0
    %6999 = vmatpush1.msra.mxu0 0.0
    %7000 = vmatprep.subr.mxu0 0.0
    %7001 = vmatpush1.msra.mxu0 0.0
    %7002 = vmatprep.subr.mxu0 0.0
    %7003 = vmatpush1.msra.mxu0 0.0
    %7004 = vmatprep.subr.mxu0 0.0
    %7005 = vmatpush1.msra.mxu0 0.0
    %7006 = vmatprep.subr.mxu0 0.0
    %7007 = vmatpush1.msra.mxu0 0.0
    %7008 = vmatprep.subr.mxu0 0.0
    %7009 = vmatpush1.msra.mxu0 0.0
    %7010 = vmatprep.subr.mxu0 0.0
    %7011 = vmatpush1.msra.mxu0 0.0
    %7012 = vmatprep.subr.mxu0 0.0
    %7013 = vmatpush1.msra.mxu0 0.0
    %7014 = vmatprep.subr.mxu0 0.0
    %7015 = vmatpush1.msra.mxu0 0.0
    %7016 = vmatprep.subr.mxu0 0.0
    %7017 = vmatpush1.msra.mxu0 0.0
    %7018 = vmatprep.subr.mxu0 0.0
    %7019 = vmatpush1.msra.mxu0 0.0
    %7020 = vmatprep.subr.mxu0 0.0
    %7021 = vmatpush1.msra.mxu0 0.0
    %7022 = vmatprep.mubr.f32.mxu0 0.0
    %v7023 = vand.u32 %v6833, 4294901760
    %7024 = vmatmul.mubr.f32.gmra.mrb[0].mxu0 %v7023
    %v7025 = vpop.f32.mrb[0].mxu0
    %v7026 = vadd.f32 %v6915, %v7025
    %v7027 = vpop.f32.mrb[0].mxu0
    %7028 = vdwg.mxu0
    %7029 = vmatprep.subr.mxu0 0.0
    %v7030 = vand.u32 %v49, 4294901760
    %v7031 = vsub.f32 %v49, %v7030
    %7032 = vmatpush1.msra.mxu0 %v7031
    %7033 = vmatprep.subr.mxu0 0.0
    %v7034 = vand.u32 %v50, 4294901760
    %v7035 = vsub.f32 %v50, %v7034
    %7036 = vmatpush1.msra.mxu0 %v7035
    %7037 = vmatprep.subr.mxu0 0.0
    %v7038 = vand.u32 %v51, 4294901760
    %v7039 = vsub.f32 %v51, %v7038
    %7040 = vmatpush1.msra.mxu0 %v7039
    %7041 = vmatprep.subr.mxu0 0.0
    %v7042 = vand.u32 %v52, 4294901760
    %v7043 = vsub.f32 %v52, %v7042
    %7044 = vmatpush1.msra.mxu0 %v7043
    %7045 = vmatprep.subr.mxu0 0.0
    %v7046 = vand.u32 %v53, 4294901760
    %v7047 = vsub.f32 %v53, %v7046
    %7048 = vmatpush1.msra.mxu0 %v7047
    %7049 = vmatprep.subr.mxu0 0.0
    %v7050 = vand.u32 %v54, 4294901760
    %v7051 = vsub.f32 %v54, %v7050
    %7052 = vmatpush1.msra.mxu0 %v7051
    %7053 = vmatprep.subr.mxu0 0.0
    %v7054 = vand.u32 %v55, 4294901760
    %v7055 = vsub.f32 %v55, %v7054
    %7056 = vmatpush1.msra.mxu0 %v7055
    %7057 = vmatprep.subr.mxu0 0.0
    %v7058 = vand.u32 %v56, 4294901760
    %v7059 = vsub.f32 %v56, %v7058
    %7060 = vmatpush1.msra.mxu0 %v7059
    %7061 = vmatprep.subr.mxu0 0.0
    %7062 = vmatpush1.msra.mxu0 0.0
    %7063 = vmatprep.subr.mxu0 0.0
    %7064 = vmatpush1.msra.mxu0 0.0
    %7065 = vmatprep.subr.mxu0 0.0
    %7066 = vmatpush1.msra.mxu0 0.0
    %7067 = vmatprep.subr.mxu0 0.0
    %7068 = vmatpush1.msra.mxu0 0.0
    %7069 = vmatprep.subr.mxu0 0.0
    %7070 = vmatpush1.msra.mxu0 0.0
    %7071 = vmatprep.subr.mxu0 0.0
    %7072 = vmatpush1.msra.mxu0 0.0
    %7073 = vmatprep.subr.mxu0 0.0
    %7074 = vmatpush1.msra.mxu0 0.0
    %7075 = vmatprep.subr.mxu0 0.0
    %7076 = vmatpush1.msra.mxu0 0.0
    %7077 = vmatprep.subr.mxu0 0.0
    %7078 = vmatpush1.msra.mxu0 0.0
    %7079 = vmatprep.subr.mxu0 0.0
    %7080 = vmatpush1.msra.mxu0 0.0
    %7081 = vmatprep.subr.mxu0 0.0
    %7082 = vmatpush1.msra.mxu0 0.0
    %7083 = vmatprep.subr.mxu0 0.0
    %7084 = vmatpush1.msra.mxu0 0.0
    %7085 = vmatprep.subr.mxu0 0.0
    %7086 = vmatpush1.msra.mxu0 0.0
    %7087 = vmatprep.subr.mxu0 0.0
    %7088 = vmatpush1.msra.mxu0 0.0
    %7089 = vmatprep.subr.mxu0 0.0
    %7090 = vmatpush1.msra.mxu0 0.0
    %7091 = vmatprep.subr.mxu0 0.0
    %7092 = vmatpush1.msra.mxu0 0.0
    %7093 = vmatprep.subr.mxu0 0.0
    %7094 = vmatpush1.msra.mxu0 0.0
    %7095 = vmatprep.subr.mxu0 0.0
    %7096 = vmatpush1.msra.mxu0 0.0
    %7097 = vmatprep.subr.mxu0 0.0
    %7098 = vmatpush1.msra.mxu0 0.0
    %7099 = vmatprep.subr.mxu0 0.0
    %7100 = vmatpush1.msra.mxu0 0.0
    %7101 = vmatprep.subr.mxu0 0.0
    %7102 = vmatpush1.msra.mxu0 0.0
    %7103 = vmatprep.subr.mxu0 0.0
    %7104 = vmatpush1.msra.mxu0 0.0
    %7105 = vmatprep.subr.mxu0 0.0
    %7106 = vmatpush1.msra.mxu0 0.0
    %7107 = vmatprep.subr.mxu0 0.0
    %7108 = vmatpush1.msra.mxu0 0.0
    %7109 = vmatprep.mubr.f32.mxu0 0.0
    %v7110 = vand.u32 %v6833, 4294901760
    %v7111 = vsub.f32 %v6833, %v7110
    %7112 = vmatmul.mubr.f32.gmra.mrb[0].mxu0 %v7111
    %v7113 = vpop.f32.mrb[0].mxu0
    %v7114 = vadd.f32 %v7026, %v7113
    %v7115 = vpop.f32.mrb[0].mxu0
    %7116 = vdwg.mxu0
    %7117 = vmatprep.subr.mxu0 0.0
    %v7118 = vand.u32 %v49, 4294901760
    %7119 = vmatpush1.msra.mxu0 %v7118
    %7120 = vmatprep.subr.mxu0 0.0
    %v7121 = vand.u32 %v50, 4294901760
    %7122 = vmatpush1.msra.mxu0 %v7121
    %7123 = vmatprep.subr.mxu0 0.0
    %v7124 = vand.u32 %v51, 4294901760
    %7125 = vmatpush1.msra.mxu0 %v7124
    %7126 = vmatprep.subr.mxu0 0.0
    %v7127 = vand.u32 %v52, 4294901760
    %7128 = vmatpush1.msra.mxu0 %v7127
    %7129 = vmatprep.subr.mxu0 0.0
    %v7130 = vand.u32 %v53, 4294901760
    %7131 = vmatpush1.msra.mxu0 %v7130
    %7132 = vmatprep.subr.mxu0 0.0
    %v7133 = vand.u32 %v54, 4294901760
    %7134 = vmatpush1.msra.mxu0 %v7133
    %7135 = vmatprep.subr.mxu0 0.0
    %v7136 = vand.u32 %v55, 4294901760
    %7137 = vmatpush1.msra.mxu0 %v7136
    %7138 = vmatprep.subr.mxu0 0.0
    %v7139 = vand.u32 %v56, 4294901760
    %7140 = vmatpush1.msra.mxu0 %v7139
    %7141 = vmatprep.subr.mxu0 0.0
    %7142 = vmatpush1.msra.mxu0 0.0
    %7143 = vmatprep.subr.mxu0 0.0
    %7144 = vmatpush1.msra.mxu0 0.0
    %7145 = vmatprep.subr.mxu0 0.0
    %7146 = vmatpush1.msra.mxu0 0.0
    %7147 = vmatprep.subr.mxu0 0.0
    %7148 = vmatpush1.msra.mxu0 0.0
    %7149 = vmatprep.subr.mxu0 0.0
    %7150 = vmatpush1.msra.mxu0 0.0
    %7151 = vmatprep.subr.mxu0 0.0
    %7152 = vmatpush1.msra.mxu0 0.0
    %7153 = vmatprep.subr.mxu0 0.0
    %7154 = vmatpush1.msra.mxu0 0.0
    %7155 = vmatprep.subr.mxu0 0.0
    %7156 = vmatpush1.msra.mxu0 0.0
    %7157 = vmatprep.subr.mxu0 0.0
    %7158 = vmatpush1.msra.mxu0 0.0
    %7159 = vmatprep.subr.mxu0 0.0
    %7160 = vmatpush1.msra.mxu0 0.0
    %7161 = vmatprep.subr.mxu0 0.0
    %7162 = vmatpush1.msra.mxu0 0.0
    %7163 = vmatprep.subr.mxu0 0.0
    %7164 = vmatpush1.msra.mxu0 0.0
    %7165 = vmatprep.subr.mxu0 0.0
    %7166 = vmatpush1.msra.mxu0 0.0
    %7167 = vmatprep.subr.mxu0 0.0
    %7168 = vmatpush1.msra.mxu0 0.0
    %7169 = vmatprep.subr.mxu0 0.0
    %7170 = vmatpush1.msra.mxu0 0.0
    %7171 = vmatprep.subr.mxu0 0.0
    %7172 = vmatpush1.msra.mxu0 0.0
    %7173 = vmatprep.subr.mxu0 0.0
    %7174 = vmatpush1.msra.mxu0 0.0
    %7175 = vmatprep.subr.mxu0 0.0
    %7176 = vmatpush1.msra.mxu0 0.0
    %7177 = vmatprep.subr.mxu0 0.0
    %7178 = vmatpush1.msra.mxu0 0.0
    %7179 = vmatprep.subr.mxu0 0.0
    %7180 = vmatpush1.msra.mxu0 0.0
    %7181 = vmatprep.subr.mxu0 0.0
    %7182 = vmatpush1.msra.mxu0 0.0
    %7183 = vmatprep.subr.mxu0 0.0
    %7184 = vmatpush1.msra.mxu0 0.0
    %7185 = vmatprep.subr.mxu0 0.0
    %7186 = vmatpush1.msra.mxu0 0.0
    %7187 = vmatprep.subr.mxu0 0.0
    %7188 = vmatpush1.msra.mxu0 0.0
    %7189 = vmatprep.mubr.f32.mxu0 0.0
    %v7190 = vand.u32 %v6833, 4294901760
    %v7191 = vsub.f32 %v6833, %v7190
    %v7192 = vand.u32 %v7191, 4294901760
    %7193 = vmatmul.mubr.f32.gmra.mrb[0].mxu0 %v7192
    %v7194 = vpop.f32.mrb[0].mxu0
    %v7195 = vadd.f32 %v7114, %v7194
    %v7196 = vpop.f32.mrb[0].mxu0
    %7197 = vdwg.mxu0
    %7198 = vmatprep.subr.mxu0 0.0
    %v7199 = vand.u32 %v49, 4294901760
    %v7200 = vsub.f32 %v49, %v7199
    %v7201 = vand.u32 %v7200, 4294901760
    %7202 = vmatpush1.msra.mxu0 %v7201
    %7203 = vmatprep.subr.mxu0 0.0
    %v7204 = vand.u32 %v50, 4294901760
    %v7205 = vsub.f32 %v50, %v7204
    %v7206 = vand.u32 %v7205, 4294901760
    %7207 = vmatpush1.msra.mxu0 %v7206
    %7208 = vmatprep.subr.mxu0 0.0
    %v7209 = vand.u32 %v51, 4294901760
    %v7210 = vsub.f32 %v51, %v7209
    %v7211 = vand.u32 %v7210, 4294901760
    %7212 = vmatpush1.msra.mxu0 %v7211
    %7213 = vmatprep.subr.mxu0 0.0
    %v7214 = vand.u32 %v52, 4294901760
    %v7215 = vsub.f32 %v52, %v7214
    %v7216 = vand.u32 %v7215, 4294901760
    %7217 = vmatpush1.msra.mxu0 %v7216
    %7218 = vmatprep.subr.mxu0 0.0
    %v7219 = vand.u32 %v53, 4294901760
    %v7220 = vsub.f32 %v53, %v7219
    %v7221 = vand.u32 %v7220, 4294901760
    %7222 = vmatpush1.msra.mxu0 %v7221
    %7223 = vmatprep.subr.mxu0 0.0
    %v7224 = vand.u32 %v54, 4294901760
    %v7225 = vsub.f32 %v54, %v7224
    %v7226 = vand.u32 %v7225, 4294901760
    %7227 = vmatpush1.msra.mxu0 %v7226
    %7228 = vmatprep.subr.mxu0 0.0
    %v7229 = vand.u32 %v55, 4294901760
    %v7230 = vsub.f32 %v55, %v7229
    %v7231 = vand.u32 %v7230, 4294901760
    %7232 = vmatpush1.msra.mxu0 %v7231
    %7233 = vmatprep.subr.mxu0 0.0
    %v7234 = vand.u32 %v56, 4294901760
    %v7235 = vsub.f32 %v56, %v7234
    %v7236 = vand.u32 %v7235, 4294901760
    %7237 = vmatpush1.msra.mxu0 %v7236
    %7238 = vmatprep.subr.mxu0 0.0
    %7239 = vmatpush1.msra.mxu0 0.0
    %7240 = vmatprep.subr.mxu0 0.0
    %7241 = vmatpush1.msra.mxu0 0.0
    %7242 = vmatprep.subr.mxu0 0.0
    %7243 = vmatpush1.msra.mxu0 0.0
    %7244 = vmatprep.subr.mxu0 0.0
    %7245 = vmatpush1.msra.mxu0 0.0
    %7246 = vmatprep.subr.mxu0 0.0
    %7247 = vmatpush1.msra.mxu0 0.0
    %7248 = vmatprep.subr.mxu0 0.0
    %7249 = vmatpush1.msra.mxu0 0.0
    %7250 = vmatprep.subr.mxu0 0.0
    %7251 = vmatpush1.msra.mxu0 0.0
    %7252 = vmatprep.subr.mxu0 0.0
    %7253 = vmatpush1.msra.mxu0 0.0
    %7254 = vmatprep.subr.mxu0 0.0
    %7255 = vmatpush1.msra.mxu0 0.0
    %7256 = vmatprep.subr.mxu0 0.0
    %7257 = vmatpush1.msra.mxu0 0.0
    %7258 = vmatprep.subr.mxu0 0.0
    %7259 = vmatpush1.msra.mxu0 0.0
    %7260 = vmatprep.subr.mxu0 0.0
    %7261 = vmatpush1.msra.mxu0 0.0
    %7262 = vmatprep.subr.mxu0 0.0
    %7263 = vmatpush1.msra.mxu0 0.0
    %7264 = vmatprep.subr.mxu0 0.0
    %7265 = vmatpush1.msra.mxu0 0.0
    %7266 = vmatprep.subr.mxu0 0.0
    %7267 = vmatpush1.msra.mxu0 0.0
    %7268 = vmatprep.subr.mxu0 0.0
    %7269 = vmatpush1.msra.mxu0 0.0
    %7270 = vmatprep.subr.mxu0 0.0
    %7271 = vmatpush1.msra.mxu0 0.0
    %7272 = vmatprep.subr.mxu0 0.0
    %7273 = vmatpush1.msra.mxu0 0.0
    %7274 = vmatprep.subr.mxu0 0.0
    %7275 = vmatpush1.msra.mxu0 0.0
    %7276 = vmatprep.subr.mxu0 0.0
    %7277 = vmatpush1.msra.mxu0 0.0
    %7278 = vmatprep.subr.mxu0 0.0
    %7279 = vmatpush1.msra.mxu0 0.0
    %7280 = vmatprep.subr.mxu0 0.0
    %7281 = vmatpush1.msra.mxu0 0.0
    %7282 = vmatprep.subr.mxu0 0.0
    %7283 = vmatpush1.msra.mxu0 0.0
    %7284 = vmatprep.subr.mxu0 0.0
    %7285 = vmatpush1.msra.mxu0 0.0
    %7286 = vmatprep.mubr.f32.mxu0 0.0
    %v7287 = vand.u32 %v6833, 4294901760
    %7288 = vmatmul.mubr.f32.gmra.mrb[0].mxu0 %v7287
    %v7289 = vpop.f32.mrb[0].mxu0
    %v7290 = vadd.f32 %v7195, %v7289
    %v7291 = vpop.f32.mrb[0].mxu0
    %7292 = vdwg.mxu0
    %7293 = vmatprep.subr.mxu0 0.0
    %v7294 = vand.u32 %v49, 4294901760
    %7295 = vmatpush1.msra.mxu0 %v7294
    %7296 = vmatprep.subr.mxu0 0.0
    %v7297 = vand.u32 %v50, 4294901760
    %7298 = vmatpush1.msra.mxu0 %v7297
    %7299 = vmatprep.subr.mxu0 0.0
    %v7300 = vand.u32 %v51, 4294901760
    %7301 = vmatpush1.msra.mxu0 %v7300
    %7302 = vmatprep.subr.mxu0 0.0
    %v7303 = vand.u32 %v52, 4294901760
    %7304 = vmatpush1.msra.mxu0 %v7303
    %7305 = vmatprep.subr.mxu0 0.0
    %v7306 = vand.u32 %v53, 4294901760
    %7307 = vmatpush1.msra.mxu0 %v7306
    %7308 = vmatprep.subr.mxu0 0.0
    %v7309 = vand.u32 %v54, 4294901760
    %7310 = vmatpush1.msra.mxu0 %v7309
    %7311 = vmatprep.subr.mxu0 0.0
    %v7312 = vand.u32 %v55, 4294901760
    %7313 = vmatpush1.msra.mxu0 %v7312
    %7314 = vmatprep.subr.mxu0 0.0
    %v7315 = vand.u32 %v56, 4294901760
    %7316 = vmatpush1.msra.mxu0 %v7315
    %7317 = vmatprep.subr.mxu0 0.0
    %7318 = vmatpush1.msra.mxu0 0.0
    %7319 = vmatprep.subr.mxu0 0.0
    %7320 = vmatpush1.msra.mxu0 0.0
    %7321 = vmatprep.subr.mxu0 0.0
    %7322 = vmatpush1.msra.mxu0 0.0
    %7323 = vmatprep.subr.mxu0 0.0
    %7324 = vmatpush1.msra.mxu0 0.0
    %7325 = vmatprep.subr.mxu0 0.0
    %7326 = vmatpush1.msra.mxu0 0.0
    %7327 = vmatprep.subr.mxu0 0.0
    %7328 = vmatpush1.msra.mxu0 0.0
    %7329 = vmatprep.subr.mxu0 0.0
    %7330 = vmatpush1.msra.mxu0 0.0
    %7331 = vmatprep.subr.mxu0 0.0
    %7332 = vmatpush1.msra.mxu0 0.0
    %7333 = vmatprep.subr.mxu0 0.0
    %7334 = vmatpush1.msra.mxu0 0.0
    %7335 = vmatprep.subr.mxu0 0.0
    %7336 = vmatpush1.msra.mxu0 0.0
    %7337 = vmatprep.subr.mxu0 0.0
    %7338 = vmatpush1.msra.mxu0 0.0
    %7339 = vmatprep.subr.mxu0 0.0
    %7340 = vmatpush1.msra.mxu0 0.0
    %7341 = vmatprep.subr.mxu0 0.0
    %7342 = vmatpush1.msra.mxu0 0.0
    %7343 = vmatprep.subr.mxu0 0.0
    %7344 = vmatpush1.msra.mxu0 0.0
    %7345 = vmatprep.subr.mxu0 0.0
    %7346 = vmatpush1.msra.mxu0 0.0
    %7347 = vmatprep.subr.mxu0 0.0
    %7348 = vmatpush1.msra.mxu0 0.0
    %7349 = vmatprep.subr.mxu0 0.0
    %7350 = vmatpush1.msra.mxu0 0.0
    %7351 = vmatprep.subr.mxu0 0.0
    %7352 = vmatpush1.msra.mxu0 0.0
    %7353 = vmatprep.subr.mxu0 0.0
    %7354 = vmatpush1.msra.mxu0 0.0
    %7355 = vmatprep.subr.mxu0 0.0
    %7356 = vmatpush1.msra.mxu0 0.0
    %7357 = vmatprep.subr.mxu0 0.0
    %7358 = vmatpush1.msra.mxu0 0.0
    %7359 = vmatprep.subr.mxu0 0.0
    %7360 = vmatpush1.msra.mxu0 0.0
    %7361 = vmatprep.subr.mxu0 0.0
    %7362 = vmatpush1.msra.mxu0 0.0
    %7363 = vmatprep.subr.mxu0 0.0
    %7364 = vmatpush1.msra.mxu0 0.0
    %7365 = vmatprep.mubr.f32.mxu0 0.0
    %v7366 = vand.u32 %v6833, 4294901760
    %7367 = vmatmul.mubr.f32.gmra.mrb[0].mxu0 %v7366
    %v7368 = vpop.f32.mrb[0].mxu0
    %v7369 = vadd.f32 %v7290, %v7368
    %v7370 = vpop.f32.mrb[0].mxu0
    %7371 = vdwg.mxu0
    %v7372 = vxor.u32 %v7369, 2147483648
    %v7373 = vmul.f32 %v7372, 1.442695
    %v7374 = vpow.pop %v7373
    %v7375 = vadd.f32 %v7374, 1.0
    %v7376 = vrcp.pop %v7375
    %v7377 = vmul.f32 1.0, %v7376
    %v7378 = vtanh.pop %v7369
    %v7379 = vmul.f32 %v7377, %v6268
    %7381 = vrot.lane.b32.xlu0 %v7378, 64
    %v7382 = vpop.permute.xlu0 %7381
    %v7384 = vmul.f32 %v7377, %v7382
    %7386 = vrot.lane.b32.xlu0 %v7384, 32
    %v7387 = vpop.permute.xlu0 %7386
    %v7389 = vadd.f32 %v7379, %v7387
    %v7390 = vtanh.pop %v7389
    %7392 = vrot.lane.b32.xlu0 %v7390, 64
    %v7393 = vpop.permute.xlu0 %7392
    %v7395 = vmul.f32 %v7377, %v7393
    %7397 = vrot.lane.b32.xlu0 %v7395, 32
    %v7398 = vpop.permute.xlu0 %7397
    %v7399 = vsel %vm85, %v7398, 0
    %7401 = vmatprep.subr.mxu0 0.0
    %v7402 = vand.u32 %v58, 4294901760
    %7403 = vmatpush1.msra.mxu0 %v7402
    %7404 = vmatprep.subr.mxu0 0.0
    %v7405 = vand.u32 %v59, 4294901760
    %7406 = vmatpush1.msra.mxu0 %v7405
    %7407 = vmatprep.subr.mxu0 0.0
    %v7408 = vand.u32 %v60, 4294901760
    %7409 = vmatpush1.msra.mxu0 %v7408
    %7410 = vmatprep.subr.mxu0 0.0
    %v7411 = vand.u32 %v61, 4294901760
    %7412 = vmatpush1.msra.mxu0 %v7411
    %7413 = vmatprep.subr.mxu0 0.0
    %7414 = vmatpush1.msra.mxu0 0.0
    %7415 = vmatprep.subr.mxu0 0.0
    %7416 = vmatpush1.msra.mxu0 0.0
    %7417 = vmatprep.subr.mxu0 0.0
    %7418 = vmatpush1.msra.mxu0 0.0
    %7419 = vmatprep.subr.mxu0 0.0
    %7420 = vmatpush1.msra.mxu0 0.0
    %7421 = vmatprep.subr.mxu0 0.0
    %7422 = vmatpush1.msra.mxu0 0.0
    %7423 = vmatprep.subr.mxu0 0.0
    %7424 = vmatpush1.msra.mxu0 0.0
    %7425 = vmatprep.subr.mxu0 0.0
    %7426 = vmatpush1.msra.mxu0 0.0
    %7427 = vmatprep.subr.mxu0 0.0
    %7428 = vmatpush1.msra.mxu0 0.0
    %7429 = vmatprep.subr.mxu0 0.0
    %7430 = vmatpush1.msra.mxu0 0.0
    %7431 = vmatprep.subr.mxu0 0.0
    %7432 = vmatpush1.msra.mxu0 0.0
    %7433 = vmatprep.subr.mxu0 0.0
    %7434 = vmatpush1.msra.mxu0 0.0
    %7435 = vmatprep.subr.mxu0 0.0
    %7436 = vmatpush1.msra.mxu0 0.0
    %7437 = vmatprep.subr.mxu0 0.0
    %7438 = vmatpush1.msra.mxu0 0.0
    %7439 = vmatprep.subr.mxu0 0.0
    %7440 = vmatpush1.msra.mxu0 0.0
    %7441 = vmatprep.subr.mxu0 0.0
    %7442 = vmatpush1.msra.mxu0 0.0
    %7443 = vmatprep.subr.mxu0 0.0
    %7444 = vmatpush1.msra.mxu0 0.0
    %7445 = vmatprep.subr.mxu0 0.0
    %7446 = vmatpush1.msra.mxu0 0.0
    %7447 = vmatprep.subr.mxu0 0.0
    %7448 = vmatpush1.msra.mxu0 0.0
    %7449 = vmatprep.subr.mxu0 0.0
    %7450 = vmatpush1.msra.mxu0 0.0
    %7451 = vmatprep.subr.mxu0 0.0
    %7452 = vmatpush1.msra.mxu0 0.0
    %7453 = vmatprep.subr.mxu0 0.0
    %7454 = vmatpush1.msra.mxu0 0.0
    %7455 = vmatprep.subr.mxu0 0.0
    %7456 = vmatpush1.msra.mxu0 0.0
    %7457 = vmatprep.subr.mxu0 0.0
    %7458 = vmatpush1.msra.mxu0 0.0
    %7459 = vmatprep.subr.mxu0 0.0
    %7460 = vmatpush1.msra.mxu0 0.0
    %7461 = vmatprep.subr.mxu0 0.0
    %7462 = vmatpush1.msra.mxu0 0.0
    %7463 = vmatprep.subr.mxu0 0.0
    %7464 = vmatpush1.msra.mxu0 0.0
    %7465 = vmatprep.subr.mxu0 0.0
    %7466 = vmatpush1.msra.mxu0 0.0
    %7467 = vmatprep.subr.mxu0 0.0
    %7468 = vmatpush1.msra.mxu0 0.0
    %7469 = vmatprep.mubr.f32.mxu0 0.0
    %v7470 = vand.u32 %v7399, 4294901760
    %v7471 = vsub.f32 %v7399, %v7470
    %v7472 = vand.u32 %v7471, 4294901760
    %v7473 = vsub.f32 %v7471, %v7472
    %v7474 = vand.u32 %v7473, 4294901760
    %7475 = vmatmul.mubr.f32.gmra.mrb[0].mxu0 %v7474
    %v7476 = vpop.f32.mrb[0].mxu0
    %v7477 = vadd.f32 %v666, %v7476
    %v7478 = vpop.f32.mrb[0].mxu0
    %7479 = vdwg.mxu0
    %7480 = vmatprep.subr.mxu0 0.0
    %v7481 = vand.u32 %v58, 4294901760
    %v7482 = vsub.f32 %v58, %v7481
    %v7483 = vand.u32 %v7482, 4294901760
    %v7484 = vsub.f32 %v7482, %v7483
    %v7485 = vand.u32 %v7484, 4294901760
    %7486 = vmatpush1.msra.mxu0 %v7485
    %7487 = vmatprep.subr.mxu0 0.0
    %v7488 = vand.u32 %v59, 4294901760
    %v7489 = vsub.f32 %v59, %v7488
    %v7490 = vand.u32 %v7489, 4294901760
    %v7491 = vsub.f32 %v7489, %v7490
    %v7492 = vand.u32 %v7491, 4294901760
    %7493 = vmatpush1.msra.mxu0 %v7492
    %7494 = vmatprep.subr.mxu0 0.0
    %v7495 = vand.u32 %v60, 4294901760
    %v7496 = vsub.f32 %v60, %v7495
    %v7497 = vand.u32 %v7496, 4294901760
    %v7498 = vsub.f32 %v7496, %v7497
    %v7499 = vand.u32 %v7498, 4294901760
    %7500 = vmatpush1.msra.mxu0 %v7499
    %7501 = vmatprep.subr.mxu0 0.0
    %v7502 = vand.u32 %v61, 4294901760
    %v7503 = vsub.f32 %v61, %v7502
    %v7504 = vand.u32 %v7503, 4294901760
    %v7505 = vsub.f32 %v7503, %v7504
    %v7506 = vand.u32 %v7505, 4294901760
    %7507 = vmatpush1.msra.mxu0 %v7506
    %7508 = vmatprep.subr.mxu0 0.0
    %7509 = vmatpush1.msra.mxu0 0.0
    %7510 = vmatprep.subr.mxu0 0.0
    %7511 = vmatpush1.msra.mxu0 0.0
    %7512 = vmatprep.subr.mxu0 0.0
    %7513 = vmatpush1.msra.mxu0 0.0
    %7514 = vmatprep.subr.mxu0 0.0
    %7515 = vmatpush1.msra.mxu0 0.0
    %7516 = vmatprep.subr.mxu0 0.0
    %7517 = vmatpush1.msra.mxu0 0.0
    %7518 = vmatprep.subr.mxu0 0.0
    %7519 = vmatpush1.msra.mxu0 0.0
    %7520 = vmatprep.subr.mxu0 0.0
    %7521 = vmatpush1.msra.mxu0 0.0
    %7522 = vmatprep.subr.mxu0 0.0
    %7523 = vmatpush1.msra.mxu0 0.0
    %7524 = vmatprep.subr.mxu0 0.0
    %7525 = vmatpush1.msra.mxu0 0.0
    %7526 = vmatprep.subr.mxu0 0.0
    %7527 = vmatpush1.msra.mxu0 0.0
    %7528 = vmatprep.subr.mxu0 0.0
    %7529 = vmatpush1.msra.mxu0 0.0
    %7530 = vmatprep.subr.mxu0 0.0
    %7531 = vmatpush1.msra.mxu0 0.0
    %7532 = vmatprep.subr.mxu0 0.0
    %7533 = vmatpush1.msra.mxu0 0.0
    %7534 = vmatprep.subr.mxu0 0.0
    %7535 = vmatpush1.msra.mxu0 0.0
    %7536 = vmatprep.subr.mxu0 0.0
    %7537 = vmatpush1.msra.mxu0 0.0
    %7538 = vmatprep.subr.mxu0 0.0
    %7539 = vmatpush1.msra.mxu0 0.0
    %7540 = vmatprep.subr.mxu0 0.0
    %7541 = vmatpush1.msra.mxu0 0.0
    %7542 = vmatprep.subr.mxu0 0.0
    %7543 = vmatpush1.msra.mxu0 0.0
    %7544 = vmatprep.subr.mxu0 0.0
    %7545 = vmatpush1.msra.mxu0 0.0
    %7546 = vmatprep.subr.mxu0 0.0
    %7547 = vmatpush1.msra.mxu0 0.0
    %7548 = vmatprep.subr.mxu0 0.0
    %7549 = vmatpush1.msra.mxu0 0.0
    %7550 = vmatprep.subr.mxu0 0.0
    %7551 = vmatpush1.msra.mxu0 0.0
    %7552 = vmatprep.subr.mxu0 0.0
    %7553 = vmatpush1.msra.mxu0 0.0
    %7554 = vmatprep.subr.mxu0 0.0
    %7555 = vmatpush1.msra.mxu0 0.0
    %7556 = vmatprep.subr.mxu0 0.0
    %7557 = vmatpush1.msra.mxu0 0.0
    %7558 = vmatprep.subr.mxu0 0.0
    %7559 = vmatpush1.msra.mxu0 0.0
    %7560 = vmatprep.subr.mxu0 0.0
    %7561 = vmatpush1.msra.mxu0 0.0
    %7562 = vmatprep.subr.mxu0 0.0
    %7563 = vmatpush1.msra.mxu0 0.0
    %7564 = vmatprep.mubr.f32.mxu0 0.0
    %v7565 = vand.u32 %v7399, 4294901760
    %7566 = vmatmul.mubr.f32.gmra.mrb[0].mxu0 %v7565
    %v7567 = vpop.f32.mrb[0].mxu0
    %v7568 = vadd.f32 %v7477, %v7567
    %v7569 = vpop.f32.mrb[0].mxu0
    %7570 = vdwg.mxu0
    %7571 = vmatprep.subr.mxu0 0.0
    %v7572 = vand.u32 %v58, 4294901760
    %v7573 = vsub.f32 %v58, %v7572
    %7574 = vmatpush1.msra.mxu0 %v7573
    %7575 = vmatprep.subr.mxu0 0.0
    %v7576 = vand.u32 %v59, 4294901760
    %v7577 = vsub.f32 %v59, %v7576
    %7578 = vmatpush1.msra.mxu0 %v7577
    %7579 = vmatprep.subr.mxu0 0.0
    %v7580 = vand.u32 %v60, 4294901760
    %v7581 = vsub.f32 %v60, %v7580
    %7582 = vmatpush1.msra.mxu0 %v7581
    %7583 = vmatprep.subr.mxu0 0.0
    %v7584 = vand.u32 %v61, 4294901760
    %v7585 = vsub.f32 %v61, %v7584
    %7586 = vmatpush1.msra.mxu0 %v7585
    %7587 = vmatprep.subr.mxu0 0.0
    %7588 = vmatpush1.msra.mxu0 0.0
    %7589 = vmatprep.subr.mxu0 0.0
    %7590 = vmatpush1.msra.mxu0 0.0
    %7591 = vmatprep.subr.mxu0 0.0
    %7592 = vmatpush1.msra.mxu0 0.0
    %7593 = vmatprep.subr.mxu0 0.0
    %7594 = vmatpush1.msra.mxu0 0.0
    %7595 = vmatprep.subr.mxu0 0.0
    %7596 = vmatpush1.msra.mxu0 0.0
    %7597 = vmatprep.subr.mxu0 0.0
    %7598 = vmatpush1.msra.mxu0 0.0
    %7599 = vmatprep.subr.mxu0 0.0
    %7600 = vmatpush1.msra.mxu0 0.0
    %7601 = vmatprep.subr.mxu0 0.0
    %7602 = vmatpush1.msra.mxu0 0.0
    %7603 = vmatprep.subr.mxu0 0.0
    %7604 = vmatpush1.msra.mxu0 0.0
    %7605 = vmatprep.subr.mxu0 0.0
    %7606 = vmatpush1.msra.mxu0 0.0
    %7607 = vmatprep.subr.mxu0 0.0
    %7608 = vmatpush1.msra.mxu0 0.0
    %7609 = vmatprep.subr.mxu0 0.0
    %7610 = vmatpush1.msra.mxu0 0.0
    %7611 = vmatprep.subr.mxu0 0.0
    %7612 = vmatpush1.msra.mxu0 0.0
    %7613 = vmatprep.subr.mxu0 0.0
    %7614 = vmatpush1.msra.mxu0 0.0
    %7615 = vmatprep.subr.mxu0 0.0
    %7616 = vmatpush1.msra.mxu0 0.0
    %7617 = vmatprep.subr.mxu0 0.0
    %7618 = vmatpush1.msra.mxu0 0.0
    %7619 = vmatprep.subr.mxu0 0.0
    %7620 = vmatpush1.msra.mxu0 0.0
    %7621 = vmatprep.subr.mxu0 0.0
    %7622 = vmatpush1.msra.mxu0 0.0
    %7623 = vmatprep.subr.mxu0 0.0
    %7624 = vmatpush1.msra.mxu0 0.0
    %7625 = vmatprep.subr.mxu0 0.0
    %7626 = vmatpush1.msra.mxu0 0.0
    %7627 = vmatprep.subr.mxu0 0.0
    %7628 = vmatpush1.msra.mxu0 0.0
    %7629 = vmatprep.subr.mxu0 0.0
    %7630 = vmatpush1.msra.mxu0 0.0
    %7631 = vmatprep.subr.mxu0 0.0
    %7632 = vmatpush1.msra.mxu0 0.0
    %7633 = vmatprep.subr.mxu0 0.0
    %7634 = vmatpush1.msra.mxu0 0.0
    %7635 = vmatprep.subr.mxu0 0.0
    %7636 = vmatpush1.msra.mxu0 0.0
    %7637 = vmatprep.subr.mxu0 0.0
    %7638 = vmatpush1.msra.mxu0 0.0
    %7639 = vmatprep.subr.mxu0 0.0
    %7640 = vmatpush1.msra.mxu0 0.0
    %7641 = vmatprep.subr.mxu0 0.0
    %7642 = vmatpush1.msra.mxu0 0.0
    %7643 = vmatprep.mubr.f32.mxu0 0.0
    %v7644 = vand.u32 %v7399, 4294901760
    %v7645 = vsub.f32 %v7399, %v7644
    %7646 = vmatmul.mubr.f32.gmra.mrb[0].mxu0 %v7645
    %v7647 = vpop.f32.mrb[0].mxu0
    %v7648 = vadd.f32 %v7568, %v7647
    %v7649 = vpop.f32.mrb[0].mxu0
    %7650 = vdwg.mxu0
    %7651 = vmatprep.subr.mxu0 0.0
    %v7652 = vand.u32 %v58, 4294901760
    %7653 = vmatpush1.msra.mxu0 %v7652
    %7654 = vmatprep.subr.mxu0 0.0
    %v7655 = vand.u32 %v59, 4294901760
    %7656 = vmatpush1.msra.mxu0 %v7655
    %7657 = vmatprep.subr.mxu0 0.0
    %v7658 = vand.u32 %v60, 4294901760
    %7659 = vmatpush1.msra.mxu0 %v7658
    %7660 = vmatprep.subr.mxu0 0.0
    %v7661 = vand.u32 %v61, 4294901760
    %7662 = vmatpush1.msra.mxu0 %v7661
    %7663 = vmatprep.subr.mxu0 0.0
    %7664 = vmatpush1.msra.mxu0 0.0
    %7665 = vmatprep.subr.mxu0 0.0
    %7666 = vmatpush1.msra.mxu0 0.0
    %7667 = vmatprep.subr.mxu0 0.0
    %7668 = vmatpush1.msra.mxu0 0.0
    %7669 = vmatprep.subr.mxu0 0.0
    %7670 = vmatpush1.msra.mxu0 0.0
    %7671 = vmatprep.subr.mxu0 0.0
    %7672 = vmatpush1.msra.mxu0 0.0
    %7673 = vmatprep.subr.mxu0 0.0
    %7674 = vmatpush1.msra.mxu0 0.0
    %7675 = vmatprep.subr.mxu0 0.0
    %7676 = vmatpush1.msra.mxu0 0.0
    %7677 = vmatprep.subr.mxu0 0.0
    %7678 = vmatpush1.msra.mxu0 0.0
    %7679 = vmatprep.subr.mxu0 0.0
    %7680 = vmatpush1.msra.mxu0 0.0
    %7681 = vmatprep.subr.mxu0 0.0
    %7682 = vmatpush1.msra.mxu0 0.0
    %7683 = vmatprep.subr.mxu0 0.0
    %7684 = vmatpush1.msra.mxu0 0.0
    %7685 = vmatprep.subr.mxu0 0.0
    %7686 = vmatpush1.msra.mxu0 0.0
    %7687 = vmatprep.subr.mxu0 0.0
    %7688 = vmatpush1.msra.mxu0 0.0
    %7689 = vmatprep.subr.mxu0 0.0
    %7690 = vmatpush1.msra.mxu0 0.0
    %7691 = vmatprep.subr.mxu0 0.0
    %7692 = vmatpush1.msra.mxu0 0.0
    %7693 = vmatprep.subr.mxu0 0.0
    %7694 = vmatpush1.msra.mxu0 0.0
    %7695 = vmatprep.subr.mxu0 0.0
    %7696 = vmatpush1.msra.mxu0 0.0
    %7697 = vmatprep.subr.mxu0 0.0
    %7698 = vmatpush1.msra.mxu0 0.0
    %7699 = vmatprep.subr.mxu0 0.0
    %7700 = vmatpush1.msra.mxu0 0.0
    %7701 = vmatprep.subr.mxu0 0.0
    %7702 = vmatpush1.msra.mxu0 0.0
    %7703 = vmatprep.subr.mxu0 0.0
    %7704 = vmatpush1.msra.mxu0 0.0
    %7705 = vmatprep.subr.mxu0 0.0
    %7706 = vmatpush1.msra.mxu0 0.0
    %7707 = vmatprep.subr.mxu0 0.0
    %7708 = vmatpush1.msra.mxu0 0.0
    %7709 = vmatprep.subr.mxu0 0.0
    %7710 = vmatpush1.msra.mxu0 0.0
    %7711 = vmatprep.subr.mxu0 0.0
    %7712 = vmatpush1.msra.mxu0 0.0
    %7713 = vmatprep.subr.mxu0 0.0
    %7714 = vmatpush1.msra.mxu0 0.0
    %7715 = vmatprep.subr.mxu0 0.0
    %7716 = vmatpush1.msra.mxu0 0.0
    %7717 = vmatprep.subr.mxu0 0.0
    %7718 = vmatpush1.msra.mxu0 0.0
    %7719 = vmatprep.mubr.f32.mxu0 0.0
    %v7720 = vand.u32 %v7399, 4294901760
    %v7721 = vsub.f32 %v7399, %v7720
    %v7722 = vand.u32 %v7721, 4294901760
    %7723 = vmatmul.mubr.f32.gmra.mrb[0].mxu0 %v7722
    %v7724 = vpop.f32.mrb[0].mxu0
    %v7725 = vadd.f32 %v7648, %v7724
    %v7726 = vpop.f32.mrb[0].mxu0
    %7727 = vdwg.mxu0
    %7728 = vmatprep.subr.mxu0 0.0
    %v7729 = vand.u32 %v58, 4294901760
    %v7730 = vsub.f32 %v58, %v7729
    %v7731 = vand.u32 %v7730, 4294901760
    %7732 = vmatpush1.msra.mxu0 %v7731
    %7733 = vmatprep.subr.mxu0 0.0
    %v7734 = vand.u32 %v59, 4294901760
    %v7735 = vsub.f32 %v59, %v7734
    %v7736 = vand.u32 %v7735, 4294901760
    %7737 = vmatpush1.msra.mxu0 %v7736
    %7738 = vmatprep.subr.mxu0 0.0
    %v7739 = vand.u32 %v60, 4294901760
    %v7740 = vsub.f32 %v60, %v7739
    %v7741 = vand.u32 %v7740, 4294901760
    %7742 = vmatpush1.msra.mxu0 %v7741
    %7743 = vmatprep.subr.mxu0 0.0
    %v7744 = vand.u32 %v61, 4294901760
    %v7745 = vsub.f32 %v61, %v7744
    %v7746 = vand.u32 %v7745, 4294901760
    %7747 = vmatpush1.msra.mxu0 %v7746
    %7748 = vmatprep.subr.mxu0 0.0
    %7749 = vmatpush1.msra.mxu0 0.0
    %7750 = vmatprep.subr.mxu0 0.0
    %7751 = vmatpush1.msra.mxu0 0.0
    %7752 = vmatprep.subr.mxu0 0.0
    %7753 = vmatpush1.msra.mxu0 0.0
    %7754 = vmatprep.subr.mxu0 0.0
    %7755 = vmatpush1.msra.mxu0 0.0
    %7756 = vmatprep.subr.mxu0 0.0
    %7757 = vmatpush1.msra.mxu0 0.0
    %7758 = vmatprep.subr.mxu0 0.0
    %7759 = vmatpush1.msra.mxu0 0.0
    %7760 = vmatprep.subr.mxu0 0.0
    %7761 = vmatpush1.msra.mxu0 0.0
    %7762 = vmatprep.subr.mxu0 0.0
    %7763 = vmatpush1.msra.mxu0 0.0
    %7764 = vmatprep.subr.mxu0 0.0
    %7765 = vmatpush1.msra.mxu0 0.0
    %7766 = vmatprep.subr.mxu0 0.0
    %7767 = vmatpush1.msra.mxu0 0.0
    %7768 = vmatprep.subr.mxu0 0.0
    %7769 = vmatpush1.msra.mxu0 0.0
    %7770 = vmatprep.subr.mxu0 0.0
    %7771 = vmatpush1.msra.mxu0 0.0
    %7772 = vmatprep.subr.mxu0 0.0
    %7773 = vmatpush1.msra.mxu0 0.0
    %7774 = vmatprep.subr.mxu0 0.0
    %7775 = vmatpush1.msra.mxu0 0.0
    %7776 = vmatprep.subr.mxu0 0.0
    %7777 = vmatpush1.msra.mxu0 0.0
    %7778 = vmatprep.subr.mxu0 0.0
    %7779 = vmatpush1.msra.mxu0 0.0
    %7780 = vmatprep.subr.mxu0 0.0
    %7781 = vmatpush1.msra.mxu0 0.0
    %7782 = vmatprep.subr.mxu0 0.0
    %7783 = vmatpush1.msra.mxu0 0.0
    %7784 = vmatprep.subr.mxu0 0.0
    %7785 = vmatpush1.msra.mxu0 0.0
    %7786 = vmatprep.subr.mxu0 0.0
    %7787 = vmatpush1.msra.mxu0 0.0
    %7788 = vmatprep.subr.mxu0 0.0
    %7789 = vmatpush1.msra.mxu0 0.0
    %7790 = vmatprep.subr.mxu0 0.0
    %7791 = vmatpush1.msra.mxu0 0.0
    %7792 = vmatprep.subr.mxu0 0.0
    %7793 = vmatpush1.msra.mxu0 0.0
    %7794 = vmatprep.subr.mxu0 0.0
    %7795 = vmatpush1.msra.mxu0 0.0
    %7796 = vmatprep.subr.mxu0 0.0
    %7797 = vmatpush1.msra.mxu0 0.0
    %7798 = vmatprep.subr.mxu0 0.0
    %7799 = vmatpush1.msra.mxu0 0.0
    %7800 = vmatprep.subr.mxu0 0.0
    %7801 = vmatpush1.msra.mxu0 0.0
    %7802 = vmatprep.subr.mxu0 0.0
    %7803 = vmatpush1.msra.mxu0 0.0
    %7804 = vmatprep.mubr.f32.mxu0 0.0
    %v7805 = vand.u32 %v7399, 4294901760
    %7806 = vmatmul.mubr.f32.gmra.mrb[0].mxu0 %v7805
    %v7807 = vpop.f32.mrb[0].mxu0
    %v7808 = vadd.f32 %v7725, %v7807
    %v7809 = vpop.f32.mrb[0].mxu0
    %7810 = vdwg.mxu0
    %7811 = vmatprep.subr.mxu0 0.0
    %v7812 = vand.u32 %v58, 4294901760
    %7813 = vmatpush1.msra.mxu0 %v7812
    %7814 = vmatprep.subr.mxu0 0.0
    %v7815 = vand.u32 %v59, 4294901760
    %7816 = vmatpush1.msra.mxu0 %v7815
    %7817 = vmatprep.subr.mxu0 0.0
    %v7818 = vand.u32 %v60, 4294901760
    %7819 = vmatpush1.msra.mxu0 %v7818
    %7820 = vmatprep.subr.mxu0 0.0
    %v7821 = vand.u32 %v61, 4294901760
    %7822 = vmatpush1.msra.mxu0 %v7821
    %7823 = vmatprep.subr.mxu0 0.0
    %7824 = vmatpush1.msra.mxu0 0.0
    %7825 = vmatprep.subr.mxu0 0.0
    %7826 = vmatpush1.msra.mxu0 0.0
    %7827 = vmatprep.subr.mxu0 0.0
    %7828 = vmatpush1.msra.mxu0 0.0
    %7829 = vmatprep.subr.mxu0 0.0
    %7830 = vmatpush1.msra.mxu0 0.0
    %7831 = vmatprep.subr.mxu0 0.0
    %7832 = vmatpush1.msra.mxu0 0.0
    %7833 = vmatprep.subr.mxu0 0.0
    %7834 = vmatpush1.msra.mxu0 0.0
    %7835 = vmatprep.subr.mxu0 0.0
    %7836 = vmatpush1.msra.mxu0 0.0
    %7837 = vmatprep.subr.mxu0 0.0
    %7838 = vmatpush1.msra.mxu0 0.0
    %7839 = vmatprep.subr.mxu0 0.0
    %7840 = vmatpush1.msra.mxu0 0.0
    %7841 = vmatprep.subr.mxu0 0.0
    %7842 = vmatpush1.msra.mxu0 0.0
    %7843 = vmatprep.subr.mxu0 0.0
    %7844 = vmatpush1.msra.mxu0 0.0
    %7845 = vmatprep.subr.mxu0 0.0
    %7846 = vmatpush1.msra.mxu0 0.0
    %7847 = vmatprep.subr.mxu0 0.0
    %7848 = vmatpush1.msra.mxu0 0.0
    %7849 = vmatprep.subr.mxu0 0.0
    %7850 = vmatpush1.msra.mxu0 0.0
    %7851 = vmatprep.subr.mxu0 0.0
    %7852 = vmatpush1.msra.mxu0 0.0
    %7853 = vmatprep.subr.mxu0 0.0
    %7854 = vmatpush1.msra.mxu0 0.0
    %7855 = vmatprep.subr.mxu0 0.0
    %7856 = vmatpush1.msra.mxu0 0.0
    %7857 = vmatprep.subr.mxu0 0.0
    %7858 = vmatpush1.msra.mxu0 0.0
    %7859 = vmatprep.subr.mxu0 0.0
    %7860 = vmatpush1.msra.mxu0 0.0
    %7861 = vmatprep.subr.mxu0 0.0
    %7862 = vmatpush1.msra.mxu0 0.0
    %7863 = vmatprep.subr.mxu0 0.0
    %7864 = vmatpush1.msra.mxu0 0.0
    %7865 = vmatprep.subr.mxu0 0.0
    %7866 = vmatpush1.msra.mxu0 0.0
    %7867 = vmatprep.subr.mxu0 0.0
    %7868 = vmatpush1.msra.mxu0 0.0
    %7869 = vmatprep.subr.mxu0 0.0
    %7870 = vmatpush1.msra.mxu0 0.0
    %7871 = vmatprep.subr.mxu0 0.0
    %7872 = vmatpush1.msra.mxu0 0.0
    %7873 = vmatprep.subr.mxu0 0.0
    %7874 = vmatpush1.msra.mxu0 0.0
    %7875 = vmatprep.subr.mxu0 0.0
    %7876 = vmatpush1.msra.mxu0 0.0
    %7877 = vmatprep.subr.mxu0 0.0
    %7878 = vmatpush1.msra.mxu0 0.0
    %7879 = vmatprep.mubr.f32.mxu0 0.0
    %v7880 = vand.u32 %v7399, 4294901760
    %7881 = vmatmul.mubr.f32.gmra.mrb[0].mxu0 %v7880
    %v7882 = vpop.f32.mrb[0].mxu0
    %v7883 = vadd.f32 %v7808, %v7882
    %v7884 = vpop.f32.mrb[0].mxu0
    %7885 = vdwg.mxu0
    %v7886 = vsel %vm1158, %v7883, -inf
    %7887 = vmax.xlane.f32.xlu0 %v7886
    %v7888 = vpop.xlane.xlu0 %7887
    %vm7889 = vcmp.eq.f32.partialorder %v7883, %v7888
    %v7890 = vsel %vm7889, %v64, 8
    %v7891 = vsel %vm1158, %v7890, 2147483647
    %v7892 = vand.u32 %v7891, 65535
    %v7893 = vshra.s32 %v7891, 16
    %v7894 = vcvt.s32.f32 %v7892
    %v7895 = vcvt.s32.f32 %v7893
    %7896 = vmin.xlane.f32.xlu0 %v7895
    %v7897 = vpop.xlane.xlu0 %7896
    %vm7898 = vcmp.eq.f32.partialorder %v7895, %v7897
    %v7899 = vsel %vm7898, %v7894, inf
    %7900 = vmin.xlane.f32.xlu0 %v7899
    %v7901 = vpop.xlane.xlu0 %7900
    %v7902 = vcvt.f32.s32 %v7901
    %v7903 = vcvt.f32.s32 %v7897
    %v7904 = vshll.u32 %v7903, 16
    %v7905 = vadd.s32 %v7904, %v7902
    %v7906 = vcvt.s32.f32 %v7905
    %vm7907 = vcmp.gt.f32.partialorder %v6824, 0.5
    %v7908 = vsel %vm7907, -1e+30, %v7883
    %v7909 = vsel %vm1158, %v7908, -inf
    %7910 = vmax.xlane.f32.xlu0 %v7909
    %v7911 = vpop.xlane.xlu0 %7910
    %vm7912 = vcmp.eq.f32.partialorder %v7908, %v7911
    %v7913 = vsel %vm7912, %v64, 8
    %v7914 = vsel %vm1158, %v7913, 2147483647
    %v7915 = vand.u32 %v7914, 65535
    %v7916 = vshra.s32 %v7914, 16
    %v7917 = vcvt.s32.f32 %v7915
    %v7918 = vcvt.s32.f32 %v7916
    %7919 = vmin.xlane.f32.xlu0 %v7918
    %v7920 = vpop.xlane.xlu0 %7919
    %vm7921 = vcmp.eq.f32.partialorder %v7918, %v7920
    %v7922 = vsel %vm7921, %v7917, inf
    %7923 = vmin.xlane.f32.xlu0 %v7922
    %v7924 = vpop.xlane.xlu0 %7923
    %v7925 = vcvt.f32.s32 %v7924
    %v7926 = vcvt.f32.s32 %v7920
    %v7927 = vshll.u32 %v7926, 16
    %v7928 = vadd.s32 %v7927, %v7925
    %v7929 = vsub.f32 %v7908, %v7911
    %v7930 = vmul.f32 %v7929, 1.442695
    %v7931 = vpow.pop %v7930
    %v7932 = vsel %vm1158, %v7931, 0.0
    %7933 = vadd.xlane.f32.xlu0 %v7932
    %v7934 = vpop.xlane.xlu0 %7933
    %v7935 = vlog2.pop %v7934
    %v7936 = vmul.f32 %v7935, 0.6931472
    %v7937 = vsub.f32 0.0, %v7936
    %v7938 = vcvt.s32.f32 %v7928
    %vm7939 = vcmask 50224
    %7940 = vst.msk [vmem:[#allocation5] sm:$0x3] %vm7939, %v7938
    %7941 = vst.msk [vmem:[#allocation6] sm:$0x3] %vm7939, %v7937
    %vm7942 = vcmp.eq.s32.totalorder %v64, %v7928
    %v7943 = vsel %vm7942, 1, 0
    %v7944 = vcvt.s32.f32 %v7943
    %v7945 = vmax.f32 %v6824, %v7944
    %v7946 = vmul.f32 %v7906, %v71
    %v7947 = vadd.f32 %v7946, %v77
    %v7948 = vmax.f32 %v7947, 0.0
    %7949 = vrot.lane.b32.xlu0 %v7395, 64
    %v7950 = vpop.permute.xlu0 %7949
    %v7952 = vsel %vm85, %v7948, %v7950
    %v7954 = vsel %vm93, %v7952, 0
    %7956 = vmatprep.subr.mxu0 0.0
    %v7957 = vand.u32 %v49, 4294901760
    %7958 = vmatpush1.msra.mxu0 %v7957
    %7959 = vmatprep.subr.mxu0 0.0
    %v7960 = vand.u32 %v50, 4294901760
    %7961 = vmatpush1.msra.mxu0 %v7960
    %7962 = vmatprep.subr.mxu0 0.0
    %v7963 = vand.u32 %v51, 4294901760
    %7964 = vmatpush1.msra.mxu0 %v7963
    %7965 = vmatprep.subr.mxu0 0.0
    %v7966 = vand.u32 %v52, 4294901760
    %7967 = vmatpush1.msra.mxu0 %v7966
    %7968 = vmatprep.subr.mxu0 0.0
    %v7969 = vand.u32 %v53, 4294901760
    %7970 = vmatpush1.msra.mxu0 %v7969
    %7971 = vmatprep.subr.mxu0 0.0
    %v7972 = vand.u32 %v54, 4294901760
    %7973 = vmatpush1.msra.mxu0 %v7972
    %7974 = vmatprep.subr.mxu0 0.0
    %v7975 = vand.u32 %v55, 4294901760
    %7976 = vmatpush1.msra.mxu0 %v7975
    %7977 = vmatprep.subr.mxu0 0.0
    %v7978 = vand.u32 %v56, 4294901760
    %7979 = vmatpush1.msra.mxu0 %v7978
    %7980 = vmatprep.subr.mxu0 0.0
    %7981 = vmatpush1.msra.mxu0 0.0
    %7982 = vmatprep.subr.mxu0 0.0
    %7983 = vmatpush1.msra.mxu0 0.0
    %7984 = vmatprep.subr.mxu0 0.0
    %7985 = vmatpush1.msra.mxu0 0.0
    %7986 = vmatprep.subr.mxu0 0.0
    %7987 = vmatpush1.msra.mxu0 0.0
    %7988 = vmatprep.subr.mxu0 0.0
    %7989 = vmatpush1.msra.mxu0 0.0
    %7990 = vmatprep.subr.mxu0 0.0
    %7991 = vmatpush1.msra.mxu0 0.0
    %7992 = vmatprep.subr.mxu0 0.0
    %7993 = vmatpush1.msra.mxu0 0.0
    %7994 = vmatprep.subr.mxu0 0.0
    %7995 = vmatpush1.msra.mxu0 0.0
    %7996 = vmatprep.subr.mxu0 0.0
    %7997 = vmatpush1.msra.mxu0 0.0
    %7998 = vmatprep.subr.mxu0 0.0
    %7999 = vmatpush1.msra.mxu0 0.0
    %8000 = vmatprep.subr.mxu0 0.0
    %8001 = vmatpush1.msra.mxu0 0.0
    %8002 = vmatprep.subr.mxu0 0.0
    %8003 = vmatpush1.msra.mxu0 0.0
    %8004 = vmatprep.subr.mxu0 0.0
    %8005 = vmatpush1.msra.mxu0 0.0
    %8006 = vmatprep.subr.mxu0 0.0
    %8007 = vmatpush1.msra.mxu0 0.0
    %8008 = vmatprep.subr.mxu0 0.0
    %8009 = vmatpush1.msra.mxu0 0.0
    %8010 = vmatprep.subr.mxu0 0.0
    %8011 = vmatpush1.msra.mxu0 0.0
    %8012 = vmatprep.subr.mxu0 0.0
    %8013 = vmatpush1.msra.mxu0 0.0
    %8014 = vmatprep.subr.mxu0 0.0
    %8015 = vmatpush1.msra.mxu0 0.0
    %8016 = vmatprep.subr.mxu0 0.0
    %8017 = vmatpush1.msra.mxu0 0.0
    %8018 = vmatprep.subr.mxu0 0.0
    %8019 = vmatpush1.msra.mxu0 0.0
    %8020 = vmatprep.subr.mxu0 0.0
    %8021 = vmatpush1.msra.mxu0 0.0
    %8022 = vmatprep.subr.mxu0 0.0
    %8023 = vmatpush1.msra.mxu0 0.0
    %8024 = vmatprep.subr.mxu0 0.0
    %8025 = vmatpush1.msra.mxu0 0.0
    %8026 = vmatprep.subr.mxu0 0.0
    %8027 = vmatpush1.msra.mxu0 0.0
    %8028 = vmatprep.mubr.f32.mxu0 0.0
    %v8029 = vand.u32 %v7954, 4294901760
    %v8030 = vsub.f32 %v7954, %v8029
    %v8031 = vand.u32 %v8030, 4294901760
    %v8032 = vsub.f32 %v8030, %v8031
    %v8033 = vand.u32 %v8032, 4294901760
    %8034 = vmatmul.mubr.f32.gmra.mrb[0].mxu0 %v8033
    %v8035 = vpop.f32.mrb[0].mxu0
    %v8036 = vadd.f32 %v91, %v8035
    %v8037 = vpop.f32.mrb[0].mxu0
    %8038 = vdwg.mxu0
    %8039 = vmatprep.subr.mxu0 0.0
    %v8040 = vand.u32 %v49, 4294901760
    %v8041 = vsub.f32 %v49, %v8040
    %v8042 = vand.u32 %v8041, 4294901760
    %v8043 = vsub.f32 %v8041, %v8042
    %v8044 = vand.u32 %v8043, 4294901760
    %8045 = vmatpush1.msra.mxu0 %v8044
    %8046 = vmatprep.subr.mxu0 0.0
    %v8047 = vand.u32 %v50, 4294901760
    %v8048 = vsub.f32 %v50, %v8047
    %v8049 = vand.u32 %v8048, 4294901760
    %v8050 = vsub.f32 %v8048, %v8049
    %v8051 = vand.u32 %v8050, 4294901760
    %8052 = vmatpush1.msra.mxu0 %v8051
    %8053 = vmatprep.subr.mxu0 0.0
    %v8054 = vand.u32 %v51, 4294901760
    %v8055 = vsub.f32 %v51, %v8054
    %v8056 = vand.u32 %v8055, 4294901760
    %v8057 = vsub.f32 %v8055, %v8056
    %v8058 = vand.u32 %v8057, 4294901760
    %8059 = vmatpush1.msra.mxu0 %v8058
    %8060 = vmatprep.subr.mxu0 0.0
    %v8061 = vand.u32 %v52, 4294901760
    %v8062 = vsub.f32 %v52, %v8061
    %v8063 = vand.u32 %v8062, 4294901760
    %v8064 = vsub.f32 %v8062, %v8063
    %v8065 = vand.u32 %v8064, 4294901760
    %8066 = vmatpush1.msra.mxu0 %v8065
    %8067 = vmatprep.subr.mxu0 0.0
    %v8068 = vand.u32 %v53, 4294901760
    %v8069 = vsub.f32 %v53, %v8068
    %v8070 = vand.u32 %v8069, 4294901760
    %v8071 = vsub.f32 %v8069, %v8070
    %v8072 = vand.u32 %v8071, 4294901760
    %8073 = vmatpush1.msra.mxu0 %v8072
    %8074 = vmatprep.subr.mxu0 0.0
    %v8075 = vand.u32 %v54, 4294901760
    %v8076 = vsub.f32 %v54, %v8075
    %v8077 = vand.u32 %v8076, 4294901760
    %v8078 = vsub.f32 %v8076, %v8077
    %v8079 = vand.u32 %v8078, 4294901760
    %8080 = vmatpush1.msra.mxu0 %v8079
    %8081 = vmatprep.subr.mxu0 0.0
    %v8082 = vand.u32 %v55, 4294901760
    %v8083 = vsub.f32 %v55, %v8082
    %v8084 = vand.u32 %v8083, 4294901760
    %v8085 = vsub.f32 %v8083, %v8084
    %v8086 = vand.u32 %v8085, 4294901760
    %8087 = vmatpush1.msra.mxu0 %v8086
    %8088 = vmatprep.subr.mxu0 0.0
    %v8089 = vand.u32 %v56, 4294901760
    %v8090 = vsub.f32 %v56, %v8089
    %v8091 = vand.u32 %v8090, 4294901760
    %v8092 = vsub.f32 %v8090, %v8091
    %v8093 = vand.u32 %v8092, 4294901760
    %8094 = vmatpush1.msra.mxu0 %v8093
    %8095 = vmatprep.subr.mxu0 0.0
    %8096 = vmatpush1.msra.mxu0 0.0
    %8097 = vmatprep.subr.mxu0 0.0
    %8098 = vmatpush1.msra.mxu0 0.0
    %8099 = vmatprep.subr.mxu0 0.0
    %8100 = vmatpush1.msra.mxu0 0.0
    %8101 = vmatprep.subr.mxu0 0.0
    %8102 = vmatpush1.msra.mxu0 0.0
    %8103 = vmatprep.subr.mxu0 0.0
    %8104 = vmatpush1.msra.mxu0 0.0
    %8105 = vmatprep.subr.mxu0 0.0
    %8106 = vmatpush1.msra.mxu0 0.0
    %8107 = vmatprep.subr.mxu0 0.0
    %8108 = vmatpush1.msra.mxu0 0.0
    %8109 = vmatprep.subr.mxu0 0.0
    %8110 = vmatpush1.msra.mxu0 0.0
    %8111 = vmatprep.subr.mxu0 0.0
    %8112 = vmatpush1.msra.mxu0 0.0
    %8113 = vmatprep.subr.mxu0 0.0
    %8114 = vmatpush1.msra.mxu0 0.0
    %8115 = vmatprep.subr.mxu0 0.0
    %8116 = vmatpush1.msra.mxu0 0.0
    %8117 = vmatprep.subr.mxu0 0.0
    %8118 = vmatpush1.msra.mxu0 0.0
    %8119 = vmatprep.subr.mxu0 0.0
    %8120 = vmatpush1.msra.mxu0 0.0
    %8121 = vmatprep.subr.mxu0 0.0
    %8122 = vmatpush1.msra.mxu0 0.0
    %8123 = vmatprep.subr.mxu0 0.0
    %8124 = vmatpush1.msra.mxu0 0.0
    %8125 = vmatprep.subr.mxu0 0.0
    %8126 = vmatpush1.msra.mxu0 0.0
    %8127 = vmatprep.subr.mxu0 0.0
    %8128 = vmatpush1.msra.mxu0 0.0
    %8129 = vmatprep.subr.mxu0 0.0
    %8130 = vmatpush1.msra.mxu0 0.0
    %8131 = vmatprep.subr.mxu0 0.0
    %8132 = vmatpush1.msra.mxu0 0.0
    %8133 = vmatprep.subr.mxu0 0.0
    %8134 = vmatpush1.msra.mxu0 0.0
    %8135 = vmatprep.subr.mxu0 0.0
    %8136 = vmatpush1.msra.mxu0 0.0
    %8137 = vmatprep.subr.mxu0 0.0
    %8138 = vmatpush1.msra.mxu0 0.0
    %8139 = vmatprep.subr.mxu0 0.0
    %8140 = vmatpush1.msra.mxu0 0.0
    %8141 = vmatprep.subr.mxu0 0.0
    %8142 = vmatpush1.msra.mxu0 0.0
    %8143 = vmatprep.mubr.f32.mxu0 0.0
    %v8144 = vand.u32 %v7954, 4294901760
    %8145 = vmatmul.mubr.f32.gmra.mrb[0].mxu0 %v8144
    %v8146 = vpop.f32.mrb[0].mxu0
    %v8147 = vadd.f32 %v8036, %v8146
    %v8148 = vpop.f32.mrb[0].mxu0
    %8149 = vdwg.mxu0
    %8150 = vmatprep.subr.mxu0 0.0
    %v8151 = vand.u32 %v49, 4294901760
    %v8152 = vsub.f32 %v49, %v8151
    %8153 = vmatpush1.msra.mxu0 %v8152
    %8154 = vmatprep.subr.mxu0 0.0
    %v8155 = vand.u32 %v50, 4294901760
    %v8156 = vsub.f32 %v50, %v8155
    %8157 = vmatpush1.msra.mxu0 %v8156
    %8158 = vmatprep.subr.mxu0 0.0
    %v8159 = vand.u32 %v51, 4294901760
    %v8160 = vsub.f32 %v51, %v8159
    %8161 = vmatpush1.msra.mxu0 %v8160
    %8162 = vmatprep.subr.mxu0 0.0
    %v8163 = vand.u32 %v52, 4294901760
    %v8164 = vsub.f32 %v52, %v8163
    %8165 = vmatpush1.msra.mxu0 %v8164
    %8166 = vmatprep.subr.mxu0 0.0
    %v8167 = vand.u32 %v53, 4294901760
    %v8168 = vsub.f32 %v53, %v8167
    %8169 = vmatpush1.msra.mxu0 %v8168
    %8170 = vmatprep.subr.mxu0 0.0
    %v8171 = vand.u32 %v54, 4294901760
    %v8172 = vsub.f32 %v54, %v8171
    %8173 = vmatpush1.msra.mxu0 %v8172
    %8174 = vmatprep.subr.mxu0 0.0
    %v8175 = vand.u32 %v55, 4294901760
    %v8176 = vsub.f32 %v55, %v8175
    %8177 = vmatpush1.msra.mxu0 %v8176
    %8178 = vmatprep.subr.mxu0 0.0
    %v8179 = vand.u32 %v56, 4294901760
    %v8180 = vsub.f32 %v56, %v8179
    %8181 = vmatpush1.msra.mxu0 %v8180
    %8182 = vmatprep.subr.mxu0 0.0
    %8183 = vmatpush1.msra.mxu0 0.0
    %8184 = vmatprep.subr.mxu0 0.0
    %8185 = vmatpush1.msra.mxu0 0.0
    %8186 = vmatprep.subr.mxu0 0.0
    %8187 = vmatpush1.msra.mxu0 0.0
    %8188 = vmatprep.subr.mxu0 0.0
    %8189 = vmatpush1.msra.mxu0 0.0
    %8190 = vmatprep.subr.mxu0 0.0
    %8191 = vmatpush1.msra.mxu0 0.0
    %8192 = vmatprep.subr.mxu0 0.0
    %8193 = vmatpush1.msra.mxu0 0.0
    %8194 = vmatprep.subr.mxu0 0.0
    %8195 = vmatpush1.msra.mxu0 0.0
    %8196 = vmatprep.subr.mxu0 0.0
    %8197 = vmatpush1.msra.mxu0 0.0
    %8198 = vmatprep.subr.mxu0 0.0
    %8199 = vmatpush1.msra.mxu0 0.0
    %8200 = vmatprep.subr.mxu0 0.0
    %8201 = vmatpush1.msra.mxu0 0.0
    %8202 = vmatprep.subr.mxu0 0.0
    %8203 = vmatpush1.msra.mxu0 0.0
    %8204 = vmatprep.subr.mxu0 0.0
    %8205 = vmatpush1.msra.mxu0 0.0
    %8206 = vmatprep.subr.mxu0 0.0
    %8207 = vmatpush1.msra.mxu0 0.0
    %8208 = vmatprep.subr.mxu0 0.0
    %8209 = vmatpush1.msra.mxu0 0.0
    %8210 = vmatprep.subr.mxu0 0.0
    %8211 = vmatpush1.msra.mxu0 0.0
    %8212 = vmatprep.subr.mxu0 0.0
    %8213 = vmatpush1.msra.mxu0 0.0
    %8214 = vmatprep.subr.mxu0 0.0
    %8215 = vmatpush1.msra.mxu0 0.0
    %8216 = vmatprep.subr.mxu0 0.0
    %8217 = vmatpush1.msra.mxu0 0.0
    %8218 = vmatprep.subr.mxu0 0.0
    %8219 = vmatpush1.msra.mxu0 0.0
    %8220 = vmatprep.subr.mxu0 0.0
    %8221 = vmatpush1.msra.mxu0 0.0
    %8222 = vmatprep.subr.mxu0 0.0
    %8223 = vmatpush1.msra.mxu0 0.0
    %8224 = vmatprep.subr.mxu0 0.0
    %8225 = vmatpush1.msra.mxu0 0.0
    %8226 = vmatprep.subr.mxu0 0.0
    %8227 = vmatpush1.msra.mxu0 0.0
    %8228 = vmatprep.subr.mxu0 0.0
    %8229 = vmatpush1.msra.mxu0 0.0
    %8230 = vmatprep.mubr.f32.mxu0 0.0
    %v8231 = vand.u32 %v7954, 4294901760
    %v8232 = vsub.f32 %v7954, %v8231
    %8233 = vmatmul.mubr.f32.gmra.mrb[0].mxu0 %v8232
    %v8234 = vpop.f32.mrb[0].mxu0
    %v8235 = vadd.f32 %v8147, %v8234
    %v8236 = vpop.f32.mrb[0].mxu0
    %8237 = vdwg.mxu0
    %8238 = vmatprep.subr.mxu0 0.0
    %v8239 = vand.u32 %v49, 4294901760
    %8240 = vmatpush1.msra.mxu0 %v8239
    %8241 = vmatprep.subr.mxu0 0.0
    %v8242 = vand.u32 %v50, 4294901760
    %8243 = vmatpush1.msra.mxu0 %v8242
    %8244 = vmatprep.subr.mxu0 0.0
    %v8245 = vand.u32 %v51, 4294901760
    %8246 = vmatpush1.msra.mxu0 %v8245
    %8247 = vmatprep.subr.mxu0 0.0
    %v8248 = vand.u32 %v52, 4294901760
    %8249 = vmatpush1.msra.mxu0 %v8248
    %8250 = vmatprep.subr.mxu0 0.0
    %v8251 = vand.u32 %v53, 4294901760
    %8252 = vmatpush1.msra.mxu0 %v8251
    %8253 = vmatprep.subr.mxu0 0.0
    %v8254 = vand.u32 %v54, 4294901760
    %8255 = vmatpush1.msra.mxu0 %v8254
    %8256 = vmatprep.subr.mxu0 0.0
    %v8257 = vand.u32 %v55, 4294901760
    %8258 = vmatpush1.msra.mxu0 %v8257
    %8259 = vmatprep.subr.mxu0 0.0
    %v8260 = vand.u32 %v56, 4294901760
    %8261 = vmatpush1.msra.mxu0 %v8260
    %8262 = vmatprep.subr.mxu0 0.0
    %8263 = vmatpush1.msra.mxu0 0.0
    %8264 = vmatprep.subr.mxu0 0.0
    %8265 = vmatpush1.msra.mxu0 0.0
    %8266 = vmatprep.subr.mxu0 0.0
    %8267 = vmatpush1.msra.mxu0 0.0
    %8268 = vmatprep.subr.mxu0 0.0
    %8269 = vmatpush1.msra.mxu0 0.0
    %8270 = vmatprep.subr.mxu0 0.0
    %8271 = vmatpush1.msra.mxu0 0.0
    %8272 = vmatprep.subr.mxu0 0.0
    %8273 = vmatpush1.msra.mxu0 0.0
    %8274 = vmatprep.subr.mxu0 0.0
    %8275 = vmatpush1.msra.mxu0 0.0
    %8276 = vmatprep.subr.mxu0 0.0
    %8277 = vmatpush1.msra.mxu0 0.0
    %8278 = vmatprep.subr.mxu0 0.0
    %8279 = vmatpush1.msra.mxu0 0.0
    %8280 = vmatprep.subr.mxu0 0.0
    %8281 = vmatpush1.msra.mxu0 0.0
    %8282 = vmatprep.subr.mxu0 0.0
    %8283 = vmatpush1.msra.mxu0 0.0
    %8284 = vmatprep.subr.mxu0 0.0
    %8285 = vmatpush1.msra.mxu0 0.0
    %8286 = vmatprep.subr.mxu0 0.0
    %8287 = vmatpush1.msra.mxu0 0.0
    %8288 = vmatprep.subr.mxu0 0.0
    %8289 = vmatpush1.msra.mxu0 0.0
    %8290 = vmatprep.subr.mxu0 0.0
    %8291 = vmatpush1.msra.mxu0 0.0
    %8292 = vmatprep.subr.mxu0 0.0
    %8293 = vmatpush1.msra.mxu0 0.0
    %8294 = vmatprep.subr.mxu0 0.0
    %8295 = vmatpush1.msra.mxu0 0.0
    %8296 = vmatprep.subr.mxu0 0.0
    %8297 = vmatpush1.msra.mxu0 0.0
    %8298 = vmatprep.subr.mxu0 0.0
    %8299 = vmatpush1.msra.mxu0 0.0
    %8300 = vmatprep.subr.mxu0 0.0
    %8301 = vmatpush1.msra.mxu0 0.0
    %8302 = vmatprep.subr.mxu0 0.0
    %8303 = vmatpush1.msra.mxu0 0.0
    %8304 = vmatprep.subr.mxu0 0.0
    %8305 = vmatpush1.msra.mxu0 0.0
    %8306 = vmatprep.subr.mxu0 0.0
    %8307 = vmatpush1.msra.mxu0 0.0
    %8308 = vmatprep.subr.mxu0 0.0
    %8309 = vmatpush1.msra.mxu0 0.0
    %8310 = vmatprep.mubr.f32.mxu0 0.0
    %v8311 = vand.u32 %v7954, 4294901760
    %v8312 = vsub.f32 %v7954, %v8311
    %v8313 = vand.u32 %v8312, 4294901760
    %8314 = vmatmul.mubr.f32.gmra.mrb[0].mxu0 %v8313
    %v8315 = vpop.f32.mrb[0].mxu0
    %v8316 = vadd.f32 %v8235, %v8315
    %v8317 = vpop.f32.mrb[0].mxu0
    %8318 = vdwg.mxu0
    %8319 = vmatprep.subr.mxu0 0.0
    %v8320 = vand.u32 %v49, 4294901760
    %v8321 = vsub.f32 %v49, %v8320
    %v8322 = vand.u32 %v8321, 4294901760
    %8323 = vmatpush1.msra.mxu0 %v8322
    %8324 = vmatprep.subr.mxu0 0.0
    %v8325 = vand.u32 %v50, 4294901760
    %v8326 = vsub.f32 %v50, %v8325
    %v8327 = vand.u32 %v8326, 4294901760
    %8328 = vmatpush1.msra.mxu0 %v8327
    %8329 = vmatprep.subr.mxu0 0.0
    %v8330 = vand.u32 %v51, 4294901760
    %v8331 = vsub.f32 %v51, %v8330
    %v8332 = vand.u32 %v8331, 4294901760
    %8333 = vmatpush1.msra.mxu0 %v8332
    %8334 = vmatprep.subr.mxu0 0.0
    %v8335 = vand.u32 %v52, 4294901760
    %v8336 = vsub.f32 %v52, %v8335
    %v8337 = vand.u32 %v8336, 4294901760
    %8338 = vmatpush1.msra.mxu0 %v8337
    %8339 = vmatprep.subr.mxu0 0.0
    %v8340 = vand.u32 %v53, 4294901760
    %v8341 = vsub.f32 %v53, %v8340
    %v8342 = vand.u32 %v8341, 4294901760
    %8343 = vmatpush1.msra.mxu0 %v8342
    %8344 = vmatprep.subr.mxu0 0.0
    %v8345 = vand.u32 %v54, 4294901760
    %v8346 = vsub.f32 %v54, %v8345
    %v8347 = vand.u32 %v8346, 4294901760
    %8348 = vmatpush1.msra.mxu0 %v8347
    %8349 = vmatprep.subr.mxu0 0.0
    %v8350 = vand.u32 %v55, 4294901760
    %v8351 = vsub.f32 %v55, %v8350
    %v8352 = vand.u32 %v8351, 4294901760
    %8353 = vmatpush1.msra.mxu0 %v8352
    %8354 = vmatprep.subr.mxu0 0.0
    %v8355 = vand.u32 %v56, 4294901760
    %v8356 = vsub.f32 %v56, %v8355
    %v8357 = vand.u32 %v8356, 4294901760
    %8358 = vmatpush1.msra.mxu0 %v8357
    %8359 = vmatprep.subr.mxu0 0.0
    %8360 = vmatpush1.msra.mxu0 0.0
    %8361 = vmatprep.subr.mxu0 0.0
    %8362 = vmatpush1.msra.mxu0 0.0
    %8363 = vmatprep.subr.mxu0 0.0
    %8364 = vmatpush1.msra.mxu0 0.0
    %8365 = vmatprep.subr.mxu0 0.0
    %8366 = vmatpush1.msra.mxu0 0.0
    %8367 = vmatprep.subr.mxu0 0.0
    %8368 = vmatpush1.msra.mxu0 0.0
    %8369 = vmatprep.subr.mxu0 0.0
    %8370 = vmatpush1.msra.mxu0 0.0
    %8371 = vmatprep.subr.mxu0 0.0
    %8372 = vmatpush1.msra.mxu0 0.0
    %8373 = vmatprep.subr.mxu0 0.0
    %8374 = vmatpush1.msra.mxu0 0.0
    %8375 = vmatprep.subr.mxu0 0.0
    %8376 = vmatpush1.msra.mxu0 0.0
    %8377 = vmatprep.subr.mxu0 0.0
    %8378 = vmatpush1.msra.mxu0 0.0
    %8379 = vmatprep.subr.mxu0 0.0
    %8380 = vmatpush1.msra.mxu0 0.0
    %8381 = vmatprep.subr.mxu0 0.0
    %8382 = vmatpush1.msra.mxu0 0.0
    %8383 = vmatprep.subr.mxu0 0.0
    %8384 = vmatpush1.msra.mxu0 0.0
    %8385 = vmatprep.subr.mxu0 0.0
    %8386 = vmatpush1.msra.mxu0 0.0
    %8387 = vmatprep.subr.mxu0 0.0
    %8388 = vmatpush1.msra.mxu0 0.0
    %8389 = vmatprep.subr.mxu0 0.0
    %8390 = vmatpush1.msra.mxu0 0.0
    %8391 = vmatprep.subr.mxu0 0.0
    %8392 = vmatpush1.msra.mxu0 0.0
    %8393 = vmatprep.subr.mxu0 0.0
    %8394 = vmatpush1.msra.mxu0 0.0
    %8395 = vmatprep.subr.mxu0 0.0
    %8396 = vmatpush1.msra.mxu0 0.0
    %8397 = vmatprep.subr.mxu0 0.0
    %8398 = vmatpush1.msra.mxu0 0.0
    %8399 = vmatprep.subr.mxu0 0.0
    %8400 = vmatpush1.msra.mxu0 0.0
    %8401 = vmatprep.subr.mxu0 0.0
    %8402 = vmatpush1.msra.mxu0 0.0
    %8403 = vmatprep.subr.mxu0 0.0
    %8404 = vmatpush1.msra.mxu0 0.0
    %8405 = vmatprep.subr.mxu0 0.0
    %8406 = vmatpush1.msra.mxu0 0.0
    %8407 = vmatprep.mubr.f32.mxu0 0.0
    %v8408 = vand.u32 %v7954, 4294901760
    %8409 = vmatmul.mubr.f32.gmra.mrb[0].mxu0 %v8408
    %v8410 = vpop.f32.mrb[0].mxu0
    %v8411 = vadd.f32 %v8316, %v8410
    %v8412 = vpop.f32.mrb[0].mxu0
    %8413 = vdwg.mxu0
    %8414 = vmatprep.subr.mxu0 0.0
    %v8415 = vand.u32 %v49, 4294901760
    %8416 = vmatpush1.msra.mxu0 %v8415
    %8417 = vmatprep.subr.mxu0 0.0
    %v8418 = vand.u32 %v50, 4294901760
    %8419 = vmatpush1.msra.mxu0 %v8418
    %8420 = vmatprep.subr.mxu0 0.0
    %v8421 = vand.u32 %v51, 4294901760
    %8422 = vmatpush1.msra.mxu0 %v8421
    %8423 = vmatprep.subr.mxu0 0.0
    %v8424 = vand.u32 %v52, 4294901760
    %8425 = vmatpush1.msra.mxu0 %v8424
    %8426 = vmatprep.subr.mxu0 0.0
    %v8427 = vand.u32 %v53, 4294901760
    %8428 = vmatpush1.msra.mxu0 %v8427
    %8429 = vmatprep.subr.mxu0 0.0
    %v8430 = vand.u32 %v54, 4294901760
    %8431 = vmatpush1.msra.mxu0 %v8430
    %8432 = vmatprep.subr.mxu0 0.0
    %v8433 = vand.u32 %v55, 4294901760
    %8434 = vmatpush1.msra.mxu0 %v8433
    %8435 = vmatprep.subr.mxu0 0.0
    %v8436 = vand.u32 %v56, 4294901760
    %8437 = vmatpush1.msra.mxu0 %v8436
    %8438 = vmatprep.subr.mxu0 0.0
    %8439 = vmatpush1.msra.mxu0 0.0
    %8440 = vmatprep.subr.mxu0 0.0
    %8441 = vmatpush1.msra.mxu0 0.0
    %8442 = vmatprep.subr.mxu0 0.0
    %8443 = vmatpush1.msra.mxu0 0.0
    %8444 = vmatprep.subr.mxu0 0.0
    %8445 = vmatpush1.msra.mxu0 0.0
    %8446 = vmatprep.subr.mxu0 0.0
    %8447 = vmatpush1.msra.mxu0 0.0
    %8448 = vmatprep.subr.mxu0 0.0
    %8449 = vmatpush1.msra.mxu0 0.0
    %8450 = vmatprep.subr.mxu0 0.0
    %8451 = vmatpush1.msra.mxu0 0.0
    %8452 = vmatprep.subr.mxu0 0.0
    %8453 = vmatpush1.msra.mxu0 0.0
    %8454 = vmatprep.subr.mxu0 0.0
    %8455 = vmatpush1.msra.mxu0 0.0
    %8456 = vmatprep.subr.mxu0 0.0
    %8457 = vmatpush1.msra.mxu0 0.0
    %8458 = vmatprep.subr.mxu0 0.0
    %8459 = vmatpush1.msra.mxu0 0.0
    %8460 = vmatprep.subr.mxu0 0.0
    %8461 = vmatpush1.msra.mxu0 0.0
    %8462 = vmatprep.subr.mxu0 0.0
    %8463 = vmatpush1.msra.mxu0 0.0
    %8464 = vmatprep.subr.mxu0 0.0
    %8465 = vmatpush1.msra.mxu0 0.0
    %8466 = vmatprep.subr.mxu0 0.0
    %8467 = vmatpush1.msra.mxu0 0.0
    %8468 = vmatprep.subr.mxu0 0.0
    %8469 = vmatpush1.msra.mxu0 0.0
    %8470 = vmatprep.subr.mxu0 0.0
    %8471 = vmatpush1.msra.mxu0 0.0
    %8472 = vmatprep.subr.mxu0 0.0
    %8473 = vmatpush1.msra.mxu0 0.0
    %8474 = vmatprep.subr.mxu0 0.0
    %8475 = vmatpush1.msra.mxu0 0.0
    %8476 = vmatprep.subr.mxu0 0.0
    %8477 = vmatpush1.msra.mxu0 0.0
    %8478 = vmatprep.subr.mxu0 0.0
    %8479 = vmatpush1.msra.mxu0 0.0
    %8480 = vmatprep.subr.mxu0 0.0
    %8481 = vmatpush1.msra.mxu0 0.0
    %8482 = vmatprep.subr.mxu0 0.0
    %8483 = vmatpush1.msra.mxu0 0.0
    %8484 = vmatprep.subr.mxu0 0.0
    %8485 = vmatpush1.msra.mxu0 0.0
    %8486 = vmatprep.mubr.f32.mxu0 0.0
    %v8487 = vand.u32 %v7954, 4294901760
    %8488 = vmatmul.mubr.f32.gmra.mrb[0].mxu0 %v8487
    %v8489 = vpop.f32.mrb[0].mxu0
    %v8490 = vadd.f32 %v8411, %v8489
    %v8491 = vpop.f32.mrb[0].mxu0
    %8492 = vdwg.mxu0
    %v8493 = vxor.u32 %v8490, 2147483648
    %v8494 = vmul.f32 %v8493, 1.442695
    %v8495 = vpow.pop %v8494
    %v8496 = vadd.f32 %v8495, 1.0
    %v8497 = vrcp.pop %v8496
    %v8498 = vmul.f32 1.0, %v8497
    %v8499 = vtanh.pop %v8490
    %v8500 = vmul.f32 %v8498, %v7389
    %8502 = vrot.lane.b32.xlu0 %v8499, 64
    %v8503 = vpop.permute.xlu0 %8502
    %v8505 = vmul.f32 %v8498, %v8503
    %8507 = vrot.lane.b32.xlu0 %v8505, 32
    %v8508 = vpop.permute.xlu0 %8507
    %v8510 = vadd.f32 %v8500, %v8508
    %v8511 = vtanh.pop %v8510
    %8513 = vrot.lane.b32.xlu0 %v8511, 64
    %v8514 = vpop.permute.xlu0 %8513
    %v8516 = vmul.f32 %v8498, %v8514
    %8518 = vrot.lane.b32.xlu0 %v8516, 32
    %v8519 = vpop.permute.xlu0 %8518
    %v8520 = vsel %vm85, %v8519, 0
    %8522 = vmatprep.subr.mxu0 0.0
    %v8523 = vand.u32 %v58, 4294901760
    %8524 = vmatpush1.msra.mxu0 %v8523
    %8525 = vmatprep.subr.mxu0 0.0
    %v8526 = vand.u32 %v59, 4294901760
    %8527 = vmatpush1.msra.mxu0 %v8526
    %8528 = vmatprep.subr.mxu0 0.0
    %v8529 = vand.u32 %v60, 4294901760
    %8530 = vmatpush1.msra.mxu0 %v8529
    %8531 = vmatprep.subr.mxu0 0.0
    %v8532 = vand.u32 %v61, 4294901760
    %8533 = vmatpush1.msra.mxu0 %v8532
    %8534 = vmatprep.subr.mxu0 0.0
    %8535 = vmatpush1.msra.mxu0 0.0
    %8536 = vmatprep.subr.mxu0 0.0
    %8537 = vmatpush1.msra.mxu0 0.0
    %8538 = vmatprep.subr.mxu0 0.0
    %8539 = vmatpush1.msra.mxu0 0.0
    %8540 = vmatprep.subr.mxu0 0.0
    %8541 = vmatpush1.msra.mxu0 0.0
    %8542 = vmatprep.subr.mxu0 0.0
    %8543 = vmatpush1.msra.mxu0 0.0
    %8544 = vmatprep.subr.mxu0 0.0
    %8545 = vmatpush1.msra.mxu0 0.0
    %8546 = vmatprep.subr.mxu0 0.0
    %8547 = vmatpush1.msra.mxu0 0.0
    %8548 = vmatprep.subr.mxu0 0.0
    %8549 = vmatpush1.msra.mxu0 0.0
    %8550 = vmatprep.subr.mxu0 0.0
    %8551 = vmatpush1.msra.mxu0 0.0
    %8552 = vmatprep.subr.mxu0 0.0
    %8553 = vmatpush1.msra.mxu0 0.0
    %8554 = vmatprep.subr.mxu0 0.0
    %8555 = vmatpush1.msra.mxu0 0.0
    %8556 = vmatprep.subr.mxu0 0.0
    %8557 = vmatpush1.msra.mxu0 0.0
    %8558 = vmatprep.subr.mxu0 0.0
    %8559 = vmatpush1.msra.mxu0 0.0
    %8560 = vmatprep.subr.mxu0 0.0
    %8561 = vmatpush1.msra.mxu0 0.0
    %8562 = vmatprep.subr.mxu0 0.0
    %8563 = vmatpush1.msra.mxu0 0.0
    %8564 = vmatprep.subr.mxu0 0.0
    %8565 = vmatpush1.msra.mxu0 0.0
    %8566 = vmatprep.subr.mxu0 0.0
    %8567 = vmatpush1.msra.mxu0 0.0
    %8568 = vmatprep.subr.mxu0 0.0
    %8569 = vmatpush1.msra.mxu0 0.0
    %8570 = vmatprep.subr.mxu0 0.0
    %8571 = vmatpush1.msra.mxu0 0.0
    %8572 = vmatprep.subr.mxu0 0.0
    %8573 = vmatpush1.msra.mxu0 0.0
    %8574 = vmatprep.subr.mxu0 0.0
    %8575 = vmatpush1.msra.mxu0 0.0
    %8576 = vmatprep.subr.mxu0 0.0
    %8577 = vmatpush1.msra.mxu0 0.0
    %8578 = vmatprep.subr.mxu0 0.0
    %8579 = vmatpush1.msra.mxu0 0.0
    %8580 = vmatprep.subr.mxu0 0.0
    %8581 = vmatpush1.msra.mxu0 0.0
    %8582 = vmatprep.subr.mxu0 0.0
    %8583 = vmatpush1.msra.mxu0 0.0
    %8584 = vmatprep.subr.mxu0 0.0
    %8585 = vmatpush1.msra.mxu0 0.0
    %8586 = vmatprep.subr.mxu0 0.0
    %8587 = vmatpush1.msra.mxu0 0.0
    %8588 = vmatprep.subr.mxu0 0.0
    %8589 = vmatpush1.msra.mxu0 0.0
    %8590 = vmatprep.mubr.f32.mxu0 0.0
    %v8591 = vand.u32 %v8520, 4294901760
    %v8592 = vsub.f32 %v8520, %v8591
    %v8593 = vand.u32 %v8592, 4294901760
    %v8594 = vsub.f32 %v8592, %v8593
    %v8595 = vand.u32 %v8594, 4294901760
    %8596 = vmatmul.mubr.f32.gmra.mrb[0].mxu0 %v8595
    %v8597 = vpop.f32.mrb[0].mxu0
    %v8598 = vadd.f32 %v666, %v8597
    %v8599 = vpop.f32.mrb[0].mxu0
    %8600 = vdwg.mxu0
    %8601 = vmatprep.subr.mxu0 0.0
    %v8602 = vand.u32 %v58, 4294901760
    %v8603 = vsub.f32 %v58, %v8602
    %v8604 = vand.u32 %v8603, 4294901760
    %v8605 = vsub.f32 %v8603, %v8604
    %v8606 = vand.u32 %v8605, 4294901760
    %8607 = vmatpush1.msra.mxu0 %v8606
    %8608 = vmatprep.subr.mxu0 0.0
    %v8609 = vand.u32 %v59, 4294901760
    %v8610 = vsub.f32 %v59, %v8609
    %v8611 = vand.u32 %v8610, 4294901760
    %v8612 = vsub.f32 %v8610, %v8611
    %v8613 = vand.u32 %v8612, 4294901760
    %8614 = vmatpush1.msra.mxu0 %v8613
    %8615 = vmatprep.subr.mxu0 0.0
    %v8616 = vand.u32 %v60, 4294901760
    %v8617 = vsub.f32 %v60, %v8616
    %v8618 = vand.u32 %v8617, 4294901760
    %v8619 = vsub.f32 %v8617, %v8618
    %v8620 = vand.u32 %v8619, 4294901760
    %8621 = vmatpush1.msra.mxu0 %v8620
    %8622 = vmatprep.subr.mxu0 0.0
    %v8623 = vand.u32 %v61, 4294901760
    %v8624 = vsub.f32 %v61, %v8623
    %v8625 = vand.u32 %v8624, 4294901760
    %v8626 = vsub.f32 %v8624, %v8625
    %v8627 = vand.u32 %v8626, 4294901760
    %8628 = vmatpush1.msra.mxu0 %v8627
    %8629 = vmatprep.subr.mxu0 0.0
    %8630 = vmatpush1.msra.mxu0 0.0
    %8631 = vmatprep.subr.mxu0 0.0
    %8632 = vmatpush1.msra.mxu0 0.0
    %8633 = vmatprep.subr.mxu0 0.0
    %8634 = vmatpush1.msra.mxu0 0.0
    %8635 = vmatprep.subr.mxu0 0.0
    %8636 = vmatpush1.msra.mxu0 0.0
    %8637 = vmatprep.subr.mxu0 0.0
    %8638 = vmatpush1.msra.mxu0 0.0
    %8639 = vmatprep.subr.mxu0 0.0
    %8640 = vmatpush1.msra.mxu0 0.0
    %8641 = vmatprep.subr.mxu0 0.0
    %8642 = vmatpush1.msra.mxu0 0.0
    %8643 = vmatprep.subr.mxu0 0.0
    %8644 = vmatpush1.msra.mxu0 0.0
    %8645 = vmatprep.subr.mxu0 0.0
    %8646 = vmatpush1.msra.mxu0 0.0
    %8647 = vmatprep.subr.mxu0 0.0
    %8648 = vmatpush1.msra.mxu0 0.0
    %8649 = vmatprep.subr.mxu0 0.0
    %8650 = vmatpush1.msra.mxu0 0.0
    %8651 = vmatprep.subr.mxu0 0.0
    %8652 = vmatpush1.msra.mxu0 0.0
    %8653 = vmatprep.subr.mxu0 0.0
    %8654 = vmatpush1.msra.mxu0 0.0
    %8655 = vmatprep.subr.mxu0 0.0
    %8656 = vmatpush1.msra.mxu0 0.0
    %8657 = vmatprep.subr.mxu0 0.0
    %8658 = vmatpush1.msra.mxu0 0.0
    %8659 = vmatprep.subr.mxu0 0.0
    %8660 = vmatpush1.msra.mxu0 0.0
    %8661 = vmatprep.subr.mxu0 0.0
    %8662 = vmatpush1.msra.mxu0 0.0
    %8663 = vmatprep.subr.mxu0 0.0
    %8664 = vmatpush1.msra.mxu0 0.0
    %8665 = vmatprep.subr.mxu0 0.0
    %8666 = vmatpush1.msra.mxu0 0.0
    %8667 = vmatprep.subr.mxu0 0.0
    %8668 = vmatpush1.msra.mxu0 0.0
    %8669 = vmatprep.subr.mxu0 0.0
    %8670 = vmatpush1.msra.mxu0 0.0
    %8671 = vmatprep.subr.mxu0 0.0
    %8672 = vmatpush1.msra.mxu0 0.0
    %8673 = vmatprep.subr.mxu0 0.0
    %8674 = vmatpush1.msra.mxu0 0.0
    %8675 = vmatprep.subr.mxu0 0.0
    %8676 = vmatpush1.msra.mxu0 0.0
    %8677 = vmatprep.subr.mxu0 0.0
    %8678 = vmatpush1.msra.mxu0 0.0
    %8679 = vmatprep.subr.mxu0 0.0
    %8680 = vmatpush1.msra.mxu0 0.0
    %8681 = vmatprep.subr.mxu0 0.0
    %8682 = vmatpush1.msra.mxu0 0.0
    %8683 = vmatprep.subr.mxu0 0.0
    %8684 = vmatpush1.msra.mxu0 0.0
    %8685 = vmatprep.mubr.f32.mxu0 0.0
    %v8686 = vand.u32 %v8520, 4294901760
    %8687 = vmatmul.mubr.f32.gmra.mrb[0].mxu0 %v8686
    %v8688 = vpop.f32.mrb[0].mxu0
    %v8689 = vadd.f32 %v8598, %v8688
    %v8690 = vpop.f32.mrb[0].mxu0
    %8691 = vdwg.mxu0
    %8692 = vmatprep.subr.mxu0 0.0
    %v8693 = vand.u32 %v58, 4294901760
    %v8694 = vsub.f32 %v58, %v8693
    %8695 = vmatpush1.msra.mxu0 %v8694
    %8696 = vmatprep.subr.mxu0 0.0
    %v8697 = vand.u32 %v59, 4294901760
    %v8698 = vsub.f32 %v59, %v8697
    %8699 = vmatpush1.msra.mxu0 %v8698
    %8700 = vmatprep.subr.mxu0 0.0
    %v8701 = vand.u32 %v60, 4294901760
    %v8702 = vsub.f32 %v60, %v8701
    %8703 = vmatpush1.msra.mxu0 %v8702
    %8704 = vmatprep.subr.mxu0 0.0
    %v8705 = vand.u32 %v61, 4294901760
    %v8706 = vsub.f32 %v61, %v8705
    %8707 = vmatpush1.msra.mxu0 %v8706
    %8708 = vmatprep.subr.mxu0 0.0
    %8709 = vmatpush1.msra.mxu0 0.0
    %8710 = vmatprep.subr.mxu0 0.0
    %8711 = vmatpush1.msra.mxu0 0.0
    %8712 = vmatprep.subr.mxu0 0.0
    %8713 = vmatpush1.msra.mxu0 0.0
    %8714 = vmatprep.subr.mxu0 0.0
    %8715 = vmatpush1.msra.mxu0 0.0
    %8716 = vmatprep.subr.mxu0 0.0
    %8717 = vmatpush1.msra.mxu0 0.0
    %8718 = vmatprep.subr.mxu0 0.0
    %8719 = vmatpush1.msra.mxu0 0.0
    %8720 = vmatprep.subr.mxu0 0.0
    %8721 = vmatpush1.msra.mxu0 0.0
    %8722 = vmatprep.subr.mxu0 0.0
    %8723 = vmatpush1.msra.mxu0 0.0
    %8724 = vmatprep.subr.mxu0 0.0
    %8725 = vmatpush1.msra.mxu0 0.0
    %8726 = vmatprep.subr.mxu0 0.0
    %8727 = vmatpush1.msra.mxu0 0.0
    %8728 = vmatprep.subr.mxu0 0.0
    %8729 = vmatpush1.msra.mxu0 0.0
    %8730 = vmatprep.subr.mxu0 0.0
    %8731 = vmatpush1.msra.mxu0 0.0
    %8732 = vmatprep.subr.mxu0 0.0
    %8733 = vmatpush1.msra.mxu0 0.0
    %8734 = vmatprep.subr.mxu0 0.0
    %8735 = vmatpush1.msra.mxu0 0.0
    %8736 = vmatprep.subr.mxu0 0.0
    %8737 = vmatpush1.msra.mxu0 0.0
    %8738 = vmatprep.subr.mxu0 0.0
    %8739 = vmatpush1.msra.mxu0 0.0
    %8740 = vmatprep.subr.mxu0 0.0
    %8741 = vmatpush1.msra.mxu0 0.0
    %8742 = vmatprep.subr.mxu0 0.0
    %8743 = vmatpush1.msra.mxu0 0.0
    %8744 = vmatprep.subr.mxu0 0.0
    %8745 = vmatpush1.msra.mxu0 0.0
    %8746 = vmatprep.subr.mxu0 0.0
    %8747 = vmatpush1.msra.mxu0 0.0
    %8748 = vmatprep.subr.mxu0 0.0
    %8749 = vmatpush1.msra.mxu0 0.0
    %8750 = vmatprep.subr.mxu0 0.0
    %8751 = vmatpush1.msra.mxu0 0.0
    %8752 = vmatprep.subr.mxu0 0.0
    %8753 = vmatpush1.msra.mxu0 0.0
    %8754 = vmatprep.subr.mxu0 0.0
    %8755 = vmatpush1.msra.mxu0 0.0
    %8756 = vmatprep.subr.mxu0 0.0
    %8757 = vmatpush1.msra.mxu0 0.0
    %8758 = vmatprep.subr.mxu0 0.0
    %8759 = vmatpush1.msra.mxu0 0.0
    %8760 = vmatprep.subr.mxu0 0.0
    %8761 = vmatpush1.msra.mxu0 0.0
    %8762 = vmatprep.subr.mxu0 0.0
    %8763 = vmatpush1.msra.mxu0 0.0
    %8764 = vmatprep.mubr.f32.mxu0 0.0
    %v8765 = vand.u32 %v8520, 4294901760
    %v8766 = vsub.f32 %v8520, %v8765
    %8767 = vmatmul.mubr.f32.gmra.mrb[0].mxu0 %v8766
    %v8768 = vpop.f32.mrb[0].mxu0
    %v8769 = vadd.f32 %v8689, %v8768
    %v8770 = vpop.f32.mrb[0].mxu0
    %8771 = vdwg.mxu0
    %8772 = vmatprep.subr.mxu0 0.0
    %v8773 = vand.u32 %v58, 4294901760
    %8774 = vmatpush1.msra.mxu0 %v8773
    %8775 = vmatprep.subr.mxu0 0.0
    %v8776 = vand.u32 %v59, 4294901760
    %8777 = vmatpush1.msra.mxu0 %v8776
    %8778 = vmatprep.subr.mxu0 0.0
    %v8779 = vand.u32 %v60, 4294901760
    %8780 = vmatpush1.msra.mxu0 %v8779
    %8781 = vmatprep.subr.mxu0 0.0
    %v8782 = vand.u32 %v61, 4294901760
    %8783 = vmatpush1.msra.mxu0 %v8782
    %8784 = vmatprep.subr.mxu0 0.0
    %8785 = vmatpush1.msra.mxu0 0.0
    %8786 = vmatprep.subr.mxu0 0.0
    %8787 = vmatpush1.msra.mxu0 0.0
    %8788 = vmatprep.subr.mxu0 0.0
    %8789 = vmatpush1.msra.mxu0 0.0
    %8790 = vmatprep.subr.mxu0 0.0
    %8791 = vmatpush1.msra.mxu0 0.0
    %8792 = vmatprep.subr.mxu0 0.0
    %8793 = vmatpush1.msra.mxu0 0.0
    %8794 = vmatprep.subr.mxu0 0.0
    %8795 = vmatpush1.msra.mxu0 0.0
    %8796 = vmatprep.subr.mxu0 0.0
    %8797 = vmatpush1.msra.mxu0 0.0
    %8798 = vmatprep.subr.mxu0 0.0
    %8799 = vmatpush1.msra.mxu0 0.0
    %8800 = vmatprep.subr.mxu0 0.0
    %8801 = vmatpush1.msra.mxu0 0.0
    %8802 = vmatprep.subr.mxu0 0.0
    %8803 = vmatpush1.msra.mxu0 0.0
    %8804 = vmatprep.subr.mxu0 0.0
    %8805 = vmatpush1.msra.mxu0 0.0
    %8806 = vmatprep.subr.mxu0 0.0
    %8807 = vmatpush1.msra.mxu0 0.0
    %8808 = vmatprep.subr.mxu0 0.0
    %8809 = vmatpush1.msra.mxu0 0.0
    %8810 = vmatprep.subr.mxu0 0.0
    %8811 = vmatpush1.msra.mxu0 0.0
    %8812 = vmatprep.subr.mxu0 0.0
    %8813 = vmatpush1.msra.mxu0 0.0
    %8814 = vmatprep.subr.mxu0 0.0
    %8815 = vmatpush1.msra.mxu0 0.0
    %8816 = vmatprep.subr.mxu0 0.0
    %8817 = vmatpush1.msra.mxu0 0.0
    %8818 = vmatprep.subr.mxu0 0.0
    %8819 = vmatpush1.msra.mxu0 0.0
    %8820 = vmatprep.subr.mxu0 0.0
    %8821 = vmatpush1.msra.mxu0 0.0
    %8822 = vmatprep.subr.mxu0 0.0
    %8823 = vmatpush1.msra.mxu0 0.0
    %8824 = vmatprep.subr.mxu0 0.0
    %8825 = vmatpush1.msra.mxu0 0.0
    %8826 = vmatprep.subr.mxu0 0.0
    %8827 = vmatpush1.msra.mxu0 0.0
    %8828 = vmatprep.subr.mxu0 0.0
    %8829 = vmatpush1.msra.mxu0 0.0
    %8830 = vmatprep.subr.mxu0 0.0
    %8831 = vmatpush1.msra.mxu0 0.0
    %8832 = vmatprep.subr.mxu0 0.0
    %8833 = vmatpush1.msra.mxu0 0.0
    %8834 = vmatprep.subr.mxu0 0.0
    %8835 = vmatpush1.msra.mxu0 0.0
    %8836 = vmatprep.subr.mxu0 0.0
    %8837 = vmatpush1.msra.mxu0 0.0
    %8838 = vmatprep.subr.mxu0 0.0
    %8839 = vmatpush1.msra.mxu0 0.0
    %8840 = vmatprep.mubr.f32.mxu0 0.0
    %v8841 = vand.u32 %v8520, 4294901760
    %v8842 = vsub.f32 %v8520, %v8841
    %v8843 = vand.u32 %v8842, 4294901760
    %8844 = vmatmul.mubr.f32.gmra.mrb[0].mxu0 %v8843
    %v8845 = vpop.f32.mrb[0].mxu0
    %v8846 = vadd.f32 %v8769, %v8845
    %v8847 = vpop.f32.mrb[0].mxu0
    %8848 = vdwg.mxu0
    %8849 = vmatprep.subr.mxu0 0.0
    %v8850 = vand.u32 %v58, 4294901760
    %v8851 = vsub.f32 %v58, %v8850
    %v8852 = vand.u32 %v8851, 4294901760
    %8853 = vmatpush1.msra.mxu0 %v8852
    %8854 = vmatprep.subr.mxu0 0.0
    %v8855 = vand.u32 %v59, 4294901760
    %v8856 = vsub.f32 %v59, %v8855
    %v8857 = vand.u32 %v8856, 4294901760
    %8858 = vmatpush1.msra.mxu0 %v8857
    %8859 = vmatprep.subr.mxu0 0.0
    %v8860 = vand.u32 %v60, 4294901760
    %v8861 = vsub.f32 %v60, %v8860
    %v8862 = vand.u32 %v8861, 4294901760
    %8863 = vmatpush1.msra.mxu0 %v8862
    %8864 = vmatprep.subr.mxu0 0.0
    %v8865 = vand.u32 %v61, 4294901760
    %v8866 = vsub.f32 %v61, %v8865
    %v8867 = vand.u32 %v8866, 4294901760
    %8868 = vmatpush1.msra.mxu0 %v8867
    %8869 = vmatprep.subr.mxu0 0.0
    %8870 = vmatpush1.msra.mxu0 0.0
    %8871 = vmatprep.subr.mxu0 0.0
    %8872 = vmatpush1.msra.mxu0 0.0
    %8873 = vmatprep.subr.mxu0 0.0
    %8874 = vmatpush1.msra.mxu0 0.0
    %8875 = vmatprep.subr.mxu0 0.0
    %8876 = vmatpush1.msra.mxu0 0.0
    %8877 = vmatprep.subr.mxu0 0.0
    %8878 = vmatpush1.msra.mxu0 0.0
    %8879 = vmatprep.subr.mxu0 0.0
    %8880 = vmatpush1.msra.mxu0 0.0
    %8881 = vmatprep.subr.mxu0 0.0
    %8882 = vmatpush1.msra.mxu0 0.0
    %8883 = vmatprep.subr.mxu0 0.0
    %8884 = vmatpush1.msra.mxu0 0.0
    %8885 = vmatprep.subr.mxu0 0.0
    %8886 = vmatpush1.msra.mxu0 0.0
    %8887 = vmatprep.subr.mxu0 0.0
    %8888 = vmatpush1.msra.mxu0 0.0
    %8889 = vmatprep.subr.mxu0 0.0
    %8890 = vmatpush1.msra.mxu0 0.0
    %8891 = vmatprep.subr.mxu0 0.0
    %8892 = vmatpush1.msra.mxu0 0.0
    %8893 = vmatprep.subr.mxu0 0.0
    %8894 = vmatpush1.msra.mxu0 0.0
    %8895 = vmatprep.subr.mxu0 0.0
    %8896 = vmatpush1.msra.mxu0 0.0
    %8897 = vmatprep.subr.mxu0 0.0
    %8898 = vmatpush1.msra.mxu0 0.0
    %8899 = vmatprep.subr.mxu0 0.0
    %8900 = vmatpush1.msra.mxu0 0.0
    %8901 = vmatprep.subr.mxu0 0.0
    %8902 = vmatpush1.msra.mxu0 0.0
    %8903 = vmatprep.subr.mxu0 0.0
    %8904 = vmatpush1.msra.mxu0 0.0
    %8905 = vmatprep.subr.mxu0 0.0
    %8906 = vmatpush1.msra.mxu0 0.0
    %8907 = vmatprep.subr.mxu0 0.0
    %8908 = vmatpush1.msra.mxu0 0.0
    %8909 = vmatprep.subr.mxu0 0.0
    %8910 = vmatpush1.msra.mxu0 0.0
    %8911 = vmatprep.subr.mxu0 0.0
    %8912 = vmatpush1.msra.mxu0 0.0
    %8913 = vmatprep.subr.mxu0 0.0
    %8914 = vmatpush1.msra.mxu0 0.0
    %8915 = vmatprep.subr.mxu0 0.0
    %8916 = vmatpush1.msra.mxu0 0.0
    %8917 = vmatprep.subr.mxu0 0.0
    %8918 = vmatpush1.msra.mxu0 0.0
    %8919 = vmatprep.subr.mxu0 0.0
    %8920 = vmatpush1.msra.mxu0 0.0
    %8921 = vmatprep.subr.mxu0 0.0
    %8922 = vmatpush1.msra.mxu0 0.0
    %8923 = vmatprep.subr.mxu0 0.0
    %8924 = vmatpush1.msra.mxu0 0.0
    %8925 = vmatprep.mubr.f32.mxu0 0.0
    %v8926 = vand.u32 %v8520, 4294901760
    %8927 = vmatmul.mubr.f32.gmra.mrb[0].mxu0 %v8926
    %v8928 = vpop.f32.mrb[0].mxu0
    %v8929 = vadd.f32 %v8846, %v8928
    %v8930 = vpop.f32.mrb[0].mxu0
    %8931 = vdwg.mxu0
    %8932 = vmatprep.subr.mxu0 0.0
    %v8933 = vand.u32 %v58, 4294901760
    %8934 = vmatpush1.msra.mxu0 %v8933
    %8935 = vmatprep.subr.mxu0 0.0
    %v8936 = vand.u32 %v59, 4294901760
    %8937 = vmatpush1.msra.mxu0 %v8936
    %8938 = vmatprep.subr.mxu0 0.0
    %v8939 = vand.u32 %v60, 4294901760
    %8940 = vmatpush1.msra.mxu0 %v8939
    %8941 = vmatprep.subr.mxu0 0.0
    %v8942 = vand.u32 %v61, 4294901760
    %8943 = vmatpush1.msra.mxu0 %v8942
    %8944 = vmatprep.subr.mxu0 0.0
    %8945 = vmatpush1.msra.mxu0 0.0
    %8946 = vmatprep.subr.mxu0 0.0
    %8947 = vmatpush1.msra.mxu0 0.0
    %8948 = vmatprep.subr.mxu0 0.0
    %8949 = vmatpush1.msra.mxu0 0.0
    %8950 = vmatprep.subr.mxu0 0.0
    %8951 = vmatpush1.msra.mxu0 0.0
    %8952 = vmatprep.subr.mxu0 0.0
    %8953 = vmatpush1.msra.mxu0 0.0
    %8954 = vmatprep.subr.mxu0 0.0
    %8955 = vmatpush1.msra.mxu0 0.0
    %8956 = vmatprep.subr.mxu0 0.0
    %8957 = vmatpush1.msra.mxu0 0.0
    %8958 = vmatprep.subr.mxu0 0.0
    %8959 = vmatpush1.msra.mxu0 0.0
    %8960 = vmatprep.subr.mxu0 0.0
    %8961 = vmatpush1.msra.mxu0 0.0
    %8962 = vmatprep.subr.mxu0 0.0
    %8963 = vmatpush1.msra.mxu0 0.0
    %8964 = vmatprep.subr.mxu0 0.0
    %8965 = vmatpush1.msra.mxu0 0.0
    %8966 = vmatprep.subr.mxu0 0.0
    %8967 = vmatpush1.msra.mxu0 0.0
    %8968 = vmatprep.subr.mxu0 0.0
    %8969 = vmatpush1.msra.mxu0 0.0
    %8970 = vmatprep.subr.mxu0 0.0
    %8971 = vmatpush1.msra.mxu0 0.0
    %8972 = vmatprep.subr.mxu0 0.0
    %8973 = vmatpush1.msra.mxu0 0.0
    %8974 = vmatprep.subr.mxu0 0.0
    %8975 = vmatpush1.msra.mxu0 0.0
    %8976 = vmatprep.subr.mxu0 0.0
    %8977 = vmatpush1.msra.mxu0 0.0
    %8978 = vmatprep.subr.mxu0 0.0
    %8979 = vmatpush1.msra.mxu0 0.0
    %8980 = vmatprep.subr.mxu0 0.0
    %8981 = vmatpush1.msra.mxu0 0.0
    %8982 = vmatprep.subr.mxu0 0.0
    %8983 = vmatpush1.msra.mxu0 0.0
    %8984 = vmatprep.subr.mxu0 0.0
    %8985 = vmatpush1.msra.mxu0 0.0
    %8986 = vmatprep.subr.mxu0 0.0
    %8987 = vmatpush1.msra.mxu0 0.0
    %8988 = vmatprep.subr.mxu0 0.0
    %8989 = vmatpush1.msra.mxu0 0.0
    %8990 = vmatprep.subr.mxu0 0.0
    %8991 = vmatpush1.msra.mxu0 0.0
    %8992 = vmatprep.subr.mxu0 0.0
    %8993 = vmatpush1.msra.mxu0 0.0
    %8994 = vmatprep.subr.mxu0 0.0
    %8995 = vmatpush1.msra.mxu0 0.0
    %8996 = vmatprep.subr.mxu0 0.0
    %8997 = vmatpush1.msra.mxu0 0.0
    %8998 = vmatprep.subr.mxu0 0.0
    %8999 = vmatpush1.msra.mxu0 0.0
    %9000 = vmatprep.mubr.f32.mxu0 0.0
    %v9001 = vand.u32 %v8520, 4294901760
    %9002 = vmatmul.mubr.f32.gmra.mrb[0].mxu0 %v9001
    %v9003 = vpop.f32.mrb[0].mxu0
    %v9004 = vadd.f32 %v8929, %v9003
    %v9005 = vpop.f32.mrb[0].mxu0
    %9006 = vdwg.mxu0
    %vm9007 = vcmp.gt.f32.partialorder %v7945, 0.5
    %v9008 = vsel %vm9007, -1e+30, %v9004
    %v9009 = vsel %vm1158, %v9008, -inf
    %9010 = vmax.xlane.f32.xlu0 %v9009
    %v9011 = vpop.xlane.xlu0 %9010
    %vm9012 = vcmp.eq.f32.partialorder %v9008, %v9011
    %v9013 = vsel %vm9012, %v64, 8
    %v9014 = vsel %vm1158, %v9013, 2147483647
    %v9015 = vand.u32 %v9014, 65535
    %v9016 = vshra.s32 %v9014, 16
    %v9017 = vcvt.s32.f32 %v9015
    %v9018 = vcvt.s32.f32 %v9016
    %9019 = vmin.xlane.f32.xlu0 %v9018
    %v9020 = vpop.xlane.xlu0 %9019
    %vm9021 = vcmp.eq.f32.partialorder %v9018, %v9020
    %v9022 = vsel %vm9021, %v9017, inf
    %9023 = vmin.xlane.f32.xlu0 %v9022
    %v9024 = vpop.xlane.xlu0 %9023
    %v9025 = vcvt.f32.s32 %v9024
    %v9026 = vcvt.f32.s32 %v9020
    %v9027 = vshll.u32 %v9026, 16
    %v9028 = vadd.s32 %v9027, %v9025
    %v9029 = vsub.f32 %v9008, %v9011
    %v9030 = vmul.f32 %v9029, 1.442695
    %v9031 = vpow.pop %v9030
    %v9032 = vsel %vm1158, %v9031, 0.0
    %9033 = vadd.xlane.f32.xlu0 %v9032
    %v9034 = vpop.xlane.xlu0 %9033
    %v9035 = vlog2.pop %v9034
    %v9036 = vmul.f32 %v9035, 0.6931472
    %v9037 = vsub.f32 0.0, %v9036
    %v9038 = vcvt.s32.f32 %v9028
    %vm9039 = vcmask 58424
    %9040 = vst.msk [vmem:[#allocation5] sm:$0x3] %vm9039, %v9038
    %9041 = vst.msk [vmem:[#allocation6] sm:$0x3] %vm9039, %v9037
    // Predicated region
    $region38: #{tpu_custom_call.1} parent=1 // pred_check
      _
    $region39: #{tpu_custom_call.1} parent=1 // pred_check_branch
      %9043 = sbr.rel (0) target = $region41
    $region40: #{tpu_custom_call.1} parent=1 // pred_region
      %s9045 = ssub.s32 32, 32
      %9046 = vsyncadd [#allocation4], %s9045
      %s9048 = sshll.u32 [#allocation5], 4
      %s9049 = int_to_ptr.vmem [resolvable:$true] %s9048
      %9051 = dma.vmem_to_hbm [thread:$0]  %s9049, 32, %s8, [#allocation4]
    $region41: #{tpu_custom_call.1} parent=1 // pred_fallthru
      _
    // Predicated region
    $region42: #{tpu_custom_call.1} parent=1 // pred_check
      _
    $region43: #{tpu_custom_call.1} parent=1 // pred_check_branch
      %9053 = sbr.rel (0) target = $region45
    $region44: #{tpu_custom_call.1} parent=1 // pred_region
      %s9055 = ssub.s32 32, 32
      %9056 = vsyncadd [#allocation7], %s9055
      %s9058 = sshll.u32 [#allocation6], 4
      %s9059 = int_to_ptr.vmem [resolvable:$true] %s9058
      %9061 = dma.vmem_to_hbm [thread:$0]  %s9059, 32, %s9, [#allocation7]
    $region45: #{tpu_custom_call.1} parent=1 // pred_fallthru
      _
    // Predicated region
    $region46: #{tpu_custom_call.1} parent=1 // pred_check
      _
    $region47: #{tpu_custom_call.1} parent=1 // pred_check_branch
      %9063 = sbr.rel (0) target = $region49
    $region48: #{tpu_custom_call.1} parent=1 // pred_region
      %9064 = dma.done [#allocation4], 32
    $region49: #{tpu_custom_call.1} parent=1 // pred_fallthru
      _
    // Predicated region
    $region50: #{tpu_custom_call.1} parent=1 // pred_check
      _
    $region51: #{tpu_custom_call.1} parent=1 // pred_check_branch
      %9066 = sbr.rel (0) target = $region53
    $region52: #{tpu_custom_call.1} parent=1 // pred_region
      %9067 = dma.done [#allocation7], 32
    $region53: #{tpu_custom_call.1} parent=1 // pred_fallthru
      _
    %9068 = vsyncpa [#allocation3], 1
    %9069 = vsyncpa [#allocation4], 1
    %9070 = vsyncpa [#allocation7], 1

</llo_original>
